<compile_context>
chip_gen: v6e
topology: v6e:2x2x1
jax: 0.10.0
libtpu: 0.0.40
codegen_flags: <defaults>
</compile_context>

<pallas_src>
import functools

import jax
import jax.numpy as jnp
from jax.experimental import pallas as pl
from jax.experimental.pallas import tpu as pltpu

# Rows of the im2col matrix processed per grid step.  256 is a multiple of 256
# (fills the v6e/v7x MXU M side) and small enough that the toy shapes below
# exercise the multi-tile grid path; use 512-1024 for production inputs.
_TILE_M = 256
_VMEM_LIMIT = 48 * 1024 * 1024  # explicit scoped-VMEM cap (fits v5e/v6e/v7x)

_COMPILER_PARAMS = pltpu.CompilerParams(
    dimension_semantics=("parallel",),      # M-tile axis -> megacore on v7x
    vmem_limit_bytes=_VMEM_LIMIT,
)


# ----------------------------- Pallas kernels -----------------------------

def _conv_stats_kernel(p_ref, w_ref, conv_ref, stats_ref):
    """Per-M-tile conv matmul + partial BN statistics.

    p_ref:     (tm, K)      bf16 im2col patch tile
    w_ref:     (K, C)       bf16 conv weights (constant index_map, resident)
    conv_ref:  (tm, C)      bf16 conv output tile
    stats_ref: (1, 2, C)    f32  per-tile [sum, sum_sq] over the tile rows
    """
    acc = jnp.dot(p_ref[...], w_ref[...], preferred_element_type=jnp.float32)
    conv_ref[...] = acc.astype(conv_ref.dtype)
    s1 = jnp.sum(acc, axis=0, keepdims=True)          # (1, C)
    s2 = jnp.sum(acc * acc, axis=0, keepdims=True)    # (1, C)
    stats_ref[...] = jnp.concatenate([s1, s2], axis=0)[None]


def _bn_relu_kernel(x_ref, scale_ref, shift_ref, o_ref):
    """Per-M-tile BatchNorm scale/shift + ReLU epilogue (f32 math, bf16 out)."""
    x = x_ref[...].astype(jnp.float32)
    y = jnp.maximum(x * scale_ref[...] + shift_ref[...], 0.0)
    o_ref[...] = y.astype(o_ref.dtype)


# ------------------------------- JAX glue --------------------------------

def _round_up(a, b):
    return (a + b - 1) // b * b


def _extract_patches(x, kh, kw, sh, sw, ph, pw):
    """x: (N, H, W, C) NHWC bf16 -> (N, oh, ow, kh*kw, C) (tap-major)."""
    if ph or pw:
        x = jnp.pad(x, ((0, 0), (ph, ph), (pw, pw), (0, 0)))
    _, h, w, _ = x.shape
    oh = (h - kh) // sh + 1
    ow = (w - kw) // sw + 1
    cols = []
    for i in range(kh):
        for j in range(kw):
            cols.append(x[:, i:i + (oh - 1) * sh + 1:sh,
                          j:j + (ow - 1) * sw + 1:sw, :])
    return jnp.stack(cols, axis=3), oh, ow


def basic_conv2d(x, w, gamma, beta, stride, padding, eps=1e-5):
    """BasicConv2d: conv (no bias) -> BatchNorm2d (training batch stats) -> ReLU.

    x: (N, H, W, Cin) bf16;  w: (KH, KW, Cin, Cout) f32.  Returns bf16 NHWC.
    """
    kh, kw, cin, cout = w.shape
    sh, sw = stride if isinstance(stride, tuple) else (stride, stride)
    ph, pw = padding if isinstance(padding, tuple) else (padding, padding)
    n = x.shape[0]

    patches, oh, ow = _extract_patches(x, kh, kw, sh, sw, ph, pw)
    m = n * oh * ow
    k = kh * kw * cin
    p2 = patches.reshape(m, k).astype(jnp.bfloat16)
    wm = w.reshape(k, cout).astype(jnp.bfloat16)

    # Pad M to a multiple of the tile (padded rows are zero -> they contribute
    # nothing to sum / sum-of-squares, so dividing by the real m stays exact).
    tm = min(_TILE_M, _round_up(m, 8))
    m_pad = _round_up(m, tm)
    if m_pad != m:
        p2 = jnp.pad(p2, ((0, m_pad - m), (0, 0)))
    n_tiles = m_pad // tm

    # Pass 1: tiled conv matmul + per-tile partial BN statistics.
    conv, stats = pl.pallas_call(
        _conv_stats_kernel,
        grid=(n_tiles,),
        in_specs=[
            pl.BlockSpec((tm, k), lambda i: (i, 0)),       # patch tile
            pl.BlockSpec((k, cout), lambda i: (0, 0)),     # weights: resident
        ],
        out_specs=[
            pl.BlockSpec((tm, cout), lambda i: (i, 0)),
            pl.BlockSpec((1, 2, cout), lambda i: (i, 0, 0)),
        ],
        out_shape=[
            jax.ShapeDtypeStruct((m_pad, cout), jnp.bfloat16),
            jax.ShapeDtypeStruct((n_tiles, 2, cout), jnp.float32),
        ],
        compiler_params=_COMPILER_PARAMS,
    )(p2, wm)

    # Tiny XLA glue: reduce partial sums -> BN scale / shift (training-mode
    # batch statistics, biased variance; matches torch BatchNorm2d in train()).
    total = jnp.sum(stats, axis=0)                     # (2, C)
    mean = total[0] / m
    var = jnp.maximum(total[1] / m - mean * mean, 0.0)
    scale = (gamma * jax.lax.rsqrt(var + eps)).reshape(1, cout).astype(jnp.float32)
    shift = (beta - mean * gamma * jax.lax.rsqrt(var + eps)).reshape(1, cout).astype(jnp.float32)

    # Pass 2: cheap tiled scale/shift + ReLU epilogue (bf16 in / bf16 out).
    y = pl.pallas_call(
        _bn_relu_kernel,
        grid=(n_tiles,),
        in_specs=[
            pl.BlockSpec((tm, cout), lambda i: (i, 0)),
            pl.BlockSpec((1, cout), lambda i: (0, 0)),     # scale: resident
            pl.BlockSpec((1, cout), lambda i: (0, 0)),     # shift: resident
        ],
        out_specs=pl.BlockSpec((tm, cout), lambda i: (i, 0)),
        out_shape=jax.ShapeDtypeStruct((m_pad, cout), jnp.bfloat16),
        compiler_params=_COMPILER_PARAMS,
    )(conv, scale, shift)

    return y[:m].reshape(n, oh, ow, cout)


def max_pool2d(x, k=3, s=2):
    """3x3/s2 max pool, NHWC bf16.  Single fused XLA reduce_window: one read of
    x, one write of the output, no intermediate tap tensors (per perf review).
    """
    init = jnp.array(-jnp.inf, dtype=x.dtype)
    return jax.lax.reduce_window(
        x, init, jax.lax.max,
        window_dimensions=(1, k, k, 1),
        window_strides=(1, s, s, 1),
        padding="VALID")


# ------------------------------ Stem model ------------------------------

def _init_conv(key, kh, kw, cin, cout):
    w = 0.1 * jax.random.normal(key, (kh, kw, cin, cout), jnp.float32)
    gamma = jnp.ones((cout,), jnp.float32)   # BatchNorm2d default weight
    beta = jnp.zeros((cout,), jnp.float32)   # BatchNorm2d default bias
    return {"w": w, "gamma": gamma, "beta": beta}


def init_stem_params(key, in_channels):
    keys = jax.random.split(key, 11)
    p = {}
    p["conv1"] = _init_conv(keys[0], 3, 3, in_channels, 32)
    p["conv2"] = _init_conv(keys[1], 3, 3, 32, 32)
    p["conv3"] = _init_conv(keys[2], 3, 3, 32, 64)
    p["m4r"] = _init_conv(keys[3], 3, 3, 64, 96)
    p["m5l_0"] = _init_conv(keys[4], 1, 1, 160, 64)
    p["m5l_1"] = _init_conv(keys[5], 3, 3, 64, 96)
    p["m5r_0"] = _init_conv(keys[6], 1, 1, 160, 64)
    p["m5r_1"] = _init_conv(keys[7], 1, 7, 64, 64)
    p["m5r_2"] = _init_conv(keys[8], 7, 1, 64, 64)
    p["m5r_3"] = _init_conv(keys[9], 3, 3, 64, 96)
    p["m6l"] = _init_conv(keys[10], 3, 3, 192, 192)
    return p


def stem_forward(params, x_nchw):
    # NCHW -> NHWC, bf16 activations end-to-end.
    x = jnp.transpose(x_nchw, (0, 2, 3, 1)).astype(jnp.bfloat16)

    def bc(name, xin, stride, padding):
        prm = params[name]
        return basic_conv2d(xin, prm["w"], prm["gamma"], prm["beta"],
                            stride, padding)

    x = bc("conv1", x, 2, 0)
    x = bc("conv2", x, 1, 0)
    x = bc("conv3", x, 1, 1)

    x_4l = max_pool2d(x, 3, 2)
    x_4r = bc("m4r", x, 2, 0)
    x = jnp.concatenate([x_4l, x_4r], axis=-1)      # torch.cat(dim=1) == channel

    # Lane-dense co-tiling: m5l_0 and m5r_0 are both 1x1 convs on the same
    # 160-channel input -> one 128-output-lane matmul (per-channel BN is
    # unchanged by channel concatenation), then split the channels.
    pl0, pr0 = params["m5l_0"], params["m5r_0"]
    w01 = jnp.concatenate([pl0["w"], pr0["w"]], axis=3)        # (1,1,160,128)
    g01 = jnp.concatenate([pl0["gamma"], pr0["gamma"]])
    b01 = jnp.concatenate([pl0["beta"], pr0["beta"]])
    y01 = basic_conv2d(x, w01, g01, b01, 1, 0)                 # (N, H, W, 128)
    y5l0, y5r0 = y01[..., :64], y01[..., 64:]

    x_5l = bc("m5l_1", y5l0, 1, 0)
    t = bc("m5r_1", y5r0, 1, (0, 3))
    t = bc("m5r_2", t, 1, (3, 0))
    x_5r = bc("m5r_3", t, 1, 0)
    x = jnp.concatenate([x_5l, x_5r], axis=-1)

    x_6l = bc("m6l", x, 2, 0)
    x_6r = max_pool2d(x, 3, 2)
    x = jnp.concatenate([x_6l, x_6r], axis=-1)

    # NHWC -> NCHW, f32 at the module boundary.
    return jnp.transpose(x, (0, 3, 1, 2)).astype(jnp.float32)


if __name__ == "__main__":
    key = jax.random.PRNGKey(0)
    k_x, k_p = jax.random.split(key)
    in_channels = 3
    # spatial 32 is the smallest "round" size that survives all stride-2 stages
    x = jax.random.normal(k_x, (2, in_channels, 32, 32), jnp.float32)
    params = init_stem_params(k_p, in_channels)

    out = jax.jit(functools.partial(stem_forward, params))(x)
    out = jax.block_until_ready(out)
    assert out.shape == (2, 384, 1, 1), out.shape
    assert bool(jnp.all(jnp.isfinite(out)))
    print("KERNEL_OK")
</pallas_src>

<mosaic_0001>
module attributes {stable_mosaic.version = 11 : i64} {
  func.func @_conv_stats_kernel(%arg0: i32, %arg1: memref<256x27xbf16, #tpu.memory_space<vmem>>, %arg2: memref<27x32xbf16, #tpu.memory_space<vmem>>, %arg3: memref<256x32xbf16, #tpu.memory_space<vmem>>, %arg4: memref<1x2x32xf32, #tpu.memory_space<vmem>>) attributes {dimension_semantics = [#tpu.dimension_semantics<parallel>], iteration_bounds = array<i64: 2>, scalar_prefetch = 0 : i64, scratch_operands = 0 : i64, tpu.core_type = #tpu.core_type<tc>, window_params = [{transform_indices = @transform_0, window_bounds = array<i64: 256, 27>}, {pipeline_mode = #tpu.pipeline_mode<synchronous>, transform_indices = @transform_1, window_bounds = array<i64: 27, 32>}, {transform_indices = @transform_2, window_bounds = array<i64: 256, 32>}, {transform_indices = @transform_3, window_bounds = array<i64: 1, 2, 32>}]} {
    %c0 = arith.constant 0 : index
    %c0_0 = arith.constant 0 : index
    %0 = vector.load %arg1[%c0, %c0_0] : memref<256x27xbf16, #tpu.memory_space<vmem>>, vector<256x27xbf16>
    %c0_1 = arith.constant 0 : index
    %c0_2 = arith.constant 0 : index
    %1 = vector.load %arg2[%c0_1, %c0_2] : memref<27x32xbf16, #tpu.memory_space<vmem>>, vector<27x32xbf16>
    %cst = arith.constant dense<0.000000e+00> : vector<256x32xf32>
    %2 = tpu.matmul %0, %1, %cst {dimension_numbers = #tpu.dot_dimension_numbers<[1], [0], [0], [1], [0, 0, 1, 1], [], []>} : vector<256x27xbf16>, vector<27x32xbf16>, vector<256x32xf32> -> vector<256x32xf32>
    %3 = arith.truncf %2 : vector<256x32xf32> to vector<256x32xbf16>
    %c0_3 = arith.constant 0 : index
    %c0_4 = arith.constant 0 : index
    %4 = vector.load %arg3[%c0_3, %c0_4] : memref<256x32xbf16, #tpu.memory_space<vmem>>, vector<256x32xbf16>
    tpu.vector_store %arg3[%c0_3, %c0_4], %3 {strides = array<i32>} : memref<256x32xbf16, #tpu.memory_space<vmem>>, vector<256x32xbf16>,
    %cst_5 = arith.constant dense<0.000000e+00> : vector<32xf32>
    %5 = vector.multi_reduction <add>, %2, %cst_5 [0] : vector<256x32xf32> to vector<32xf32>
    %6 = vector.shape_cast %5 : vector<32xf32> to vector<1x32xf32>
    %7 = arith.mulf %2, %2 : vector<256x32xf32>
    %cst_6 = arith.constant dense<0.000000e+00> : vector<32xf32>
    %8 = vector.multi_reduction <add>, %7, %cst_6 [0] : vector<256x32xf32> to vector<32xf32>
    %9 = vector.shape_cast %8 : vector<32xf32> to vector<1x32xf32>
    %10 = tpu.concatenate %6, %9 in 0 : vector<1x32xf32>, vector<1x32xf32> -> vector<2x32xf32>
    %11 = vector.shape_cast %10 : vector<2x32xf32> to vector<1x2x32xf32>
    %c0_7 = arith.constant 0 : index
    %c0_8 = arith.constant 0 : index
    %c0_9 = arith.constant 0 : index
    %12 = vector.load %arg4[%c0_7, %c0_8, %c0_9] : memref<1x2x32xf32, #tpu.memory_space<vmem>>, vector<1x2x32xf32>
    tpu.vector_store %arg4[%c0_7, %c0_8, %c0_9], %11 {strides = array<i32>} : memref<1x2x32xf32, #tpu.memory_space<vmem>>, vector<1x2x32xf32>,
    return
  }
  func.func @transform_0(%arg0: i32) -> (i32, i32) {
    %c0_i32 = arith.constant 0 : i32
    %c0_i32_0 = arith.constant 0 : i32
    return %arg0, %c0_i32 : i32, i32
  }
  func.func @transform_1(%arg0: i32) -> (i32, i32) {
    %c0_i32 = arith.constant 0 : i32
    %c0_i32_0 = arith.constant 0 : i32
    %c0_i32_1 = arith.constant 0 : i32
    return %c0_i32, %c0_i32_0 : i32, i32
  }
  func.func @transform_2(%arg0: i32) -> (i32, i32) {
    %c0_i32 = arith.constant 0 : i32
    %c0_i32_0 = arith.constant 0 : i32
    return %arg0, %c0_i32 : i32, i32
  }
  func.func @transform_3(%arg0: i32) -> (i32, i32, i32) {
    %c0_i32 = arith.constant 0 : i32
    %c0_i32_0 = arith.constant 0 : i32
    %c0_i32_1 = arith.constant 0 : i32
    return %arg0, %c0_i32, %c0_i32_0 : i32, i32, i32
  }
}

module attributes {stable_mosaic.version = 11 : i64} {
  func.func @_bn_relu_kernel(%arg0: i32, %arg1: memref<256x32xbf16, #tpu.memory_space<vmem>>, %arg2: memref<1x32xf32, #tpu.memory_space<vmem>>, %arg3: memref<1x32xf32, #tpu.memory_space<vmem>>, %arg4: memref<256x32xbf16, #tpu.memory_space<vmem>>) attributes {dimension_semantics = [#tpu.dimension_semantics<parallel>], iteration_bounds = array<i64: 2>, scalar_prefetch = 0 : i64, scratch_operands = 0 : i64, tpu.core_type = #tpu.core_type<tc>, window_params = [{transform_indices = @transform_0, window_bounds = array<i64: 256, 32>}, {pipeline_mode = #tpu.pipeline_mode<synchronous>, transform_indices = @transform_1, window_bounds = array<i64: 1, 32>}, {pipeline_mode = #tpu.pipeline_mode<synchronous>, transform_indices = @transform_2, window_bounds = array<i64: 1, 32>}, {transform_indices = @transform_3, window_bounds = array<i64: 256, 32>}]} {
    %c0 = arith.constant 0 : index
    %c0_0 = arith.constant 0 : index
    %0 = vector.load %arg1[%c0, %c0_0] : memref<256x32xbf16, #tpu.memory_space<vmem>>, vector<256x32xbf16>
    %1 = arith.extf %0 : vector<256x32xbf16> to vector<256x32xf32>
    %c0_1 = arith.constant 0 : index
    %c0_2 = arith.constant 0 : index
    %2 = vector.load %arg2[%c0_1, %c0_2] : memref<1x32xf32, #tpu.memory_space<vmem>>, vector<1x32xf32>
    %3 = vector.broadcast %2 : vector<1x32xf32> to vector<256x32xf32>
    %4 = arith.mulf %1, %3 : vector<256x32xf32>
    %c0_3 = arith.constant 0 : index
    %c0_4 = arith.constant 0 : index
    %5 = vector.load %arg3[%c0_3, %c0_4] : memref<1x32xf32, #tpu.memory_space<vmem>>, vector<1x32xf32>
    %6 = vector.broadcast %5 : vector<1x32xf32> to vector<256x32xf32>
    %7 = arith.addf %4, %6 : vector<256x32xf32>
    %cst = arith.constant 0.000000e+00 : f32
    %8 = vector.broadcast %cst : f32 to vector<256x32xf32>
    %9 = arith.maximumf %7, %8 : vector<256x32xf32>
    %10 = arith.truncf %9 : vector<256x32xf32> to vector<256x32xbf16>
    %c0_5 = arith.constant 0 : index
    %c0_6 = arith.constant 0 : index
    %11 = vector.load %arg4[%c0_5, %c0_6] : memref<256x32xbf16, #tpu.memory_space<vmem>>, vector<256x32xbf16>
    tpu.vector_store %arg4[%c0_5, %c0_6], %10 {strides = array<i32>} : memref<256x32xbf16, #tpu.memory_space<vmem>>, vector<256x32xbf16>,
    return
  }
  func.func @transform_0(%arg0: i32) -> (i32, i32) {
    %c0_i32 = arith.constant 0 : i32
    %c0_i32_0 = arith.constant 0 : i32
    return %arg0, %c0_i32 : i32, i32
  }
  func.func @transform_1(%arg0: i32) -> (i32, i32) {
    %c0_i32 = arith.constant 0 : i32
    %c0_i32_0 = arith.constant 0 : i32
    %c0_i32_1 = arith.constant 0 : i32
    return %c0_i32, %c0_i32_0 : i32, i32
  }
  func.func @transform_2(%arg0: i32) -> (i32, i32) {
    %c0_i32 = arith.constant 0 : i32
    %c0_i32_0 = arith.constant 0 : i32
    %c0_i32_1 = arith.constant 0 : i32
    return %c0_i32, %c0_i32_0 : i32, i32
  }
  func.func @transform_3(%arg0: i32) -> (i32, i32) {
    %c0_i32 = arith.constant 0 : i32
    %c0_i32_0 = arith.constant 0 : i32
    return %arg0, %c0_i32 : i32, i32
  }
}

module attributes {stable_mosaic.version = 11 : i64} {
  func.func @_conv_stats_kernel(%arg0: i32, %arg1: memref<256x288xbf16, #tpu.memory_space<vmem>>, %arg2: memref<288x32xbf16, #tpu.memory_space<vmem>>, %arg3: memref<256x32xbf16, #tpu.memory_space<vmem>>, %arg4: memref<1x2x32xf32, #tpu.memory_space<vmem>>) attributes {dimension_semantics = [#tpu.dimension_semantics<parallel>], iteration_bounds = array<i64: 2>, scalar_prefetch = 0 : i64, scratch_operands = 0 : i64, tpu.core_type = #tpu.core_type<tc>, window_params = [{transform_indices = @transform_0, window_bounds = array<i64: 256, 288>}, {pipeline_mode = #tpu.pipeline_mode<synchronous>, transform_indices = @transform_1, window_bounds = array<i64: 288, 32>}, {transform_indices = @transform_2, window_bounds = array<i64: 256, 32>}, {transform_indices = @transform_3, window_bounds = array<i64: 1, 2, 32>}]} {
    %c0 = arith.constant 0 : index
    %c0_0 = arith.constant 0 : index
    %0 = vector.load %arg1[%c0, %c0_0] : memref<256x288xbf16, #tpu.memory_space<vmem>>, vector<256x288xbf16>
    %c0_1 = arith.constant 0 : index
    %c0_2 = arith.constant 0 : index
    %1 = vector.load %arg2[%c0_1, %c0_2] : memref<288x32xbf16, #tpu.memory_space<vmem>>, vector<288x32xbf16>
    %cst = arith.constant dense<0.000000e+00> : vector<256x32xf32>
    %2 = tpu.matmul %0, %1, %cst {dimension_numbers = #tpu.dot_dimension_numbers<[1], [0], [0], [1], [0, 0, 1, 1], [], []>} : vector<256x288xbf16>, vector<288x32xbf16>, vector<256x32xf32> -> vector<256x32xf32>
    %3 = arith.truncf %2 : vector<256x32xf32> to vector<256x32xbf16>
    %c0_3 = arith.constant 0 : index
    %c0_4 = arith.constant 0 : index
    %4 = vector.load %arg3[%c0_3, %c0_4] : memref<256x32xbf16, #tpu.memory_space<vmem>>, vector<256x32xbf16>
    tpu.vector_store %arg3[%c0_3, %c0_4], %3 {strides = array<i32>} : memref<256x32xbf16, #tpu.memory_space<vmem>>, vector<256x32xbf16>,
    %cst_5 = arith.constant dense<0.000000e+00> : vector<32xf32>
    %5 = vector.multi_reduction <add>, %2, %cst_5 [0] : vector<256x32xf32> to vector<32xf32>
    %6 = vector.shape_cast %5 : vector<32xf32> to vector<1x32xf32>
    %7 = arith.mulf %2, %2 : vector<256x32xf32>
    %cst_6 = arith.constant dense<0.000000e+00> : vector<32xf32>
    %8 = vector.multi_reduction <add>, %7, %cst_6 [0] : vector<256x32xf32> to vector<32xf32>
    %9 = vector.shape_cast %8 : vector<32xf32> to vector<1x32xf32>
    %10 = tpu.concatenate %6, %9 in 0 : vector<1x32xf32>, vector<1x32xf32> -> vector<2x32xf32>
    %11 = vector.shape_cast %10 : vector<2x32xf32> to vector<1x2x32xf32>
    %c0_7 = arith.constant 0 : index
    %c0_8 = arith.constant 0 : index
    %c0_9 = arith.constant 0 : index
    %12 = vector.load %arg4[%c0_7, %c0_8, %c0_9] : memref<1x2x32xf32, #tpu.memory_space<vmem>>, vector<1x2x32xf32>
    tpu.vector_store %arg4[%c0_7, %c0_8, %c0_9], %11 {strides = array<i32>} : memref<1x2x32xf32, #tpu.memory_space<vmem>>, vector<1x2x32xf32>,
    return
  }
  func.func @transform_0(%arg0: i32) -> (i32, i32) {
    %c0_i32 = arith.constant 0 : i32
    %c0_i32_0 = arith.constant 0 : i32
    return %arg0, %c0_i32 : i32, i32
  }
  func.func @transform_1(%arg0: i32) -> (i32, i32) {
    %c0_i32 = arith.constant 0 : i32
    %c0_i32_0 = arith.constant 0 : i32
    %c0_i32_1 = arith.constant 0 : i32
    return %c0_i32, %c0_i32_0 : i32, i32
  }
  func.func @transform_2(%arg0: i32) -> (i32, i32) {
    %c0_i32 = arith.constant 0 : i32
    %c0_i32_0 = arith.constant 0 : i32
    return %arg0, %c0_i32 : i32, i32
  }
  func.func @transform_3(%arg0: i32) -> (i32, i32, i32) {
    %c0_i32 = arith.constant 0 : i32
    %c0_i32_0 = arith.constant 0 : i32
    %c0_i32_1 = arith.constant 0 : i32
    return %arg0, %c0_i32, %c0_i32_0 : i32, i32, i32
  }
}

module attributes {stable_mosaic.version = 11 : i64} {
  func.func @_conv_stats_kernel(%arg0: i32, %arg1: memref<256x288xbf16, #tpu.memory_space<vmem>>, %arg2: memref<288x64xbf16, #tpu.memory_space<vmem>>, %arg3: memref<256x64xbf16, #tpu.memory_space<vmem>>, %arg4: memref<1x2x64xf32, #tpu.memory_space<vmem>>) attributes {dimension_semantics = [#tpu.dimension_semantics<parallel>], iteration_bounds = array<i64: 2>, scalar_prefetch = 0 : i64, scratch_operands = 0 : i64, tpu.core_type = #tpu.core_type<tc>, window_params = [{transform_indices = @transform_0, window_bounds = array<i64: 256, 288>}, {pipeline_mode = #tpu.pipeline_mode<synchronous>, transform_indices = @transform_1, window_bounds = array<i64: 288, 64>}, {transform_indices = @transform_2, window_bounds = array<i64: 256, 64>}, {transform_indices = @transform_3, window_bounds = array<i64: 1, 2, 64>}]} {
    %c0 = arith.constant 0 : index
    %c0_0 = arith.constant 0 : index
    %0 = vector.load %arg1[%c0, %c0_0] : memref<256x288xbf16, #tpu.memory_space<vmem>>, vector<256x288xbf16>
    %c0_1 = arith.constant 0 : index
    %c0_2 = arith.constant 0 : index
    %1 = vector.load %arg2[%c0_1, %c0_2] : memref<288x64xbf16, #tpu.memory_space<vmem>>, vector<288x64xbf16>
    %cst = arith.constant dense<0.000000e+00> : vector<256x64xf32>
    %2 = tpu.matmul %0, %1, %cst {dimension_numbers = #tpu.dot_dimension_numbers<[1], [0], [0], [1], [0, 0, 1, 1], [], []>} : vector<256x288xbf16>, vector<288x64xbf16>, vector<256x64xf32> -> vector<256x64xf32>
    %3 = arith.truncf %2 : vector<256x64xf32> to vector<256x64xbf16>
    %c0_3 = arith.constant 0 : index
    %c0_4 = arith.constant 0 : index
    %4 = vector.load %arg3[%c0_3, %c0_4] : memref<256x64xbf16, #tpu.memory_space<vmem>>, vector<256x64xbf16>
    tpu.vector_store %arg3[%c0_3, %c0_4], %3 {strides = array<i32>} : memref<256x64xbf16, #tpu.memory_space<vmem>>, vector<256x64xbf16>,
    %cst_5 = arith.constant dense<0.000000e+00> : vector<64xf32>
    %5 = vector.multi_reduction <add>, %2, %cst_5 [0] : vector<256x64xf32> to vector<64xf32>
    %6 = vector.shape_cast %5 : vector<64xf32> to vector<1x64xf32>
    %7 = arith.mulf %2, %2 : vector<256x64xf32>
    %cst_6 = arith.constant dense<0.000000e+00> : vector<64xf32>
    %8 = vector.multi_reduction <add>, %7, %cst_6 [0] : vector<256x64xf32> to vector<64xf32>
    %9 = vector.shape_cast %8 : vector<64xf32> to vector<1x64xf32>
    %10 = tpu.concatenate %6, %9 in 0 : vector<1x64xf32>, vector<1x64xf32> -> vector<2x64xf32>
    %11 = vector.shape_cast %10 : vector<2x64xf32> to vector<1x2x64xf32>
    %c0_7 = arith.constant 0 : index
    %c0_8 = arith.constant 0 : index
    %c0_9 = arith.constant 0 : index
    %12 = vector.load %arg4[%c0_7, %c0_8, %c0_9] : memref<1x2x64xf32, #tpu.memory_space<vmem>>, vector<1x2x64xf32>
    tpu.vector_store %arg4[%c0_7, %c0_8, %c0_9], %11 {strides = array<i32>} : memref<1x2x64xf32, #tpu.memory_space<vmem>>, vector<1x2x64xf32>,
    return
  }
  func.func @transform_0(%arg0: i32) -> (i32, i32) {
    %c0_i32 = arith.constant 0 : i32
    %c0_i32_0 = arith.constant 0 : i32
    return %arg0, %c0_i32 : i32, i32
  }
  func.func @transform_1(%arg0: i32) -> (i32, i32) {
    %c0_i32 = arith.constant 0 : i32
    %c0_i32_0 = arith.constant 0 : i32
    %c0_i32_1 = arith.constant 0 : i32
    return %c0_i32, %c0_i32_0 : i32, i32
  }
  func.func @transform_2(%arg0: i32) -> (i32, i32) {
    %c0_i32 = arith.constant 0 : i32
    %c0_i32_0 = arith.constant 0 : i32
    return %arg0, %c0_i32 : i32, i32
  }
  func.func @transform_3(%arg0: i32) -> (i32, i32, i32) {
    %c0_i32 = arith.constant 0 : i32
    %c0_i32_0 = arith.constant 0 : i32
    %c0_i32_1 = arith.constant 0 : i32
    return %arg0, %c0_i32, %c0_i32_0 : i32, i32, i32
  }
}

module attributes {stable_mosaic.version = 11 : i64} {
  func.func @_bn_relu_kernel(%arg0: i32, %arg1: memref<256x64xbf16, #tpu.memory_space<vmem>>, %arg2: memref<1x64xf32, #tpu.memory_space<vmem>>, %arg3: memref<1x64xf32, #tpu.memory_space<vmem>>, %arg4: memref<256x64xbf16, #tpu.memory_space<vmem>>) attributes {dimension_semantics = [#tpu.dimension_semantics<parallel>], iteration_bounds = array<i64: 2>, scalar_prefetch = 0 : i64, scratch_operands = 0 : i64, tpu.core_type = #tpu.core_type<tc>, window_params = [{transform_indices = @transform_0, window_bounds = array<i64: 256, 64>}, {pipeline_mode = #tpu.pipeline_mode<synchronous>, transform_indices = @transform_1, window_bounds = array<i64: 1, 64>}, {pipeline_mode = #tpu.pipeline_mode<synchronous>, transform_indices = @transform_2, window_bounds = array<i64: 1, 64>}, {transform_indices = @transform_3, window_bounds = array<i64: 256, 64>}]} {
    %c0 = arith.constant 0 : index
    %c0_0 = arith.constant 0 : index
    %0 = vector.load %arg1[%c0, %c0_0] : memref<256x64xbf16, #tpu.memory_space<vmem>>, vector<256x64xbf16>
    %1 = arith.extf %0 : vector<256x64xbf16> to vector<256x64xf32>
    %c0_1 = arith.constant 0 : index
    %c0_2 = arith.constant 0 : index
    %2 = vector.load %arg2[%c0_1, %c0_2] : memref<1x64xf32, #tpu.memory_space<vmem>>, vector<1x64xf32>
    %3 = vector.broadcast %2 : vector<1x64xf32> to vector<256x64xf32>
    %4 = arith.mulf %1, %3 : vector<256x64xf32>
    %c0_3 = arith.constant 0 : index
    %c0_4 = arith.constant 0 : index
    %5 = vector.load %arg3[%c0_3, %c0_4] : memref<1x64xf32, #tpu.memory_space<vmem>>, vector<1x64xf32>
    %6 = vector.broadcast %5 : vector<1x64xf32> to vector<256x64xf32>
    %7 = arith.addf %4, %6 : vector<256x64xf32>
    %cst = arith.constant 0.000000e+00 : f32
    %8 = vector.broadcast %cst : f32 to vector<256x64xf32>
    %9 = arith.maximumf %7, %8 : vector<256x64xf32>
    %10 = arith.truncf %9 : vector<256x64xf32> to vector<256x64xbf16>
    %c0_5 = arith.constant 0 : index
    %c0_6 = arith.constant 0 : index
    %11 = vector.load %arg4[%c0_5, %c0_6] : memref<256x64xbf16, #tpu.memory_space<vmem>>, vector<256x64xbf16>
    tpu.vector_store %arg4[%c0_5, %c0_6], %10 {strides = array<i32>} : memref<256x64xbf16, #tpu.memory_space<vmem>>, vector<256x64xbf16>,
    return
  }
  func.func @transform_0(%arg0: i32) -> (i32, i32) {
    %c0_i32 = arith.constant 0 : i32
    %c0_i32_0 = arith.constant 0 : i32
    return %arg0, %c0_i32 : i32, i32
  }
  func.func @transform_1(%arg0: i32) -> (i32, i32) {
    %c0_i32 = arith.constant 0 : i32
    %c0_i32_0 = arith.constant 0 : i32
    %c0_i32_1 = arith.constant 0 : i32
    return %c0_i32, %c0_i32_0 : i32, i32
  }
  func.func @transform_2(%arg0: i32) -> (i32, i32) {
    %c0_i32 = arith.constant 0 : i32
    %c0_i32_0 = arith.constant 0 : i32
    %c0_i32_1 = arith.constant 0 : i32
    return %c0_i32, %c0_i32_0 : i32, i32
  }
  func.func @transform_3(%arg0: i32) -> (i32, i32) {
    %c0_i32 = arith.constant 0 : i32
    %c0_i32_0 = arith.constant 0 : i32
    return %arg0, %c0_i32 : i32, i32
  }
}

module attributes {stable_mosaic.version = 11 : i64} {
  func.func @_conv_stats_kernel(%arg0: i32, %arg1: memref<72x576xbf16, #tpu.memory_space<vmem>>, %arg2: memref<576x96xbf16, #tpu.memory_space<vmem>>, %arg3: memref<72x96xbf16, #tpu.memory_space<vmem>>, %arg4: memref<1x2x96xf32, #tpu.memory_space<vmem>>) attributes {dimension_semantics = [#tpu.dimension_semantics<parallel>], iteration_bounds = array<i64: 1>, scalar_prefetch = 0 : i64, scratch_operands = 0 : i64, tpu.core_type = #tpu.core_type<tc>, window_params = [{transform_indices = @transform_0, window_bounds = array<i64: 72, 576>}, {pipeline_mode = #tpu.pipeline_mode<synchronous>, transform_indices = @transform_1, window_bounds = array<i64: 576, 96>}, {transform_indices = @transform_2, window_bounds = array<i64: 72, 96>}, {transform_indices = @transform_3, window_bounds = array<i64: 1, 2, 96>}]} {
    %c0 = arith.constant 0 : index
    %c0_0 = arith.constant 0 : index
    %0 = vector.load %arg1[%c0, %c0_0] : memref<72x576xbf16, #tpu.memory_space<vmem>>, vector<72x576xbf16>
    %c0_1 = arith.constant 0 : index
    %c0_2 = arith.constant 0 : index
    %1 = vector.load %arg2[%c0_1, %c0_2] : memref<576x96xbf16, #tpu.memory_space<vmem>>, vector<576x96xbf16>
    %cst = arith.constant dense<0.000000e+00> : vector<72x96xf32>
    %2 = tpu.matmul %0, %1, %cst {dimension_numbers = #tpu.dot_dimension_numbers<[1], [0], [0], [1], [0, 0, 1, 1], [], []>} : vector<72x576xbf16>, vector<576x96xbf16>, vector<72x96xf32> -> vector<72x96xf32>
    %3 = arith.truncf %2 : vector<72x96xf32> to vector<72x96xbf16>
    %c0_3 = arith.constant 0 : index
    %c0_4 = arith.constant 0 : index
    %4 = vector.load %arg3[%c0_3, %c0_4] : memref<72x96xbf16, #tpu.memory_space<vmem>>, vector<72x96xbf16>
    tpu.vector_store %arg3[%c0_3, %c0_4], %3 {strides = array<i32>} : memref<72x96xbf16, #tpu.memory_space<vmem>>, vector<72x96xbf16>,
    %cst_5 = arith.constant dense<0.000000e+00> : vector<96xf32>
    %5 = vector.multi_reduction <add>, %2, %cst_5 [0] : vector<72x96xf32> to vector<96xf32>
    %6 = vector.shape_cast %5 : vector<96xf32> to vector<1x96xf32>
    %7 = arith.mulf %2, %2 : vector<72x96xf32>
    %cst_6 = arith.constant dense<0.000000e+00> : vector<96xf32>
    %8 = vector.multi_reduction <add>, %7, %cst_6 [0] : vector<72x96xf32> to vector<96xf32>
    %9 = vector.shape_cast %8 : vector<96xf32> to vector<1x96xf32>
    %10 = tpu.concatenate %6, %9 in 0 : vector<1x96xf32>, vector<1x96xf32> -> vector<2x96xf32>
    %11 = vector.shape_cast %10 : vector<2x96xf32> to vector<1x2x96xf32>
    %c0_7 = arith.constant 0 : index
    %c0_8 = arith.constant 0 : index
    %c0_9 = arith.constant 0 : index
    %12 = vector.load %arg4[%c0_7, %c0_8, %c0_9] : memref<1x2x96xf32, #tpu.memory_space<vmem>>, vector<1x2x96xf32>
    tpu.vector_store %arg4[%c0_7, %c0_8, %c0_9], %11 {strides = array<i32>} : memref<1x2x96xf32, #tpu.memory_space<vmem>>, vector<1x2x96xf32>,
    return
  }
  func.func @transform_0(%arg0: i32) -> (i32, i32) {
    %c0_i32 = arith.constant 0 : i32
    %c0_i32_0 = arith.constant 0 : i32
    return %arg0, %c0_i32 : i32, i32
  }
  func.func @transform_1(%arg0: i32) -> (i32, i32) {
    %c0_i32 = arith.constant 0 : i32
    %c0_i32_0 = arith.constant 0 : i32
    %c0_i32_1 = arith.constant 0 : i32
    return %c0_i32, %c0_i32_0 : i32, i32
  }
  func.func @transform_2(%arg0: i32) -> (i32, i32) {
    %c0_i32 = arith.constant 0 : i32
    %c0_i32_0 = arith.constant 0 : i32
    return %arg0, %c0_i32 : i32, i32
  }
  func.func @transform_3(%arg0: i32) -> (i32, i32, i32) {
    %c0_i32 = arith.constant 0 : i32
    %c0_i32_0 = arith.constant 0 : i32
    %c0_i32_1 = arith.constant 0 : i32
    return %arg0, %c0_i32, %c0_i32_0 : i32, i32, i32
  }
}

module attributes {stable_mosaic.version = 11 : i64} {
  func.func @_bn_relu_kernel(%arg0: i32, %arg1: memref<72x96xbf16, #tpu.memory_space<vmem>>, %arg2: memref<1x96xf32, #tpu.memory_space<vmem>>, %arg3: memref<1x96xf32, #tpu.memory_space<vmem>>, %arg4: memref<72x96xbf16, #tpu.memory_space<vmem>>) attributes {dimension_semantics = [#tpu.dimension_semantics<parallel>], iteration_bounds = array<i64: 1>, scalar_prefetch = 0 : i64, scratch_operands = 0 : i64, tpu.core_type = #tpu.core_type<tc>, window_params = [{transform_indices = @transform_0, window_bounds = array<i64: 72, 96>}, {pipeline_mode = #tpu.pipeline_mode<synchronous>, transform_indices = @transform_1, window_bounds = array<i64: 1, 96>}, {pipeline_mode = #tpu.pipeline_mode<synchronous>, transform_indices = @transform_2, window_bounds = array<i64: 1, 96>}, {transform_indices = @transform_3, window_bounds = array<i64: 72, 96>}]} {
    %c0 = arith.constant 0 : index
    %c0_0 = arith.constant 0 : index
    %0 = vector.load %arg1[%c0, %c0_0] : memref<72x96xbf16, #tpu.memory_space<vmem>>, vector<72x96xbf16>
    %1 = arith.extf %0 : vector<72x96xbf16> to vector<72x96xf32>
    %c0_1 = arith.constant 0 : index
    %c0_2 = arith.constant 0 : index
    %2 = vector.load %arg2[%c0_1, %c0_2] : memref<1x96xf32, #tpu.memory_space<vmem>>, vector<1x96xf32>
    %3 = vector.broadcast %2 : vector<1x96xf32> to vector<72x96xf32>
    %4 = arith.mulf %1, %3 : vector<72x96xf32>
    %c0_3 = arith.constant 0 : index
    %c0_4 = arith.constant 0 : index
    %5 = vector.load %arg3[%c0_3, %c0_4] : memref<1x96xf32, #tpu.memory_space<vmem>>, vector<1x96xf32>
    %6 = vector.broadcast %5 : vector<1x96xf32> to vector<72x96xf32>
    %7 = arith.addf %4, %6 : vector<72x96xf32>
    %cst = arith.constant 0.000000e+00 : f32
    %8 = vector.broadcast %cst : f32 to vector<72x96xf32>
    %9 = arith.maximumf %7, %8 : vector<72x96xf32>
    %10 = arith.truncf %9 : vector<72x96xf32> to vector<72x96xbf16>
    %c0_5 = arith.constant 0 : index
    %c0_6 = arith.constant 0 : index
    %11 = vector.load %arg4[%c0_5, %c0_6] : memref<72x96xbf16, #tpu.memory_space<vmem>>, vector<72x96xbf16>
    tpu.vector_store %arg4[%c0_5, %c0_6], %10 {strides = array<i32>} : memref<72x96xbf16, #tpu.memory_space<vmem>>, vector<72x96xbf16>,
    return
  }
  func.func @transform_0(%arg0: i32) -> (i32, i32) {
    %c0_i32 = arith.constant 0 : i32
    %c0_i32_0 = arith.constant 0 : i32
    return %arg0, %c0_i32 : i32, i32
  }
  func.func @transform_1(%arg0: i32) -> (i32, i32) {
    %c0_i32 = arith.constant 0 : i32
    %c0_i32_0 = arith.constant 0 : i32
    %c0_i32_1 = arith.constant 0 : i32
    return %c0_i32, %c0_i32_0 : i32, i32
  }
  func.func @transform_2(%arg0: i32) -> (i32, i32) {
    %c0_i32 = arith.constant 0 : i32
    %c0_i32_0 = arith.constant 0 : i32
    %c0_i32_1 = arith.constant 0 : i32
    return %c0_i32, %c0_i32_0 : i32, i32
  }
  func.func @transform_3(%arg0: i32) -> (i32, i32) {
    %c0_i32 = arith.constant 0 : i32
    %c0_i32_0 = arith.constant 0 : i32
    return %arg0, %c0_i32 : i32, i32
  }
}

module attributes {stable_mosaic.version = 11 : i64} {
  func.func @_conv_stats_kernel(%arg0: i32, %arg1: memref<72x160xbf16, #tpu.memory_space<vmem>>, %arg2: memref<160x128xbf16, #tpu.memory_space<vmem>>, %arg3: memref<72x128xbf16, #tpu.memory_space<vmem>>, %arg4: memref<1x2x128xf32, #tpu.memory_space<vmem>>) attributes {dimension_semantics = [#tpu.dimension_semantics<parallel>], iteration_bounds = array<i64: 1>, scalar_prefetch = 0 : i64, scratch_operands = 0 : i64, tpu.core_type = #tpu.core_type<tc>, window_params = [{transform_indices = @transform_0, window_bounds = array<i64: 72, 160>}, {pipeline_mode = #tpu.pipeline_mode<synchronous>, transform_indices = @transform_1, window_bounds = array<i64: 160, 128>}, {transform_indices = @transform_2, window_bounds = array<i64: 72, 128>}, {transform_indices = @transform_3, window_bounds = array<i64: 1, 2, 128>}]} {
    %c0 = arith.constant 0 : index
    %c0_0 = arith.constant 0 : index
    %0 = vector.load %arg1[%c0, %c0_0] : memref<72x160xbf16, #tpu.memory_space<vmem>>, vector<72x160xbf16>
    %c0_1 = arith.constant 0 : index
    %c0_2 = arith.constant 0 : index
    %1 = vector.load %arg2[%c0_1, %c0_2] : memref<160x128xbf16, #tpu.memory_space<vmem>>, vector<160x128xbf16>
    %cst = arith.constant dense<0.000000e+00> : vector<72x128xf32>
    %2 = tpu.matmul %0, %1, %cst {dimension_numbers = #tpu.dot_dimension_numbers<[1], [0], [0], [1], [0, 0, 1, 1], [], []>} : vector<72x160xbf16>, vector<160x128xbf16>, vector<72x128xf32> -> vector<72x128xf32>
    %3 = arith.truncf %2 : vector<72x128xf32> to vector<72x128xbf16>
    %c0_3 = arith.constant 0 : index
    %c0_4 = arith.constant 0 : index
    %4 = vector.load %arg3[%c0_3, %c0_4] : memref<72x128xbf16, #tpu.memory_space<vmem>>, vector<72x128xbf16>
    tpu.vector_store %arg3[%c0_3, %c0_4], %3 {strides = array<i32>} : memref<72x128xbf16, #tpu.memory_space<vmem>>, vector<72x128xbf16>,
    %cst_5 = arith.constant dense<0.000000e+00> : vector<128xf32>
    %5 = vector.multi_reduction <add>, %2, %cst_5 [0] : vector<72x128xf32> to vector<128xf32>
    %6 = vector.shape_cast %5 : vector<128xf32> to vector<1x128xf32>
    %7 = arith.mulf %2, %2 : vector<72x128xf32>
    %cst_6 = arith.constant dense<0.000000e+00> : vector<128xf32>
    %8 = vector.multi_reduction <add>, %7, %cst_6 [0] : vector<72x128xf32> to vector<128xf32>
    %9 = vector.shape_cast %8 : vector<128xf32> to vector<1x128xf32>
    %10 = tpu.concatenate %6, %9 in 0 : vector<1x128xf32>, vector<1x128xf32> -> vector<2x128xf32>
    %11 = vector.shape_cast %10 : vector<2x128xf32> to vector<1x2x128xf32>
    %c0_7 = arith.constant 0 : index
    %c0_8 = arith.constant 0 : index
    %c0_9 = arith.constant 0 : index
    %12 = vector.load %arg4[%c0_7, %c0_8, %c0_9] : memref<1x2x128xf32, #tpu.memory_space<vmem>>, vector<1x2x128xf32>
    tpu.vector_store %arg4[%c0_7, %c0_8, %c0_9], %11 {strides = array<i32>} : memref<1x2x128xf32, #tpu.memory_space<vmem>>, vector<1x2x128xf32>,
    return
  }
  func.func @transform_0(%arg0: i32) -> (i32, i32) {
    %c0_i32 = arith.constant 0 : i32
    %c0_i32_0 = arith.constant 0 : i32
    return %arg0, %c0_i32 : i32, i32
  }
  func.func @transform_1(%arg0: i32) -> (i32, i32) {
    %c0_i32 = arith.constant 0 : i32
    %c0_i32_0 = arith.constant 0 : i32
    %c0_i32_1 = arith.constant 0 : i32
    return %c0_i32, %c0_i32_0 : i32, i32
  }
  func.func @transform_2(%arg0: i32) -> (i32, i32) {
    %c0_i32 = arith.constant 0 : i32
    %c0_i32_0 = arith.constant 0 : i32
    return %arg0, %c0_i32 : i32, i32
  }
  func.func @transform_3(%arg0: i32) -> (i32, i32, i32) {
    %c0_i32 = arith.constant 0 : i32
    %c0_i32_0 = arith.constant 0 : i32
    %c0_i32_1 = arith.constant 0 : i32
    return %arg0, %c0_i32, %c0_i32_0 : i32, i32, i32
  }
}

module attributes {stable_mosaic.version = 11 : i64} {
  func.func @_bn_relu_kernel(%arg0: i32, %arg1: memref<72x128xbf16, #tpu.memory_space<vmem>>, %arg2: memref<1x128xf32, #tpu.memory_space<vmem>>, %arg3: memref<1x128xf32, #tpu.memory_space<vmem>>, %arg4: memref<72x128xbf16, #tpu.memory_space<vmem>>) attributes {dimension_semantics = [#tpu.dimension_semantics<parallel>], iteration_bounds = array<i64: 1>, scalar_prefetch = 0 : i64, scratch_operands = 0 : i64, tpu.core_type = #tpu.core_type<tc>, window_params = [{transform_indices = @transform_0, window_bounds = array<i64: 72, 128>}, {pipeline_mode = #tpu.pipeline_mode<synchronous>, transform_indices = @transform_1, window_bounds = array<i64: 1, 128>}, {pipeline_mode = #tpu.pipeline_mode<synchronous>, transform_indices = @transform_2, window_bounds = array<i64: 1, 128>}, {transform_indices = @transform_3, window_bounds = array<i64: 72, 128>}]} {
    %c0 = arith.constant 0 : index
    %c0_0 = arith.constant 0 : index
    %0 = vector.load %arg1[%c0, %c0_0] : memref<72x128xbf16, #tpu.memory_space<vmem>>, vector<72x128xbf16>
    %1 = arith.extf %0 : vector<72x128xbf16> to vector<72x128xf32>
    %c0_1 = arith.constant 0 : index
    %c0_2 = arith.constant 0 : index
    %2 = vector.load %arg2[%c0_1, %c0_2] : memref<1x128xf32, #tpu.memory_space<vmem>>, vector<1x128xf32>
    %3 = vector.broadcast %2 : vector<1x128xf32> to vector<72x128xf32>
    %4 = arith.mulf %1, %3 : vector<72x128xf32>
    %c0_3 = arith.constant 0 : index
    %c0_4 = arith.constant 0 : index
    %5 = vector.load %arg3[%c0_3, %c0_4] : memref<1x128xf32, #tpu.memory_space<vmem>>, vector<1x128xf32>
    %6 = vector.broadcast %5 : vector<1x128xf32> to vector<72x128xf32>
    %7 = arith.addf %4, %6 : vector<72x128xf32>
    %cst = arith.constant 0.000000e+00 : f32
    %8 = vector.broadcast %cst : f32 to vector<72x128xf32>
    %9 = arith.maximumf %7, %8 : vector<72x128xf32>
    %10 = arith.truncf %9 : vector<72x128xf32> to vector<72x128xbf16>
    %c0_5 = arith.constant 0 : index
    %c0_6 = arith.constant 0 : index
    %11 = vector.load %arg4[%c0_5, %c0_6] : memref<72x128xbf16, #tpu.memory_space<vmem>>, vector<72x128xbf16>
    tpu.vector_store %arg4[%c0_5, %c0_6], %10 {strides = array<i32>} : memref<72x128xbf16, #tpu.memory_space<vmem>>, vector<72x128xbf16>,
    return
  }
  func.func @transform_0(%arg0: i32) -> (i32, i32) {
    %c0_i32 = arith.constant 0 : i32
    %c0_i32_0 = arith.constant 0 : i32
    return %arg0, %c0_i32 : i32, i32
  }
  func.func @transform_1(%arg0: i32) -> (i32, i32) {
    %c0_i32 = arith.constant 0 : i32
    %c0_i32_0 = arith.constant 0 : i32
    %c0_i32_1 = arith.constant 0 : i32
    return %c0_i32, %c0_i32_0 : i32, i32
  }
  func.func @transform_2(%arg0: i32) -> (i32, i32) {
    %c0_i32 = arith.constant 0 : i32
    %c0_i32_0 = arith.constant 0 : i32
    %c0_i32_1 = arith.constant 0 : i32
    return %c0_i32, %c0_i32_0 : i32, i32
  }
  func.func @transform_3(%arg0: i32) -> (i32, i32) {
    %c0_i32 = arith.constant 0 : i32
    %c0_i32_0 = arith.constant 0 : i32
    return %arg0, %c0_i32 : i32, i32
  }
}

module attributes {stable_mosaic.version = 11 : i64} {
  func.func @_conv_stats_kernel(%arg0: i32, %arg1: memref<32x576xbf16, #tpu.memory_space<vmem>>, %arg2: memref<576x96xbf16, #tpu.memory_space<vmem>>, %arg3: memref<32x96xbf16, #tpu.memory_space<vmem>>, %arg4: memref<1x2x96xf32, #tpu.memory_space<vmem>>) attributes {dimension_semantics = [#tpu.dimension_semantics<parallel>], iteration_bounds = array<i64: 1>, scalar_prefetch = 0 : i64, scratch_operands = 0 : i64, tpu.core_type = #tpu.core_type<tc>, window_params = [{transform_indices = @transform_0, window_bounds = array<i64: 32, 576>}, {pipeline_mode = #tpu.pipeline_mode<synchronous>, transform_indices = @transform_1, window_bounds = array<i64: 576, 96>}, {transform_indices = @transform_2, window_bounds = array<i64: 32, 96>}, {transform_indices = @transform_3, window_bounds = array<i64: 1, 2, 96>}]} {
    %c0 = arith.constant 0 : index
    %c0_0 = arith.constant 0 : index
    %0 = vector.load %arg1[%c0, %c0_0] : memref<32x576xbf16, #tpu.memory_space<vmem>>, vector<32x576xbf16>
    %c0_1 = arith.constant 0 : index
    %c0_2 = arith.constant 0 : index
    %1 = vector.load %arg2[%c0_1, %c0_2] : memref<576x96xbf16, #tpu.memory_space<vmem>>, vector<576x96xbf16>
    %cst = arith.constant dense<0.000000e+00> : vector<32x96xf32>
    %2 = tpu.matmul %0, %1, %cst {dimension_numbers = #tpu.dot_dimension_numbers<[1], [0], [0], [1], [0, 0, 1, 1], [], []>} : vector<32x576xbf16>, vector<576x96xbf16>, vector<32x96xf32> -> vector<32x96xf32>
    %3 = arith.truncf %2 : vector<32x96xf32> to vector<32x96xbf16>
    %c0_3 = arith.constant 0 : index
    %c0_4 = arith.constant 0 : index
    %4 = vector.load %arg3[%c0_3, %c0_4] : memref<32x96xbf16, #tpu.memory_space<vmem>>, vector<32x96xbf16>
    tpu.vector_store %arg3[%c0_3, %c0_4], %3 {strides = array<i32>} : memref<32x96xbf16, #tpu.memory_space<vmem>>, vector<32x96xbf16>,
    %cst_5 = arith.constant dense<0.000000e+00> : vector<96xf32>
    %5 = vector.multi_reduction <add>, %2, %cst_5 [0] : vector<32x96xf32> to vector<96xf32>
    %6 = vector.shape_cast %5 : vector<96xf32> to vector<1x96xf32>
    %7 = arith.mulf %2, %2 : vector<32x96xf32>
    %cst_6 = arith.constant dense<0.000000e+00> : vector<96xf32>
    %8 = vector.multi_reduction <add>, %7, %cst_6 [0] : vector<32x96xf32> to vector<96xf32>
    %9 = vector.shape_cast %8 : vector<96xf32> to vector<1x96xf32>
    %10 = tpu.concatenate %6, %9 in 0 : vector<1x96xf32>, vector<1x96xf32> -> vector<2x96xf32>
    %11 = vector.shape_cast %10 : vector<2x96xf32> to vector<1x2x96xf32>
    %c0_7 = arith.constant 0 : index
    %c0_8 = arith.constant 0 : index
    %c0_9 = arith.constant 0 : index
    %12 = vector.load %arg4[%c0_7, %c0_8, %c0_9] : memref<1x2x96xf32, #tpu.memory_space<vmem>>, vector<1x2x96xf32>
    tpu.vector_store %arg4[%c0_7, %c0_8, %c0_9], %11 {strides = array<i32>} : memref<1x2x96xf32, #tpu.memory_space<vmem>>, vector<1x2x96xf32>,
    return
  }
  func.func @transform_0(%arg0: i32) -> (i32, i32) {
    %c0_i32 = arith.constant 0 : i32
    %c0_i32_0 = arith.constant 0 : i32
    return %arg0, %c0_i32 : i32, i32
  }
  func.func @transform_1(%arg0: i32) -> (i32, i32) {
    %c0_i32 = arith.constant 0 : i32
    %c0_i32_0 = arith.constant 0 : i32
    %c0_i32_1 = arith.constant 0 : i32
    return %c0_i32, %c0_i32_0 : i32, i32
  }
  func.func @transform_2(%arg0: i32) -> (i32, i32) {
    %c0_i32 = arith.constant 0 : i32
    %c0_i32_0 = arith.constant 0 : i32
    return %arg0, %c0_i32 : i32, i32
  }
  func.func @transform_3(%arg0: i32) -> (i32, i32, i32) {
    %c0_i32 = arith.constant 0 : i32
    %c0_i32_0 = arith.constant 0 : i32
    %c0_i32_1 = arith.constant 0 : i32
    return %arg0, %c0_i32, %c0_i32_0 : i32, i32, i32
  }
}

module attributes {stable_mosaic.version = 11 : i64} {
  func.func @_bn_relu_kernel(%arg0: i32, %arg1: memref<32x96xbf16, #tpu.memory_space<vmem>>, %arg2: memref<1x96xf32, #tpu.memory_space<vmem>>, %arg3: memref<1x96xf32, #tpu.memory_space<vmem>>, %arg4: memref<32x96xbf16, #tpu.memory_space<vmem>>) attributes {dimension_semantics = [#tpu.dimension_semantics<parallel>], iteration_bounds = array<i64: 1>, scalar_prefetch = 0 : i64, scratch_operands = 0 : i64, tpu.core_type = #tpu.core_type<tc>, window_params = [{transform_indices = @transform_0, window_bounds = array<i64: 32, 96>}, {pipeline_mode = #tpu.pipeline_mode<synchronous>, transform_indices = @transform_1, window_bounds = array<i64: 1, 96>}, {pipeline_mode = #tpu.pipeline_mode<synchronous>, transform_indices = @transform_2, window_bounds = array<i64: 1, 96>}, {transform_indices = @transform_3, window_bounds = array<i64: 32, 96>}]} {
    %c0 = arith.constant 0 : index
    %c0_0 = arith.constant 0 : index
    %0 = vector.load %arg1[%c0, %c0_0] : memref<32x96xbf16, #tpu.memory_space<vmem>>, vector<32x96xbf16>
    %1 = arith.extf %0 : vector<32x96xbf16> to vector<32x96xf32>
    %c0_1 = arith.constant 0 : index
    %c0_2 = arith.constant 0 : index
    %2 = vector.load %arg2[%c0_1, %c0_2] : memref<1x96xf32, #tpu.memory_space<vmem>>, vector<1x96xf32>
    %3 = vector.broadcast %2 : vector<1x96xf32> to vector<32x96xf32>
    %4 = arith.mulf %1, %3 : vector<32x96xf32>
    %c0_3 = arith.constant 0 : index
    %c0_4 = arith.constant 0 : index
    %5 = vector.load %arg3[%c0_3, %c0_4] : memref<1x96xf32, #tpu.memory_space<vmem>>, vector<1x96xf32>
    %6 = vector.broadcast %5 : vector<1x96xf32> to vector<32x96xf32>
    %7 = arith.addf %4, %6 : vector<32x96xf32>
    %cst = arith.constant 0.000000e+00 : f32
    %8 = vector.broadcast %cst : f32 to vector<32x96xf32>
    %9 = arith.maximumf %7, %8 : vector<32x96xf32>
    %10 = arith.truncf %9 : vector<32x96xf32> to vector<32x96xbf16>
    %c0_5 = arith.constant 0 : index
    %c0_6 = arith.constant 0 : index
    %11 = vector.load %arg4[%c0_5, %c0_6] : memref<32x96xbf16, #tpu.memory_space<vmem>>, vector<32x96xbf16>
    tpu.vector_store %arg4[%c0_5, %c0_6], %10 {strides = array<i32>} : memref<32x96xbf16, #tpu.memory_space<vmem>>, vector<32x96xbf16>,
    return
  }
  func.func @transform_0(%arg0: i32) -> (i32, i32) {
    %c0_i32 = arith.constant 0 : i32
    %c0_i32_0 = arith.constant 0 : i32
    return %arg0, %c0_i32 : i32, i32
  }
  func.func @transform_1(%arg0: i32) -> (i32, i32) {
    %c0_i32 = arith.constant 0 : i32
    %c0_i32_0 = arith.constant 0 : i32
    %c0_i32_1 = arith.constant 0 : i32
    return %c0_i32, %c0_i32_0 : i32, i32
  }
  func.func @transform_2(%arg0: i32) -> (i32, i32) {
    %c0_i32 = arith.constant 0 : i32
    %c0_i32_0 = arith.constant 0 : i32
    %c0_i32_1 = arith.constant 0 : i32
    return %c0_i32, %c0_i32_0 : i32, i32
  }
  func.func @transform_3(%arg0: i32) -> (i32, i32) {
    %c0_i32 = arith.constant 0 : i32
    %c0_i32_0 = arith.constant 0 : i32
    return %arg0, %c0_i32 : i32, i32
  }
}

module attributes {stable_mosaic.version = 11 : i64} {
  func.func @_conv_stats_kernel(%arg0: i32, %arg1: memref<72x448xbf16, #tpu.memory_space<vmem>>, %arg2: memref<448x64xbf16, #tpu.memory_space<vmem>>, %arg3: memref<72x64xbf16, #tpu.memory_space<vmem>>, %arg4: memref<1x2x64xf32, #tpu.memory_space<vmem>>) attributes {dimension_semantics = [#tpu.dimension_semantics<parallel>], iteration_bounds = array<i64: 1>, scalar_prefetch = 0 : i64, scratch_operands = 0 : i64, tpu.core_type = #tpu.core_type<tc>, window_params = [{transform_indices = @transform_0, window_bounds = array<i64: 72, 448>}, {pipeline_mode = #tpu.pipeline_mode<synchronous>, transform_indices = @transform_1, window_bounds = array<i64: 448, 64>}, {transform_indices = @transform_2, window_bounds = array<i64: 72, 64>}, {transform_indices = @transform_3, window_bounds = array<i64: 1, 2, 64>}]} {
    %c0 = arith.constant 0 : index
    %c0_0 = arith.constant 0 : index
    %0 = vector.load %arg1[%c0, %c0_0] : memref<72x448xbf16, #tpu.memory_space<vmem>>, vector<72x448xbf16>
    %c0_1 = arith.constant 0 : index
    %c0_2 = arith.constant 0 : index
    %1 = vector.load %arg2[%c0_1, %c0_2] : memref<448x64xbf16, #tpu.memory_space<vmem>>, vector<448x64xbf16>
    %cst = arith.constant dense<0.000000e+00> : vector<72x64xf32>
    %2 = tpu.matmul %0, %1, %cst {dimension_numbers = #tpu.dot_dimension_numbers<[1], [0], [0], [1], [0, 0, 1, 1], [], []>} : vector<72x448xbf16>, vector<448x64xbf16>, vector<72x64xf32> -> vector<72x64xf32>
    %3 = arith.truncf %2 : vector<72x64xf32> to vector<72x64xbf16>
    %c0_3 = arith.constant 0 : index
    %c0_4 = arith.constant 0 : index
    %4 = vector.load %arg3[%c0_3, %c0_4] : memref<72x64xbf16, #tpu.memory_space<vmem>>, vector<72x64xbf16>
    tpu.vector_store %arg3[%c0_3, %c0_4], %3 {strides = array<i32>} : memref<72x64xbf16, #tpu.memory_space<vmem>>, vector<72x64xbf16>,
    %cst_5 = arith.constant dense<0.000000e+00> : vector<64xf32>
    %5 = vector.multi_reduction <add>, %2, %cst_5 [0] : vector<72x64xf32> to vector<64xf32>
    %6 = vector.shape_cast %5 : vector<64xf32> to vector<1x64xf32>
    %7 = arith.mulf %2, %2 : vector<72x64xf32>
    %cst_6 = arith.constant dense<0.000000e+00> : vector<64xf32>
    %8 = vector.multi_reduction <add>, %7, %cst_6 [0] : vector<72x64xf32> to vector<64xf32>
    %9 = vector.shape_cast %8 : vector<64xf32> to vector<1x64xf32>
    %10 = tpu.concatenate %6, %9 in 0 : vector<1x64xf32>, vector<1x64xf32> -> vector<2x64xf32>
    %11 = vector.shape_cast %10 : vector<2x64xf32> to vector<1x2x64xf32>
    %c0_7 = arith.constant 0 : index
    %c0_8 = arith.constant 0 : index
    %c0_9 = arith.constant 0 : index
    %12 = vector.load %arg4[%c0_7, %c0_8, %c0_9] : memref<1x2x64xf32, #tpu.memory_space<vmem>>, vector<1x2x64xf32>
    tpu.vector_store %arg4[%c0_7, %c0_8, %c0_9], %11 {strides = array<i32>} : memref<1x2x64xf32, #tpu.memory_space<vmem>>, vector<1x2x64xf32>,
    return
  }
  func.func @transform_0(%arg0: i32) -> (i32, i32) {
    %c0_i32 = arith.constant 0 : i32
    %c0_i32_0 = arith.constant 0 : i32
    return %arg0, %c0_i32 : i32, i32
  }
  func.func @transform_1(%arg0: i32) -> (i32, i32) {
    %c0_i32 = arith.constant 0 : i32
    %c0_i32_0 = arith.constant 0 : i32
    %c0_i32_1 = arith.constant 0 : i32
    return %c0_i32, %c0_i32_0 : i32, i32
  }
  func.func @transform_2(%arg0: i32) -> (i32, i32) {
    %c0_i32 = arith.constant 0 : i32
    %c0_i32_0 = arith.constant 0 : i32
    return %arg0, %c0_i32 : i32, i32
  }
  func.func @transform_3(%arg0: i32) -> (i32, i32, i32) {
    %c0_i32 = arith.constant 0 : i32
    %c0_i32_0 = arith.constant 0 : i32
    %c0_i32_1 = arith.constant 0 : i32
    return %arg0, %c0_i32, %c0_i32_0 : i32, i32, i32
  }
}

module attributes {stable_mosaic.version = 11 : i64} {
  func.func @_bn_relu_kernel(%arg0: i32, %arg1: memref<72x64xbf16, #tpu.memory_space<vmem>>, %arg2: memref<1x64xf32, #tpu.memory_space<vmem>>, %arg3: memref<1x64xf32, #tpu.memory_space<vmem>>, %arg4: memref<72x64xbf16, #tpu.memory_space<vmem>>) attributes {dimension_semantics = [#tpu.dimension_semantics<parallel>], iteration_bounds = array<i64: 1>, scalar_prefetch = 0 : i64, scratch_operands = 0 : i64, tpu.core_type = #tpu.core_type<tc>, window_params = [{transform_indices = @transform_0, window_bounds = array<i64: 72, 64>}, {pipeline_mode = #tpu.pipeline_mode<synchronous>, transform_indices = @transform_1, window_bounds = array<i64: 1, 64>}, {pipeline_mode = #tpu.pipeline_mode<synchronous>, transform_indices = @transform_2, window_bounds = array<i64: 1, 64>}, {transform_indices = @transform_3, window_bounds = array<i64: 72, 64>}]} {
    %c0 = arith.constant 0 : index
    %c0_0 = arith.constant 0 : index
    %0 = vector.load %arg1[%c0, %c0_0] : memref<72x64xbf16, #tpu.memory_space<vmem>>, vector<72x64xbf16>
    %1 = arith.extf %0 : vector<72x64xbf16> to vector<72x64xf32>
    %c0_1 = arith.constant 0 : index
    %c0_2 = arith.constant 0 : index
    %2 = vector.load %arg2[%c0_1, %c0_2] : memref<1x64xf32, #tpu.memory_space<vmem>>, vector<1x64xf32>
    %3 = vector.broadcast %2 : vector<1x64xf32> to vector<72x64xf32>
    %4 = arith.mulf %1, %3 : vector<72x64xf32>
    %c0_3 = arith.constant 0 : index
    %c0_4 = arith.constant 0 : index
    %5 = vector.load %arg3[%c0_3, %c0_4] : memref<1x64xf32, #tpu.memory_space<vmem>>, vector<1x64xf32>
    %6 = vector.broadcast %5 : vector<1x64xf32> to vector<72x64xf32>
    %7 = arith.addf %4, %6 : vector<72x64xf32>
    %cst = arith.constant 0.000000e+00 : f32
    %8 = vector.broadcast %cst : f32 to vector<72x64xf32>
    %9 = arith.maximumf %7, %8 : vector<72x64xf32>
    %10 = arith.truncf %9 : vector<72x64xf32> to vector<72x64xbf16>
    %c0_5 = arith.constant 0 : index
    %c0_6 = arith.constant 0 : index
    %11 = vector.load %arg4[%c0_5, %c0_6] : memref<72x64xbf16, #tpu.memory_space<vmem>>, vector<72x64xbf16>
    tpu.vector_store %arg4[%c0_5, %c0_6], %10 {strides = array<i32>} : memref<72x64xbf16, #tpu.memory_space<vmem>>, vector<72x64xbf16>,
    return
  }
  func.func @transform_0(%arg0: i32) -> (i32, i32) {
    %c0_i32 = arith.constant 0 : i32
    %c0_i32_0 = arith.constant 0 : i32
    return %arg0, %c0_i32 : i32, i32
  }
  func.func @transform_1(%arg0: i32) -> (i32, i32) {
    %c0_i32 = arith.constant 0 : i32
    %c0_i32_0 = arith.constant 0 : i32
    %c0_i32_1 = arith.constant 0 : i32
    return %c0_i32, %c0_i32_0 : i32, i32
  }
  func.func @transform_2(%arg0: i32) -> (i32, i32) {
    %c0_i32 = arith.constant 0 : i32
    %c0_i32_0 = arith.constant 0 : i32
    %c0_i32_1 = arith.constant 0 : i32
    return %c0_i32, %c0_i32_0 : i32, i32
  }
  func.func @transform_3(%arg0: i32) -> (i32, i32) {
    %c0_i32 = arith.constant 0 : i32
    %c0_i32_0 = arith.constant 0 : i32
    return %arg0, %c0_i32 : i32, i32
  }
}

module attributes {stable_mosaic.version = 11 : i64} {
  func.func @_bn_relu_kernel(%arg0: i32, %arg1: memref<8x192xbf16, #tpu.memory_space<vmem>>, %arg2: memref<1x192xf32, #tpu.memory_space<vmem>>, %arg3: memref<1x192xf32, #tpu.memory_space<vmem>>, %arg4: memref<8x192xbf16, #tpu.memory_space<vmem>>) attributes {dimension_semantics = [#tpu.dimension_semantics<parallel>], iteration_bounds = array<i64: 1>, scalar_prefetch = 0 : i64, scratch_operands = 0 : i64, tpu.core_type = #tpu.core_type<tc>, window_params = [{transform_indices = @transform_0, window_bounds = array<i64: 8, 192>}, {pipeline_mode = #tpu.pipeline_mode<synchronous>, transform_indices = @transform_1, window_bounds = array<i64: 1, 192>}, {pipeline_mode = #tpu.pipeline_mode<synchronous>, transform_indices = @transform_2, window_bounds = array<i64: 1, 192>}, {transform_indices = @transform_3, window_bounds = array<i64: 8, 192>}]} {
    %c0 = arith.constant 0 : index
    %c0_0 = arith.constant 0 : index
    %0 = vector.load %arg1[%c0, %c0_0] : memref<8x192xbf16, #tpu.memory_space<vmem>>, vector<8x192xbf16>
    %1 = arith.extf %0 : vector<8x192xbf16> to vector<8x192xf32>
    %c0_1 = arith.constant 0 : index
    %c0_2 = arith.constant 0 : index
    %2 = vector.load %arg2[%c0_1, %c0_2] : memref<1x192xf32, #tpu.memory_space<vmem>>, vector<1x192xf32>
    %3 = vector.broadcast %2 : vector<1x192xf32> to vector<8x192xf32>
    %4 = arith.mulf %1, %3 : vector<8x192xf32>
    %c0_3 = arith.constant 0 : index
    %c0_4 = arith.constant 0 : index
    %5 = vector.load %arg3[%c0_3, %c0_4] : memref<1x192xf32, #tpu.memory_space<vmem>>, vector<1x192xf32>
    %6 = vector.broadcast %5 : vector<1x192xf32> to vector<8x192xf32>
    %7 = arith.addf %4, %6 : vector<8x192xf32>
    %cst = arith.constant 0.000000e+00 : f32
    %8 = vector.broadcast %cst : f32 to vector<8x192xf32>
    %9 = arith.maximumf %7, %8 : vector<8x192xf32>
    %10 = arith.truncf %9 : vector<8x192xf32> to vector<8x192xbf16>
    %c0_5 = arith.constant 0 : index
    %c0_6 = arith.constant 0 : index
    %11 = vector.load %arg4[%c0_5, %c0_6] : memref<8x192xbf16, #tpu.memory_space<vmem>>, vector<8x192xbf16>
    tpu.vector_store %arg4[%c0_5, %c0_6], %10 {strides = array<i32>} : memref<8x192xbf16, #tpu.memory_space<vmem>>, vector<8x192xbf16>,
    return
  }
  func.func @transform_0(%arg0: i32) -> (i32, i32) {
    %c0_i32 = arith.constant 0 : i32
    %c0_i32_0 = arith.constant 0 : i32
    return %arg0, %c0_i32 : i32, i32
  }
  func.func @transform_1(%arg0: i32) -> (i32, i32) {
    %c0_i32 = arith.constant 0 : i32
    %c0_i32_0 = arith.constant 0 : i32
    %c0_i32_1 = arith.constant 0 : i32
    return %c0_i32, %c0_i32_0 : i32, i32
  }
  func.func @transform_2(%arg0: i32) -> (i32, i32) {
    %c0_i32 = arith.constant 0 : i32
    %c0_i32_0 = arith.constant 0 : i32
    %c0_i32_1 = arith.constant 0 : i32
    return %c0_i32, %c0_i32_0 : i32, i32
  }
  func.func @transform_3(%arg0: i32) -> (i32, i32) {
    %c0_i32 = arith.constant 0 : i32
    %c0_i32_0 = arith.constant 0 : i32
    return %arg0, %c0_i32 : i32, i32
  }
}

module attributes {stable_mosaic.version = 11 : i64} {
  func.func @_conv_stats_kernel(%arg0: i32, %arg1: memref<8x1728xbf16, #tpu.memory_space<vmem>>, %arg2: memref<1728x192xbf16, #tpu.memory_space<vmem>>, %arg3: memref<8x192xbf16, #tpu.memory_space<vmem>>, %arg4: memref<1x2x192xf32, #tpu.memory_space<vmem>>) attributes {dimension_semantics = [#tpu.dimension_semantics<parallel>], iteration_bounds = array<i64: 1>, scalar_prefetch = 0 : i64, scratch_operands = 0 : i64, tpu.core_type = #tpu.core_type<tc>, window_params = [{transform_indices = @transform_0, window_bounds = array<i64: 8, 1728>}, {pipeline_mode = #tpu.pipeline_mode<synchronous>, transform_indices = @transform_1, window_bounds = array<i64: 1728, 192>}, {transform_indices = @transform_2, window_bounds = array<i64: 8, 192>}, {transform_indices = @transform_3, window_bounds = array<i64: 1, 2, 192>}]} {
    %c0 = arith.constant 0 : index
    %c0_0 = arith.constant 0 : index
    %0 = vector.load %arg1[%c0, %c0_0] : memref<8x1728xbf16, #tpu.memory_space<vmem>>, vector<8x1728xbf16>
    %c0_1 = arith.constant 0 : index
    %c0_2 = arith.constant 0 : index
    %1 = vector.load %arg2[%c0_1, %c0_2] : memref<1728x192xbf16, #tpu.memory_space<vmem>>, vector<1728x192xbf16>
    %cst = arith.constant dense<0.000000e+00> : vector<8x192xf32>
    %2 = tpu.matmul %0, %1, %cst {dimension_numbers = #tpu.dot_dimension_numbers<[1], [0], [0], [1], [0, 0, 1, 1], [], []>} : vector<8x1728xbf16>, vector<1728x192xbf16>, vector<8x192xf32> -> vector<8x192xf32>
    %3 = arith.truncf %2 : vector<8x192xf32> to vector<8x192xbf16>
    %c0_3 = arith.constant 0 : index
    %c0_4 = arith.constant 0 : index
    %4 = vector.load %arg3[%c0_3, %c0_4] : memref<8x192xbf16, #tpu.memory_space<vmem>>, vector<8x192xbf16>
    tpu.vector_store %arg3[%c0_3, %c0_4], %3 {strides = array<i32>} : memref<8x192xbf16, #tpu.memory_space<vmem>>, vector<8x192xbf16>,
    %cst_5 = arith.constant dense<0.000000e+00> : vector<192xf32>
    %5 = vector.multi_reduction <add>, %2, %cst_5 [0] : vector<8x192xf32> to vector<192xf32>
    %6 = vector.shape_cast %5 : vector<192xf32> to vector<1x192xf32>
    %7 = arith.mulf %2, %2 : vector<8x192xf32>
    %cst_6 = arith.constant dense<0.000000e+00> : vector<192xf32>
    %8 = vector.multi_reduction <add>, %7, %cst_6 [0] : vector<8x192xf32> to vector<192xf32>
    %9 = vector.shape_cast %8 : vector<192xf32> to vector<1x192xf32>
    %10 = tpu.concatenate %6, %9 in 0 : vector<1x192xf32>, vector<1x192xf32> -> vector<2x192xf32>
    %11 = vector.shape_cast %10 : vector<2x192xf32> to vector<1x2x192xf32>
    %c0_7 = arith.constant 0 : index
    %c0_8 = arith.constant 0 : index
    %c0_9 = arith.constant 0 : index
    %12 = vector.load %arg4[%c0_7, %c0_8, %c0_9] : memref<1x2x192xf32, #tpu.memory_space<vmem>>, vector<1x2x192xf32>
    tpu.vector_store %arg4[%c0_7, %c0_8, %c0_9], %11 {strides = array<i32>} : memref<1x2x192xf32, #tpu.memory_space<vmem>>, vector<1x2x192xf32>,
    return
  }
  func.func @transform_0(%arg0: i32) -> (i32, i32) {
    %c0_i32 = arith.constant 0 : i32
    %c0_i32_0 = arith.constant 0 : i32
    return %arg0, %c0_i32 : i32, i32
  }
  func.func @transform_1(%arg0: i32) -> (i32, i32) {
    %c0_i32 = arith.constant 0 : i32
    %c0_i32_0 = arith.constant 0 : i32
    %c0_i32_1 = arith.constant 0 : i32
    return %c0_i32, %c0_i32_0 : i32, i32
  }
  func.func @transform_2(%arg0: i32) -> (i32, i32) {
    %c0_i32 = arith.constant 0 : i32
    %c0_i32_0 = arith.constant 0 : i32
    return %arg0, %c0_i32 : i32, i32
  }
  func.func @transform_3(%arg0: i32) -> (i32, i32, i32) {
    %c0_i32 = arith.constant 0 : i32
    %c0_i32_0 = arith.constant 0 : i32
    %c0_i32_1 = arith.constant 0 : i32
    return %arg0, %c0_i32, %c0_i32_0 : i32, i32, i32
  }
}

</mosaic_0001>

<llo_original>
// kernel: stem_forward.21
$region0: #{stem_forward.21}
  #allocation0 [shape = 'u32[]', space=smem, size = 0x4, offset = 0x4, fixed_abs, tag = 'smem constant byte address 0x4 - core index']
  #allocation1 [shape = 'u32[144,128]{1,0:T(1,128)}', space=vmem, size = 0x12000, scoped, tag = 'internal scratch']
  %s0 = inlined_call_operand.vmem [shape: bf16[512,32], index: 0, kind: input, shape index: {}]
  %s1 = inlined_call_operand.vmem [shape: f32[1,32], index: 1, kind: input, shape index: {}]
  %s2 = inlined_call_operand.vmem [shape: f32[1,32], index: 2, kind: input, shape index: {}]
  %s3 = inlined_call_operand.vmem [shape: bf16[512,32], index: 3, kind: output, shape index: {}]
  %s4 = sld [smem:[#allocation0]]
  $region45: #{stem_forward.21} parent=0
    _
  %s6 = ssub.s32 1, %s4
  %s7 = scalar_select 0, %s6, %s4
  loop: start=0, step=1, limit=4
  $region2: #{stem_forward.21} parent=0 // loop_pre_header
    _
  $region3: #{stem_forward.21} parent=0 // loop_header
    %s9 = sphi 0, %s13
    %p10 = scmp.ge.s32.totalorder %s9, 4
    %s19 = sphi 0, %s21
    %s22 = sphi 0, %s19
    %s23 = sphi 0, %s22
    %s39 = sphi 0, %s23
    %s43 = sphi 0, %s43
    %s45 = sphi 0, %s43
    %s46 = sphi 0, %s45
    %s60 = sphi 0, %s46
    %s64 = sphi 0, %s64
    %s66 = sphi 0, %s64
    %s67 = sphi 0, %s66
    %s81 = sphi 0, %s67
    %s87 = sphi 0, %s89
    %s90 = sphi 0, %s87
    %s91 = sphi 0, %s90
    %s107 = sphi 0, %s91
  $region4: #{stem_forward.21} parent=0 // loop_header_branch
    %12 = sbr.rel (%p10) target = $region8
  $region5: #{stem_forward.21} parent=0 // loop_body
    %s14 = ssub.s32 %s9, 1
    %s15 = ssub.s32 %s9, 2
    %s16 = sadd.s32 %s9, 1
    %s17 = ssub.s32 %s9, %s16
    %p18 = scmp.eq.s32.totalorder %s17, 0
    %s20 = sadd.s32 %s19, 1
    %s21 = scalar_select %p18, %s19, %s20
    %p24 = pneg %p18
    %p25 = scmp.eq.s32.totalorder %s9, 1
    %p26 = por %p24, %p25
    %p27 = scmp.ne.s32.totalorder %s19, %s22
    %p28 = scmp.eq.s32.totalorder %s9, 0
    %p29 = por %p27, %p28
    %p30 = scmp.ne.s32.totalorder %s19, %s22
    %p31 = scmp.eq.s32.totalorder %s14, 1
    %p32 = por %p30, %p31
    %p33 = scmp.ne.s32.totalorder %s22, %s23
    %p34 = scmp.eq.s32.totalorder %s14, 0
    %p35 = por %p33, %p34
    %p36 = scmp.ne.s32.totalorder %s22, %s23
    %p37 = scmp.eq.s32.totalorder %s15, 1
    %p38 = por %p36, %p37
    %p40 = scmp.ne.s32.totalorder %s23, %s39
    %p41 = scmp.eq.s32.totalorder %s15, 0
    %p42 = por %p40, %p41
    %s44 = sadd.s32 %s43, 1
    %p47 = scmp.eq.s32.totalorder %s9, 1
    %p48 = scmp.ne.s32.totalorder %s43, %s45
    %p49 = scmp.eq.s32.totalorder %s9, 0
    %p50 = por %p48, %p49
    %p51 = scmp.ne.s32.totalorder %s43, %s45
    %p52 = scmp.eq.s32.totalorder %s14, 1
    %p53 = por %p51, %p52
    %p54 = scmp.ne.s32.totalorder %s45, %s46
    %p55 = scmp.eq.s32.totalorder %s14, 0
    %p56 = por %p54, %p55
    %p57 = scmp.ne.s32.totalorder %s45, %s46
    %p58 = scmp.eq.s32.totalorder %s15, 1
    %p59 = por %p57, %p58
    %p61 = scmp.ne.s32.totalorder %s46, %s60
    %p62 = scmp.eq.s32.totalorder %s15, 0
    %p63 = por %p61, %p62
    %s65 = sadd.s32 %s64, 1
    %p68 = scmp.eq.s32.totalorder %s9, 1
    %p69 = scmp.ne.s32.totalorder %s64, %s66
    %p70 = scmp.eq.s32.totalorder %s9, 0
    %p71 = por %p69, %p70
    %p72 = scmp.ne.s32.totalorder %s64, %s66
    %p73 = scmp.eq.s32.totalorder %s14, 1
    %p74 = por %p72, %p73
    %p75 = scmp.ne.s32.totalorder %s66, %s67
    %p76 = scmp.eq.s32.totalorder %s14, 0
    %p77 = por %p75, %p76
    %p78 = scmp.ne.s32.totalorder %s66, %s67
    %p79 = scmp.eq.s32.totalorder %s15, 1
    %p80 = por %p78, %p79
    %p82 = scmp.ne.s32.totalorder %s67, %s81
    %p83 = scmp.eq.s32.totalorder %s15, 0
    %p84 = por %p82, %p83
    %s85 = ssub.s32 %s9, %s16
    %p86 = scmp.eq.s32.totalorder %s85, 0
    %s88 = sadd.s32 %s87, 1
    %s89 = scalar_select %p86, %s87, %s88
    %p92 = pneg %p86
    %p93 = scmp.eq.s32.totalorder %s9, 1
    %p94 = por %p92, %p93
    %p95 = scmp.ne.s32.totalorder %s87, %s90
    %p96 = scmp.eq.s32.totalorder %s9, 0
    %p97 = por %p95, %p96
    %p98 = scmp.ne.s32.totalorder %s87, %s90
    %p99 = scmp.eq.s32.totalorder %s14, 1
    %p100 = por %p98, %p99
    %p101 = scmp.ne.s32.totalorder %s90, %s91
    %p102 = scmp.eq.s32.totalorder %s14, 0
    %p103 = por %p101, %p102
    %p104 = scmp.ne.s32.totalorder %s90, %s91
    %p105 = scmp.eq.s32.totalorder %s15, 1
    %p106 = por %p104, %p105
    %p108 = scmp.ne.s32.totalorder %s91, %s107
    %p109 = scmp.eq.s32.totalorder %s15, 0
    %p110 = por %p108, %p109
    %p111 = scmp.le.s32.totalorder 1, %s9
    %p112 = scmp.lt.s32.totalorder %s9, 3
    %p113 = pnand %p111, %p112
    %p114 = pneg %p113
    // Predicated region
    $region9: #{stem_forward.21} parent=5 // pred_check
      _
    $region10: #{stem_forward.21} parent=5 // pred_check_branch
      %116 = sbr.rel (%p113) target = $region12
    $region11: #{stem_forward.21} parent=5 // pred_region
      %s117 = ssub.s32 %s9, 1
      // Predicated region
      $region13: #{stem_forward.21} parent=11 // pred_check
        %p118 = pneg %p56
      $region14: #{stem_forward.21} parent=11 // pred_check_branch
        %120 = sbr.rel (%p118) target = $region16
      $region15: #{stem_forward.21} parent=11 // pred_region
        _
      $region16: #{stem_forward.21} parent=11 // pred_fallthru
        _
      // Predicated region
      $region17: #{stem_forward.21} parent=11 // pred_check
        %p121 = pneg %p77
      $region18: #{stem_forward.21} parent=11 // pred_check_branch
        %123 = sbr.rel (%p121) target = $region20
      $region19: #{stem_forward.21} parent=11 // pred_region
        _
      $region20: #{stem_forward.21} parent=11 // pred_fallthru
        _
    $region12: #{stem_forward.21} parent=5 // pred_fallthru
      _
    %p124 = scmp.lt.s32.totalorder %s9, 2
    // Predicated region
    $region21: #{stem_forward.21} parent=5 // pred_check
      %p125 = pneg %p124
    $region22: #{stem_forward.21} parent=5 // pred_check_branch
      %127 = sbr.rel (%p125) target = $region24
    $region23: #{stem_forward.21} parent=5 // pred_region
      // Predicated region
      $region25: #{stem_forward.21} parent=23 // pred_check
        %p128 = pneg %p29
      $region26: #{stem_forward.21} parent=23 // pred_check_branch
        %130 = sbr.rel (%p128) target = $region28
      $region27: #{stem_forward.21} parent=23 // pred_region
        %s131 = smul.u32 32, %s9
        %p132 = scmp.lt.s32.totalorder %s131, 63
        %s133 = scalar_select %p132, %s131, 63
        %s134 = smul.addr %s133, 4
        %s135 = scalar_lea.vmem %s0, %s134
        %s136 = smul.u32 32, %s9
      $region28: #{stem_forward.21} parent=23 // pred_fallthru
        _
    $region24: #{stem_forward.21} parent=5 // pred_fallthru
      _
    %p137 = scmp.le.s32.totalorder 1, %s9
    %p138 = scmp.lt.s32.totalorder %s9, 3
    %p139 = pnand %p137, %p138
    %p140 = pneg %p139
    // Predicated region
    $region29: #{stem_forward.21} parent=5 // pred_check
      _
    $region30: #{stem_forward.21} parent=5 // pred_check_branch
      %142 = sbr.rel (%p139) target = $region32
    $region31: #{stem_forward.21} parent=5 // pred_region
      %s143 = ssub.s32 %s9, 1
      %s144 = smul.u32 32, %s14
      %p145 = scmp.lt.s32.totalorder %s144, 63
      %s146 = scalar_select %p145, %s144, 63
      %s147 = smul.addr %s146, 4
      %s148 = scalar_lea.vmem %s0, %s147
      %p149 = pneg %p35
      %p150 = pneg %p32
      %p151 = pneg %p56
      %p152 = pneg %p53
      %p153 = pneg %p77
      %p154 = pneg %p74
      %p155 = pneg %p103
      %p156 = pneg %p100
      %s157 = smul.u32 32, %s14
      %p158 = scmp.lt.s32.totalorder %s157, 63
      %s159 = scalar_select %p158, %s157, 63
      %s160 = smul.addr %s159, 4
      %s161 = scalar_lea.vmem %s3, %s160
      %s162 = smul.u32 32, %s14
      %p163 = scmp.lt.s32.totalorder %s162, 63
      %s164 = scalar_select %p163, %s162, 63
      %s165 = smul.addr %s164, 4
      %s166 = scalar_lea.vmem %s0, %s165
      %s167 = smul.u32 32, %s14
      %s168 = smul.u32 32, %s14
      %p169 = scmp.lt.s32.totalorder %s168, 63
      %s170 = scalar_select %p169, %s168, 63
      %s171 = smul.addr %s170, 4
      %s172 = scalar_lea.vmem %s3, %s171
      %s173 = smul.u32 32, %s14
      %v174 = vld [vmem:[%s166] sm:$0xf]
      %v175 = vld [vmem:[%s166 + $0x4] sm:$0xf]
      %v176 = vld [vmem:[%s166 + $0x8] sm:$0xf]
      %v177 = vld [vmem:[%s166 + $0xc] sm:$0xf]
      %v178 = vld [vmem:[%s166 + $0x10] sm:$0xf]
      %v179 = vld [vmem:[%s166 + $0x14] sm:$0xf]
      %v180 = vld [vmem:[%s166 + $0x18] sm:$0xf]
      %v181 = vld [vmem:[%s166 + $0x1c] sm:$0xf]
      %v182 = vld [vmem:[%s166 + $0x20] sm:$0xf]
      %v183 = vld [vmem:[%s166 + $0x24] sm:$0xf]
      %v184 = vld [vmem:[%s166 + $0x28] sm:$0xf]
      %v185 = vld [vmem:[%s166 + $0x2c] sm:$0xf]
      %v186 = vld [vmem:[%s166 + $0x30] sm:$0xf]
      %v187 = vld [vmem:[%s166 + $0x34] sm:$0xf]
      %v188 = vld [vmem:[%s166 + $0x38] sm:$0xf]
      %v189 = vld [vmem:[%s166 + $0x3c] sm:$0xf]
      %v190 = vld [vmem:[%s166 + $0x40] sm:$0xf]
      %v191 = vld [vmem:[%s166 + $0x44] sm:$0xf]
      %v192 = vld [vmem:[%s166 + $0x48] sm:$0xf]
      %v193 = vld [vmem:[%s166 + $0x4c] sm:$0xf]
      %v194 = vld [vmem:[%s166 + $0x50] sm:$0xf]
      %v195 = vld [vmem:[%s166 + $0x54] sm:$0xf]
      %v196 = vld [vmem:[%s166 + $0x58] sm:$0xf]
      %v197 = vld [vmem:[%s166 + $0x5c] sm:$0xf]
      %v198 = vld [vmem:[%s166 + $0x60] sm:$0xf]
      %v199 = vld [vmem:[%s166 + $0x64] sm:$0xf]
      %v200 = vld [vmem:[%s166 + $0x68] sm:$0xf]
      %v201 = vld [vmem:[%s166 + $0x6c] sm:$0xf]
      %v202 = vld [vmem:[%s166 + $0x70] sm:$0xf]
      %v203 = vld [vmem:[%s166 + $0x74] sm:$0xf]
      %v204 = vld [vmem:[%s166 + $0x78] sm:$0xf]
      %v205 = vld [vmem:[%s166 + $0x7c] sm:$0xf]
      %v206 = vunpack.c.l.bf16 %v174
      %v207 = vunpack.c.l.bf16 %v175
      %v208 = vunpack.c.l.bf16 %v176
      %v209 = vunpack.c.l.bf16 %v177
      %v210 = vunpack.c.l.bf16 %v178
      %v211 = vunpack.c.l.bf16 %v179
      %v212 = vunpack.c.l.bf16 %v180
      %v213 = vunpack.c.l.bf16 %v181
      %v214 = vunpack.c.l.bf16 %v182
      %v215 = vunpack.c.l.bf16 %v183
      %v216 = vunpack.c.l.bf16 %v184
      %v217 = vunpack.c.l.bf16 %v185
      %v218 = vunpack.c.l.bf16 %v186
      %v219 = vunpack.c.l.bf16 %v187
      %v220 = vunpack.c.l.bf16 %v188
      %v221 = vunpack.c.l.bf16 %v189
      %v222 = vunpack.c.l.bf16 %v190
      %v223 = vunpack.c.l.bf16 %v191
      %v224 = vunpack.c.l.bf16 %v192
      %v225 = vunpack.c.l.bf16 %v193
      %v226 = vunpack.c.l.bf16 %v194
      %v227 = vunpack.c.l.bf16 %v195
      %v228 = vunpack.c.l.bf16 %v196
      %v229 = vunpack.c.l.bf16 %v197
      %v230 = vunpack.c.l.bf16 %v198
      %v231 = vunpack.c.l.bf16 %v199
      %v232 = vunpack.c.l.bf16 %v200
      %v233 = vunpack.c.l.bf16 %v201
      %v234 = vunpack.c.l.bf16 %v202
      %v235 = vunpack.c.l.bf16 %v203
      %v236 = vunpack.c.l.bf16 %v204
      %v237 = vunpack.c.l.bf16 %v205
      %v238 = vld [vmem:[%s1] sm:$0x1]
      %v240 = vlaneseq
      %v241 = vshrl.u32 %v240, 7
      %v242 = vsub.s32 0, %v241
      %v243 = vrot.slane %v238, %v242
      %v245 = vmul.f32 %v206, %v243
      %v246 = vmul.f32 %v207, %v243
      %v247 = vmul.f32 %v208, %v243
      %v248 = vmul.f32 %v209, %v243
      %v249 = vmul.f32 %v210, %v243
      %v250 = vmul.f32 %v211, %v243
      %v251 = vmul.f32 %v212, %v243
      %v252 = vmul.f32 %v213, %v243
      %v253 = vmul.f32 %v214, %v243
      %v254 = vmul.f32 %v215, %v243
      %v255 = vmul.f32 %v216, %v243
      %v256 = vmul.f32 %v217, %v243
      %v257 = vmul.f32 %v218, %v243
      %v258 = vmul.f32 %v219, %v243
      %v259 = vmul.f32 %v220, %v243
      %v260 = vmul.f32 %v221, %v243
      %v261 = vmul.f32 %v222, %v243
      %v262 = vmul.f32 %v223, %v243
      %v263 = vmul.f32 %v224, %v243
      %v264 = vmul.f32 %v225, %v243
      %v265 = vmul.f32 %v226, %v243
      %v266 = vmul.f32 %v227, %v243
      %v267 = vmul.f32 %v228, %v243
      %v268 = vmul.f32 %v229, %v243
      %v269 = vmul.f32 %v230, %v243
      %v270 = vmul.f32 %v231, %v243
      %v271 = vmul.f32 %v232, %v243
      %v272 = vmul.f32 %v233, %v243
      %v273 = vmul.f32 %v234, %v243
      %v274 = vmul.f32 %v235, %v243
      %v275 = vmul.f32 %v236, %v243
      %v276 = vmul.f32 %v237, %v243
      %v277 = vld [vmem:[%s2] sm:$0x1]
      %v279 = vlaneseq
      %v280 = vshrl.u32 %v279, 7
      %v281 = vsub.s32 0, %v280
      %v282 = vrot.slane %v277, %v281
      %v284 = vadd.f32 %v245, %v282
      %v285 = vadd.f32 %v246, %v282
      %v286 = vadd.f32 %v247, %v282
      %v287 = vadd.f32 %v248, %v282
      %v288 = vadd.f32 %v249, %v282
      %v289 = vadd.f32 %v250, %v282
      %v290 = vadd.f32 %v251, %v282
      %v291 = vadd.f32 %v252, %v282
      %v292 = vadd.f32 %v253, %v282
      %v293 = vadd.f32 %v254, %v282
      %v294 = vadd.f32 %v255, %v282
      %v295 = vadd.f32 %v256, %v282
      %v296 = vadd.f32 %v257, %v282
      %v297 = vadd.f32 %v258, %v282
      %v298 = vadd.f32 %v259, %v282
      %v299 = vadd.f32 %v260, %v282
      %v300 = vadd.f32 %v261, %v282
      %v301 = vadd.f32 %v262, %v282
      %v302 = vadd.f32 %v263, %v282
      %v303 = vadd.f32 %v264, %v282
      %v304 = vadd.f32 %v265, %v282
      %v305 = vadd.f32 %v266, %v282
      %v306 = vadd.f32 %v267, %v282
      %v307 = vadd.f32 %v268, %v282
      %v308 = vadd.f32 %v269, %v282
      %v309 = vadd.f32 %v270, %v282
      %v310 = vadd.f32 %v271, %v282
      %v311 = vadd.f32 %v272, %v282
      %v312 = vadd.f32 %v273, %v282
      %v313 = vadd.f32 %v274, %v282
      %v314 = vadd.f32 %v275, %v282
      %v315 = vadd.f32 %v276, %v282
      %v316 = vmax.f32 %v284, 0.0
      %v317 = vmax.f32 %v285, 0.0
      %v318 = vmax.f32 %v286, 0.0
      %v319 = vmax.f32 %v287, 0.0
      %v320 = vmax.f32 %v288, 0.0
      %v321 = vmax.f32 %v289, 0.0
      %v322 = vmax.f32 %v290, 0.0
      %v323 = vmax.f32 %v291, 0.0
      %v324 = vmax.f32 %v292, 0.0
      %v325 = vmax.f32 %v293, 0.0
      %v326 = vmax.f32 %v294, 0.0
      %v327 = vmax.f32 %v295, 0.0
      %v328 = vmax.f32 %v296, 0.0
      %v329 = vmax.f32 %v297, 0.0
      %v330 = vmax.f32 %v298, 0.0
      %v331 = vmax.f32 %v299, 0.0
      %v332 = vmax.f32 %v300, 0.0
      %v333 = vmax.f32 %v301, 0.0
      %v334 = vmax.f32 %v302, 0.0
      %v335 = vmax.f32 %v303, 0.0
      %v336 = vmax.f32 %v304, 0.0
      %v337 = vmax.f32 %v305, 0.0
      %v338 = vmax.f32 %v306, 0.0
      %v339 = vmax.f32 %v307, 0.0
      %v340 = vmax.f32 %v308, 0.0
      %v341 = vmax.f32 %v309, 0.0
      %v342 = vmax.f32 %v310, 0.0
      %v343 = vmax.f32 %v311, 0.0
      %v344 = vmax.f32 %v312, 0.0
      %v345 = vmax.f32 %v313, 0.0
      %v346 = vmax.f32 %v314, 0.0
      %v347 = vmax.f32 %v315, 0.0
      %v348 = vpack.c.bf16 %v317, %v316
      %v349 = vpack.c.bf16 %v319, %v318
      %v350 = vpack.c.bf16 %v321, %v320
      %v351 = vpack.c.bf16 %v323, %v322
      %v352 = vpack.c.bf16 %v325, %v324
      %v353 = vpack.c.bf16 %v327, %v326
      %v354 = vpack.c.bf16 %v329, %v328
      %v355 = vpack.c.bf16 %v331, %v330
      %v356 = vpack.c.bf16 %v333, %v332
      %v357 = vpack.c.bf16 %v335, %v334
      %v358 = vpack.c.bf16 %v337, %v336
      %v359 = vpack.c.bf16 %v339, %v338
      %v360 = vpack.c.bf16 %v341, %v340
      %v361 = vpack.c.bf16 %v343, %v342
      %v362 = vpack.c.bf16 %v345, %v344
      %v363 = vpack.c.bf16 %v347, %v346
      %v380 = vunpack.c.l.b16 %v348
      %v381 = vunpack.c.h.b16 %v348
      %v382 = vunpack.c.l.b16 %v349
      %v383 = vunpack.c.h.b16 %v349
      %v384 = vunpack.c.l.b16 %v350
      %v385 = vunpack.c.h.b16 %v350
      %v386 = vunpack.c.l.b16 %v351
      %v387 = vunpack.c.h.b16 %v351
      %v388 = vunpack.c.l.b16 %v352
      %v389 = vunpack.c.h.b16 %v352
      %v390 = vunpack.c.l.b16 %v353
      %v391 = vunpack.c.h.b16 %v353
      %v392 = vunpack.c.l.b16 %v354
      %v393 = vunpack.c.h.b16 %v354
      %v394 = vunpack.c.l.b16 %v355
      %v395 = vunpack.c.h.b16 %v355
      %v396 = vunpack.c.l.b16 %v356
      %v397 = vunpack.c.h.b16 %v356
      %v398 = vunpack.c.l.b16 %v357
      %v399 = vunpack.c.h.b16 %v357
      %v400 = vunpack.c.l.b16 %v358
      %v401 = vunpack.c.h.b16 %v358
      %v402 = vunpack.c.l.b16 %v359
      %v403 = vunpack.c.h.b16 %v359
      %v404 = vunpack.c.l.b16 %v360
      %v405 = vunpack.c.h.b16 %v360
      %v406 = vunpack.c.l.b16 %v361
      %v407 = vunpack.c.h.b16 %v361
      %v408 = vunpack.c.l.b16 %v362
      %v409 = vunpack.c.h.b16 %v362
      %v410 = vunpack.c.l.b16 %v363
      %v411 = vunpack.c.h.b16 %v363
      %v412 = vpack.c.b16 %v380, %v380
      %v413 = vpack.c.b16 %v381, %v381
      %v414 = vpack.c.b16 %v382, %v382
      %v415 = vpack.c.b16 %v383, %v383
      %v416 = vpack.c.b16 %v384, %v384
      %v417 = vpack.c.b16 %v385, %v385
      %v418 = vpack.c.b16 %v386, %v386
      %v419 = vpack.c.b16 %v387, %v387
      %v420 = vpack.c.b16 %v388, %v388
      %v421 = vpack.c.b16 %v389, %v389
      %v422 = vpack.c.b16 %v390, %v390
      %v423 = vpack.c.b16 %v391, %v391
      %v424 = vpack.c.b16 %v392, %v392
      %v425 = vpack.c.b16 %v393, %v393
      %v426 = vpack.c.b16 %v394, %v394
      %v427 = vpack.c.b16 %v395, %v395
      %v428 = vpack.c.b16 %v396, %v396
      %v429 = vpack.c.b16 %v397, %v397
      %v430 = vpack.c.b16 %v398, %v398
      %v431 = vpack.c.b16 %v399, %v399
      %v432 = vpack.c.b16 %v400, %v400
      %v433 = vpack.c.b16 %v401, %v401
      %v434 = vpack.c.b16 %v402, %v402
      %v435 = vpack.c.b16 %v403, %v403
      %v436 = vpack.c.b16 %v404, %v404
      %v437 = vpack.c.b16 %v405, %v405
      %v438 = vpack.c.b16 %v406, %v406
      %v439 = vpack.c.b16 %v407, %v407
      %v440 = vpack.c.b16 %v408, %v408
      %v441 = vpack.c.b16 %v409, %v409
      %v442 = vpack.c.b16 %v410, %v410
      %v443 = vpack.c.b16 %v411, %v411
      %vm476 = vcmask 257024
      %477 = vst.msk [vmem:[%s172] sm:$0xf] %vm476, %v412
      %478 = vst.msk [vmem:[%s172 + $0x4] sm:$0xf] %vm476, %v413
      %479 = vst.msk [vmem:[%s172 + $0x8] sm:$0xf] %vm476, %v414
      %480 = vst.msk [vmem:[%s172 + $0xc] sm:$0xf] %vm476, %v415
      %481 = vst.msk [vmem:[%s172 + $0x10] sm:$0xf] %vm476, %v416
      %482 = vst.msk [vmem:[%s172 + $0x14] sm:$0xf] %vm476, %v417
      %483 = vst.msk [vmem:[%s172 + $0x18] sm:$0xf] %vm476, %v418
      %484 = vst.msk [vmem:[%s172 + $0x1c] sm:$0xf] %vm476, %v419
      %485 = vst.msk [vmem:[%s172 + $0x20] sm:$0xf] %vm476, %v420
      %486 = vst.msk [vmem:[%s172 + $0x24] sm:$0xf] %vm476, %v421
      %487 = vst.msk [vmem:[%s172 + $0x28] sm:$0xf] %vm476, %v422
      %488 = vst.msk [vmem:[%s172 + $0x2c] sm:$0xf] %vm476, %v423
      %489 = vst.msk [vmem:[%s172 + $0x30] sm:$0xf] %vm476, %v424
      %490 = vst.msk [vmem:[%s172 + $0x34] sm:$0xf] %vm476, %v425
      %491 = vst.msk [vmem:[%s172 + $0x38] sm:$0xf] %vm476, %v426
      %492 = vst.msk [vmem:[%s172 + $0x3c] sm:$0xf] %vm476, %v427
      %493 = vst.msk [vmem:[%s172 + $0x40] sm:$0xf] %vm476, %v428
      %494 = vst.msk [vmem:[%s172 + $0x44] sm:$0xf] %vm476, %v429
      %495 = vst.msk [vmem:[%s172 + $0x48] sm:$0xf] %vm476, %v430
      %496 = vst.msk [vmem:[%s172 + $0x4c] sm:$0xf] %vm476, %v431
      %497 = vst.msk [vmem:[%s172 + $0x50] sm:$0xf] %vm476, %v432
      %498 = vst.msk [vmem:[%s172 + $0x54] sm:$0xf] %vm476, %v433
      %499 = vst.msk [vmem:[%s172 + $0x58] sm:$0xf] %vm476, %v434
      %500 = vst.msk [vmem:[%s172 + $0x5c] sm:$0xf] %vm476, %v435
      %501 = vst.msk [vmem:[%s172 + $0x60] sm:$0xf] %vm476, %v436
      %502 = vst.msk [vmem:[%s172 + $0x64] sm:$0xf] %vm476, %v437
      %503 = vst.msk [vmem:[%s172 + $0x68] sm:$0xf] %vm476, %v438
      %504 = vst.msk [vmem:[%s172 + $0x6c] sm:$0xf] %vm476, %v439
      %505 = vst.msk [vmem:[%s172 + $0x70] sm:$0xf] %vm476, %v440
      %506 = vst.msk [vmem:[%s172 + $0x74] sm:$0xf] %vm476, %v441
      %507 = vst.msk [vmem:[%s172 + $0x78] sm:$0xf] %vm476, %v442
      %508 = vst.msk [vmem:[%s172 + $0x7c] sm:$0xf] %vm476, %v443
      %s509 = smul.u32 32, %s14
      %p510 = scmp.lt.s32.totalorder %s509, 63
      %s511 = scalar_select %p510, %s509, 63
      %s512 = smul.addr %s511, 4
      %s513 = scalar_lea.vmem %s3, %s512
      // Predicated region
      $region33: #{stem_forward.21} parent=31 // pred_check
        %p514 = pneg %p100
      $region34: #{stem_forward.21} parent=31 // pred_check_branch
        %516 = sbr.rel (%p514) target = $region36
      $region35: #{stem_forward.21} parent=31 // pred_region
        %s517 = smul.u32 32, %s14
      $region36: #{stem_forward.21} parent=31 // pred_fallthru
        _
    $region32: #{stem_forward.21} parent=5 // pred_fallthru
      _
    %p518 = scmp.le.s32.totalorder 2, %s9
    // Predicated region
    $region37: #{stem_forward.21} parent=5 // pred_check
      %p519 = pneg %p518
    $region38: #{stem_forward.21} parent=5 // pred_check_branch
      %521 = sbr.rel (%p519) target = $region40
    $region39: #{stem_forward.21} parent=5 // pred_region
      %s522 = ssub.s32 %s9, 2
      // Predicated region
      $region41: #{stem_forward.21} parent=39 // pred_check
        %p523 = pneg %p106
      $region42: #{stem_forward.21} parent=39 // pred_check_branch
        %525 = sbr.rel (%p523) target = $region44
      $region43: #{stem_forward.21} parent=39 // pred_region
        %s526 = smul.u32 32, %s15
        %p527 = scmp.lt.s32.totalorder %s526, 63
        %s528 = scalar_select %p527, %s526, 63
        %s529 = smul.addr %s528, 4
        %s530 = scalar_lea.vmem %s3, %s529
      $region44: #{stem_forward.21} parent=39 // pred_fallthru
        _
    $region40: #{stem_forward.21} parent=5 // pred_fallthru
      _
  $region6: #{stem_forward.21} parent=0 // loop_footer
    %s13 = sadd.s32 1, %s9
  $region7: #{stem_forward.21} parent=0 // loop_footer_branch
    %8 = sbr.rel target = $region3
  $region8: #{stem_forward.21} parent=0 // loop_exit
    _

// kernel: stem_forward.20
$region0: #{stem_forward.20}
  #allocation0 [shape = 'u32[]', space=smem, size = 0x4, offset = 0x4, fixed_abs, tag = 'smem constant byte address 0x4 - core index']
  #allocation1 [shape = 'u32[144,128]{1,0:T(1,128)}', space=vmem, size = 0x12000, scoped, tag = 'internal scratch']
  %s0 = inlined_call_operand.vmem [shape: bf16[512,27], index: 0, kind: input, shape index: {}]
  %s1 = inlined_call_operand.vmem [shape: bf16[27,32], index: 1, kind: input, shape index: {}]
  %s2 = inlined_call_operand.vmem [shape: bf16[512,32], index: 2, kind: output, shape index: {0}]
  %s3 = inlined_call_operand.vmem [shape: f32[2,2,32], index: 3, kind: output, shape index: {1}]
  %4 = xla_tuple %s2, %s3
  %s5 = sld [smem:[#allocation0]]
  $region49: #{stem_forward.20} parent=0
    _
  %s7 = ssub.s32 1, %s5
  %s8 = scalar_select 0, %s7, %s5
  loop: start=0, step=1, limit=4
  $region2: #{stem_forward.20} parent=0 // loop_pre_header
    _
  $region3: #{stem_forward.20} parent=0 // loop_header
    %s10 = sphi 0, %s14
    %p11 = scmp.ge.s32.totalorder %s10, 4
    %s20 = sphi 0, %s22
    %s23 = sphi 0, %s20
    %s24 = sphi 0, %s23
    %s40 = sphi 0, %s24
    %s44 = sphi 0, %s44
    %s46 = sphi 0, %s44
    %s47 = sphi 0, %s46
    %s61 = sphi 0, %s47
    %s67 = sphi 0, %s69
    %s70 = sphi 0, %s67
    %s71 = sphi 0, %s70
    %s87 = sphi 0, %s71
    %s93 = sphi 0, %s95
    %s96 = sphi 0, %s93
    %s97 = sphi 0, %s96
    %s113 = sphi 0, %s97
  $region4: #{stem_forward.20} parent=0 // loop_header_branch
    %13 = sbr.rel (%p11) target = $region8
  $region5: #{stem_forward.20} parent=0 // loop_body
    %s15 = ssub.s32 %s10, 1
    %s16 = ssub.s32 %s10, 2
    %s17 = sadd.s32 %s10, 1
    %s18 = ssub.s32 %s10, %s17
    %p19 = scmp.eq.s32.totalorder %s18, 0
    %s21 = sadd.s32 %s20, 1
    %s22 = scalar_select %p19, %s20, %s21
    %p25 = pneg %p19
    %p26 = scmp.eq.s32.totalorder %s10, 1
    %p27 = por %p25, %p26
    %p28 = scmp.ne.s32.totalorder %s20, %s23
    %p29 = scmp.eq.s32.totalorder %s10, 0
    %p30 = por %p28, %p29
    %p31 = scmp.ne.s32.totalorder %s20, %s23
    %p32 = scmp.eq.s32.totalorder %s15, 1
    %p33 = por %p31, %p32
    %p34 = scmp.ne.s32.totalorder %s23, %s24
    %p35 = scmp.eq.s32.totalorder %s15, 0
    %p36 = por %p34, %p35
    %p37 = scmp.ne.s32.totalorder %s23, %s24
    %p38 = scmp.eq.s32.totalorder %s16, 1
    %p39 = por %p37, %p38
    %p41 = scmp.ne.s32.totalorder %s24, %s40
    %p42 = scmp.eq.s32.totalorder %s16, 0
    %p43 = por %p41, %p42
    %s45 = sadd.s32 %s44, 1
    %p48 = scmp.eq.s32.totalorder %s10, 1
    %p49 = scmp.ne.s32.totalorder %s44, %s46
    %p50 = scmp.eq.s32.totalorder %s10, 0
    %p51 = por %p49, %p50
    %p52 = scmp.ne.s32.totalorder %s44, %s46
    %p53 = scmp.eq.s32.totalorder %s15, 1
    %p54 = por %p52, %p53
    %p55 = scmp.ne.s32.totalorder %s46, %s47
    %p56 = scmp.eq.s32.totalorder %s15, 0
    %p57 = por %p55, %p56
    %p58 = scmp.ne.s32.totalorder %s46, %s47
    %p59 = scmp.eq.s32.totalorder %s16, 1
    %p60 = por %p58, %p59
    %p62 = scmp.ne.s32.totalorder %s47, %s61
    %p63 = scmp.eq.s32.totalorder %s16, 0
    %p64 = por %p62, %p63
    %s65 = ssub.s32 %s10, %s17
    %p66 = scmp.eq.s32.totalorder %s65, 0
    %s68 = sadd.s32 %s67, 1
    %s69 = scalar_select %p66, %s67, %s68
    %p72 = pneg %p66
    %p73 = scmp.eq.s32.totalorder %s10, 1
    %p74 = por %p72, %p73
    %p75 = scmp.ne.s32.totalorder %s67, %s70
    %p76 = scmp.eq.s32.totalorder %s10, 0
    %p77 = por %p75, %p76
    %p78 = scmp.ne.s32.totalorder %s67, %s70
    %p79 = scmp.eq.s32.totalorder %s15, 1
    %p80 = por %p78, %p79
    %p81 = scmp.ne.s32.totalorder %s70, %s71
    %p82 = scmp.eq.s32.totalorder %s15, 0
    %p83 = por %p81, %p82
    %p84 = scmp.ne.s32.totalorder %s70, %s71
    %p85 = scmp.eq.s32.totalorder %s16, 1
    %p86 = por %p84, %p85
    %p88 = scmp.ne.s32.totalorder %s71, %s87
    %p89 = scmp.eq.s32.totalorder %s16, 0
    %p90 = por %p88, %p89
    %s91 = ssub.s32 %s10, %s17
    %p92 = scmp.eq.s32.totalorder %s91, 0
    %s94 = sadd.s32 %s93, 1
    %s95 = scalar_select %p92, %s93, %s94
    %p98 = pneg %p92
    %p99 = scmp.eq.s32.totalorder %s10, 1
    %p100 = por %p98, %p99
    %p101 = scmp.ne.s32.totalorder %s93, %s96
    %p102 = scmp.eq.s32.totalorder %s10, 0
    %p103 = por %p101, %p102
    %p104 = scmp.ne.s32.totalorder %s93, %s96
    %p105 = scmp.eq.s32.totalorder %s15, 1
    %p106 = por %p104, %p105
    %p107 = scmp.ne.s32.totalorder %s96, %s97
    %p108 = scmp.eq.s32.totalorder %s15, 0
    %p109 = por %p107, %p108
    %p110 = scmp.ne.s32.totalorder %s96, %s97
    %p111 = scmp.eq.s32.totalorder %s16, 1
    %p112 = por %p110, %p111
    %p114 = scmp.ne.s32.totalorder %s97, %s113
    %p115 = scmp.eq.s32.totalorder %s16, 0
    %p116 = por %p114, %p115
    %p117 = scmp.le.s32.totalorder 1, %s10
    %p118 = scmp.lt.s32.totalorder %s10, 3
    %p119 = pnand %p117, %p118
    %p120 = pneg %p119
    // Predicated region
    $region9: #{stem_forward.20} parent=5 // pred_check
      _
    $region10: #{stem_forward.20} parent=5 // pred_check_branch
      %122 = sbr.rel (%p119) target = $region12
    $region11: #{stem_forward.20} parent=5 // pred_region
      %s123 = ssub.s32 %s10, 1
      // Predicated region
      $region13: #{stem_forward.20} parent=11 // pred_check
        %p124 = pneg %p57
      $region14: #{stem_forward.20} parent=11 // pred_check_branch
        %126 = sbr.rel (%p124) target = $region16
      $region15: #{stem_forward.20} parent=11 // pred_region
        _
      $region16: #{stem_forward.20} parent=11 // pred_fallthru
        _
    $region12: #{stem_forward.20} parent=5 // pred_fallthru
      _
    %p127 = scmp.lt.s32.totalorder %s10, 2
    // Predicated region
    $region17: #{stem_forward.20} parent=5 // pred_check
      %p128 = pneg %p127
    $region18: #{stem_forward.20} parent=5 // pred_check_branch
      %130 = sbr.rel (%p128) target = $region20
    $region19: #{stem_forward.20} parent=5 // pred_region
      // Predicated region
      $region21: #{stem_forward.20} parent=19 // pred_check
        %p131 = pneg %p30
      $region22: #{stem_forward.20} parent=19 // pred_check_branch
        %133 = sbr.rel (%p131) target = $region24
      $region23: #{stem_forward.20} parent=19 // pred_region
        %s134 = smul.u32 32, %s10
        %p135 = scmp.lt.s32.totalorder %s134, 63
        %s136 = scalar_select %p135, %s134, 63
        %s137 = smul.addr %s136, 4
        %s138 = scalar_lea.vmem %s0, %s137
        %s139 = smul.u32 32, %s10
      $region24: #{stem_forward.20} parent=19 // pred_fallthru
        _
    $region20: #{stem_forward.20} parent=5 // pred_fallthru
      _
    %p140 = scmp.le.s32.totalorder 1, %s10
    %p141 = scmp.lt.s32.totalorder %s10, 3
    %p142 = pnand %p140, %p141
    %p143 = pneg %p142
    // Predicated region
    $region25: #{stem_forward.20} parent=5 // pred_check
      _
    $region26: #{stem_forward.20} parent=5 // pred_check_branch
      %145 = sbr.rel (%p142) target = $region28
    $region27: #{stem_forward.20} parent=5 // pred_region
      %s146 = ssub.s32 %s10, 1
      %s147 = smul.u32 32, %s15
      %p148 = scmp.lt.s32.totalorder %s147, 63
      %s149 = scalar_select %p148, %s147, 63
      %s150 = smul.addr %s149, 4
      %s151 = scalar_lea.vmem %s0, %s150
      %p152 = pneg %p36
      %p153 = pneg %p33
      %p154 = pneg %p57
      %p155 = pneg %p54
      %p156 = pneg %p83
      %p157 = pneg %p80
      %s158 = smul.u32 32, %s15
      %p159 = scmp.lt.s32.totalorder %s158, 63
      %s160 = scalar_select %p159, %s158, 63
      %s161 = smul.addr %s160, 4
      %s162 = scalar_lea.vmem %s2, %s161
      %p163 = pneg %p109
      %p164 = pneg %p106
      %p165 = scmp.lt.s32.totalorder %s15, 1
      %s166 = scalar_select %p165, %s15, 1
      %s167 = smul.addr %s166, 2
      %s168 = scalar_lea.vmem %s3, %s167
      %s169 = smul.u32 32, %s15
      %p170 = scmp.lt.s32.totalorder %s169, 63
      %s171 = scalar_select %p170, %s169, 63
      %s172 = smul.addr %s171, 4
      %s173 = scalar_lea.vmem %s0, %s172
      %s174 = smul.u32 32, %s15
      %s175 = smul.u32 32, %s15
      %p176 = scmp.lt.s32.totalorder %s175, 63
      %s177 = scalar_select %p176, %s175, 63
      %s178 = smul.addr %s177, 4
      %s179 = scalar_lea.vmem %s2, %s178
      %s180 = smul.u32 32, %s15
      %p181 = scmp.lt.s32.totalorder %s15, 1
      %s182 = scalar_select %p181, %s15, 1
      %s183 = smul.addr %s182, 2
      %s184 = scalar_lea.vmem %s3, %s183
      %v186 = vld [vmem:[%s173] sm:$0xf]
      %v187 = vld [vmem:[%s173 + $0x4] sm:$0xf]
      %v188 = vld [vmem:[%s173 + $0x8] sm:$0xf]
      %v189 = vld [vmem:[%s173 + $0xc] sm:$0xf]
      %v190 = vld [vmem:[%s173 + $0x10] sm:$0xf]
      %v191 = vld [vmem:[%s173 + $0x14] sm:$0xf]
      %v192 = vld [vmem:[%s173 + $0x18] sm:$0xf]
      %v193 = vld [vmem:[%s173 + $0x1c] sm:$0xf]
      %v194 = vld [vmem:[%s173 + $0x20] sm:$0xf]
      %v195 = vld [vmem:[%s173 + $0x24] sm:$0xf]
      %v196 = vld [vmem:[%s173 + $0x28] sm:$0xf]
      %v197 = vld [vmem:[%s173 + $0x2c] sm:$0xf]
      %v198 = vld [vmem:[%s173 + $0x30] sm:$0xf]
      %v199 = vld [vmem:[%s173 + $0x34] sm:$0xf]
      %v200 = vld [vmem:[%s173 + $0x38] sm:$0xf]
      %v201 = vld [vmem:[%s173 + $0x3c] sm:$0xf]
      %v202 = vld [vmem:[%s173 + $0x40] sm:$0xf]
      %v203 = vld [vmem:[%s173 + $0x44] sm:$0xf]
      %v204 = vld [vmem:[%s173 + $0x48] sm:$0xf]
      %v205 = vld [vmem:[%s173 + $0x4c] sm:$0xf]
      %v206 = vld [vmem:[%s173 + $0x50] sm:$0xf]
      %v207 = vld [vmem:[%s173 + $0x54] sm:$0xf]
      %v208 = vld [vmem:[%s173 + $0x58] sm:$0xf]
      %v209 = vld [vmem:[%s173 + $0x5c] sm:$0xf]
      %v210 = vld [vmem:[%s173 + $0x60] sm:$0xf]
      %v211 = vld [vmem:[%s173 + $0x64] sm:$0xf]
      %v212 = vld [vmem:[%s173 + $0x68] sm:$0xf]
      %v213 = vld [vmem:[%s173 + $0x6c] sm:$0xf]
      %v214 = vld [vmem:[%s173 + $0x70] sm:$0xf]
      %v215 = vld [vmem:[%s173 + $0x74] sm:$0xf]
      %v216 = vld [vmem:[%s173 + $0x78] sm:$0xf]
      %v217 = vld [vmem:[%s173 + $0x7c] sm:$0xf]
      %v218 = vld [vmem:[%s1] sm:$0xf]
      %v219 = vld [vmem:[%s1 + $0x4] sm:$0xf]
      %v220 = vld [vmem:[%s1 + $0x8] sm:$0xf]
      %v221 = vld [vmem:[%s1 + $0xc] sm:$0x3]
      %v254 = vunpack.c.l.b16 %v186
      %v255 = vunpack.c.l.b16 %v187
      %v256 = vunpack.c.l.b16 %v188
      %v257 = vunpack.c.l.b16 %v189
      %v258 = vunpack.c.l.b16 %v190
      %v259 = vunpack.c.l.b16 %v191
      %v260 = vunpack.c.l.b16 %v192
      %v261 = vunpack.c.l.b16 %v193
      %v262 = vunpack.c.l.b16 %v194
      %v263 = vunpack.c.l.b16 %v195
      %v264 = vunpack.c.l.b16 %v196
      %v265 = vunpack.c.l.b16 %v197
      %v266 = vunpack.c.l.b16 %v198
      %v267 = vunpack.c.l.b16 %v199
      %v268 = vunpack.c.l.b16 %v200
      %v269 = vunpack.c.l.b16 %v201
      %v270 = vunpack.c.l.b16 %v202
      %v271 = vunpack.c.l.b16 %v203
      %v272 = vunpack.c.l.b16 %v204
      %v273 = vunpack.c.l.b16 %v205
      %v274 = vunpack.c.l.b16 %v206
      %v275 = vunpack.c.l.b16 %v207
      %v276 = vunpack.c.l.b16 %v208
      %v277 = vunpack.c.l.b16 %v209
      %v278 = vunpack.c.l.b16 %v210
      %v279 = vunpack.c.l.b16 %v211
      %v280 = vunpack.c.l.b16 %v212
      %v281 = vunpack.c.l.b16 %v213
      %v282 = vunpack.c.l.b16 %v214
      %v283 = vunpack.c.l.b16 %v215
      %v284 = vunpack.c.l.b16 %v216
      %v285 = vunpack.c.l.b16 %v217
      %v286 = vpack.c.b16 %v255, %v254
      %v287 = vpack.c.b16 %v257, %v256
      %v288 = vpack.c.b16 %v259, %v258
      %v289 = vpack.c.b16 %v261, %v260
      %v290 = vpack.c.b16 %v263, %v262
      %v291 = vpack.c.b16 %v265, %v264
      %v292 = vpack.c.b16 %v267, %v266
      %v293 = vpack.c.b16 %v269, %v268
      %v294 = vpack.c.b16 %v271, %v270
      %v295 = vpack.c.b16 %v273, %v272
      %v296 = vpack.c.b16 %v275, %v274
      %v297 = vpack.c.b16 %v277, %v276
      %v298 = vpack.c.b16 %v279, %v278
      %v299 = vpack.c.b16 %v281, %v280
      %v300 = vpack.c.b16 %v283, %v282
      %v301 = vpack.c.b16 %v285, %v284
      %v306 = vunpack.c.l.b16 %v218
      %v307 = vunpack.c.l.b16 %v219
      %v308 = vunpack.c.l.b16 %v220
      %v309 = vunpack.c.l.b16 %v221
      %v310 = vpack.c.b16 %v307, %v306
      %v311 = vpack.c.b16 %v309, %v308
      %vm313 = vcmask 220160
      %v315 = vsel %vm313, %v286, 0
      %v318 = vsel %vm313, %v287, 0
      %v321 = vsel %vm313, %v288, 0
      %v324 = vsel %vm313, %v289, 0
      %v327 = vsel %vm313, %v290, 0
      %v330 = vsel %vm313, %v291, 0
      %v333 = vsel %vm313, %v292, 0
      %v336 = vsel %vm313, %v293, 0
      %v339 = vsel %vm313, %v294, 0
      %v342 = vsel %vm313, %v295, 0
      %v345 = vsel %vm313, %v296, 0
      %v348 = vsel %vm313, %v297, 0
      %v351 = vsel %vm313, %v298, 0
      %v354 = vsel %vm313, %v299, 0
      %v357 = vsel %vm313, %v300, 0
      %v360 = vsel %vm313, %v301, 0
      %vm362 = vcmask 1044480
      %vm363 = vcmask 1045504
      %v364 = vsel %vm362, 4294967295, 65535
      %v365 = vsel %vm363, %v364, 0
      %v367 = vand.u32 %v311, %v365
      %369 = vmatprep.subr.bf16.mxu0 0
      %370 = vmatpush1.bf16.msra.mxu0 0
      %371 = vmatprep.subr.bf16.mxu0 0
      %372 = vmatpush1.bf16.msra.mxu0 0
      %373 = vmatprep.subr.bf16.mxu0 0
      %374 = vmatpush1.bf16.msra.mxu0 0
      %375 = vmatprep.subr.bf16.mxu0 0
      %376 = vmatpush1.bf16.msra.mxu0 0
      %377 = vmatprep.subr.bf16.mxu0 0
      %378 = vmatpush1.bf16.msra.mxu0 0
      %379 = vmatprep.subr.bf16.mxu0 0
      %380 = vmatpush1.bf16.msra.mxu0 0
      %381 = vmatprep.subr.bf16.mxu0 0
      %382 = vmatpush1.bf16.msra.mxu0 %v367
      %383 = vmatprep.subr.bf16.mxu0 0
      %384 = vmatpush1.bf16.msra.mxu0 %v310
      %385 = vmatprep.subr.bf16.mxu0 0
      %386 = vmatpush2.bf16.msra.mxu0 0
      %387 = vmatprep.subr.bf16.mxu0 0
      %388 = vmatpush2.bf16.msra.mxu0 0
      %389 = vmatprep.subr.bf16.mxu0 0
      %390 = vmatpush2.bf16.msra.mxu0 0
      %391 = vmatprep.subr.bf16.mxu0 0
      %392 = vmatpush2.bf16.msra.mxu0 0
      %393 = vmatprep.subr.bf16.mxu0 0
      %394 = vmatpush2.bf16.msra.mxu0 0
      %395 = vmatprep.subr.bf16.mxu0 0
      %396 = vmatpush2.bf16.msra.mxu0 0
      %397 = vmatprep.subr.bf16.mxu0 0
      %398 = vmatpush2.bf16.msra.mxu0 0
      %399 = vmatprep.subr.bf16.mxu0 0
      %400 = vmatpush2.bf16.msra.mxu0 0
      %401 = vmatprep.mubr.bf16.mxu0 0
      %402 = vmatmul.mubr.bf16.gmra.mxu0 %v315
      %v403 = vpop.f32.mrf.mxu0
      %v404 = vadd.f32 0.0, %v403
      %v405 = vpop.f32.mrf.mxu0
      %v406 = vpop.f32.mrf.mxu0
      %v407 = vadd.f32 0.0, %v406
      %v408 = vpop.f32.mrf.mxu0
      %409 = vmatprep.mubr.bf16.mxu0 0
      %410 = vmatmul.mubr.bf16.gmra.mxu0 %v318
      %v411 = vpop.f32.mrf.mxu0
      %v412 = vadd.f32 0.0, %v411
      %v413 = vpop.f32.mrf.mxu0
      %v414 = vpop.f32.mrf.mxu0
      %v415 = vadd.f32 0.0, %v414
      %v416 = vpop.f32.mrf.mxu0
      %417 = vmatprep.mubr.bf16.mxu0 0
      %418 = vmatmul.mubr.bf16.gmra.mxu0 %v321
      %v419 = vpop.f32.mrf.mxu0
      %v420 = vadd.f32 0.0, %v419
      %v421 = vpop.f32.mrf.mxu0
      %v422 = vpop.f32.mrf.mxu0
      %v423 = vadd.f32 0.0, %v422
      %v424 = vpop.f32.mrf.mxu0
      %425 = vmatprep.mubr.bf16.mxu0 0
      %426 = vmatmul.mubr.bf16.gmra.mxu0 %v324
      %v427 = vpop.f32.mrf.mxu0
      %v428 = vadd.f32 0.0, %v427
      %v429 = vpop.f32.mrf.mxu0
      %v430 = vpop.f32.mrf.mxu0
      %v431 = vadd.f32 0.0, %v430
      %v432 = vpop.f32.mrf.mxu0
      %433 = vmatprep.mubr.bf16.mxu0 0
      %434 = vmatmul.mubr.bf16.gmra.mxu0 %v327
      %v435 = vpop.f32.mrf.mxu0
      %v436 = vadd.f32 0.0, %v435
      %v437 = vpop.f32.mrf.mxu0
      %v438 = vpop.f32.mrf.mxu0
      %v439 = vadd.f32 0.0, %v438
      %v440 = vpop.f32.mrf.mxu0
      %441 = vmatprep.mubr.bf16.mxu0 0
      %442 = vmatmul.mubr.bf16.gmra.mxu0 %v330
      %v443 = vpop.f32.mrf.mxu0
      %v444 = vadd.f32 0.0, %v443
      %v445 = vpop.f32.mrf.mxu0
      %v446 = vpop.f32.mrf.mxu0
      %v447 = vadd.f32 0.0, %v446
      %v448 = vpop.f32.mrf.mxu0
      %449 = vmatprep.mubr.bf16.mxu0 0
      %450 = vmatmul.mubr.bf16.gmra.mxu0 %v333
      %v451 = vpop.f32.mrf.mxu0
      %v452 = vadd.f32 0.0, %v451
      %v453 = vpop.f32.mrf.mxu0
      %v454 = vpop.f32.mrf.mxu0
      %v455 = vadd.f32 0.0, %v454
      %v456 = vpop.f32.mrf.mxu0
      %457 = vmatprep.mubr.bf16.mxu0 0
      %458 = vmatmul.mubr.bf16.gmra.mxu0 %v336
      %v459 = vpop.f32.mrf.mxu0
      %v460 = vadd.f32 0.0, %v459
      %v461 = vpop.f32.mrf.mxu0
      %v462 = vpop.f32.mrf.mxu0
      %v463 = vadd.f32 0.0, %v462
      %v464 = vpop.f32.mrf.mxu0
      %465 = vmatprep.mubr.bf16.mxu0 0
      %466 = vmatmul.mubr.bf16.gmra.mxu0 %v339
      %v467 = vpop.f32.mrf.mxu0
      %v468 = vadd.f32 0.0, %v467
      %v469 = vpop.f32.mrf.mxu0
      %v470 = vpop.f32.mrf.mxu0
      %v471 = vadd.f32 0.0, %v470
      %v472 = vpop.f32.mrf.mxu0
      %473 = vmatprep.mubr.bf16.mxu0 0
      %474 = vmatmul.mubr.bf16.gmra.mxu0 %v342
      %v475 = vpop.f32.mrf.mxu0
      %v476 = vadd.f32 0.0, %v475
      %v477 = vpop.f32.mrf.mxu0
      %v478 = vpop.f32.mrf.mxu0
      %v479 = vadd.f32 0.0, %v478
      %v480 = vpop.f32.mrf.mxu0
      %481 = vmatprep.mubr.bf16.mxu0 0
      %482 = vmatmul.mubr.bf16.gmra.mxu0 %v345
      %v483 = vpop.f32.mrf.mxu0
      %v484 = vadd.f32 0.0, %v483
      %v485 = vpop.f32.mrf.mxu0
      %v486 = vpop.f32.mrf.mxu0
      %v487 = vadd.f32 0.0, %v486
      %v488 = vpop.f32.mrf.mxu0
      %489 = vmatprep.mubr.bf16.mxu0 0
      %490 = vmatmul.mubr.bf16.gmra.mxu0 %v348
      %v491 = vpop.f32.mrf.mxu0
      %v492 = vadd.f32 0.0, %v491
      %v493 = vpop.f32.mrf.mxu0
      %v494 = vpop.f32.mrf.mxu0
      %v495 = vadd.f32 0.0, %v494
      %v496 = vpop.f32.mrf.mxu0
      %497 = vmatprep.mubr.bf16.mxu0 0
      %498 = vmatmul.mubr.bf16.gmra.mxu0 %v351
      %v499 = vpop.f32.mrf.mxu0
      %v500 = vadd.f32 0.0, %v499
      %v501 = vpop.f32.mrf.mxu0
      %v502 = vpop.f32.mrf.mxu0
      %v503 = vadd.f32 0.0, %v502
      %v504 = vpop.f32.mrf.mxu0
      %505 = vmatprep.mubr.bf16.mxu0 0
      %506 = vmatmul.mubr.bf16.gmra.mxu0 %v354
      %v507 = vpop.f32.mrf.mxu0
      %v508 = vadd.f32 0.0, %v507
      %v509 = vpop.f32.mrf.mxu0
      %v510 = vpop.f32.mrf.mxu0
      %v511 = vadd.f32 0.0, %v510
      %v512 = vpop.f32.mrf.mxu0
      %513 = vmatprep.mubr.bf16.mxu0 0
      %514 = vmatmul.mubr.bf16.gmra.mxu0 %v357
      %v515 = vpop.f32.mrf.mxu0
      %v516 = vadd.f32 0.0, %v515
      %v517 = vpop.f32.mrf.mxu0
      %v518 = vpop.f32.mrf.mxu0
      %v519 = vadd.f32 0.0, %v518
      %v520 = vpop.f32.mrf.mxu0
      %521 = vmatprep.mubr.bf16.mxu0 0
      %522 = vmatmul.mubr.bf16.gmra.mxu0 %v360
      %v523 = vpop.f32.mrf.mxu0
      %v524 = vadd.f32 0.0, %v523
      %v525 = vpop.f32.mrf.mxu0
      %v526 = vpop.f32.mrf.mxu0
      %v527 = vadd.f32 0.0, %v526
      %v528 = vpop.f32.mrf.mxu0
      %529 = vdwg.mxu0
      %v530 = vpack.c.bf16 %v407, %v404
      %v531 = vpack.c.bf16 %v415, %v412
      %v532 = vpack.c.bf16 %v423, %v420
      %v533 = vpack.c.bf16 %v431, %v428
      %v534 = vpack.c.bf16 %v439, %v436
      %v535 = vpack.c.bf16 %v447, %v444
      %v536 = vpack.c.bf16 %v455, %v452
      %v537 = vpack.c.bf16 %v463, %v460
      %v538 = vpack.c.bf16 %v471, %v468
      %v539 = vpack.c.bf16 %v479, %v476
      %v540 = vpack.c.bf16 %v487, %v484
      %v541 = vpack.c.bf16 %v495, %v492
      %v542 = vpack.c.bf16 %v503, %v500
      %v543 = vpack.c.bf16 %v511, %v508
      %v544 = vpack.c.bf16 %v519, %v516
      %v545 = vpack.c.bf16 %v527, %v524
      %v562 = vunpack.c.l.b16 %v530
      %v563 = vunpack.c.h.b16 %v530
      %v564 = vunpack.c.l.b16 %v531
      %v565 = vunpack.c.h.b16 %v531
      %v566 = vunpack.c.l.b16 %v532
      %v567 = vunpack.c.h.b16 %v532
      %v568 = vunpack.c.l.b16 %v533
      %v569 = vunpack.c.h.b16 %v533
      %v570 = vunpack.c.l.b16 %v534
      %v571 = vunpack.c.h.b16 %v534
      %v572 = vunpack.c.l.b16 %v535
      %v573 = vunpack.c.h.b16 %v535
      %v574 = vunpack.c.l.b16 %v536
      %v575 = vunpack.c.h.b16 %v536
      %v576 = vunpack.c.l.b16 %v537
      %v577 = vunpack.c.h.b16 %v537
      %v578 = vunpack.c.l.b16 %v538
      %v579 = vunpack.c.h.b16 %v538
      %v580 = vunpack.c.l.b16 %v539
      %v581 = vunpack.c.h.b16 %v539
      %v582 = vunpack.c.l.b16 %v540
      %v583 = vunpack.c.h.b16 %v540
      %v584 = vunpack.c.l.b16 %v541
      %v585 = vunpack.c.h.b16 %v541
      %v586 = vunpack.c.l.b16 %v542
      %v587 = vunpack.c.h.b16 %v542
      %v588 = vunpack.c.l.b16 %v543
      %v589 = vunpack.c.h.b16 %v543
      %v590 = vunpack.c.l.b16 %v544
      %v591 = vunpack.c.h.b16 %v544
      %v592 = vunpack.c.l.b16 %v545
      %v593 = vunpack.c.h.b16 %v545
      %v594 = vpack.c.b16 %v562, %v562
      %v595 = vpack.c.b16 %v563, %v563
      %v596 = vpack.c.b16 %v564, %v564
      %v597 = vpack.c.b16 %v565, %v565
      %v598 = vpack.c.b16 %v566, %v566
      %v599 = vpack.c.b16 %v567, %v567
      %v600 = vpack.c.b16 %v568, %v568
      %v601 = vpack.c.b16 %v569, %v569
      %v602 = vpack.c.b16 %v570, %v570
      %v603 = vpack.c.b16 %v571, %v571
      %v604 = vpack.c.b16 %v572, %v572
      %v605 = vpack.c.b16 %v573, %v573
      %v606 = vpack.c.b16 %v574, %v574
      %v607 = vpack.c.b16 %v575, %v575
      %v608 = vpack.c.b16 %v576, %v576
      %v609 = vpack.c.b16 %v577, %v577
      %v610 = vpack.c.b16 %v578, %v578
      %v611 = vpack.c.b16 %v579, %v579
      %v612 = vpack.c.b16 %v580, %v580
      %v613 = vpack.c.b16 %v581, %v581
      %v614 = vpack.c.b16 %v582, %v582
      %v615 = vpack.c.b16 %v583, %v583
      %v616 = vpack.c.b16 %v584, %v584
      %v617 = vpack.c.b16 %v585, %v585
      %v618 = vpack.c.b16 %v586, %v586
      %v619 = vpack.c.b16 %v587, %v587
      %v620 = vpack.c.b16 %v588, %v588
      %v621 = vpack.c.b16 %v589, %v589
      %v622 = vpack.c.b16 %v590, %v590
      %v623 = vpack.c.b16 %v591, %v591
      %v624 = vpack.c.b16 %v592, %v592
      %v625 = vpack.c.b16 %v593, %v593
      %vm658 = vcmask 257024
      %659 = vst.msk [vmem:[%s179] sm:$0xf] %vm658, %v594
      %660 = vst.msk [vmem:[%s179 + $0x4] sm:$0xf] %vm658, %v595
      %661 = vst.msk [vmem:[%s179 + $0x8] sm:$0xf] %vm658, %v596
      %662 = vst.msk [vmem:[%s179 + $0xc] sm:$0xf] %vm658, %v597
      %663 = vst.msk [vmem:[%s179 + $0x10] sm:$0xf] %vm658, %v598
      %664 = vst.msk [vmem:[%s179 + $0x14] sm:$0xf] %vm658, %v599
      %665 = vst.msk [vmem:[%s179 + $0x18] sm:$0xf] %vm658, %v600
      %666 = vst.msk [vmem:[%s179 + $0x1c] sm:$0xf] %vm658, %v601
      %667 = vst.msk [vmem:[%s179 + $0x20] sm:$0xf] %vm658, %v602
      %668 = vst.msk [vmem:[%s179 + $0x24] sm:$0xf] %vm658, %v603
      %669 = vst.msk [vmem:[%s179 + $0x28] sm:$0xf] %vm658, %v604
      %670 = vst.msk [vmem:[%s179 + $0x2c] sm:$0xf] %vm658, %v605
      %671 = vst.msk [vmem:[%s179 + $0x30] sm:$0xf] %vm658, %v606
      %672 = vst.msk [vmem:[%s179 + $0x34] sm:$0xf] %vm658, %v607
      %673 = vst.msk [vmem:[%s179 + $0x38] sm:$0xf] %vm658, %v608
      %674 = vst.msk [vmem:[%s179 + $0x3c] sm:$0xf] %vm658, %v609
      %675 = vst.msk [vmem:[%s179 + $0x40] sm:$0xf] %vm658, %v610
      %676 = vst.msk [vmem:[%s179 + $0x44] sm:$0xf] %vm658, %v611
      %677 = vst.msk [vmem:[%s179 + $0x48] sm:$0xf] %vm658, %v612
      %678 = vst.msk [vmem:[%s179 + $0x4c] sm:$0xf] %vm658, %v613
      %679 = vst.msk [vmem:[%s179 + $0x50] sm:$0xf] %vm658, %v614
      %680 = vst.msk [vmem:[%s179 + $0x54] sm:$0xf] %vm658, %v615
      %681 = vst.msk [vmem:[%s179 + $0x58] sm:$0xf] %vm658, %v616
      %682 = vst.msk [vmem:[%s179 + $0x5c] sm:$0xf] %vm658, %v617
      %683 = vst.msk [vmem:[%s179 + $0x60] sm:$0xf] %vm658, %v618
      %684 = vst.msk [vmem:[%s179 + $0x64] sm:$0xf] %vm658, %v619
      %685 = vst.msk [vmem:[%s179 + $0x68] sm:$0xf] %vm658, %v620
      %686 = vst.msk [vmem:[%s179 + $0x6c] sm:$0xf] %vm658, %v621
      %687 = vst.msk [vmem:[%s179 + $0x70] sm:$0xf] %vm658, %v622
      %688 = vst.msk [vmem:[%s179 + $0x74] sm:$0xf] %vm658, %v623
      %689 = vst.msk [vmem:[%s179 + $0x78] sm:$0xf] %vm658, %v624
      %690 = vst.msk [vmem:[%s179 + $0x7c] sm:$0xf] %vm658, %v625
      %vm691 = vcmask 261120
      %v692 = vsel %vm691, %v404, 0.0
      %v693 = vsel %vm691, %v407, 0.0
      %v694 = vadd.f32 %v692, %v693
      %v695 = vsel %vm691, %v412, 0.0
      %v696 = vadd.f32 %v694, %v695
      %v697 = vsel %vm691, %v415, 0.0
      %v698 = vadd.f32 %v696, %v697
      %v699 = vsel %vm691, %v420, 0.0
      %v700 = vadd.f32 %v698, %v699
      %v701 = vsel %vm691, %v423, 0.0
      %v702 = vadd.f32 %v700, %v701
      %v703 = vsel %vm691, %v428, 0.0
      %v704 = vadd.f32 %v702, %v703
      %v705 = vsel %vm691, %v431, 0.0
      %v706 = vadd.f32 %v704, %v705
      %v707 = vsel %vm691, %v436, 0.0
      %v708 = vadd.f32 %v706, %v707
      %v709 = vsel %vm691, %v439, 0.0
      %v710 = vadd.f32 %v708, %v709
      %v711 = vsel %vm691, %v444, 0.0
      %v712 = vadd.f32 %v710, %v711
      %v713 = vsel %vm691, %v447, 0.0
      %v714 = vadd.f32 %v712, %v713
      %v715 = vsel %vm691, %v452, 0.0
      %v716 = vadd.f32 %v714, %v715
      %v717 = vsel %vm691, %v455, 0.0
      %v718 = vadd.f32 %v716, %v717
      %v719 = vsel %vm691, %v460, 0.0
      %v720 = vadd.f32 %v718, %v719
      %v721 = vsel %vm691, %v463, 0.0
      %v722 = vadd.f32 %v720, %v721
      %v723 = vsel %vm691, %v468, 0.0
      %v724 = vadd.f32 %v722, %v723
      %v725 = vsel %vm691, %v471, 0.0
      %v726 = vadd.f32 %v724, %v725
      %v727 = vsel %vm691, %v476, 0.0
      %v728 = vadd.f32 %v726, %v727
      %v729 = vsel %vm691, %v479, 0.0
      %v730 = vadd.f32 %v728, %v729
      %v731 = vsel %vm691, %v484, 0.0
      %v732 = vadd.f32 %v730, %v731
      %v733 = vsel %vm691, %v487, 0.0
      %v734 = vadd.f32 %v732, %v733
      %v735 = vsel %vm691, %v492, 0.0
      %v736 = vadd.f32 %v734, %v735
      %v737 = vsel %vm691, %v495, 0.0
      %v738 = vadd.f32 %v736, %v737
      %v739 = vsel %vm691, %v500, 0.0
      %v740 = vadd.f32 %v738, %v739
      %v741 = vsel %vm691, %v503, 0.0
      %v742 = vadd.f32 %v740, %v741
      %v743 = vsel %vm691, %v508, 0.0
      %v744 = vadd.f32 %v742, %v743
      %v745 = vsel %vm691, %v511, 0.0
      %v746 = vadd.f32 %v744, %v745
      %v747 = vsel %vm691, %v516, 0.0
      %v748 = vadd.f32 %v746, %v747
      %v749 = vsel %vm691, %v519, 0.0
      %v750 = vadd.f32 %v748, %v749
      %v751 = vsel %vm691, %v524, 0.0
      %v752 = vadd.f32 %v750, %v751
      %v753 = vsel %vm691, %v527, 0.0
      %v754 = vadd.f32 %v752, %v753
      %v755 = vrot.slane %v754, 4
      %v756 = vadd.f32 %v754, %v755
      %v757 = vrot.slane %v756, 2
      %v758 = vadd.f32 %v756, %v757
      %v759 = vrot.slane %v758, 1
      %v760 = vadd.f32 %v758, %v759
      %v761 = vmul.f32 %v404, %v404
      %v762 = vmul.f32 %v407, %v407
      %v763 = vmul.f32 %v412, %v412
      %v764 = vmul.f32 %v415, %v415
      %v765 = vmul.f32 %v420, %v420
      %v766 = vmul.f32 %v423, %v423
      %v767 = vmul.f32 %v428, %v428
      %v768 = vmul.f32 %v431, %v431
      %v769 = vmul.f32 %v436, %v436
      %v770 = vmul.f32 %v439, %v439
      %v771 = vmul.f32 %v444, %v444
      %v772 = vmul.f32 %v447, %v447
      %v773 = vmul.f32 %v452, %v452
      %v774 = vmul.f32 %v455, %v455
      %v775 = vmul.f32 %v460, %v460
      %v776 = vmul.f32 %v463, %v463
      %v777 = vmul.f32 %v468, %v468
      %v778 = vmul.f32 %v471, %v471
      %v779 = vmul.f32 %v476, %v476
      %v780 = vmul.f32 %v479, %v479
      %v781 = vmul.f32 %v484, %v484
      %v782 = vmul.f32 %v487, %v487
      %v783 = vmul.f32 %v492, %v492
      %v784 = vmul.f32 %v495, %v495
      %v785 = vmul.f32 %v500, %v500
      %v786 = vmul.f32 %v503, %v503
      %v787 = vmul.f32 %v508, %v508
      %v788 = vmul.f32 %v511, %v511
      %v789 = vmul.f32 %v516, %v516
      %v790 = vmul.f32 %v519, %v519
      %v791 = vmul.f32 %v524, %v524
      %v792 = vmul.f32 %v527, %v527
      %v793 = vsel %vm691, %v761, 0.0
      %v794 = vsel %vm691, %v762, 0.0
      %v795 = vadd.f32 %v793, %v794
      %v796 = vsel %vm691, %v763, 0.0
      %v797 = vadd.f32 %v795, %v796
      %v798 = vsel %vm691, %v764, 0.0
      %v799 = vadd.f32 %v797, %v798
      %v800 = vsel %vm691, %v765, 0.0
      %v801 = vadd.f32 %v799, %v800
      %v802 = vsel %vm691, %v766, 0.0
      %v803 = vadd.f32 %v801, %v802
      %v804 = vsel %vm691, %v767, 0.0
      %v805 = vadd.f32 %v803, %v804
      %v806 = vsel %vm691, %v768, 0.0
      %v807 = vadd.f32 %v805, %v806
      %v808 = vsel %vm691, %v769, 0.0
      %v809 = vadd.f32 %v807, %v808
      %v810 = vsel %vm691, %v770, 0.0
      %v811 = vadd.f32 %v809, %v810
      %v812 = vsel %vm691, %v771, 0.0
      %v813 = vadd.f32 %v811, %v812
      %v814 = vsel %vm691, %v772, 0.0
      %v815 = vadd.f32 %v813, %v814
      %v816 = vsel %vm691, %v773, 0.0
      %v817 = vadd.f32 %v815, %v816
      %v818 = vsel %vm691, %v774, 0.0
      %v819 = vadd.f32 %v817, %v818
      %v820 = vsel %vm691, %v775, 0.0
      %v821 = vadd.f32 %v819, %v820
      %v822 = vsel %vm691, %v776, 0.0
      %v823 = vadd.f32 %v821, %v822
      %v824 = vsel %vm691, %v777, 0.0
      %v825 = vadd.f32 %v823, %v824
      %v826 = vsel %vm691, %v778, 0.0
      %v827 = vadd.f32 %v825, %v826
      %v828 = vsel %vm691, %v779, 0.0
      %v829 = vadd.f32 %v827, %v828
      %v830 = vsel %vm691, %v780, 0.0
      %v831 = vadd.f32 %v829, %v830
      %v832 = vsel %vm691, %v781, 0.0
      %v833 = vadd.f32 %v831, %v832
      %v834 = vsel %vm691, %v782, 0.0
      %v835 = vadd.f32 %v833, %v834
      %v836 = vsel %vm691, %v783, 0.0
      %v837 = vadd.f32 %v835, %v836
      %v838 = vsel %vm691, %v784, 0.0
      %v839 = vadd.f32 %v837, %v838
      %v840 = vsel %vm691, %v785, 0.0
      %v841 = vadd.f32 %v839, %v840
      %v842 = vsel %vm691, %v786, 0.0
      %v843 = vadd.f32 %v841, %v842
      %v844 = vsel %vm691, %v787, 0.0
      %v845 = vadd.f32 %v843, %v844
      %v846 = vsel %vm691, %v788, 0.0
      %v847 = vadd.f32 %v845, %v846
      %v848 = vsel %vm691, %v789, 0.0
      %v849 = vadd.f32 %v847, %v848
      %v850 = vsel %vm691, %v790, 0.0
      %v851 = vadd.f32 %v849, %v850
      %v852 = vsel %vm691, %v791, 0.0
      %v853 = vadd.f32 %v851, %v852
      %v854 = vsel %vm691, %v792, 0.0
      %v855 = vadd.f32 %v853, %v854
      %v856 = vrot.slane %v855, 4
      %v857 = vadd.f32 %v855, %v856
      %v858 = vrot.slane %v857, 2
      %v859 = vadd.f32 %v857, %v858
      %v860 = vrot.slane %v859, 1
      %v861 = vadd.f32 %v859, %v860
      %vm862 = vcmask 1040384
      %v863 = vsel %vm862, %v760, %v861
      %vm864 = vcmask 254976
      %865 = vst.msk [vmem:[%s184] sm:$0x3] %vm864, %v863
      %s866 = smul.u32 32, %s15
      %p867 = scmp.lt.s32.totalorder %s866, 63
      %s868 = scalar_select %p867, %s866, 63
      %s869 = smul.addr %s868, 4
      %s870 = scalar_lea.vmem %s2, %s869
      %p871 = scmp.lt.s32.totalorder %s15, 1
      %s872 = scalar_select %p871, %s15, 1
      %s873 = smul.addr %s872, 2
      %s874 = scalar_lea.vmem %s3, %s873
      // Predicated region
      $region29: #{stem_forward.20} parent=27 // pred_check
        %p875 = pneg %p80
      $region30: #{stem_forward.20} parent=27 // pred_check_branch
        %877 = sbr.rel (%p875) target = $region32
      $region31: #{stem_forward.20} parent=27 // pred_region
        %s878 = smul.u32 32, %s15
      $region32: #{stem_forward.20} parent=27 // pred_fallthru
        _
      // Predicated region
      $region33: #{stem_forward.20} parent=27 // pred_check
        %p879 = pneg %p106
      $region34: #{stem_forward.20} parent=27 // pred_check_branch
        %881 = sbr.rel (%p879) target = $region36
      $region35: #{stem_forward.20} parent=27 // pred_region
        _
      $region36: #{stem_forward.20} parent=27 // pred_fallthru
        _
    $region28: #{stem_forward.20} parent=5 // pred_fallthru
      _
    %p882 = scmp.le.s32.totalorder 2, %s10
    // Predicated region
    $region37: #{stem_forward.20} parent=5 // pred_check
      %p883 = pneg %p882
    $region38: #{stem_forward.20} parent=5 // pred_check_branch
      %885 = sbr.rel (%p883) target = $region40
    $region39: #{stem_forward.20} parent=5 // pred_region
      %s886 = ssub.s32 %s10, 2
      // Predicated region
      $region41: #{stem_forward.20} parent=39 // pred_check
        %p887 = pneg %p86
      $region42: #{stem_forward.20} parent=39 // pred_check_branch
        %889 = sbr.rel (%p887) target = $region44
      $region43: #{stem_forward.20} parent=39 // pred_region
        %s890 = smul.u32 32, %s16
        %p891 = scmp.lt.s32.totalorder %s890, 63
        %s892 = scalar_select %p891, %s890, 63
        %s893 = smul.addr %s892, 4
        %s894 = scalar_lea.vmem %s2, %s893
      $region44: #{stem_forward.20} parent=39 // pred_fallthru
        _
      // Predicated region
      $region45: #{stem_forward.20} parent=39 // pred_check
        %p895 = pneg %p112
      $region46: #{stem_forward.20} parent=39 // pred_check_branch
        %897 = sbr.rel (%p895) target = $region48
      $region47: #{stem_forward.20} parent=39 // pred_region
        %p898 = scmp.lt.s32.totalorder %s16, 1
        %s899 = scalar_select %p898, %s16, 1
        %s900 = smul.addr %s899, 2
        %s901 = scalar_lea.vmem %s3, %s900
      $region48: #{stem_forward.20} parent=39 // pred_fallthru
        _
    $region40: #{stem_forward.20} parent=5 // pred_fallthru
      _
  $region6: #{stem_forward.20} parent=0 // loop_footer
    %s14 = sadd.s32 1, %s10
  $region7: #{stem_forward.20} parent=0 // loop_footer_branch
    %9 = sbr.rel target = $region3
  $region8: #{stem_forward.20} parent=0 // loop_exit
    _

// kernel: stem_forward.22
$region0: #{stem_forward.22}
  #allocation0 [shape = 'u32[]', space=smem, size = 0x4, offset = 0x4, fixed_abs, tag = 'smem constant byte address 0x4 - core index']
  #allocation1 [shape = 'u32[144,128]{1,0:T(1,128)}', space=vmem, size = 0x12000, scoped, tag = 'internal scratch']
  %s0 = inlined_call_operand.vmem [shape: bf16[512,288], index: 0, kind: input, shape index: {}]
  %s1 = inlined_call_operand.vmem [shape: bf16[288,32], index: 1, kind: input, shape index: {}]
  %s2 = inlined_call_operand.vmem [shape: bf16[512,32], index: 2, kind: output, shape index: {0}]
  %s3 = inlined_call_operand.vmem [shape: f32[2,2,32], index: 3, kind: output, shape index: {1}]
  %4 = xla_tuple %s2, %s3
  %s5 = sld [smem:[#allocation0]]
  $region49: #{stem_forward.22} parent=0
    _
  %s7 = ssub.s32 1, %s5
  %s8 = scalar_select 0, %s7, %s5
  loop: start=0, step=1, limit=4
  $region2: #{stem_forward.22} parent=0 // loop_pre_header
    _
  $region3: #{stem_forward.22} parent=0 // loop_header
    %s10 = sphi 0, %s14
    %p11 = scmp.ge.s32.totalorder %s10, 4
    %s20 = sphi 0, %s22
    %s23 = sphi 0, %s20
    %s24 = sphi 0, %s23
    %s40 = sphi 0, %s24
    %s44 = sphi 0, %s44
    %s46 = sphi 0, %s44
    %s47 = sphi 0, %s46
    %s61 = sphi 0, %s47
    %s67 = sphi 0, %s69
    %s70 = sphi 0, %s67
    %s71 = sphi 0, %s70
    %s87 = sphi 0, %s71
    %s93 = sphi 0, %s95
    %s96 = sphi 0, %s93
    %s97 = sphi 0, %s96
    %s113 = sphi 0, %s97
  $region4: #{stem_forward.22} parent=0 // loop_header_branch
    %13 = sbr.rel (%p11) target = $region8
  $region5: #{stem_forward.22} parent=0 // loop_body
    %s15 = ssub.s32 %s10, 1
    %s16 = ssub.s32 %s10, 2
    %s17 = sadd.s32 %s10, 1
    %s18 = ssub.s32 %s10, %s17
    %p19 = scmp.eq.s32.totalorder %s18, 0
    %s21 = sadd.s32 %s20, 1
    %s22 = scalar_select %p19, %s20, %s21
    %p25 = pneg %p19
    %p26 = scmp.eq.s32.totalorder %s10, 1
    %p27 = por %p25, %p26
    %p28 = scmp.ne.s32.totalorder %s20, %s23
    %p29 = scmp.eq.s32.totalorder %s10, 0
    %p30 = por %p28, %p29
    %p31 = scmp.ne.s32.totalorder %s20, %s23
    %p32 = scmp.eq.s32.totalorder %s15, 1
    %p33 = por %p31, %p32
    %p34 = scmp.ne.s32.totalorder %s23, %s24
    %p35 = scmp.eq.s32.totalorder %s15, 0
    %p36 = por %p34, %p35
    %p37 = scmp.ne.s32.totalorder %s23, %s24
    %p38 = scmp.eq.s32.totalorder %s16, 1
    %p39 = por %p37, %p38
    %p41 = scmp.ne.s32.totalorder %s24, %s40
    %p42 = scmp.eq.s32.totalorder %s16, 0
    %p43 = por %p41, %p42
    %s45 = sadd.s32 %s44, 1
    %p48 = scmp.eq.s32.totalorder %s10, 1
    %p49 = scmp.ne.s32.totalorder %s44, %s46
    %p50 = scmp.eq.s32.totalorder %s10, 0
    %p51 = por %p49, %p50
    %p52 = scmp.ne.s32.totalorder %s44, %s46
    %p53 = scmp.eq.s32.totalorder %s15, 1
    %p54 = por %p52, %p53
    %p55 = scmp.ne.s32.totalorder %s46, %s47
    %p56 = scmp.eq.s32.totalorder %s15, 0
    %p57 = por %p55, %p56
    %p58 = scmp.ne.s32.totalorder %s46, %s47
    %p59 = scmp.eq.s32.totalorder %s16, 1
    %p60 = por %p58, %p59
    %p62 = scmp.ne.s32.totalorder %s47, %s61
    %p63 = scmp.eq.s32.totalorder %s16, 0
    %p64 = por %p62, %p63
    %s65 = ssub.s32 %s10, %s17
    %p66 = scmp.eq.s32.totalorder %s65, 0
    %s68 = sadd.s32 %s67, 1
    %s69 = scalar_select %p66, %s67, %s68
    %p72 = pneg %p66
    %p73 = scmp.eq.s32.totalorder %s10, 1
    %p74 = por %p72, %p73
    %p75 = scmp.ne.s32.totalorder %s67, %s70
    %p76 = scmp.eq.s32.totalorder %s10, 0
    %p77 = por %p75, %p76
    %p78 = scmp.ne.s32.totalorder %s67, %s70
    %p79 = scmp.eq.s32.totalorder %s15, 1
    %p80 = por %p78, %p79
    %p81 = scmp.ne.s32.totalorder %s70, %s71
    %p82 = scmp.eq.s32.totalorder %s15, 0
    %p83 = por %p81, %p82
    %p84 = scmp.ne.s32.totalorder %s70, %s71
    %p85 = scmp.eq.s32.totalorder %s16, 1
    %p86 = por %p84, %p85
    %p88 = scmp.ne.s32.totalorder %s71, %s87
    %p89 = scmp.eq.s32.totalorder %s16, 0
    %p90 = por %p88, %p89
    %s91 = ssub.s32 %s10, %s17
    %p92 = scmp.eq.s32.totalorder %s91, 0
    %s94 = sadd.s32 %s93, 1
    %s95 = scalar_select %p92, %s93, %s94
    %p98 = pneg %p92
    %p99 = scmp.eq.s32.totalorder %s10, 1
    %p100 = por %p98, %p99
    %p101 = scmp.ne.s32.totalorder %s93, %s96
    %p102 = scmp.eq.s32.totalorder %s10, 0
    %p103 = por %p101, %p102
    %p104 = scmp.ne.s32.totalorder %s93, %s96
    %p105 = scmp.eq.s32.totalorder %s15, 1
    %p106 = por %p104, %p105
    %p107 = scmp.ne.s32.totalorder %s96, %s97
    %p108 = scmp.eq.s32.totalorder %s15, 0
    %p109 = por %p107, %p108
    %p110 = scmp.ne.s32.totalorder %s96, %s97
    %p111 = scmp.eq.s32.totalorder %s16, 1
    %p112 = por %p110, %p111
    %p114 = scmp.ne.s32.totalorder %s97, %s113
    %p115 = scmp.eq.s32.totalorder %s16, 0
    %p116 = por %p114, %p115
    %p117 = scmp.le.s32.totalorder 1, %s10
    %p118 = scmp.lt.s32.totalorder %s10, 3
    %p119 = pnand %p117, %p118
    %p120 = pneg %p119
    // Predicated region
    $region9: #{stem_forward.22} parent=5 // pred_check
      _
    $region10: #{stem_forward.22} parent=5 // pred_check_branch
      %122 = sbr.rel (%p119) target = $region12
    $region11: #{stem_forward.22} parent=5 // pred_region
      %s123 = ssub.s32 %s10, 1
      // Predicated region
      $region13: #{stem_forward.22} parent=11 // pred_check
        %p124 = pneg %p57
      $region14: #{stem_forward.22} parent=11 // pred_check_branch
        %126 = sbr.rel (%p124) target = $region16
      $region15: #{stem_forward.22} parent=11 // pred_region
        _
      $region16: #{stem_forward.22} parent=11 // pred_fallthru
        _
    $region12: #{stem_forward.22} parent=5 // pred_fallthru
      _
    %p127 = scmp.lt.s32.totalorder %s10, 2
    // Predicated region
    $region17: #{stem_forward.22} parent=5 // pred_check
      %p128 = pneg %p127
    $region18: #{stem_forward.22} parent=5 // pred_check_branch
      %130 = sbr.rel (%p128) target = $region20
    $region19: #{stem_forward.22} parent=5 // pred_region
      // Predicated region
      $region21: #{stem_forward.22} parent=19 // pred_check
        %p131 = pneg %p30
      $region22: #{stem_forward.22} parent=19 // pred_check_branch
        %133 = sbr.rel (%p131) target = $region24
      $region23: #{stem_forward.22} parent=19 // pred_region
        %s134 = smul.u32 32, %s10
        %p135 = scmp.lt.s32.totalorder %s134, 63
        %s136 = scalar_select %p135, %s134, 63
        %s137 = smul.addr %s136, 3
        %s138 = smul.addr %s137, 4
        %s139 = scalar_lea.vmem %s0, %s138
        %s140 = smul.u32 32, %s10
      $region24: #{stem_forward.22} parent=19 // pred_fallthru
        _
    $region20: #{stem_forward.22} parent=5 // pred_fallthru
      _
    %p141 = scmp.le.s32.totalorder 1, %s10
    %p142 = scmp.lt.s32.totalorder %s10, 3
    %p143 = pnand %p141, %p142
    %p144 = pneg %p143
    // Predicated region
    $region25: #{stem_forward.22} parent=5 // pred_check
      _
    $region26: #{stem_forward.22} parent=5 // pred_check_branch
      %146 = sbr.rel (%p143) target = $region28
    $region27: #{stem_forward.22} parent=5 // pred_region
      %s147 = ssub.s32 %s10, 1
      %s148 = smul.u32 32, %s15
      %p149 = scmp.lt.s32.totalorder %s148, 63
      %s150 = scalar_select %p149, %s148, 63
      %s151 = smul.addr %s150, 3
      %s152 = smul.addr %s151, 4
      %s153 = scalar_lea.vmem %s0, %s152
      %p154 = pneg %p36
      %p155 = pneg %p33
      %p156 = pneg %p57
      %p157 = pneg %p54
      %p158 = pneg %p83
      %p159 = pneg %p80
      %s160 = smul.u32 32, %s15
      %p161 = scmp.lt.s32.totalorder %s160, 63
      %s162 = scalar_select %p161, %s160, 63
      %s163 = smul.addr %s162, 4
      %s164 = scalar_lea.vmem %s2, %s163
      %p165 = pneg %p109
      %p166 = pneg %p106
      %p167 = scmp.lt.s32.totalorder %s15, 1
      %s168 = scalar_select %p167, %s15, 1
      %s169 = smul.addr %s168, 2
      %s170 = scalar_lea.vmem %s3, %s169
      %s171 = smul.u32 32, %s15
      %p172 = scmp.lt.s32.totalorder %s171, 63
      %s173 = scalar_select %p172, %s171, 63
      %s174 = smul.addr %s173, 3
      %s175 = smul.addr %s174, 4
      %s176 = scalar_lea.vmem %s0, %s175
      %s177 = smul.u32 32, %s15
      %s178 = smul.u32 32, %s15
      %p179 = scmp.lt.s32.totalorder %s178, 63
      %s180 = scalar_select %p179, %s178, 63
      %s181 = smul.addr %s180, 4
      %s182 = scalar_lea.vmem %s2, %s181
      %s183 = smul.u32 32, %s15
      %p184 = scmp.lt.s32.totalorder %s15, 1
      %s185 = scalar_select %p184, %s15, 1
      %s186 = smul.addr %s185, 2
      %s187 = scalar_lea.vmem %s3, %s186
      %v189 = vld [vmem:[%s176] sm:$0xff]
      %v190 = vld [vmem:[%s176 + $0x8] sm:$0xf]
      %v191 = vld [vmem:[%s176 + $0xc] sm:$0xff]
      %v192 = vld [vmem:[%s176 + $0x14] sm:$0xf]
      %v193 = vld [vmem:[%s176 + $0x18] sm:$0xff]
      %v194 = vld [vmem:[%s176 + $0x20] sm:$0xf]
      %v195 = vld [vmem:[%s176 + $0x24] sm:$0xff]
      %v196 = vld [vmem:[%s176 + $0x2c] sm:$0xf]
      %v197 = vld [vmem:[%s176 + $0x30] sm:$0xff]
      %v198 = vld [vmem:[%s176 + $0x38] sm:$0xf]
      %v199 = vld [vmem:[%s176 + $0x3c] sm:$0xff]
      %v200 = vld [vmem:[%s176 + $0x44] sm:$0xf]
      %v201 = vld [vmem:[%s176 + $0x48] sm:$0xff]
      %v202 = vld [vmem:[%s176 + $0x50] sm:$0xf]
      %v203 = vld [vmem:[%s176 + $0x54] sm:$0xff]
      %v204 = vld [vmem:[%s176 + $0x5c] sm:$0xf]
      %v205 = vld [vmem:[%s176 + $0x60] sm:$0xff]
      %v206 = vld [vmem:[%s176 + $0x68] sm:$0xf]
      %v207 = vld [vmem:[%s176 + $0x6c] sm:$0xff]
      %v208 = vld [vmem:[%s176 + $0x74] sm:$0xf]
      %v209 = vld [vmem:[%s176 + $0x78] sm:$0xff]
      %v210 = vld [vmem:[%s176 + $0x80] sm:$0xf]
      %v211 = vld [vmem:[%s176 + $0x84] sm:$0xff]
      %v212 = vld [vmem:[%s176 + $0x8c] sm:$0xf]
      %v213 = vld [vmem:[%s176 + $0x90] sm:$0xff]
      %v214 = vld [vmem:[%s176 + $0x98] sm:$0xf]
      %v215 = vld [vmem:[%s176 + $0x9c] sm:$0xff]
      %v216 = vld [vmem:[%s176 + $0xa4] sm:$0xf]
      %v217 = vld [vmem:[%s176 + $0xa8] sm:$0xff]
      %v218 = vld [vmem:[%s176 + $0xb0] sm:$0xf]
      %v219 = vld [vmem:[%s176 + $0xb4] sm:$0xff]
      %v220 = vld [vmem:[%s176 + $0xbc] sm:$0xf]
      %v221 = vld [vmem:[%s176 + $0xc0] sm:$0xff]
      %v222 = vld [vmem:[%s176 + $0xc8] sm:$0xf]
      %v223 = vld [vmem:[%s176 + $0xcc] sm:$0xff]
      %v224 = vld [vmem:[%s176 + $0xd4] sm:$0xf]
      %v225 = vld [vmem:[%s176 + $0xd8] sm:$0xff]
      %v226 = vld [vmem:[%s176 + $0xe0] sm:$0xf]
      %v227 = vld [vmem:[%s176 + $0xe4] sm:$0xff]
      %v228 = vld [vmem:[%s176 + $0xec] sm:$0xf]
      %v229 = vld [vmem:[%s176 + $0xf0] sm:$0xff]
      %v230 = vld [vmem:[%s176 + $0xf8] sm:$0xf]
      %v231 = vld [vmem:[%s176 + $0xfc] sm:$0xff]
      %v232 = vld [vmem:[%s176 + $0x104] sm:$0xf]
      %v233 = vld [vmem:[%s176 + $0x108] sm:$0xff]
      %v234 = vld [vmem:[%s176 + $0x110] sm:$0xf]
      %v235 = vld [vmem:[%s176 + $0x114] sm:$0xff]
      %v236 = vld [vmem:[%s176 + $0x11c] sm:$0xf]
      %v237 = vld [vmem:[%s176 + $0x120] sm:$0xff]
      %v238 = vld [vmem:[%s176 + $0x128] sm:$0xf]
      %v239 = vld [vmem:[%s176 + $0x12c] sm:$0xff]
      %v240 = vld [vmem:[%s176 + $0x134] sm:$0xf]
      %v241 = vld [vmem:[%s176 + $0x138] sm:$0xff]
      %v242 = vld [vmem:[%s176 + $0x140] sm:$0xf]
      %v243 = vld [vmem:[%s176 + $0x144] sm:$0xff]
      %v244 = vld [vmem:[%s176 + $0x14c] sm:$0xf]
      %v245 = vld [vmem:[%s176 + $0x150] sm:$0xff]
      %v246 = vld [vmem:[%s176 + $0x158] sm:$0xf]
      %v247 = vld [vmem:[%s176 + $0x15c] sm:$0xff]
      %v248 = vld [vmem:[%s176 + $0x164] sm:$0xf]
      %v249 = vld [vmem:[%s176 + $0x168] sm:$0xff]
      %v250 = vld [vmem:[%s176 + $0x170] sm:$0xf]
      %v251 = vld [vmem:[%s176 + $0x174] sm:$0xff]
      %v252 = vld [vmem:[%s176 + $0x17c] sm:$0xf]
      %v253 = vld [vmem:[%s1] sm:$0xf]
      %v254 = vld [vmem:[%s1 + $0x4] sm:$0xf]
      %v255 = vld [vmem:[%s1 + $0x8] sm:$0xf]
      %v256 = vld [vmem:[%s1 + $0xc] sm:$0xf]
      %v257 = vld [vmem:[%s1 + $0x10] sm:$0xf]
      %v258 = vld [vmem:[%s1 + $0x14] sm:$0xf]
      %v259 = vld [vmem:[%s1 + $0x18] sm:$0xf]
      %v260 = vld [vmem:[%s1 + $0x1c] sm:$0xf]
      %v261 = vld [vmem:[%s1 + $0x20] sm:$0xf]
      %v262 = vld [vmem:[%s1 + $0x24] sm:$0xf]
      %v263 = vld [vmem:[%s1 + $0x28] sm:$0xf]
      %v264 = vld [vmem:[%s1 + $0x2c] sm:$0xf]
      %v265 = vld [vmem:[%s1 + $0x30] sm:$0xf]
      %v266 = vld [vmem:[%s1 + $0x34] sm:$0xf]
      %v267 = vld [vmem:[%s1 + $0x38] sm:$0xf]
      %v268 = vld [vmem:[%s1 + $0x3c] sm:$0xf]
      %v269 = vld [vmem:[%s1 + $0x40] sm:$0xf]
      %v270 = vld [vmem:[%s1 + $0x44] sm:$0xf]
      %v271 = vld [vmem:[%s1 + $0x48] sm:$0xf]
      %v272 = vld [vmem:[%s1 + $0x4c] sm:$0xf]
      %v273 = vld [vmem:[%s1 + $0x50] sm:$0xf]
      %v274 = vld [vmem:[%s1 + $0x54] sm:$0xf]
      %v275 = vld [vmem:[%s1 + $0x58] sm:$0xf]
      %v276 = vld [vmem:[%s1 + $0x5c] sm:$0xf]
      %v277 = vld [vmem:[%s1 + $0x60] sm:$0xf]
      %v278 = vld [vmem:[%s1 + $0x64] sm:$0xf]
      %v279 = vld [vmem:[%s1 + $0x68] sm:$0xf]
      %v280 = vld [vmem:[%s1 + $0x6c] sm:$0xf]
      %v281 = vld [vmem:[%s1 + $0x70] sm:$0xf]
      %v282 = vld [vmem:[%s1 + $0x74] sm:$0xf]
      %v283 = vld [vmem:[%s1 + $0x78] sm:$0xf]
      %v284 = vld [vmem:[%s1 + $0x7c] sm:$0xf]
      %v285 = vld [vmem:[%s1 + $0x80] sm:$0xf]
      %v286 = vld [vmem:[%s1 + $0x84] sm:$0xf]
      %v287 = vld [vmem:[%s1 + $0x88] sm:$0xf]
      %v288 = vld [vmem:[%s1 + $0x8c] sm:$0xf]
      %v353 = vunpack.c.l.b16 %v189
      %v354 = vunpack.c.h.b16 %v189
      %v355 = vunpack.c.l.b16 %v190
      %v356 = vunpack.c.l.b16 %v191
      %v357 = vunpack.c.h.b16 %v191
      %v358 = vunpack.c.l.b16 %v192
      %v359 = vunpack.c.l.b16 %v193
      %v360 = vunpack.c.h.b16 %v193
      %v361 = vunpack.c.l.b16 %v194
      %v362 = vunpack.c.l.b16 %v195
      %v363 = vunpack.c.h.b16 %v195
      %v364 = vunpack.c.l.b16 %v196
      %v365 = vunpack.c.l.b16 %v197
      %v366 = vunpack.c.h.b16 %v197
      %v367 = vunpack.c.l.b16 %v198
      %v368 = vunpack.c.l.b16 %v199
      %v369 = vunpack.c.h.b16 %v199
      %v370 = vunpack.c.l.b16 %v200
      %v371 = vunpack.c.l.b16 %v201
      %v372 = vunpack.c.h.b16 %v201
      %v373 = vunpack.c.l.b16 %v202
      %v374 = vunpack.c.l.b16 %v203
      %v375 = vunpack.c.h.b16 %v203
      %v376 = vunpack.c.l.b16 %v204
      %v377 = vunpack.c.l.b16 %v205
      %v378 = vunpack.c.h.b16 %v205
      %v379 = vunpack.c.l.b16 %v206
      %v380 = vunpack.c.l.b16 %v207
      %v381 = vunpack.c.h.b16 %v207
      %v382 = vunpack.c.l.b16 %v208
      %v383 = vunpack.c.l.b16 %v209
      %v384 = vunpack.c.h.b16 %v209
      %v385 = vunpack.c.l.b16 %v210
      %v386 = vunpack.c.l.b16 %v211
      %v387 = vunpack.c.h.b16 %v211
      %v388 = vunpack.c.l.b16 %v212
      %v389 = vunpack.c.l.b16 %v213
      %v390 = vunpack.c.h.b16 %v213
      %v391 = vunpack.c.l.b16 %v214
      %v392 = vunpack.c.l.b16 %v215
      %v393 = vunpack.c.h.b16 %v215
      %v394 = vunpack.c.l.b16 %v216
      %v395 = vunpack.c.l.b16 %v217
      %v396 = vunpack.c.h.b16 %v217
      %v397 = vunpack.c.l.b16 %v218
      %v398 = vunpack.c.l.b16 %v219
      %v399 = vunpack.c.h.b16 %v219
      %v400 = vunpack.c.l.b16 %v220
      %v401 = vunpack.c.l.b16 %v221
      %v402 = vunpack.c.h.b16 %v221
      %v403 = vunpack.c.l.b16 %v222
      %v404 = vunpack.c.l.b16 %v223
      %v405 = vunpack.c.h.b16 %v223
      %v406 = vunpack.c.l.b16 %v224
      %v407 = vunpack.c.l.b16 %v225
      %v408 = vunpack.c.h.b16 %v225
      %v409 = vunpack.c.l.b16 %v226
      %v410 = vunpack.c.l.b16 %v227
      %v411 = vunpack.c.h.b16 %v227
      %v412 = vunpack.c.l.b16 %v228
      %v413 = vunpack.c.l.b16 %v229
      %v414 = vunpack.c.h.b16 %v229
      %v415 = vunpack.c.l.b16 %v230
      %v416 = vunpack.c.l.b16 %v231
      %v417 = vunpack.c.h.b16 %v231
      %v418 = vunpack.c.l.b16 %v232
      %v419 = vunpack.c.l.b16 %v233
      %v420 = vunpack.c.h.b16 %v233
      %v421 = vunpack.c.l.b16 %v234
      %v422 = vunpack.c.l.b16 %v235
      %v423 = vunpack.c.h.b16 %v235
      %v424 = vunpack.c.l.b16 %v236
      %v425 = vunpack.c.l.b16 %v237
      %v426 = vunpack.c.h.b16 %v237
      %v427 = vunpack.c.l.b16 %v238
      %v428 = vunpack.c.l.b16 %v239
      %v429 = vunpack.c.h.b16 %v239
      %v430 = vunpack.c.l.b16 %v240
      %v431 = vunpack.c.l.b16 %v241
      %v432 = vunpack.c.h.b16 %v241
      %v433 = vunpack.c.l.b16 %v242
      %v434 = vunpack.c.l.b16 %v243
      %v435 = vunpack.c.h.b16 %v243
      %v436 = vunpack.c.l.b16 %v244
      %v437 = vunpack.c.l.b16 %v245
      %v438 = vunpack.c.h.b16 %v245
      %v439 = vunpack.c.l.b16 %v246
      %v440 = vunpack.c.l.b16 %v247
      %v441 = vunpack.c.h.b16 %v247
      %v442 = vunpack.c.l.b16 %v248
      %v443 = vunpack.c.l.b16 %v249
      %v444 = vunpack.c.h.b16 %v249
      %v445 = vunpack.c.l.b16 %v250
      %v446 = vunpack.c.l.b16 %v251
      %v447 = vunpack.c.h.b16 %v251
      %v448 = vunpack.c.l.b16 %v252
      %v449 = vpack.c.b16 %v356, %v353
      %v450 = vpack.c.b16 %v357, %v354
      %v451 = vpack.c.b16 %v358, %v355
      %v452 = vpack.c.b16 %v362, %v359
      %v453 = vpack.c.b16 %v363, %v360
      %v454 = vpack.c.b16 %v364, %v361
      %v455 = vpack.c.b16 %v368, %v365
      %v456 = vpack.c.b16 %v369, %v366
      %v457 = vpack.c.b16 %v370, %v367
      %v458 = vpack.c.b16 %v374, %v371
      %v459 = vpack.c.b16 %v375, %v372
      %v460 = vpack.c.b16 %v376, %v373
      %v461 = vpack.c.b16 %v380, %v377
      %v462 = vpack.c.b16 %v381, %v378
      %v463 = vpack.c.b16 %v382, %v379
      %v464 = vpack.c.b16 %v386, %v383
      %v465 = vpack.c.b16 %v387, %v384
      %v466 = vpack.c.b16 %v388, %v385
      %v467 = vpack.c.b16 %v392, %v389
      %v468 = vpack.c.b16 %v393, %v390
      %v469 = vpack.c.b16 %v394, %v391
      %v470 = vpack.c.b16 %v398, %v395
      %v471 = vpack.c.b16 %v399, %v396
      %v472 = vpack.c.b16 %v400, %v397
      %v473 = vpack.c.b16 %v404, %v401
      %v474 = vpack.c.b16 %v405, %v402
      %v475 = vpack.c.b16 %v406, %v403
      %v476 = vpack.c.b16 %v410, %v407
      %v477 = vpack.c.b16 %v411, %v408
      %v478 = vpack.c.b16 %v412, %v409
      %v479 = vpack.c.b16 %v416, %v413
      %v480 = vpack.c.b16 %v417, %v414
      %v481 = vpack.c.b16 %v418, %v415
      %v482 = vpack.c.b16 %v422, %v419
      %v483 = vpack.c.b16 %v423, %v420
      %v484 = vpack.c.b16 %v424, %v421
      %v485 = vpack.c.b16 %v428, %v425
      %v486 = vpack.c.b16 %v429, %v426
      %v487 = vpack.c.b16 %v430, %v427
      %v488 = vpack.c.b16 %v434, %v431
      %v489 = vpack.c.b16 %v435, %v432
      %v490 = vpack.c.b16 %v436, %v433
      %v491 = vpack.c.b16 %v440, %v437
      %v492 = vpack.c.b16 %v441, %v438
      %v493 = vpack.c.b16 %v442, %v439
      %v494 = vpack.c.b16 %v446, %v443
      %v495 = vpack.c.b16 %v447, %v444
      %v496 = vpack.c.b16 %v448, %v445
      %v565 = vunpack.c.l.b16 %v253
      %v566 = vunpack.c.l.b16 %v254
      %v567 = vunpack.c.l.b16 %v255
      %v568 = vunpack.c.l.b16 %v256
      %v569 = vunpack.c.l.b16 %v257
      %v570 = vunpack.c.l.b16 %v258
      %v571 = vunpack.c.l.b16 %v259
      %v572 = vunpack.c.l.b16 %v260
      %v573 = vunpack.c.l.b16 %v261
      %v574 = vunpack.c.l.b16 %v262
      %v575 = vunpack.c.l.b16 %v263
      %v576 = vunpack.c.l.b16 %v264
      %v577 = vunpack.c.l.b16 %v265
      %v578 = vunpack.c.l.b16 %v266
      %v579 = vunpack.c.l.b16 %v267
      %v580 = vunpack.c.l.b16 %v268
      %v581 = vunpack.c.l.b16 %v269
      %v582 = vunpack.c.l.b16 %v270
      %v583 = vunpack.c.l.b16 %v271
      %v584 = vunpack.c.l.b16 %v272
      %v585 = vunpack.c.l.b16 %v273
      %v586 = vunpack.c.l.b16 %v274
      %v587 = vunpack.c.l.b16 %v275
      %v588 = vunpack.c.l.b16 %v276
      %v589 = vunpack.c.l.b16 %v277
      %v590 = vunpack.c.l.b16 %v278
      %v591 = vunpack.c.l.b16 %v279
      %v592 = vunpack.c.l.b16 %v280
      %v593 = vunpack.c.l.b16 %v281
      %v594 = vunpack.c.l.b16 %v282
      %v595 = vunpack.c.l.b16 %v283
      %v596 = vunpack.c.l.b16 %v284
      %v597 = vunpack.c.l.b16 %v285
      %v598 = vunpack.c.l.b16 %v286
      %v599 = vunpack.c.l.b16 %v287
      %v600 = vunpack.c.l.b16 %v288
      %v601 = vpack.c.b16 %v566, %v565
      %v602 = vpack.c.b16 %v568, %v567
      %v603 = vpack.c.b16 %v570, %v569
      %v604 = vpack.c.b16 %v572, %v571
      %v605 = vpack.c.b16 %v574, %v573
      %v606 = vpack.c.b16 %v576, %v575
      %v607 = vpack.c.b16 %v578, %v577
      %v608 = vpack.c.b16 %v580, %v579
      %v609 = vpack.c.b16 %v582, %v581
      %v610 = vpack.c.b16 %v584, %v583
      %v611 = vpack.c.b16 %v586, %v585
      %v612 = vpack.c.b16 %v588, %v587
      %v613 = vpack.c.b16 %v590, %v589
      %v614 = vpack.c.b16 %v592, %v591
      %v615 = vpack.c.b16 %v594, %v593
      %v616 = vpack.c.b16 %v596, %v595
      %v617 = vpack.c.b16 %v598, %v597
      %v618 = vpack.c.b16 %v600, %v599
      %vm637 = vcmask 261120
      %v639 = vsel %vm637, %v451, 0
      %v642 = vsel %vm637, %v454, 0
      %v645 = vsel %vm637, %v457, 0
      %v648 = vsel %vm637, %v460, 0
      %v651 = vsel %vm637, %v463, 0
      %v654 = vsel %vm637, %v466, 0
      %v657 = vsel %vm637, %v469, 0
      %v660 = vsel %vm637, %v472, 0
      %v663 = vsel %vm637, %v475, 0
      %v666 = vsel %vm637, %v478, 0
      %v669 = vsel %vm637, %v481, 0
      %v672 = vsel %vm637, %v484, 0
      %v675 = vsel %vm637, %v487, 0
      %v678 = vsel %vm637, %v490, 0
      %v681 = vsel %vm637, %v493, 0
      %v684 = vsel %vm637, %v496, 0
      %686 = vmatprep.subr.bf16.mxu0 0
      %687 = vmatpush1.bf16.msra.mxu0 %v608
      %688 = vmatprep.subr.bf16.mxu0 0
      %689 = vmatpush1.bf16.msra.mxu0 %v607
      %690 = vmatprep.subr.bf16.mxu0 0
      %691 = vmatpush1.bf16.msra.mxu0 %v606
      %692 = vmatprep.subr.bf16.mxu0 0
      %693 = vmatpush1.bf16.msra.mxu0 %v605
      %694 = vmatprep.subr.bf16.mxu0 0
      %695 = vmatpush1.bf16.msra.mxu0 %v604
      %696 = vmatprep.subr.bf16.mxu0 0
      %697 = vmatpush1.bf16.msra.mxu0 %v603
      %698 = vmatprep.subr.bf16.mxu0 0
      %699 = vmatpush1.bf16.msra.mxu0 %v602
      %700 = vmatprep.subr.bf16.mxu0 0
      %701 = vmatpush1.bf16.msra.mxu0 %v601
      %702 = vmatprep.subr.bf16.mxu0 0
      %703 = vmatpush2.bf16.msra.mxu0 %v616
      %704 = vmatprep.subr.bf16.mxu0 0
      %705 = vmatpush2.bf16.msra.mxu0 %v615
      %706 = vmatprep.subr.bf16.mxu0 0
      %707 = vmatpush2.bf16.msra.mxu0 %v614
      %708 = vmatprep.subr.bf16.mxu0 0
      %709 = vmatpush2.bf16.msra.mxu0 %v613
      %710 = vmatprep.subr.bf16.mxu0 0
      %711 = vmatpush2.bf16.msra.mxu0 %v612
      %712 = vmatprep.subr.bf16.mxu0 0
      %713 = vmatpush2.bf16.msra.mxu0 %v611
      %714 = vmatprep.subr.bf16.mxu0 0
      %715 = vmatpush2.bf16.msra.mxu0 %v610
      %716 = vmatprep.subr.bf16.mxu0 0
      %717 = vmatpush2.bf16.msra.mxu0 %v609
      %718 = vmatprep.mubr.bf16.mxu0 %v450
      %719 = vmatmul.mubr.bf16.gmra.mxu0 %v449
      %v720 = vpop.f32.mrf.mxu0
      %v721 = vadd.f32 0.0, %v720
      %v722 = vpop.f32.mrf.mxu0
      %v723 = vpop.f32.mrf.mxu0
      %v724 = vadd.f32 0.0, %v723
      %v725 = vpop.f32.mrf.mxu0
      %726 = vmatprep.mubr.bf16.mxu0 %v453
      %727 = vmatmul.mubr.bf16.gmra.mxu0 %v452
      %v728 = vpop.f32.mrf.mxu0
      %v729 = vadd.f32 0.0, %v728
      %v730 = vpop.f32.mrf.mxu0
      %v731 = vpop.f32.mrf.mxu0
      %v732 = vadd.f32 0.0, %v731
      %v733 = vpop.f32.mrf.mxu0
      %734 = vmatprep.mubr.bf16.mxu0 %v456
      %735 = vmatmul.mubr.bf16.gmra.mxu0 %v455
      %v736 = vpop.f32.mrf.mxu0
      %v737 = vadd.f32 0.0, %v736
      %v738 = vpop.f32.mrf.mxu0
      %v739 = vpop.f32.mrf.mxu0
      %v740 = vadd.f32 0.0, %v739
      %v741 = vpop.f32.mrf.mxu0
      %742 = vmatprep.mubr.bf16.mxu0 %v459
      %743 = vmatmul.mubr.bf16.gmra.mxu0 %v458
      %v744 = vpop.f32.mrf.mxu0
      %v745 = vadd.f32 0.0, %v744
      %v746 = vpop.f32.mrf.mxu0
      %v747 = vpop.f32.mrf.mxu0
      %v748 = vadd.f32 0.0, %v747
      %v749 = vpop.f32.mrf.mxu0
      %750 = vmatprep.mubr.bf16.mxu0 %v462
      %751 = vmatmul.mubr.bf16.gmra.mxu0 %v461
      %v752 = vpop.f32.mrf.mxu0
      %v753 = vadd.f32 0.0, %v752
      %v754 = vpop.f32.mrf.mxu0
      %v755 = vpop.f32.mrf.mxu0
      %v756 = vadd.f32 0.0, %v755
      %v757 = vpop.f32.mrf.mxu0
      %758 = vmatprep.mubr.bf16.mxu0 %v465
      %759 = vmatmul.mubr.bf16.gmra.mxu0 %v464
      %v760 = vpop.f32.mrf.mxu0
      %v761 = vadd.f32 0.0, %v760
      %v762 = vpop.f32.mrf.mxu0
      %v763 = vpop.f32.mrf.mxu0
      %v764 = vadd.f32 0.0, %v763
      %v765 = vpop.f32.mrf.mxu0
      %766 = vmatprep.mubr.bf16.mxu0 %v468
      %767 = vmatmul.mubr.bf16.gmra.mxu0 %v467
      %v768 = vpop.f32.mrf.mxu0
      %v769 = vadd.f32 0.0, %v768
      %v770 = vpop.f32.mrf.mxu0
      %v771 = vpop.f32.mrf.mxu0
      %v772 = vadd.f32 0.0, %v771
      %v773 = vpop.f32.mrf.mxu0
      %774 = vmatprep.mubr.bf16.mxu0 %v471
      %775 = vmatmul.mubr.bf16.gmra.mxu0 %v470
      %v776 = vpop.f32.mrf.mxu0
      %v777 = vadd.f32 0.0, %v776
      %v778 = vpop.f32.mrf.mxu0
      %v779 = vpop.f32.mrf.mxu0
      %v780 = vadd.f32 0.0, %v779
      %v781 = vpop.f32.mrf.mxu0
      %782 = vmatprep.mubr.bf16.mxu0 %v474
      %783 = vmatmul.mubr.bf16.gmra.mxu0 %v473
      %v784 = vpop.f32.mrf.mxu0
      %v785 = vadd.f32 0.0, %v784
      %v786 = vpop.f32.mrf.mxu0
      %v787 = vpop.f32.mrf.mxu0
      %v788 = vadd.f32 0.0, %v787
      %v789 = vpop.f32.mrf.mxu0
      %790 = vmatprep.mubr.bf16.mxu0 %v477
      %791 = vmatmul.mubr.bf16.gmra.mxu0 %v476
      %v792 = vpop.f32.mrf.mxu0
      %v793 = vadd.f32 0.0, %v792
      %v794 = vpop.f32.mrf.mxu0
      %v795 = vpop.f32.mrf.mxu0
      %v796 = vadd.f32 0.0, %v795
      %v797 = vpop.f32.mrf.mxu0
      %798 = vmatprep.mubr.bf16.mxu0 %v480
      %799 = vmatmul.mubr.bf16.gmra.mxu0 %v479
      %v800 = vpop.f32.mrf.mxu0
      %v801 = vadd.f32 0.0, %v800
      %v802 = vpop.f32.mrf.mxu0
      %v803 = vpop.f32.mrf.mxu0
      %v804 = vadd.f32 0.0, %v803
      %v805 = vpop.f32.mrf.mxu0
      %806 = vmatprep.mubr.bf16.mxu0 %v483
      %807 = vmatmul.mubr.bf16.gmra.mxu0 %v482
      %v808 = vpop.f32.mrf.mxu0
      %v809 = vadd.f32 0.0, %v808
      %v810 = vpop.f32.mrf.mxu0
      %v811 = vpop.f32.mrf.mxu0
      %v812 = vadd.f32 0.0, %v811
      %v813 = vpop.f32.mrf.mxu0
      %814 = vmatprep.mubr.bf16.mxu0 %v486
      %815 = vmatmul.mubr.bf16.gmra.mxu0 %v485
      %v816 = vpop.f32.mrf.mxu0
      %v817 = vadd.f32 0.0, %v816
      %v818 = vpop.f32.mrf.mxu0
      %v819 = vpop.f32.mrf.mxu0
      %v820 = vadd.f32 0.0, %v819
      %v821 = vpop.f32.mrf.mxu0
      %822 = vmatprep.mubr.bf16.mxu0 %v489
      %823 = vmatmul.mubr.bf16.gmra.mxu0 %v488
      %v824 = vpop.f32.mrf.mxu0
      %v825 = vadd.f32 0.0, %v824
      %v826 = vpop.f32.mrf.mxu0
      %v827 = vpop.f32.mrf.mxu0
      %v828 = vadd.f32 0.0, %v827
      %v829 = vpop.f32.mrf.mxu0
      %830 = vmatprep.mubr.bf16.mxu0 %v492
      %831 = vmatmul.mubr.bf16.gmra.mxu0 %v491
      %v832 = vpop.f32.mrf.mxu0
      %v833 = vadd.f32 0.0, %v832
      %v834 = vpop.f32.mrf.mxu0
      %v835 = vpop.f32.mrf.mxu0
      %v836 = vadd.f32 0.0, %v835
      %v837 = vpop.f32.mrf.mxu0
      %838 = vmatprep.mubr.bf16.mxu0 %v495
      %839 = vmatmul.mubr.bf16.gmra.mxu0 %v494
      %v840 = vpop.f32.mrf.mxu0
      %v841 = vadd.f32 0.0, %v840
      %v842 = vpop.f32.mrf.mxu0
      %v843 = vpop.f32.mrf.mxu0
      %v844 = vadd.f32 0.0, %v843
      %v845 = vpop.f32.mrf.mxu0
      %846 = vdwg.mxu0
      %847 = vmatprep.subr.bf16.mxu0 0
      %848 = vmatpush1.bf16.msra.mxu0 0
      %849 = vmatprep.subr.bf16.mxu0 0
      %850 = vmatpush1.bf16.msra.mxu0 0
      %851 = vmatprep.subr.bf16.mxu0 0
      %852 = vmatpush1.bf16.msra.mxu0 0
      %853 = vmatprep.subr.bf16.mxu0 0
      %854 = vmatpush1.bf16.msra.mxu0 0
      %855 = vmatprep.subr.bf16.mxu0 0
      %856 = vmatpush1.bf16.msra.mxu0 0
      %857 = vmatprep.subr.bf16.mxu0 0
      %858 = vmatpush1.bf16.msra.mxu0 0
      %859 = vmatprep.subr.bf16.mxu0 0
      %860 = vmatpush1.bf16.msra.mxu0 %v618
      %861 = vmatprep.subr.bf16.mxu0 0
      %862 = vmatpush1.bf16.msra.mxu0 %v617
      %863 = vmatprep.subr.bf16.mxu0 0
      %864 = vmatpush2.bf16.msra.mxu0 0
      %865 = vmatprep.subr.bf16.mxu0 0
      %866 = vmatpush2.bf16.msra.mxu0 0
      %867 = vmatprep.subr.bf16.mxu0 0
      %868 = vmatpush2.bf16.msra.mxu0 0
      %869 = vmatprep.subr.bf16.mxu0 0
      %870 = vmatpush2.bf16.msra.mxu0 0
      %871 = vmatprep.subr.bf16.mxu0 0
      %872 = vmatpush2.bf16.msra.mxu0 0
      %873 = vmatprep.subr.bf16.mxu0 0
      %874 = vmatpush2.bf16.msra.mxu0 0
      %875 = vmatprep.subr.bf16.mxu0 0
      %876 = vmatpush2.bf16.msra.mxu0 0
      %877 = vmatprep.subr.bf16.mxu0 0
      %878 = vmatpush2.bf16.msra.mxu0 0
      %879 = vmatprep.mubr.bf16.mxu0 0
      %880 = vmatmul.mubr.bf16.gmra.mxu0 %v639
      %v881 = vpop.f32.mrf.mxu0
      %v882 = vadd.f32 %v721, %v881
      %v883 = vpop.f32.mrf.mxu0
      %v884 = vpop.f32.mrf.mxu0
      %v885 = vadd.f32 %v724, %v884
      %v886 = vpop.f32.mrf.mxu0
      %887 = vmatprep.mubr.bf16.mxu0 0
      %888 = vmatmul.mubr.bf16.gmra.mxu0 %v642
      %v889 = vpop.f32.mrf.mxu0
      %v890 = vadd.f32 %v729, %v889
      %v891 = vpop.f32.mrf.mxu0
      %v892 = vpop.f32.mrf.mxu0
      %v893 = vadd.f32 %v732, %v892
      %v894 = vpop.f32.mrf.mxu0
      %895 = vmatprep.mubr.bf16.mxu0 0
      %896 = vmatmul.mubr.bf16.gmra.mxu0 %v645
      %v897 = vpop.f32.mrf.mxu0
      %v898 = vadd.f32 %v737, %v897
      %v899 = vpop.f32.mrf.mxu0
      %v900 = vpop.f32.mrf.mxu0
      %v901 = vadd.f32 %v740, %v900
      %v902 = vpop.f32.mrf.mxu0
      %903 = vmatprep.mubr.bf16.mxu0 0
      %904 = vmatmul.mubr.bf16.gmra.mxu0 %v648
      %v905 = vpop.f32.mrf.mxu0
      %v906 = vadd.f32 %v745, %v905
      %v907 = vpop.f32.mrf.mxu0
      %v908 = vpop.f32.mrf.mxu0
      %v909 = vadd.f32 %v748, %v908
      %v910 = vpop.f32.mrf.mxu0
      %911 = vmatprep.mubr.bf16.mxu0 0
      %912 = vmatmul.mubr.bf16.gmra.mxu0 %v651
      %v913 = vpop.f32.mrf.mxu0
      %v914 = vadd.f32 %v753, %v913
      %v915 = vpop.f32.mrf.mxu0
      %v916 = vpop.f32.mrf.mxu0
      %v917 = vadd.f32 %v756, %v916
      %v918 = vpop.f32.mrf.mxu0
      %919 = vmatprep.mubr.bf16.mxu0 0
      %920 = vmatmul.mubr.bf16.gmra.mxu0 %v654
      %v921 = vpop.f32.mrf.mxu0
      %v922 = vadd.f32 %v761, %v921
      %v923 = vpop.f32.mrf.mxu0
      %v924 = vpop.f32.mrf.mxu0
      %v925 = vadd.f32 %v764, %v924
      %v926 = vpop.f32.mrf.mxu0
      %927 = vmatprep.mubr.bf16.mxu0 0
      %928 = vmatmul.mubr.bf16.gmra.mxu0 %v657
      %v929 = vpop.f32.mrf.mxu0
      %v930 = vadd.f32 %v769, %v929
      %v931 = vpop.f32.mrf.mxu0
      %v932 = vpop.f32.mrf.mxu0
      %v933 = vadd.f32 %v772, %v932
      %v934 = vpop.f32.mrf.mxu0
      %935 = vmatprep.mubr.bf16.mxu0 0
      %936 = vmatmul.mubr.bf16.gmra.mxu0 %v660
      %v937 = vpop.f32.mrf.mxu0
      %v938 = vadd.f32 %v777, %v937
      %v939 = vpop.f32.mrf.mxu0
      %v940 = vpop.f32.mrf.mxu0
      %v941 = vadd.f32 %v780, %v940
      %v942 = vpop.f32.mrf.mxu0
      %943 = vmatprep.mubr.bf16.mxu0 0
      %944 = vmatmul.mubr.bf16.gmra.mxu0 %v663
      %v945 = vpop.f32.mrf.mxu0
      %v946 = vadd.f32 %v785, %v945
      %v947 = vpop.f32.mrf.mxu0
      %v948 = vpop.f32.mrf.mxu0
      %v949 = vadd.f32 %v788, %v948
      %v950 = vpop.f32.mrf.mxu0
      %951 = vmatprep.mubr.bf16.mxu0 0
      %952 = vmatmul.mubr.bf16.gmra.mxu0 %v666
      %v953 = vpop.f32.mrf.mxu0
      %v954 = vadd.f32 %v793, %v953
      %v955 = vpop.f32.mrf.mxu0
      %v956 = vpop.f32.mrf.mxu0
      %v957 = vadd.f32 %v796, %v956
      %v958 = vpop.f32.mrf.mxu0
      %959 = vmatprep.mubr.bf16.mxu0 0
      %960 = vmatmul.mubr.bf16.gmra.mxu0 %v669
      %v961 = vpop.f32.mrf.mxu0
      %v962 = vadd.f32 %v801, %v961
      %v963 = vpop.f32.mrf.mxu0
      %v964 = vpop.f32.mrf.mxu0
      %v965 = vadd.f32 %v804, %v964
      %v966 = vpop.f32.mrf.mxu0
      %967 = vmatprep.mubr.bf16.mxu0 0
      %968 = vmatmul.mubr.bf16.gmra.mxu0 %v672
      %v969 = vpop.f32.mrf.mxu0
      %v970 = vadd.f32 %v809, %v969
      %v971 = vpop.f32.mrf.mxu0
      %v972 = vpop.f32.mrf.mxu0
      %v973 = vadd.f32 %v812, %v972
      %v974 = vpop.f32.mrf.mxu0
      %975 = vmatprep.mubr.bf16.mxu0 0
      %976 = vmatmul.mubr.bf16.gmra.mxu0 %v675
      %v977 = vpop.f32.mrf.mxu0
      %v978 = vadd.f32 %v817, %v977
      %v979 = vpop.f32.mrf.mxu0
      %v980 = vpop.f32.mrf.mxu0
      %v981 = vadd.f32 %v820, %v980
      %v982 = vpop.f32.mrf.mxu0
      %983 = vmatprep.mubr.bf16.mxu0 0
      %984 = vmatmul.mubr.bf16.gmra.mxu0 %v678
      %v985 = vpop.f32.mrf.mxu0
      %v986 = vadd.f32 %v825, %v985
      %v987 = vpop.f32.mrf.mxu0
      %v988 = vpop.f32.mrf.mxu0
      %v989 = vadd.f32 %v828, %v988
      %v990 = vpop.f32.mrf.mxu0
      %991 = vmatprep.mubr.bf16.mxu0 0
      %992 = vmatmul.mubr.bf16.gmra.mxu0 %v681
      %v993 = vpop.f32.mrf.mxu0
      %v994 = vadd.f32 %v833, %v993
      %v995 = vpop.f32.mrf.mxu0
      %v996 = vpop.f32.mrf.mxu0
      %v997 = vadd.f32 %v836, %v996
      %v998 = vpop.f32.mrf.mxu0
      %999 = vmatprep.mubr.bf16.mxu0 0
      %1000 = vmatmul.mubr.bf16.gmra.mxu0 %v684
      %v1001 = vpop.f32.mrf.mxu0
      %v1002 = vadd.f32 %v841, %v1001
      %v1003 = vpop.f32.mrf.mxu0
      %v1004 = vpop.f32.mrf.mxu0
      %v1005 = vadd.f32 %v844, %v1004
      %v1006 = vpop.f32.mrf.mxu0
      %1007 = vdwg.mxu0
      %v1008 = vpack.c.bf16 %v885, %v882
      %v1009 = vpack.c.bf16 %v893, %v890
      %v1010 = vpack.c.bf16 %v901, %v898
      %v1011 = vpack.c.bf16 %v909, %v906
      %v1012 = vpack.c.bf16 %v917, %v914
      %v1013 = vpack.c.bf16 %v925, %v922
      %v1014 = vpack.c.bf16 %v933, %v930
      %v1015 = vpack.c.bf16 %v941, %v938
      %v1016 = vpack.c.bf16 %v949, %v946
      %v1017 = vpack.c.bf16 %v957, %v954
      %v1018 = vpack.c.bf16 %v965, %v962
      %v1019 = vpack.c.bf16 %v973, %v970
      %v1020 = vpack.c.bf16 %v981, %v978
      %v1021 = vpack.c.bf16 %v989, %v986
      %v1022 = vpack.c.bf16 %v997, %v994
      %v1023 = vpack.c.bf16 %v1005, %v1002
      %v1040 = vunpack.c.l.b16 %v1008
      %v1041 = vunpack.c.h.b16 %v1008
      %v1042 = vunpack.c.l.b16 %v1009
      %v1043 = vunpack.c.h.b16 %v1009
      %v1044 = vunpack.c.l.b16 %v1010
      %v1045 = vunpack.c.h.b16 %v1010
      %v1046 = vunpack.c.l.b16 %v1011
      %v1047 = vunpack.c.h.b16 %v1011
      %v1048 = vunpack.c.l.b16 %v1012
      %v1049 = vunpack.c.h.b16 %v1012
      %v1050 = vunpack.c.l.b16 %v1013
      %v1051 = vunpack.c.h.b16 %v1013
      %v1052 = vunpack.c.l.b16 %v1014
      %v1053 = vunpack.c.h.b16 %v1014
      %v1054 = vunpack.c.l.b16 %v1015
      %v1055 = vunpack.c.h.b16 %v1015
      %v1056 = vunpack.c.l.b16 %v1016
      %v1057 = vunpack.c.h.b16 %v1016
      %v1058 = vunpack.c.l.b16 %v1017
      %v1059 = vunpack.c.h.b16 %v1017
      %v1060 = vunpack.c.l.b16 %v1018
      %v1061 = vunpack.c.h.b16 %v1018
      %v1062 = vunpack.c.l.b16 %v1019
      %v1063 = vunpack.c.h.b16 %v1019
      %v1064 = vunpack.c.l.b16 %v1020
      %v1065 = vunpack.c.h.b16 %v1020
      %v1066 = vunpack.c.l.b16 %v1021
      %v1067 = vunpack.c.h.b16 %v1021
      %v1068 = vunpack.c.l.b16 %v1022
      %v1069 = vunpack.c.h.b16 %v1022
      %v1070 = vunpack.c.l.b16 %v1023
      %v1071 = vunpack.c.h.b16 %v1023
      %v1072 = vpack.c.b16 %v1040, %v1040
      %v1073 = vpack.c.b16 %v1041, %v1041
      %v1074 = vpack.c.b16 %v1042, %v1042
      %v1075 = vpack.c.b16 %v1043, %v1043
      %v1076 = vpack.c.b16 %v1044, %v1044
      %v1077 = vpack.c.b16 %v1045, %v1045
      %v1078 = vpack.c.b16 %v1046, %v1046
      %v1079 = vpack.c.b16 %v1047, %v1047
      %v1080 = vpack.c.b16 %v1048, %v1048
      %v1081 = vpack.c.b16 %v1049, %v1049
      %v1082 = vpack.c.b16 %v1050, %v1050
      %v1083 = vpack.c.b16 %v1051, %v1051
      %v1084 = vpack.c.b16 %v1052, %v1052
      %v1085 = vpack.c.b16 %v1053, %v1053
      %v1086 = vpack.c.b16 %v1054, %v1054
      %v1087 = vpack.c.b16 %v1055, %v1055
      %v1088 = vpack.c.b16 %v1056, %v1056
      %v1089 = vpack.c.b16 %v1057, %v1057
      %v1090 = vpack.c.b16 %v1058, %v1058
      %v1091 = vpack.c.b16 %v1059, %v1059
      %v1092 = vpack.c.b16 %v1060, %v1060
      %v1093 = vpack.c.b16 %v1061, %v1061
      %v1094 = vpack.c.b16 %v1062, %v1062
      %v1095 = vpack.c.b16 %v1063, %v1063
      %v1096 = vpack.c.b16 %v1064, %v1064
      %v1097 = vpack.c.b16 %v1065, %v1065
      %v1098 = vpack.c.b16 %v1066, %v1066
      %v1099 = vpack.c.b16 %v1067, %v1067
      %v1100 = vpack.c.b16 %v1068, %v1068
      %v1101 = vpack.c.b16 %v1069, %v1069
      %v1102 = vpack.c.b16 %v1070, %v1070
      %v1103 = vpack.c.b16 %v1071, %v1071
      %vm1136 = vcmask 257024
      %1137 = vst.msk [vmem:[%s182] sm:$0xf] %vm1136, %v1072
      %1138 = vst.msk [vmem:[%s182 + $0x4] sm:$0xf] %vm1136, %v1073
      %1139 = vst.msk [vmem:[%s182 + $0x8] sm:$0xf] %vm1136, %v1074
      %1140 = vst.msk [vmem:[%s182 + $0xc] sm:$0xf] %vm1136, %v1075
      %1141 = vst.msk [vmem:[%s182 + $0x10] sm:$0xf] %vm1136, %v1076
      %1142 = vst.msk [vmem:[%s182 + $0x14] sm:$0xf] %vm1136, %v1077
      %1143 = vst.msk [vmem:[%s182 + $0x18] sm:$0xf] %vm1136, %v1078
      %1144 = vst.msk [vmem:[%s182 + $0x1c] sm:$0xf] %vm1136, %v1079
      %1145 = vst.msk [vmem:[%s182 + $0x20] sm:$0xf] %vm1136, %v1080
      %1146 = vst.msk [vmem:[%s182 + $0x24] sm:$0xf] %vm1136, %v1081
      %1147 = vst.msk [vmem:[%s182 + $0x28] sm:$0xf] %vm1136, %v1082
      %1148 = vst.msk [vmem:[%s182 + $0x2c] sm:$0xf] %vm1136, %v1083
      %1149 = vst.msk [vmem:[%s182 + $0x30] sm:$0xf] %vm1136, %v1084
      %1150 = vst.msk [vmem:[%s182 + $0x34] sm:$0xf] %vm1136, %v1085
      %1151 = vst.msk [vmem:[%s182 + $0x38] sm:$0xf] %vm1136, %v1086
      %1152 = vst.msk [vmem:[%s182 + $0x3c] sm:$0xf] %vm1136, %v1087
      %1153 = vst.msk [vmem:[%s182 + $0x40] sm:$0xf] %vm1136, %v1088
      %1154 = vst.msk [vmem:[%s182 + $0x44] sm:$0xf] %vm1136, %v1089
      %1155 = vst.msk [vmem:[%s182 + $0x48] sm:$0xf] %vm1136, %v1090
      %1156 = vst.msk [vmem:[%s182 + $0x4c] sm:$0xf] %vm1136, %v1091
      %1157 = vst.msk [vmem:[%s182 + $0x50] sm:$0xf] %vm1136, %v1092
      %1158 = vst.msk [vmem:[%s182 + $0x54] sm:$0xf] %vm1136, %v1093
      %1159 = vst.msk [vmem:[%s182 + $0x58] sm:$0xf] %vm1136, %v1094
      %1160 = vst.msk [vmem:[%s182 + $0x5c] sm:$0xf] %vm1136, %v1095
      %1161 = vst.msk [vmem:[%s182 + $0x60] sm:$0xf] %vm1136, %v1096
      %1162 = vst.msk [vmem:[%s182 + $0x64] sm:$0xf] %vm1136, %v1097
      %1163 = vst.msk [vmem:[%s182 + $0x68] sm:$0xf] %vm1136, %v1098
      %1164 = vst.msk [vmem:[%s182 + $0x6c] sm:$0xf] %vm1136, %v1099
      %1165 = vst.msk [vmem:[%s182 + $0x70] sm:$0xf] %vm1136, %v1100
      %1166 = vst.msk [vmem:[%s182 + $0x74] sm:$0xf] %vm1136, %v1101
      %1167 = vst.msk [vmem:[%s182 + $0x78] sm:$0xf] %vm1136, %v1102
      %1168 = vst.msk [vmem:[%s182 + $0x7c] sm:$0xf] %vm1136, %v1103
      %v1169 = vsel %vm637, %v882, 0.0
      %v1170 = vsel %vm637, %v885, 0.0
      %v1171 = vadd.f32 %v1169, %v1170
      %v1172 = vsel %vm637, %v890, 0.0
      %v1173 = vadd.f32 %v1171, %v1172
      %v1174 = vsel %vm637, %v893, 0.0
      %v1175 = vadd.f32 %v1173, %v1174
      %v1176 = vsel %vm637, %v898, 0.0
      %v1177 = vadd.f32 %v1175, %v1176
      %v1178 = vsel %vm637, %v901, 0.0
      %v1179 = vadd.f32 %v1177, %v1178
      %v1180 = vsel %vm637, %v906, 0.0
      %v1181 = vadd.f32 %v1179, %v1180
      %v1182 = vsel %vm637, %v909, 0.0
      %v1183 = vadd.f32 %v1181, %v1182
      %v1184 = vsel %vm637, %v914, 0.0
      %v1185 = vadd.f32 %v1183, %v1184
      %v1186 = vsel %vm637, %v917, 0.0
      %v1187 = vadd.f32 %v1185, %v1186
      %v1188 = vsel %vm637, %v922, 0.0
      %v1189 = vadd.f32 %v1187, %v1188
      %v1190 = vsel %vm637, %v925, 0.0
      %v1191 = vadd.f32 %v1189, %v1190
      %v1192 = vsel %vm637, %v930, 0.0
      %v1193 = vadd.f32 %v1191, %v1192
      %v1194 = vsel %vm637, %v933, 0.0
      %v1195 = vadd.f32 %v1193, %v1194
      %v1196 = vsel %vm637, %v938, 0.0
      %v1197 = vadd.f32 %v1195, %v1196
      %v1198 = vsel %vm637, %v941, 0.0
      %v1199 = vadd.f32 %v1197, %v1198
      %v1200 = vsel %vm637, %v946, 0.0
      %v1201 = vadd.f32 %v1199, %v1200
      %v1202 = vsel %vm637, %v949, 0.0
      %v1203 = vadd.f32 %v1201, %v1202
      %v1204 = vsel %vm637, %v954, 0.0
      %v1205 = vadd.f32 %v1203, %v1204
      %v1206 = vsel %vm637, %v957, 0.0
      %v1207 = vadd.f32 %v1205, %v1206
      %v1208 = vsel %vm637, %v962, 0.0
      %v1209 = vadd.f32 %v1207, %v1208
      %v1210 = vsel %vm637, %v965, 0.0
      %v1211 = vadd.f32 %v1209, %v1210
      %v1212 = vsel %vm637, %v970, 0.0
      %v1213 = vadd.f32 %v1211, %v1212
      %v1214 = vsel %vm637, %v973, 0.0
      %v1215 = vadd.f32 %v1213, %v1214
      %v1216 = vsel %vm637, %v978, 0.0
      %v1217 = vadd.f32 %v1215, %v1216
      %v1218 = vsel %vm637, %v981, 0.0
      %v1219 = vadd.f32 %v1217, %v1218
      %v1220 = vsel %vm637, %v986, 0.0
      %v1221 = vadd.f32 %v1219, %v1220
      %v1222 = vsel %vm637, %v989, 0.0
      %v1223 = vadd.f32 %v1221, %v1222
      %v1224 = vsel %vm637, %v994, 0.0
      %v1225 = vadd.f32 %v1223, %v1224
      %v1226 = vsel %vm637, %v997, 0.0
      %v1227 = vadd.f32 %v1225, %v1226
      %v1228 = vsel %vm637, %v1002, 0.0
      %v1229 = vadd.f32 %v1227, %v1228
      %v1230 = vsel %vm637, %v1005, 0.0
      %v1231 = vadd.f32 %v1229, %v1230
      %v1232 = vrot.slane %v1231, 4
      %v1233 = vadd.f32 %v1231, %v1232
      %v1234 = vrot.slane %v1233, 2
      %v1235 = vadd.f32 %v1233, %v1234
      %v1236 = vrot.slane %v1235, 1
      %v1237 = vadd.f32 %v1235, %v1236
      %v1238 = vmul.f32 %v882, %v882
      %v1239 = vmul.f32 %v885, %v885
      %v1240 = vmul.f32 %v890, %v890
      %v1241 = vmul.f32 %v893, %v893
      %v1242 = vmul.f32 %v898, %v898
      %v1243 = vmul.f32 %v901, %v901
      %v1244 = vmul.f32 %v906, %v906
      %v1245 = vmul.f32 %v909, %v909
      %v1246 = vmul.f32 %v914, %v914
      %v1247 = vmul.f32 %v917, %v917
      %v1248 = vmul.f32 %v922, %v922
      %v1249 = vmul.f32 %v925, %v925
      %v1250 = vmul.f32 %v930, %v930
      %v1251 = vmul.f32 %v933, %v933
      %v1252 = vmul.f32 %v938, %v938
      %v1253 = vmul.f32 %v941, %v941
      %v1254 = vmul.f32 %v946, %v946
      %v1255 = vmul.f32 %v949, %v949
      %v1256 = vmul.f32 %v954, %v954
      %v1257 = vmul.f32 %v957, %v957
      %v1258 = vmul.f32 %v962, %v962
      %v1259 = vmul.f32 %v965, %v965
      %v1260 = vmul.f32 %v970, %v970
      %v1261 = vmul.f32 %v973, %v973
      %v1262 = vmul.f32 %v978, %v978
      %v1263 = vmul.f32 %v981, %v981
      %v1264 = vmul.f32 %v986, %v986
      %v1265 = vmul.f32 %v989, %v989
      %v1266 = vmul.f32 %v994, %v994
      %v1267 = vmul.f32 %v997, %v997
      %v1268 = vmul.f32 %v1002, %v1002
      %v1269 = vmul.f32 %v1005, %v1005
      %v1270 = vsel %vm637, %v1238, 0.0
      %v1271 = vsel %vm637, %v1239, 0.0
      %v1272 = vadd.f32 %v1270, %v1271
      %v1273 = vsel %vm637, %v1240, 0.0
      %v1274 = vadd.f32 %v1272, %v1273
      %v1275 = vsel %vm637, %v1241, 0.0
      %v1276 = vadd.f32 %v1274, %v1275
      %v1277 = vsel %vm637, %v1242, 0.0
      %v1278 = vadd.f32 %v1276, %v1277
      %v1279 = vsel %vm637, %v1243, 0.0
      %v1280 = vadd.f32 %v1278, %v1279
      %v1281 = vsel %vm637, %v1244, 0.0
      %v1282 = vadd.f32 %v1280, %v1281
      %v1283 = vsel %vm637, %v1245, 0.0
      %v1284 = vadd.f32 %v1282, %v1283
      %v1285 = vsel %vm637, %v1246, 0.0
      %v1286 = vadd.f32 %v1284, %v1285
      %v1287 = vsel %vm637, %v1247, 0.0
      %v1288 = vadd.f32 %v1286, %v1287
      %v1289 = vsel %vm637, %v1248, 0.0
      %v1290 = vadd.f32 %v1288, %v1289
      %v1291 = vsel %vm637, %v1249, 0.0
      %v1292 = vadd.f32 %v1290, %v1291
      %v1293 = vsel %vm637, %v1250, 0.0
      %v1294 = vadd.f32 %v1292, %v1293
      %v1295 = vsel %vm637, %v1251, 0.0
      %v1296 = vadd.f32 %v1294, %v1295
      %v1297 = vsel %vm637, %v1252, 0.0
      %v1298 = vadd.f32 %v1296, %v1297
      %v1299 = vsel %vm637, %v1253, 0.0
      %v1300 = vadd.f32 %v1298, %v1299
      %v1301 = vsel %vm637, %v1254, 0.0
      %v1302 = vadd.f32 %v1300, %v1301
      %v1303 = vsel %vm637, %v1255, 0.0
      %v1304 = vadd.f32 %v1302, %v1303
      %v1305 = vsel %vm637, %v1256, 0.0
      %v1306 = vadd.f32 %v1304, %v1305
      %v1307 = vsel %vm637, %v1257, 0.0
      %v1308 = vadd.f32 %v1306, %v1307
      %v1309 = vsel %vm637, %v1258, 0.0
      %v1310 = vadd.f32 %v1308, %v1309
      %v1311 = vsel %vm637, %v1259, 0.0
      %v1312 = vadd.f32 %v1310, %v1311
      %v1313 = vsel %vm637, %v1260, 0.0
      %v1314 = vadd.f32 %v1312, %v1313
      %v1315 = vsel %vm637, %v1261, 0.0
      %v1316 = vadd.f32 %v1314, %v1315
      %v1317 = vsel %vm637, %v1262, 0.0
      %v1318 = vadd.f32 %v1316, %v1317
      %v1319 = vsel %vm637, %v1263, 0.0
      %v1320 = vadd.f32 %v1318, %v1319
      %v1321 = vsel %vm637, %v1264, 0.0
      %v1322 = vadd.f32 %v1320, %v1321
      %v1323 = vsel %vm637, %v1265, 0.0
      %v1324 = vadd.f32 %v1322, %v1323
      %v1325 = vsel %vm637, %v1266, 0.0
      %v1326 = vadd.f32 %v1324, %v1325
      %v1327 = vsel %vm637, %v1267, 0.0
      %v1328 = vadd.f32 %v1326, %v1327
      %v1329 = vsel %vm637, %v1268, 0.0
      %v1330 = vadd.f32 %v1328, %v1329
      %v1331 = vsel %vm637, %v1269, 0.0
      %v1332 = vadd.f32 %v1330, %v1331
      %v1333 = vrot.slane %v1332, 4
      %v1334 = vadd.f32 %v1332, %v1333
      %v1335 = vrot.slane %v1334, 2
      %v1336 = vadd.f32 %v1334, %v1335
      %v1337 = vrot.slane %v1336, 1
      %v1338 = vadd.f32 %v1336, %v1337
      %vm1339 = vcmask 1040384
      %v1340 = vsel %vm1339, %v1237, %v1338
      %vm1341 = vcmask 254976
      %1342 = vst.msk [vmem:[%s187] sm:$0x3] %vm1341, %v1340
      %s1343 = smul.u32 32, %s15
      %p1344 = scmp.lt.s32.totalorder %s1343, 63
      %s1345 = scalar_select %p1344, %s1343, 63
      %s1346 = smul.addr %s1345, 4
      %s1347 = scalar_lea.vmem %s2, %s1346
      %p1348 = scmp.lt.s32.totalorder %s15, 1
      %s1349 = scalar_select %p1348, %s15, 1
      %s1350 = smul.addr %s1349, 2
      %s1351 = scalar_lea.vmem %s3, %s1350
      // Predicated region
      $region29: #{stem_forward.22} parent=27 // pred_check
        %p1352 = pneg %p80
      $region30: #{stem_forward.22} parent=27 // pred_check_branch
        %1354 = sbr.rel (%p1352) target = $region32
      $region31: #{stem_forward.22} parent=27 // pred_region
        %s1355 = smul.u32 32, %s15
      $region32: #{stem_forward.22} parent=27 // pred_fallthru
        _
      // Predicated region
      $region33: #{stem_forward.22} parent=27 // pred_check
        %p1356 = pneg %p106
      $region34: #{stem_forward.22} parent=27 // pred_check_branch
        %1358 = sbr.rel (%p1356) target = $region36
      $region35: #{stem_forward.22} parent=27 // pred_region
        _
      $region36: #{stem_forward.22} parent=27 // pred_fallthru
        _
    $region28: #{stem_forward.22} parent=5 // pred_fallthru
      _
    %p1359 = scmp.le.s32.totalorder 2, %s10
    // Predicated region
    $region37: #{stem_forward.22} parent=5 // pred_check
      %p1360 = pneg %p1359
    $region38: #{stem_forward.22} parent=5 // pred_check_branch
      %1362 = sbr.rel (%p1360) target = $region40
    $region39: #{stem_forward.22} parent=5 // pred_region
      %s1363 = ssub.s32 %s10, 2
      // Predicated region
      $region41: #{stem_forward.22} parent=39 // pred_check
        %p1364 = pneg %p86
      $region42: #{stem_forward.22} parent=39 // pred_check_branch
        %1366 = sbr.rel (%p1364) target = $region44
      $region43: #{stem_forward.22} parent=39 // pred_region
        %s1367 = smul.u32 32, %s16
        %p1368 = scmp.lt.s32.totalorder %s1367, 63
        %s1369 = scalar_select %p1368, %s1367, 63
        %s1370 = smul.addr %s1369, 4
        %s1371 = scalar_lea.vmem %s2, %s1370
      $region44: #{stem_forward.22} parent=39 // pred_fallthru
        _
      // Predicated region
      $region45: #{stem_forward.22} parent=39 // pred_check
        %p1372 = pneg %p112
      $region46: #{stem_forward.22} parent=39 // pred_check_branch
        %1374 = sbr.rel (%p1372) target = $region48
      $region47: #{stem_forward.22} parent=39 // pred_region
        %p1375 = scmp.lt.s32.totalorder %s16, 1
        %s1376 = scalar_select %p1375, %s16, 1
        %s1377 = smul.addr %s1376, 2
        %s1378 = scalar_lea.vmem %s3, %s1377
      $region48: #{stem_forward.22} parent=39 // pred_fallthru
        _
    $region40: #{stem_forward.22} parent=5 // pred_fallthru
      _
  $region6: #{stem_forward.22} parent=0 // loop_footer
    %s14 = sadd.s32 1, %s10
  $region7: #{stem_forward.22} parent=0 // loop_footer_branch
    %9 = sbr.rel target = $region3
  $region8: #{stem_forward.22} parent=0 // loop_exit
    _

// kernel: stem_forward.25
$region0: #{stem_forward.25}
  #allocation0 [shape = 'u32[]', space=smem, size = 0x4, offset = 0x4, fixed_abs, tag = 'smem constant byte address 0x4 - core index']
  #allocation1 [shape = 'u32[144,128]{1,0:T(1,128)}', space=vmem, size = 0x12000, scoped, tag = 'internal scratch']
  %s0 = inlined_call_operand.vmem [shape: bf16[512,64], index: 0, kind: input, shape index: {}]
  %s1 = inlined_call_operand.vmem [shape: f32[1,64], index: 1, kind: input, shape index: {}]
  %s2 = inlined_call_operand.vmem [shape: f32[1,64], index: 2, kind: input, shape index: {}]
  %s3 = inlined_call_operand.vmem [shape: bf16[512,64], index: 3, kind: output, shape index: {}]
  %s4 = sld [smem:[#allocation0]]
  $region45: #{stem_forward.25} parent=0
    _
  %s6 = ssub.s32 1, %s4
  %s7 = scalar_select 0, %s6, %s4
  loop: start=0, step=1, limit=4
  $region2: #{stem_forward.25} parent=0 // loop_pre_header
    _
  $region3: #{stem_forward.25} parent=0 // loop_header
    %s9 = sphi 0, %s13
    %p10 = scmp.ge.s32.totalorder %s9, 4
    %s19 = sphi 0, %s21
    %s22 = sphi 0, %s19
    %s23 = sphi 0, %s22
    %s39 = sphi 0, %s23
    %s43 = sphi 0, %s43
    %s45 = sphi 0, %s43
    %s46 = sphi 0, %s45
    %s60 = sphi 0, %s46
    %s64 = sphi 0, %s64
    %s66 = sphi 0, %s64
    %s67 = sphi 0, %s66
    %s81 = sphi 0, %s67
    %s87 = sphi 0, %s89
    %s90 = sphi 0, %s87
    %s91 = sphi 0, %s90
    %s107 = sphi 0, %s91
  $region4: #{stem_forward.25} parent=0 // loop_header_branch
    %12 = sbr.rel (%p10) target = $region8
  $region5: #{stem_forward.25} parent=0 // loop_body
    %s14 = ssub.s32 %s9, 1
    %s15 = ssub.s32 %s9, 2
    %s16 = sadd.s32 %s9, 1
    %s17 = ssub.s32 %s9, %s16
    %p18 = scmp.eq.s32.totalorder %s17, 0
    %s20 = sadd.s32 %s19, 1
    %s21 = scalar_select %p18, %s19, %s20
    %p24 = pneg %p18
    %p25 = scmp.eq.s32.totalorder %s9, 1
    %p26 = por %p24, %p25
    %p27 = scmp.ne.s32.totalorder %s19, %s22
    %p28 = scmp.eq.s32.totalorder %s9, 0
    %p29 = por %p27, %p28
    %p30 = scmp.ne.s32.totalorder %s19, %s22
    %p31 = scmp.eq.s32.totalorder %s14, 1
    %p32 = por %p30, %p31
    %p33 = scmp.ne.s32.totalorder %s22, %s23
    %p34 = scmp.eq.s32.totalorder %s14, 0
    %p35 = por %p33, %p34
    %p36 = scmp.ne.s32.totalorder %s22, %s23
    %p37 = scmp.eq.s32.totalorder %s15, 1
    %p38 = por %p36, %p37
    %p40 = scmp.ne.s32.totalorder %s23, %s39
    %p41 = scmp.eq.s32.totalorder %s15, 0
    %p42 = por %p40, %p41
    %s44 = sadd.s32 %s43, 1
    %p47 = scmp.eq.s32.totalorder %s9, 1
    %p48 = scmp.ne.s32.totalorder %s43, %s45
    %p49 = scmp.eq.s32.totalorder %s9, 0
    %p50 = por %p48, %p49
    %p51 = scmp.ne.s32.totalorder %s43, %s45
    %p52 = scmp.eq.s32.totalorder %s14, 1
    %p53 = por %p51, %p52
    %p54 = scmp.ne.s32.totalorder %s45, %s46
    %p55 = scmp.eq.s32.totalorder %s14, 0
    %p56 = por %p54, %p55
    %p57 = scmp.ne.s32.totalorder %s45, %s46
    %p58 = scmp.eq.s32.totalorder %s15, 1
    %p59 = por %p57, %p58
    %p61 = scmp.ne.s32.totalorder %s46, %s60
    %p62 = scmp.eq.s32.totalorder %s15, 0
    %p63 = por %p61, %p62
    %s65 = sadd.s32 %s64, 1
    %p68 = scmp.eq.s32.totalorder %s9, 1
    %p69 = scmp.ne.s32.totalorder %s64, %s66
    %p70 = scmp.eq.s32.totalorder %s9, 0
    %p71 = por %p69, %p70
    %p72 = scmp.ne.s32.totalorder %s64, %s66
    %p73 = scmp.eq.s32.totalorder %s14, 1
    %p74 = por %p72, %p73
    %p75 = scmp.ne.s32.totalorder %s66, %s67
    %p76 = scmp.eq.s32.totalorder %s14, 0
    %p77 = por %p75, %p76
    %p78 = scmp.ne.s32.totalorder %s66, %s67
    %p79 = scmp.eq.s32.totalorder %s15, 1
    %p80 = por %p78, %p79
    %p82 = scmp.ne.s32.totalorder %s67, %s81
    %p83 = scmp.eq.s32.totalorder %s15, 0
    %p84 = por %p82, %p83
    %s85 = ssub.s32 %s9, %s16
    %p86 = scmp.eq.s32.totalorder %s85, 0
    %s88 = sadd.s32 %s87, 1
    %s89 = scalar_select %p86, %s87, %s88
    %p92 = pneg %p86
    %p93 = scmp.eq.s32.totalorder %s9, 1
    %p94 = por %p92, %p93
    %p95 = scmp.ne.s32.totalorder %s87, %s90
    %p96 = scmp.eq.s32.totalorder %s9, 0
    %p97 = por %p95, %p96
    %p98 = scmp.ne.s32.totalorder %s87, %s90
    %p99 = scmp.eq.s32.totalorder %s14, 1
    %p100 = por %p98, %p99
    %p101 = scmp.ne.s32.totalorder %s90, %s91
    %p102 = scmp.eq.s32.totalorder %s14, 0
    %p103 = por %p101, %p102
    %p104 = scmp.ne.s32.totalorder %s90, %s91
    %p105 = scmp.eq.s32.totalorder %s15, 1
    %p106 = por %p104, %p105
    %p108 = scmp.ne.s32.totalorder %s91, %s107
    %p109 = scmp.eq.s32.totalorder %s15, 0
    %p110 = por %p108, %p109
    %p111 = scmp.le.s32.totalorder 1, %s9
    %p112 = scmp.lt.s32.totalorder %s9, 3
    %p113 = pnand %p111, %p112
    %p114 = pneg %p113
    // Predicated region
    $region9: #{stem_forward.25} parent=5 // pred_check
      _
    $region10: #{stem_forward.25} parent=5 // pred_check_branch
      %116 = sbr.rel (%p113) target = $region12
    $region11: #{stem_forward.25} parent=5 // pred_region
      %s117 = ssub.s32 %s9, 1
      // Predicated region
      $region13: #{stem_forward.25} parent=11 // pred_check
        %p118 = pneg %p56
      $region14: #{stem_forward.25} parent=11 // pred_check_branch
        %120 = sbr.rel (%p118) target = $region16
      $region15: #{stem_forward.25} parent=11 // pred_region
        _
      $region16: #{stem_forward.25} parent=11 // pred_fallthru
        _
      // Predicated region
      $region17: #{stem_forward.25} parent=11 // pred_check
        %p121 = pneg %p77
      $region18: #{stem_forward.25} parent=11 // pred_check_branch
        %123 = sbr.rel (%p121) target = $region20
      $region19: #{stem_forward.25} parent=11 // pred_region
        _
      $region20: #{stem_forward.25} parent=11 // pred_fallthru
        _
    $region12: #{stem_forward.25} parent=5 // pred_fallthru
      _
    %p124 = scmp.lt.s32.totalorder %s9, 2
    // Predicated region
    $region21: #{stem_forward.25} parent=5 // pred_check
      %p125 = pneg %p124
    $region22: #{stem_forward.25} parent=5 // pred_check_branch
      %127 = sbr.rel (%p125) target = $region24
    $region23: #{stem_forward.25} parent=5 // pred_region
      // Predicated region
      $region25: #{stem_forward.25} parent=23 // pred_check
        %p128 = pneg %p29
      $region26: #{stem_forward.25} parent=23 // pred_check_branch
        %130 = sbr.rel (%p128) target = $region28
      $region27: #{stem_forward.25} parent=23 // pred_region
        %s131 = smul.u32 32, %s9
        %p132 = scmp.lt.s32.totalorder %s131, 63
        %s133 = scalar_select %p132, %s131, 63
        %s134 = smul.addr %s133, 4
        %s135 = scalar_lea.vmem %s0, %s134
        %s136 = smul.u32 32, %s9
      $region28: #{stem_forward.25} parent=23 // pred_fallthru
        _
    $region24: #{stem_forward.25} parent=5 // pred_fallthru
      _
    %p137 = scmp.le.s32.totalorder 1, %s9
    %p138 = scmp.lt.s32.totalorder %s9, 3
    %p139 = pnand %p137, %p138
    %p140 = pneg %p139
    // Predicated region
    $region29: #{stem_forward.25} parent=5 // pred_check
      _
    $region30: #{stem_forward.25} parent=5 // pred_check_branch
      %142 = sbr.rel (%p139) target = $region32
    $region31: #{stem_forward.25} parent=5 // pred_region
      %s143 = ssub.s32 %s9, 1
      %s144 = smul.u32 32, %s14
      %p145 = scmp.lt.s32.totalorder %s144, 63
      %s146 = scalar_select %p145, %s144, 63
      %s147 = smul.addr %s146, 4
      %s148 = scalar_lea.vmem %s0, %s147
      %p149 = pneg %p35
      %p150 = pneg %p32
      %p151 = pneg %p56
      %p152 = pneg %p53
      %p153 = pneg %p77
      %p154 = pneg %p74
      %p155 = pneg %p103
      %p156 = pneg %p100
      %s157 = smul.u32 32, %s14
      %p158 = scmp.lt.s32.totalorder %s157, 63
      %s159 = scalar_select %p158, %s157, 63
      %s160 = smul.addr %s159, 4
      %s161 = scalar_lea.vmem %s3, %s160
      %s162 = smul.u32 32, %s14
      %p163 = scmp.lt.s32.totalorder %s162, 63
      %s164 = scalar_select %p163, %s162, 63
      %s165 = smul.addr %s164, 4
      %s166 = scalar_lea.vmem %s0, %s165
      %s167 = smul.u32 32, %s14
      %s168 = smul.u32 32, %s14
      %p169 = scmp.lt.s32.totalorder %s168, 63
      %s170 = scalar_select %p169, %s168, 63
      %s171 = smul.addr %s170, 4
      %s172 = scalar_lea.vmem %s3, %s171
      %s173 = smul.u32 32, %s14
      %v174 = vld [vmem:[%s166] sm:$0xf]
      %v175 = vld [vmem:[%s166 + $0x4] sm:$0xf]
      %v176 = vld [vmem:[%s166 + $0x8] sm:$0xf]
      %v177 = vld [vmem:[%s166 + $0xc] sm:$0xf]
      %v178 = vld [vmem:[%s166 + $0x10] sm:$0xf]
      %v179 = vld [vmem:[%s166 + $0x14] sm:$0xf]
      %v180 = vld [vmem:[%s166 + $0x18] sm:$0xf]
      %v181 = vld [vmem:[%s166 + $0x1c] sm:$0xf]
      %v182 = vld [vmem:[%s166 + $0x20] sm:$0xf]
      %v183 = vld [vmem:[%s166 + $0x24] sm:$0xf]
      %v184 = vld [vmem:[%s166 + $0x28] sm:$0xf]
      %v185 = vld [vmem:[%s166 + $0x2c] sm:$0xf]
      %v186 = vld [vmem:[%s166 + $0x30] sm:$0xf]
      %v187 = vld [vmem:[%s166 + $0x34] sm:$0xf]
      %v188 = vld [vmem:[%s166 + $0x38] sm:$0xf]
      %v189 = vld [vmem:[%s166 + $0x3c] sm:$0xf]
      %v190 = vld [vmem:[%s166 + $0x40] sm:$0xf]
      %v191 = vld [vmem:[%s166 + $0x44] sm:$0xf]
      %v192 = vld [vmem:[%s166 + $0x48] sm:$0xf]
      %v193 = vld [vmem:[%s166 + $0x4c] sm:$0xf]
      %v194 = vld [vmem:[%s166 + $0x50] sm:$0xf]
      %v195 = vld [vmem:[%s166 + $0x54] sm:$0xf]
      %v196 = vld [vmem:[%s166 + $0x58] sm:$0xf]
      %v197 = vld [vmem:[%s166 + $0x5c] sm:$0xf]
      %v198 = vld [vmem:[%s166 + $0x60] sm:$0xf]
      %v199 = vld [vmem:[%s166 + $0x64] sm:$0xf]
      %v200 = vld [vmem:[%s166 + $0x68] sm:$0xf]
      %v201 = vld [vmem:[%s166 + $0x6c] sm:$0xf]
      %v202 = vld [vmem:[%s166 + $0x70] sm:$0xf]
      %v203 = vld [vmem:[%s166 + $0x74] sm:$0xf]
      %v204 = vld [vmem:[%s166 + $0x78] sm:$0xf]
      %v205 = vld [vmem:[%s166 + $0x7c] sm:$0xf]
      %v206 = vunpack.c.l.bf16 %v174
      %v207 = vunpack.c.l.bf16 %v175
      %v208 = vunpack.c.l.bf16 %v176
      %v209 = vunpack.c.l.bf16 %v177
      %v210 = vunpack.c.l.bf16 %v178
      %v211 = vunpack.c.l.bf16 %v179
      %v212 = vunpack.c.l.bf16 %v180
      %v213 = vunpack.c.l.bf16 %v181
      %v214 = vunpack.c.l.bf16 %v182
      %v215 = vunpack.c.l.bf16 %v183
      %v216 = vunpack.c.l.bf16 %v184
      %v217 = vunpack.c.l.bf16 %v185
      %v218 = vunpack.c.l.bf16 %v186
      %v219 = vunpack.c.l.bf16 %v187
      %v220 = vunpack.c.l.bf16 %v188
      %v221 = vunpack.c.l.bf16 %v189
      %v222 = vunpack.c.l.bf16 %v190
      %v223 = vunpack.c.l.bf16 %v191
      %v224 = vunpack.c.l.bf16 %v192
      %v225 = vunpack.c.l.bf16 %v193
      %v226 = vunpack.c.l.bf16 %v194
      %v227 = vunpack.c.l.bf16 %v195
      %v228 = vunpack.c.l.bf16 %v196
      %v229 = vunpack.c.l.bf16 %v197
      %v230 = vunpack.c.l.bf16 %v198
      %v231 = vunpack.c.l.bf16 %v199
      %v232 = vunpack.c.l.bf16 %v200
      %v233 = vunpack.c.l.bf16 %v201
      %v234 = vunpack.c.l.bf16 %v202
      %v235 = vunpack.c.l.bf16 %v203
      %v236 = vunpack.c.l.bf16 %v204
      %v237 = vunpack.c.l.bf16 %v205
      %v238 = vld [vmem:[%s1] sm:$0x1]
      %v240 = vlaneseq
      %v241 = vshrl.u32 %v240, 7
      %v242 = vsub.s32 0, %v241
      %v243 = vrot.slane %v238, %v242
      %v245 = vmul.f32 %v206, %v243
      %v246 = vmul.f32 %v207, %v243
      %v247 = vmul.f32 %v208, %v243
      %v248 = vmul.f32 %v209, %v243
      %v249 = vmul.f32 %v210, %v243
      %v250 = vmul.f32 %v211, %v243
      %v251 = vmul.f32 %v212, %v243
      %v252 = vmul.f32 %v213, %v243
      %v253 = vmul.f32 %v214, %v243
      %v254 = vmul.f32 %v215, %v243
      %v255 = vmul.f32 %v216, %v243
      %v256 = vmul.f32 %v217, %v243
      %v257 = vmul.f32 %v218, %v243
      %v258 = vmul.f32 %v219, %v243
      %v259 = vmul.f32 %v220, %v243
      %v260 = vmul.f32 %v221, %v243
      %v261 = vmul.f32 %v222, %v243
      %v262 = vmul.f32 %v223, %v243
      %v263 = vmul.f32 %v224, %v243
      %v264 = vmul.f32 %v225, %v243
      %v265 = vmul.f32 %v226, %v243
      %v266 = vmul.f32 %v227, %v243
      %v267 = vmul.f32 %v228, %v243
      %v268 = vmul.f32 %v229, %v243
      %v269 = vmul.f32 %v230, %v243
      %v270 = vmul.f32 %v231, %v243
      %v271 = vmul.f32 %v232, %v243
      %v272 = vmul.f32 %v233, %v243
      %v273 = vmul.f32 %v234, %v243
      %v274 = vmul.f32 %v235, %v243
      %v275 = vmul.f32 %v236, %v243
      %v276 = vmul.f32 %v237, %v243
      %v277 = vld [vmem:[%s2] sm:$0x1]
      %v279 = vlaneseq
      %v280 = vshrl.u32 %v279, 7
      %v281 = vsub.s32 0, %v280
      %v282 = vrot.slane %v277, %v281
      %v284 = vadd.f32 %v245, %v282
      %v285 = vadd.f32 %v246, %v282
      %v286 = vadd.f32 %v247, %v282
      %v287 = vadd.f32 %v248, %v282
      %v288 = vadd.f32 %v249, %v282
      %v289 = vadd.f32 %v250, %v282
      %v290 = vadd.f32 %v251, %v282
      %v291 = vadd.f32 %v252, %v282
      %v292 = vadd.f32 %v253, %v282
      %v293 = vadd.f32 %v254, %v282
      %v294 = vadd.f32 %v255, %v282
      %v295 = vadd.f32 %v256, %v282
      %v296 = vadd.f32 %v257, %v282
      %v297 = vadd.f32 %v258, %v282
      %v298 = vadd.f32 %v259, %v282
      %v299 = vadd.f32 %v260, %v282
      %v300 = vadd.f32 %v261, %v282
      %v301 = vadd.f32 %v262, %v282
      %v302 = vadd.f32 %v263, %v282
      %v303 = vadd.f32 %v264, %v282
      %v304 = vadd.f32 %v265, %v282
      %v305 = vadd.f32 %v266, %v282
      %v306 = vadd.f32 %v267, %v282
      %v307 = vadd.f32 %v268, %v282
      %v308 = vadd.f32 %v269, %v282
      %v309 = vadd.f32 %v270, %v282
      %v310 = vadd.f32 %v271, %v282
      %v311 = vadd.f32 %v272, %v282
      %v312 = vadd.f32 %v273, %v282
      %v313 = vadd.f32 %v274, %v282
      %v314 = vadd.f32 %v275, %v282
      %v315 = vadd.f32 %v276, %v282
      %v316 = vmax.f32 %v284, 0.0
      %v317 = vmax.f32 %v285, 0.0
      %v318 = vmax.f32 %v286, 0.0
      %v319 = vmax.f32 %v287, 0.0
      %v320 = vmax.f32 %v288, 0.0
      %v321 = vmax.f32 %v289, 0.0
      %v322 = vmax.f32 %v290, 0.0
      %v323 = vmax.f32 %v291, 0.0
      %v324 = vmax.f32 %v292, 0.0
      %v325 = vmax.f32 %v293, 0.0
      %v326 = vmax.f32 %v294, 0.0
      %v327 = vmax.f32 %v295, 0.0
      %v328 = vmax.f32 %v296, 0.0
      %v329 = vmax.f32 %v297, 0.0
      %v330 = vmax.f32 %v298, 0.0
      %v331 = vmax.f32 %v299, 0.0
      %v332 = vmax.f32 %v300, 0.0
      %v333 = vmax.f32 %v301, 0.0
      %v334 = vmax.f32 %v302, 0.0
      %v335 = vmax.f32 %v303, 0.0
      %v336 = vmax.f32 %v304, 0.0
      %v337 = vmax.f32 %v305, 0.0
      %v338 = vmax.f32 %v306, 0.0
      %v339 = vmax.f32 %v307, 0.0
      %v340 = vmax.f32 %v308, 0.0
      %v341 = vmax.f32 %v309, 0.0
      %v342 = vmax.f32 %v310, 0.0
      %v343 = vmax.f32 %v311, 0.0
      %v344 = vmax.f32 %v312, 0.0
      %v345 = vmax.f32 %v313, 0.0
      %v346 = vmax.f32 %v314, 0.0
      %v347 = vmax.f32 %v315, 0.0
      %v348 = vpack.c.bf16 %v317, %v316
      %v349 = vpack.c.bf16 %v319, %v318
      %v350 = vpack.c.bf16 %v321, %v320
      %v351 = vpack.c.bf16 %v323, %v322
      %v352 = vpack.c.bf16 %v325, %v324
      %v353 = vpack.c.bf16 %v327, %v326
      %v354 = vpack.c.bf16 %v329, %v328
      %v355 = vpack.c.bf16 %v331, %v330
      %v356 = vpack.c.bf16 %v333, %v332
      %v357 = vpack.c.bf16 %v335, %v334
      %v358 = vpack.c.bf16 %v337, %v336
      %v359 = vpack.c.bf16 %v339, %v338
      %v360 = vpack.c.bf16 %v341, %v340
      %v361 = vpack.c.bf16 %v343, %v342
      %v362 = vpack.c.bf16 %v345, %v344
      %v363 = vpack.c.bf16 %v347, %v346
      %v380 = vunpack.c.l.b16 %v348
      %v381 = vunpack.c.h.b16 %v348
      %v382 = vunpack.c.l.b16 %v349
      %v383 = vunpack.c.h.b16 %v349
      %v384 = vunpack.c.l.b16 %v350
      %v385 = vunpack.c.h.b16 %v350
      %v386 = vunpack.c.l.b16 %v351
      %v387 = vunpack.c.h.b16 %v351
      %v388 = vunpack.c.l.b16 %v352
      %v389 = vunpack.c.h.b16 %v352
      %v390 = vunpack.c.l.b16 %v353
      %v391 = vunpack.c.h.b16 %v353
      %v392 = vunpack.c.l.b16 %v354
      %v393 = vunpack.c.h.b16 %v354
      %v394 = vunpack.c.l.b16 %v355
      %v395 = vunpack.c.h.b16 %v355
      %v396 = vunpack.c.l.b16 %v356
      %v397 = vunpack.c.h.b16 %v356
      %v398 = vunpack.c.l.b16 %v357
      %v399 = vunpack.c.h.b16 %v357
      %v400 = vunpack.c.l.b16 %v358
      %v401 = vunpack.c.h.b16 %v358
      %v402 = vunpack.c.l.b16 %v359
      %v403 = vunpack.c.h.b16 %v359
      %v404 = vunpack.c.l.b16 %v360
      %v405 = vunpack.c.h.b16 %v360
      %v406 = vunpack.c.l.b16 %v361
      %v407 = vunpack.c.h.b16 %v361
      %v408 = vunpack.c.l.b16 %v362
      %v409 = vunpack.c.h.b16 %v362
      %v410 = vunpack.c.l.b16 %v363
      %v411 = vunpack.c.h.b16 %v363
      %v412 = vpack.c.b16 %v380, %v380
      %v413 = vpack.c.b16 %v381, %v381
      %v414 = vpack.c.b16 %v382, %v382
      %v415 = vpack.c.b16 %v383, %v383
      %v416 = vpack.c.b16 %v384, %v384
      %v417 = vpack.c.b16 %v385, %v385
      %v418 = vpack.c.b16 %v386, %v386
      %v419 = vpack.c.b16 %v387, %v387
      %v420 = vpack.c.b16 %v388, %v388
      %v421 = vpack.c.b16 %v389, %v389
      %v422 = vpack.c.b16 %v390, %v390
      %v423 = vpack.c.b16 %v391, %v391
      %v424 = vpack.c.b16 %v392, %v392
      %v425 = vpack.c.b16 %v393, %v393
      %v426 = vpack.c.b16 %v394, %v394
      %v427 = vpack.c.b16 %v395, %v395
      %v428 = vpack.c.b16 %v396, %v396
      %v429 = vpack.c.b16 %v397, %v397
      %v430 = vpack.c.b16 %v398, %v398
      %v431 = vpack.c.b16 %v399, %v399
      %v432 = vpack.c.b16 %v400, %v400
      %v433 = vpack.c.b16 %v401, %v401
      %v434 = vpack.c.b16 %v402, %v402
      %v435 = vpack.c.b16 %v403, %v403
      %v436 = vpack.c.b16 %v404, %v404
      %v437 = vpack.c.b16 %v405, %v405
      %v438 = vpack.c.b16 %v406, %v406
      %v439 = vpack.c.b16 %v407, %v407
      %v440 = vpack.c.b16 %v408, %v408
      %v441 = vpack.c.b16 %v409, %v409
      %v442 = vpack.c.b16 %v410, %v410
      %v443 = vpack.c.b16 %v411, %v411
      %vm476 = vcmask 519168
      %477 = vst.msk [vmem:[%s172] sm:$0xf] %vm476, %v412
      %478 = vst.msk [vmem:[%s172 + $0x4] sm:$0xf] %vm476, %v413
      %479 = vst.msk [vmem:[%s172 + $0x8] sm:$0xf] %vm476, %v414
      %480 = vst.msk [vmem:[%s172 + $0xc] sm:$0xf] %vm476, %v415
      %481 = vst.msk [vmem:[%s172 + $0x10] sm:$0xf] %vm476, %v416
      %482 = vst.msk [vmem:[%s172 + $0x14] sm:$0xf] %vm476, %v417
      %483 = vst.msk [vmem:[%s172 + $0x18] sm:$0xf] %vm476, %v418
      %484 = vst.msk [vmem:[%s172 + $0x1c] sm:$0xf] %vm476, %v419
      %485 = vst.msk [vmem:[%s172 + $0x20] sm:$0xf] %vm476, %v420
      %486 = vst.msk [vmem:[%s172 + $0x24] sm:$0xf] %vm476, %v421
      %487 = vst.msk [vmem:[%s172 + $0x28] sm:$0xf] %vm476, %v422
      %488 = vst.msk [vmem:[%s172 + $0x2c] sm:$0xf] %vm476, %v423
      %489 = vst.msk [vmem:[%s172 + $0x30] sm:$0xf] %vm476, %v424
      %490 = vst.msk [vmem:[%s172 + $0x34] sm:$0xf] %vm476, %v425
      %491 = vst.msk [vmem:[%s172 + $0x38] sm:$0xf] %vm476, %v426
      %492 = vst.msk [vmem:[%s172 + $0x3c] sm:$0xf] %vm476, %v427
      %493 = vst.msk [vmem:[%s172 + $0x40] sm:$0xf] %vm476, %v428
      %494 = vst.msk [vmem:[%s172 + $0x44] sm:$0xf] %vm476, %v429
      %495 = vst.msk [vmem:[%s172 + $0x48] sm:$0xf] %vm476, %v430
      %496 = vst.msk [vmem:[%s172 + $0x4c] sm:$0xf] %vm476, %v431
      %497 = vst.msk [vmem:[%s172 + $0x50] sm:$0xf] %vm476, %v432
      %498 = vst.msk [vmem:[%s172 + $0x54] sm:$0xf] %vm476, %v433
      %499 = vst.msk [vmem:[%s172 + $0x58] sm:$0xf] %vm476, %v434
      %500 = vst.msk [vmem:[%s172 + $0x5c] sm:$0xf] %vm476, %v435
      %501 = vst.msk [vmem:[%s172 + $0x60] sm:$0xf] %vm476, %v436
      %502 = vst.msk [vmem:[%s172 + $0x64] sm:$0xf] %vm476, %v437
      %503 = vst.msk [vmem:[%s172 + $0x68] sm:$0xf] %vm476, %v438
      %504 = vst.msk [vmem:[%s172 + $0x6c] sm:$0xf] %vm476, %v439
      %505 = vst.msk [vmem:[%s172 + $0x70] sm:$0xf] %vm476, %v440
      %506 = vst.msk [vmem:[%s172 + $0x74] sm:$0xf] %vm476, %v441
      %507 = vst.msk [vmem:[%s172 + $0x78] sm:$0xf] %vm476, %v442
      %508 = vst.msk [vmem:[%s172 + $0x7c] sm:$0xf] %vm476, %v443
      %s509 = smul.u32 32, %s14
      %p510 = scmp.lt.s32.totalorder %s509, 63
      %s511 = scalar_select %p510, %s509, 63
      %s512 = smul.addr %s511, 4
      %s513 = scalar_lea.vmem %s3, %s512
      // Predicated region
      $region33: #{stem_forward.25} parent=31 // pred_check
        %p514 = pneg %p100
      $region34: #{stem_forward.25} parent=31 // pred_check_branch
        %516 = sbr.rel (%p514) target = $region36
      $region35: #{stem_forward.25} parent=31 // pred_region
        %s517 = smul.u32 32, %s14
      $region36: #{stem_forward.25} parent=31 // pred_fallthru
        _
    $region32: #{stem_forward.25} parent=5 // pred_fallthru
      _
    %p518 = scmp.le.s32.totalorder 2, %s9
    // Predicated region
    $region37: #{stem_forward.25} parent=5 // pred_check
      %p519 = pneg %p518
    $region38: #{stem_forward.25} parent=5 // pred_check_branch
      %521 = sbr.rel (%p519) target = $region40
    $region39: #{stem_forward.25} parent=5 // pred_region
      %s522 = ssub.s32 %s9, 2
      // Predicated region
      $region41: #{stem_forward.25} parent=39 // pred_check
        %p523 = pneg %p106
      $region42: #{stem_forward.25} parent=39 // pred_check_branch
        %525 = sbr.rel (%p523) target = $region44
      $region43: #{stem_forward.25} parent=39 // pred_region
        %s526 = smul.u32 32, %s15
        %p527 = scmp.lt.s32.totalorder %s526, 63
        %s528 = scalar_select %p527, %s526, 63
        %s529 = smul.addr %s528, 4
        %s530 = scalar_lea.vmem %s3, %s529
      $region44: #{stem_forward.25} parent=39 // pred_fallthru
        _
    $region40: #{stem_forward.25} parent=5 // pred_fallthru
      _
  $region6: #{stem_forward.25} parent=0 // loop_footer
    %s13 = sadd.s32 1, %s9
  $region7: #{stem_forward.25} parent=0 // loop_footer_branch
    %8 = sbr.rel target = $region3
  $region8: #{stem_forward.25} parent=0 // loop_exit
    _

// kernel: stem_forward.24
$region0: #{stem_forward.24}
  #allocation0 [shape = 'u32[]', space=smem, size = 0x4, offset = 0x4, fixed_abs, tag = 'smem constant byte address 0x4 - core index']
  #allocation1 [shape = 'u32[144,128]{1,0:T(1,128)}', space=vmem, size = 0x12000, scoped, tag = 'internal scratch']
  %s0 = inlined_call_operand.vmem [shape: bf16[512,288], index: 0, kind: input, shape index: {}]
  %s1 = inlined_call_operand.vmem [shape: bf16[288,64], index: 1, kind: input, shape index: {}]
  %s2 = inlined_call_operand.vmem [shape: bf16[512,64], index: 2, kind: output, shape index: {0}]
  %s3 = inlined_call_operand.vmem [shape: f32[2,2,64], index: 3, kind: output, shape index: {1}]
  %4 = xla_tuple %s2, %s3
  %s5 = sld [smem:[#allocation0]]
  $region49: #{stem_forward.24} parent=0
    _
  %s7 = ssub.s32 1, %s5
  %s8 = scalar_select 0, %s7, %s5
  loop: start=0, step=1, limit=4
  $region2: #{stem_forward.24} parent=0 // loop_pre_header
    _
  $region3: #{stem_forward.24} parent=0 // loop_header
    %s10 = sphi 0, %s14
    %p11 = scmp.ge.s32.totalorder %s10, 4
    %s20 = sphi 0, %s22
    %s23 = sphi 0, %s20
    %s24 = sphi 0, %s23
    %s40 = sphi 0, %s24
    %s44 = sphi 0, %s44
    %s46 = sphi 0, %s44
    %s47 = sphi 0, %s46
    %s61 = sphi 0, %s47
    %s67 = sphi 0, %s69
    %s70 = sphi 0, %s67
    %s71 = sphi 0, %s70
    %s87 = sphi 0, %s71
    %s93 = sphi 0, %s95
    %s96 = sphi 0, %s93
    %s97 = sphi 0, %s96
    %s113 = sphi 0, %s97
  $region4: #{stem_forward.24} parent=0 // loop_header_branch
    %13 = sbr.rel (%p11) target = $region8
  $region5: #{stem_forward.24} parent=0 // loop_body
    %s15 = ssub.s32 %s10, 1
    %s16 = ssub.s32 %s10, 2
    %s17 = sadd.s32 %s10, 1
    %s18 = ssub.s32 %s10, %s17
    %p19 = scmp.eq.s32.totalorder %s18, 0
    %s21 = sadd.s32 %s20, 1
    %s22 = scalar_select %p19, %s20, %s21
    %p25 = pneg %p19
    %p26 = scmp.eq.s32.totalorder %s10, 1
    %p27 = por %p25, %p26
    %p28 = scmp.ne.s32.totalorder %s20, %s23
    %p29 = scmp.eq.s32.totalorder %s10, 0
    %p30 = por %p28, %p29
    %p31 = scmp.ne.s32.totalorder %s20, %s23
    %p32 = scmp.eq.s32.totalorder %s15, 1
    %p33 = por %p31, %p32
    %p34 = scmp.ne.s32.totalorder %s23, %s24
    %p35 = scmp.eq.s32.totalorder %s15, 0
    %p36 = por %p34, %p35
    %p37 = scmp.ne.s32.totalorder %s23, %s24
    %p38 = scmp.eq.s32.totalorder %s16, 1
    %p39 = por %p37, %p38
    %p41 = scmp.ne.s32.totalorder %s24, %s40
    %p42 = scmp.eq.s32.totalorder %s16, 0
    %p43 = por %p41, %p42
    %s45 = sadd.s32 %s44, 1
    %p48 = scmp.eq.s32.totalorder %s10, 1
    %p49 = scmp.ne.s32.totalorder %s44, %s46
    %p50 = scmp.eq.s32.totalorder %s10, 0
    %p51 = por %p49, %p50
    %p52 = scmp.ne.s32.totalorder %s44, %s46
    %p53 = scmp.eq.s32.totalorder %s15, 1
    %p54 = por %p52, %p53
    %p55 = scmp.ne.s32.totalorder %s46, %s47
    %p56 = scmp.eq.s32.totalorder %s15, 0
    %p57 = por %p55, %p56
    %p58 = scmp.ne.s32.totalorder %s46, %s47
    %p59 = scmp.eq.s32.totalorder %s16, 1
    %p60 = por %p58, %p59
    %p62 = scmp.ne.s32.totalorder %s47, %s61
    %p63 = scmp.eq.s32.totalorder %s16, 0
    %p64 = por %p62, %p63
    %s65 = ssub.s32 %s10, %s17
    %p66 = scmp.eq.s32.totalorder %s65, 0
    %s68 = sadd.s32 %s67, 1
    %s69 = scalar_select %p66, %s67, %s68
    %p72 = pneg %p66
    %p73 = scmp.eq.s32.totalorder %s10, 1
    %p74 = por %p72, %p73
    %p75 = scmp.ne.s32.totalorder %s67, %s70
    %p76 = scmp.eq.s32.totalorder %s10, 0
    %p77 = por %p75, %p76
    %p78 = scmp.ne.s32.totalorder %s67, %s70
    %p79 = scmp.eq.s32.totalorder %s15, 1
    %p80 = por %p78, %p79
    %p81 = scmp.ne.s32.totalorder %s70, %s71
    %p82 = scmp.eq.s32.totalorder %s15, 0
    %p83 = por %p81, %p82
    %p84 = scmp.ne.s32.totalorder %s70, %s71
    %p85 = scmp.eq.s32.totalorder %s16, 1
    %p86 = por %p84, %p85
    %p88 = scmp.ne.s32.totalorder %s71, %s87
    %p89 = scmp.eq.s32.totalorder %s16, 0
    %p90 = por %p88, %p89
    %s91 = ssub.s32 %s10, %s17
    %p92 = scmp.eq.s32.totalorder %s91, 0
    %s94 = sadd.s32 %s93, 1
    %s95 = scalar_select %p92, %s93, %s94
    %p98 = pneg %p92
    %p99 = scmp.eq.s32.totalorder %s10, 1
    %p100 = por %p98, %p99
    %p101 = scmp.ne.s32.totalorder %s93, %s96
    %p102 = scmp.eq.s32.totalorder %s10, 0
    %p103 = por %p101, %p102
    %p104 = scmp.ne.s32.totalorder %s93, %s96
    %p105 = scmp.eq.s32.totalorder %s15, 1
    %p106 = por %p104, %p105
    %p107 = scmp.ne.s32.totalorder %s96, %s97
    %p108 = scmp.eq.s32.totalorder %s15, 0
    %p109 = por %p107, %p108
    %p110 = scmp.ne.s32.totalorder %s96, %s97
    %p111 = scmp.eq.s32.totalorder %s16, 1
    %p112 = por %p110, %p111
    %p114 = scmp.ne.s32.totalorder %s97, %s113
    %p115 = scmp.eq.s32.totalorder %s16, 0
    %p116 = por %p114, %p115
    %p117 = scmp.le.s32.totalorder 1, %s10
    %p118 = scmp.lt.s32.totalorder %s10, 3
    %p119 = pnand %p117, %p118
    %p120 = pneg %p119
    // Predicated region
    $region9: #{stem_forward.24} parent=5 // pred_check
      _
    $region10: #{stem_forward.24} parent=5 // pred_check_branch
      %122 = sbr.rel (%p119) target = $region12
    $region11: #{stem_forward.24} parent=5 // pred_region
      %s123 = ssub.s32 %s10, 1
      // Predicated region
      $region13: #{stem_forward.24} parent=11 // pred_check
        %p124 = pneg %p57
      $region14: #{stem_forward.24} parent=11 // pred_check_branch
        %126 = sbr.rel (%p124) target = $region16
      $region15: #{stem_forward.24} parent=11 // pred_region
        _
      $region16: #{stem_forward.24} parent=11 // pred_fallthru
        _
    $region12: #{stem_forward.24} parent=5 // pred_fallthru
      _
    %p127 = scmp.lt.s32.totalorder %s10, 2
    // Predicated region
    $region17: #{stem_forward.24} parent=5 // pred_check
      %p128 = pneg %p127
    $region18: #{stem_forward.24} parent=5 // pred_check_branch
      %130 = sbr.rel (%p128) target = $region20
    $region19: #{stem_forward.24} parent=5 // pred_region
      // Predicated region
      $region21: #{stem_forward.24} parent=19 // pred_check
        %p131 = pneg %p30
      $region22: #{stem_forward.24} parent=19 // pred_check_branch
        %133 = sbr.rel (%p131) target = $region24
      $region23: #{stem_forward.24} parent=19 // pred_region
        %s134 = smul.u32 32, %s10
        %p135 = scmp.lt.s32.totalorder %s134, 63
        %s136 = scalar_select %p135, %s134, 63
        %s137 = smul.addr %s136, 3
        %s138 = smul.addr %s137, 4
        %s139 = scalar_lea.vmem %s0, %s138
        %s140 = smul.u32 32, %s10
      $region24: #{stem_forward.24} parent=19 // pred_fallthru
        _
    $region20: #{stem_forward.24} parent=5 // pred_fallthru
      _
    %p141 = scmp.le.s32.totalorder 1, %s10
    %p142 = scmp.lt.s32.totalorder %s10, 3
    %p143 = pnand %p141, %p142
    %p144 = pneg %p143
    // Predicated region
    $region25: #{stem_forward.24} parent=5 // pred_check
      _
    $region26: #{stem_forward.24} parent=5 // pred_check_branch
      %146 = sbr.rel (%p143) target = $region28
    $region27: #{stem_forward.24} parent=5 // pred_region
      %s147 = ssub.s32 %s10, 1
      %s148 = smul.u32 32, %s15
      %p149 = scmp.lt.s32.totalorder %s148, 63
      %s150 = scalar_select %p149, %s148, 63
      %s151 = smul.addr %s150, 3
      %s152 = smul.addr %s151, 4
      %s153 = scalar_lea.vmem %s0, %s152
      %p154 = pneg %p36
      %p155 = pneg %p33
      %p156 = pneg %p57
      %p157 = pneg %p54
      %p158 = pneg %p83
      %p159 = pneg %p80
      %s160 = smul.u32 32, %s15
      %p161 = scmp.lt.s32.totalorder %s160, 63
      %s162 = scalar_select %p161, %s160, 63
      %s163 = smul.addr %s162, 4
      %s164 = scalar_lea.vmem %s2, %s163
      %p165 = pneg %p109
      %p166 = pneg %p106
      %p167 = scmp.lt.s32.totalorder %s15, 1
      %s168 = scalar_select %p167, %s15, 1
      %s169 = smul.addr %s168, 2
      %s170 = scalar_lea.vmem %s3, %s169
      %s171 = smul.u32 32, %s15
      %p172 = scmp.lt.s32.totalorder %s171, 63
      %s173 = scalar_select %p172, %s171, 63
      %s174 = smul.addr %s173, 3
      %s175 = smul.addr %s174, 4
      %s176 = scalar_lea.vmem %s0, %s175
      %s177 = smul.u32 32, %s15
      %s178 = smul.u32 32, %s15
      %p179 = scmp.lt.s32.totalorder %s178, 63
      %s180 = scalar_select %p179, %s178, 63
      %s181 = smul.addr %s180, 4
      %s182 = scalar_lea.vmem %s2, %s181
      %s183 = smul.u32 32, %s15
      %p184 = scmp.lt.s32.totalorder %s15, 1
      %s185 = scalar_select %p184, %s15, 1
      %s186 = smul.addr %s185, 2
      %s187 = scalar_lea.vmem %s3, %s186
      %v189 = vld [vmem:[%s176] sm:$0xff]
      %v190 = vld [vmem:[%s176 + $0x8] sm:$0xf]
      %v191 = vld [vmem:[%s176 + $0xc] sm:$0xff]
      %v192 = vld [vmem:[%s176 + $0x14] sm:$0xf]
      %v193 = vld [vmem:[%s176 + $0x18] sm:$0xff]
      %v194 = vld [vmem:[%s176 + $0x20] sm:$0xf]
      %v195 = vld [vmem:[%s176 + $0x24] sm:$0xff]
      %v196 = vld [vmem:[%s176 + $0x2c] sm:$0xf]
      %v197 = vld [vmem:[%s176 + $0x30] sm:$0xff]
      %v198 = vld [vmem:[%s176 + $0x38] sm:$0xf]
      %v199 = vld [vmem:[%s176 + $0x3c] sm:$0xff]
      %v200 = vld [vmem:[%s176 + $0x44] sm:$0xf]
      %v201 = vld [vmem:[%s176 + $0x48] sm:$0xff]
      %v202 = vld [vmem:[%s176 + $0x50] sm:$0xf]
      %v203 = vld [vmem:[%s176 + $0x54] sm:$0xff]
      %v204 = vld [vmem:[%s176 + $0x5c] sm:$0xf]
      %v205 = vld [vmem:[%s176 + $0x60] sm:$0xff]
      %v206 = vld [vmem:[%s176 + $0x68] sm:$0xf]
      %v207 = vld [vmem:[%s176 + $0x6c] sm:$0xff]
      %v208 = vld [vmem:[%s176 + $0x74] sm:$0xf]
      %v209 = vld [vmem:[%s176 + $0x78] sm:$0xff]
      %v210 = vld [vmem:[%s176 + $0x80] sm:$0xf]
      %v211 = vld [vmem:[%s176 + $0x84] sm:$0xff]
      %v212 = vld [vmem:[%s176 + $0x8c] sm:$0xf]
      %v213 = vld [vmem:[%s176 + $0x90] sm:$0xff]
      %v214 = vld [vmem:[%s176 + $0x98] sm:$0xf]
      %v215 = vld [vmem:[%s176 + $0x9c] sm:$0xff]
      %v216 = vld [vmem:[%s176 + $0xa4] sm:$0xf]
      %v217 = vld [vmem:[%s176 + $0xa8] sm:$0xff]
      %v218 = vld [vmem:[%s176 + $0xb0] sm:$0xf]
      %v219 = vld [vmem:[%s176 + $0xb4] sm:$0xff]
      %v220 = vld [vmem:[%s176 + $0xbc] sm:$0xf]
      %v221 = vld [vmem:[%s176 + $0xc0] sm:$0xff]
      %v222 = vld [vmem:[%s176 + $0xc8] sm:$0xf]
      %v223 = vld [vmem:[%s176 + $0xcc] sm:$0xff]
      %v224 = vld [vmem:[%s176 + $0xd4] sm:$0xf]
      %v225 = vld [vmem:[%s176 + $0xd8] sm:$0xff]
      %v226 = vld [vmem:[%s176 + $0xe0] sm:$0xf]
      %v227 = vld [vmem:[%s176 + $0xe4] sm:$0xff]
      %v228 = vld [vmem:[%s176 + $0xec] sm:$0xf]
      %v229 = vld [vmem:[%s176 + $0xf0] sm:$0xff]
      %v230 = vld [vmem:[%s176 + $0xf8] sm:$0xf]
      %v231 = vld [vmem:[%s176 + $0xfc] sm:$0xff]
      %v232 = vld [vmem:[%s176 + $0x104] sm:$0xf]
      %v233 = vld [vmem:[%s176 + $0x108] sm:$0xff]
      %v234 = vld [vmem:[%s176 + $0x110] sm:$0xf]
      %v235 = vld [vmem:[%s176 + $0x114] sm:$0xff]
      %v236 = vld [vmem:[%s176 + $0x11c] sm:$0xf]
      %v237 = vld [vmem:[%s176 + $0x120] sm:$0xff]
      %v238 = vld [vmem:[%s176 + $0x128] sm:$0xf]
      %v239 = vld [vmem:[%s176 + $0x12c] sm:$0xff]
      %v240 = vld [vmem:[%s176 + $0x134] sm:$0xf]
      %v241 = vld [vmem:[%s176 + $0x138] sm:$0xff]
      %v242 = vld [vmem:[%s176 + $0x140] sm:$0xf]
      %v243 = vld [vmem:[%s176 + $0x144] sm:$0xff]
      %v244 = vld [vmem:[%s176 + $0x14c] sm:$0xf]
      %v245 = vld [vmem:[%s176 + $0x150] sm:$0xff]
      %v246 = vld [vmem:[%s176 + $0x158] sm:$0xf]
      %v247 = vld [vmem:[%s176 + $0x15c] sm:$0xff]
      %v248 = vld [vmem:[%s176 + $0x164] sm:$0xf]
      %v249 = vld [vmem:[%s176 + $0x168] sm:$0xff]
      %v250 = vld [vmem:[%s176 + $0x170] sm:$0xf]
      %v251 = vld [vmem:[%s176 + $0x174] sm:$0xff]
      %v252 = vld [vmem:[%s176 + $0x17c] sm:$0xf]
      %v253 = vld [vmem:[%s1] sm:$0xf]
      %v254 = vld [vmem:[%s1 + $0x4] sm:$0xf]
      %v255 = vld [vmem:[%s1 + $0x8] sm:$0xf]
      %v256 = vld [vmem:[%s1 + $0xc] sm:$0xf]
      %v257 = vld [vmem:[%s1 + $0x10] sm:$0xf]
      %v258 = vld [vmem:[%s1 + $0x14] sm:$0xf]
      %v259 = vld [vmem:[%s1 + $0x18] sm:$0xf]
      %v260 = vld [vmem:[%s1 + $0x1c] sm:$0xf]
      %v261 = vld [vmem:[%s1 + $0x20] sm:$0xf]
      %v262 = vld [vmem:[%s1 + $0x24] sm:$0xf]
      %v263 = vld [vmem:[%s1 + $0x28] sm:$0xf]
      %v264 = vld [vmem:[%s1 + $0x2c] sm:$0xf]
      %v265 = vld [vmem:[%s1 + $0x30] sm:$0xf]
      %v266 = vld [vmem:[%s1 + $0x34] sm:$0xf]
      %v267 = vld [vmem:[%s1 + $0x38] sm:$0xf]
      %v268 = vld [vmem:[%s1 + $0x3c] sm:$0xf]
      %v269 = vld [vmem:[%s1 + $0x40] sm:$0xf]
      %v270 = vld [vmem:[%s1 + $0x44] sm:$0xf]
      %v271 = vld [vmem:[%s1 + $0x48] sm:$0xf]
      %v272 = vld [vmem:[%s1 + $0x4c] sm:$0xf]
      %v273 = vld [vmem:[%s1 + $0x50] sm:$0xf]
      %v274 = vld [vmem:[%s1 + $0x54] sm:$0xf]
      %v275 = vld [vmem:[%s1 + $0x58] sm:$0xf]
      %v276 = vld [vmem:[%s1 + $0x5c] sm:$0xf]
      %v277 = vld [vmem:[%s1 + $0x60] sm:$0xf]
      %v278 = vld [vmem:[%s1 + $0x64] sm:$0xf]
      %v279 = vld [vmem:[%s1 + $0x68] sm:$0xf]
      %v280 = vld [vmem:[%s1 + $0x6c] sm:$0xf]
      %v281 = vld [vmem:[%s1 + $0x70] sm:$0xf]
      %v282 = vld [vmem:[%s1 + $0x74] sm:$0xf]
      %v283 = vld [vmem:[%s1 + $0x78] sm:$0xf]
      %v284 = vld [vmem:[%s1 + $0x7c] sm:$0xf]
      %v285 = vld [vmem:[%s1 + $0x80] sm:$0xf]
      %v286 = vld [vmem:[%s1 + $0x84] sm:$0xf]
      %v287 = vld [vmem:[%s1 + $0x88] sm:$0xf]
      %v288 = vld [vmem:[%s1 + $0x8c] sm:$0xf]
      %v353 = vunpack.c.l.b16 %v189
      %v354 = vunpack.c.h.b16 %v189
      %v355 = vunpack.c.l.b16 %v190
      %v356 = vunpack.c.l.b16 %v191
      %v357 = vunpack.c.h.b16 %v191
      %v358 = vunpack.c.l.b16 %v192
      %v359 = vunpack.c.l.b16 %v193
      %v360 = vunpack.c.h.b16 %v193
      %v361 = vunpack.c.l.b16 %v194
      %v362 = vunpack.c.l.b16 %v195
      %v363 = vunpack.c.h.b16 %v195
      %v364 = vunpack.c.l.b16 %v196
      %v365 = vunpack.c.l.b16 %v197
      %v366 = vunpack.c.h.b16 %v197
      %v367 = vunpack.c.l.b16 %v198
      %v368 = vunpack.c.l.b16 %v199
      %v369 = vunpack.c.h.b16 %v199
      %v370 = vunpack.c.l.b16 %v200
      %v371 = vunpack.c.l.b16 %v201
      %v372 = vunpack.c.h.b16 %v201
      %v373 = vunpack.c.l.b16 %v202
      %v374 = vunpack.c.l.b16 %v203
      %v375 = vunpack.c.h.b16 %v203
      %v376 = vunpack.c.l.b16 %v204
      %v377 = vunpack.c.l.b16 %v205
      %v378 = vunpack.c.h.b16 %v205
      %v379 = vunpack.c.l.b16 %v206
      %v380 = vunpack.c.l.b16 %v207
      %v381 = vunpack.c.h.b16 %v207
      %v382 = vunpack.c.l.b16 %v208
      %v383 = vunpack.c.l.b16 %v209
      %v384 = vunpack.c.h.b16 %v209
      %v385 = vunpack.c.l.b16 %v210
      %v386 = vunpack.c.l.b16 %v211
      %v387 = vunpack.c.h.b16 %v211
      %v388 = vunpack.c.l.b16 %v212
      %v389 = vunpack.c.l.b16 %v213
      %v390 = vunpack.c.h.b16 %v213
      %v391 = vunpack.c.l.b16 %v214
      %v392 = vunpack.c.l.b16 %v215
      %v393 = vunpack.c.h.b16 %v215
      %v394 = vunpack.c.l.b16 %v216
      %v395 = vunpack.c.l.b16 %v217
      %v396 = vunpack.c.h.b16 %v217
      %v397 = vunpack.c.l.b16 %v218
      %v398 = vunpack.c.l.b16 %v219
      %v399 = vunpack.c.h.b16 %v219
      %v400 = vunpack.c.l.b16 %v220
      %v401 = vunpack.c.l.b16 %v221
      %v402 = vunpack.c.h.b16 %v221
      %v403 = vunpack.c.l.b16 %v222
      %v404 = vunpack.c.l.b16 %v223
      %v405 = vunpack.c.h.b16 %v223
      %v406 = vunpack.c.l.b16 %v224
      %v407 = vunpack.c.l.b16 %v225
      %v408 = vunpack.c.h.b16 %v225
      %v409 = vunpack.c.l.b16 %v226
      %v410 = vunpack.c.l.b16 %v227
      %v411 = vunpack.c.h.b16 %v227
      %v412 = vunpack.c.l.b16 %v228
      %v413 = vunpack.c.l.b16 %v229
      %v414 = vunpack.c.h.b16 %v229
      %v415 = vunpack.c.l.b16 %v230
      %v416 = vunpack.c.l.b16 %v231
      %v417 = vunpack.c.h.b16 %v231
      %v418 = vunpack.c.l.b16 %v232
      %v419 = vunpack.c.l.b16 %v233
      %v420 = vunpack.c.h.b16 %v233
      %v421 = vunpack.c.l.b16 %v234
      %v422 = vunpack.c.l.b16 %v235
      %v423 = vunpack.c.h.b16 %v235
      %v424 = vunpack.c.l.b16 %v236
      %v425 = vunpack.c.l.b16 %v237
      %v426 = vunpack.c.h.b16 %v237
      %v427 = vunpack.c.l.b16 %v238
      %v428 = vunpack.c.l.b16 %v239
      %v429 = vunpack.c.h.b16 %v239
      %v430 = vunpack.c.l.b16 %v240
      %v431 = vunpack.c.l.b16 %v241
      %v432 = vunpack.c.h.b16 %v241
      %v433 = vunpack.c.l.b16 %v242
      %v434 = vunpack.c.l.b16 %v243
      %v435 = vunpack.c.h.b16 %v243
      %v436 = vunpack.c.l.b16 %v244
      %v437 = vunpack.c.l.b16 %v245
      %v438 = vunpack.c.h.b16 %v245
      %v439 = vunpack.c.l.b16 %v246
      %v440 = vunpack.c.l.b16 %v247
      %v441 = vunpack.c.h.b16 %v247
      %v442 = vunpack.c.l.b16 %v248
      %v443 = vunpack.c.l.b16 %v249
      %v444 = vunpack.c.h.b16 %v249
      %v445 = vunpack.c.l.b16 %v250
      %v446 = vunpack.c.l.b16 %v251
      %v447 = vunpack.c.h.b16 %v251
      %v448 = vunpack.c.l.b16 %v252
      %v449 = vpack.c.b16 %v356, %v353
      %v450 = vpack.c.b16 %v357, %v354
      %v451 = vpack.c.b16 %v358, %v355
      %v452 = vpack.c.b16 %v362, %v359
      %v453 = vpack.c.b16 %v363, %v360
      %v454 = vpack.c.b16 %v364, %v361
      %v455 = vpack.c.b16 %v368, %v365
      %v456 = vpack.c.b16 %v369, %v366
      %v457 = vpack.c.b16 %v370, %v367
      %v458 = vpack.c.b16 %v374, %v371
      %v459 = vpack.c.b16 %v375, %v372
      %v460 = vpack.c.b16 %v376, %v373
      %v461 = vpack.c.b16 %v380, %v377
      %v462 = vpack.c.b16 %v381, %v378
      %v463 = vpack.c.b16 %v382, %v379
      %v464 = vpack.c.b16 %v386, %v383
      %v465 = vpack.c.b16 %v387, %v384
      %v466 = vpack.c.b16 %v388, %v385
      %v467 = vpack.c.b16 %v392, %v389
      %v468 = vpack.c.b16 %v393, %v390
      %v469 = vpack.c.b16 %v394, %v391
      %v470 = vpack.c.b16 %v398, %v395
      %v471 = vpack.c.b16 %v399, %v396
      %v472 = vpack.c.b16 %v400, %v397
      %v473 = vpack.c.b16 %v404, %v401
      %v474 = vpack.c.b16 %v405, %v402
      %v475 = vpack.c.b16 %v406, %v403
      %v476 = vpack.c.b16 %v410, %v407
      %v477 = vpack.c.b16 %v411, %v408
      %v478 = vpack.c.b16 %v412, %v409
      %v479 = vpack.c.b16 %v416, %v413
      %v480 = vpack.c.b16 %v417, %v414
      %v481 = vpack.c.b16 %v418, %v415
      %v482 = vpack.c.b16 %v422, %v419
      %v483 = vpack.c.b16 %v423, %v420
      %v484 = vpack.c.b16 %v424, %v421
      %v485 = vpack.c.b16 %v428, %v425
      %v486 = vpack.c.b16 %v429, %v426
      %v487 = vpack.c.b16 %v430, %v427
      %v488 = vpack.c.b16 %v434, %v431
      %v489 = vpack.c.b16 %v435, %v432
      %v490 = vpack.c.b16 %v436, %v433
      %v491 = vpack.c.b16 %v440, %v437
      %v492 = vpack.c.b16 %v441, %v438
      %v493 = vpack.c.b16 %v442, %v439
      %v494 = vpack.c.b16 %v446, %v443
      %v495 = vpack.c.b16 %v447, %v444
      %v496 = vpack.c.b16 %v448, %v445
      %v565 = vunpack.c.l.b16 %v253
      %v566 = vunpack.c.l.b16 %v254
      %v567 = vunpack.c.l.b16 %v255
      %v568 = vunpack.c.l.b16 %v256
      %v569 = vunpack.c.l.b16 %v257
      %v570 = vunpack.c.l.b16 %v258
      %v571 = vunpack.c.l.b16 %v259
      %v572 = vunpack.c.l.b16 %v260
      %v573 = vunpack.c.l.b16 %v261
      %v574 = vunpack.c.l.b16 %v262
      %v575 = vunpack.c.l.b16 %v263
      %v576 = vunpack.c.l.b16 %v264
      %v577 = vunpack.c.l.b16 %v265
      %v578 = vunpack.c.l.b16 %v266
      %v579 = vunpack.c.l.b16 %v267
      %v580 = vunpack.c.l.b16 %v268
      %v581 = vunpack.c.l.b16 %v269
      %v582 = vunpack.c.l.b16 %v270
      %v583 = vunpack.c.l.b16 %v271
      %v584 = vunpack.c.l.b16 %v272
      %v585 = vunpack.c.l.b16 %v273
      %v586 = vunpack.c.l.b16 %v274
      %v587 = vunpack.c.l.b16 %v275
      %v588 = vunpack.c.l.b16 %v276
      %v589 = vunpack.c.l.b16 %v277
      %v590 = vunpack.c.l.b16 %v278
      %v591 = vunpack.c.l.b16 %v279
      %v592 = vunpack.c.l.b16 %v280
      %v593 = vunpack.c.l.b16 %v281
      %v594 = vunpack.c.l.b16 %v282
      %v595 = vunpack.c.l.b16 %v283
      %v596 = vunpack.c.l.b16 %v284
      %v597 = vunpack.c.l.b16 %v285
      %v598 = vunpack.c.l.b16 %v286
      %v599 = vunpack.c.l.b16 %v287
      %v600 = vunpack.c.l.b16 %v288
      %v601 = vpack.c.b16 %v566, %v565
      %v602 = vpack.c.b16 %v568, %v567
      %v603 = vpack.c.b16 %v570, %v569
      %v604 = vpack.c.b16 %v572, %v571
      %v605 = vpack.c.b16 %v574, %v573
      %v606 = vpack.c.b16 %v576, %v575
      %v607 = vpack.c.b16 %v578, %v577
      %v608 = vpack.c.b16 %v580, %v579
      %v609 = vpack.c.b16 %v582, %v581
      %v610 = vpack.c.b16 %v584, %v583
      %v611 = vpack.c.b16 %v586, %v585
      %v612 = vpack.c.b16 %v588, %v587
      %v613 = vpack.c.b16 %v590, %v589
      %v614 = vpack.c.b16 %v592, %v591
      %v615 = vpack.c.b16 %v594, %v593
      %v616 = vpack.c.b16 %v596, %v595
      %v617 = vpack.c.b16 %v598, %v597
      %v618 = vpack.c.b16 %v600, %v599
      %vm637 = vcmask 261120
      %v639 = vsel %vm637, %v451, 0
      %v642 = vsel %vm637, %v454, 0
      %v645 = vsel %vm637, %v457, 0
      %v648 = vsel %vm637, %v460, 0
      %v651 = vsel %vm637, %v463, 0
      %v654 = vsel %vm637, %v466, 0
      %v657 = vsel %vm637, %v469, 0
      %v660 = vsel %vm637, %v472, 0
      %v663 = vsel %vm637, %v475, 0
      %v666 = vsel %vm637, %v478, 0
      %v669 = vsel %vm637, %v481, 0
      %v672 = vsel %vm637, %v484, 0
      %v675 = vsel %vm637, %v487, 0
      %v678 = vsel %vm637, %v490, 0
      %v681 = vsel %vm637, %v493, 0
      %v684 = vsel %vm637, %v496, 0
      %686 = vmatprep.subr.bf16.mxu0 0
      %687 = vmatpush1.bf16.msra.mxu0 %v608
      %688 = vmatprep.subr.bf16.mxu0 0
      %689 = vmatpush1.bf16.msra.mxu0 %v607
      %690 = vmatprep.subr.bf16.mxu0 0
      %691 = vmatpush1.bf16.msra.mxu0 %v606
      %692 = vmatprep.subr.bf16.mxu0 0
      %693 = vmatpush1.bf16.msra.mxu0 %v605
      %694 = vmatprep.subr.bf16.mxu0 0
      %695 = vmatpush1.bf16.msra.mxu0 %v604
      %696 = vmatprep.subr.bf16.mxu0 0
      %697 = vmatpush1.bf16.msra.mxu0 %v603
      %698 = vmatprep.subr.bf16.mxu0 0
      %699 = vmatpush1.bf16.msra.mxu0 %v602
      %700 = vmatprep.subr.bf16.mxu0 0
      %701 = vmatpush1.bf16.msra.mxu0 %v601
      %702 = vmatprep.subr.bf16.mxu0 0
      %703 = vmatpush2.bf16.msra.mxu0 %v616
      %704 = vmatprep.subr.bf16.mxu0 0
      %705 = vmatpush2.bf16.msra.mxu0 %v615
      %706 = vmatprep.subr.bf16.mxu0 0
      %707 = vmatpush2.bf16.msra.mxu0 %v614
      %708 = vmatprep.subr.bf16.mxu0 0
      %709 = vmatpush2.bf16.msra.mxu0 %v613
      %710 = vmatprep.subr.bf16.mxu0 0
      %711 = vmatpush2.bf16.msra.mxu0 %v612
      %712 = vmatprep.subr.bf16.mxu0 0
      %713 = vmatpush2.bf16.msra.mxu0 %v611
      %714 = vmatprep.subr.bf16.mxu0 0
      %715 = vmatpush2.bf16.msra.mxu0 %v610
      %716 = vmatprep.subr.bf16.mxu0 0
      %717 = vmatpush2.bf16.msra.mxu0 %v609
      %718 = vmatprep.mubr.bf16.mxu0 %v450
      %719 = vmatmul.mubr.bf16.gmra.mxu0 %v449
      %v720 = vpop.f32.mrf.mxu0
      %v721 = vadd.f32 0.0, %v720
      %v722 = vpop.f32.mrf.mxu0
      %v723 = vpop.f32.mrf.mxu0
      %v724 = vadd.f32 0.0, %v723
      %v725 = vpop.f32.mrf.mxu0
      %726 = vmatprep.mubr.bf16.mxu0 %v453
      %727 = vmatmul.mubr.bf16.gmra.mxu0 %v452
      %v728 = vpop.f32.mrf.mxu0
      %v729 = vadd.f32 0.0, %v728
      %v730 = vpop.f32.mrf.mxu0
      %v731 = vpop.f32.mrf.mxu0
      %v732 = vadd.f32 0.0, %v731
      %v733 = vpop.f32.mrf.mxu0
      %734 = vmatprep.mubr.bf16.mxu0 %v456
      %735 = vmatmul.mubr.bf16.gmra.mxu0 %v455
      %v736 = vpop.f32.mrf.mxu0
      %v737 = vadd.f32 0.0, %v736
      %v738 = vpop.f32.mrf.mxu0
      %v739 = vpop.f32.mrf.mxu0
      %v740 = vadd.f32 0.0, %v739
      %v741 = vpop.f32.mrf.mxu0
      %742 = vmatprep.mubr.bf16.mxu0 %v459
      %743 = vmatmul.mubr.bf16.gmra.mxu0 %v458
      %v744 = vpop.f32.mrf.mxu0
      %v745 = vadd.f32 0.0, %v744
      %v746 = vpop.f32.mrf.mxu0
      %v747 = vpop.f32.mrf.mxu0
      %v748 = vadd.f32 0.0, %v747
      %v749 = vpop.f32.mrf.mxu0
      %750 = vmatprep.mubr.bf16.mxu0 %v462
      %751 = vmatmul.mubr.bf16.gmra.mxu0 %v461
      %v752 = vpop.f32.mrf.mxu0
      %v753 = vadd.f32 0.0, %v752
      %v754 = vpop.f32.mrf.mxu0
      %v755 = vpop.f32.mrf.mxu0
      %v756 = vadd.f32 0.0, %v755
      %v757 = vpop.f32.mrf.mxu0
      %758 = vmatprep.mubr.bf16.mxu0 %v465
      %759 = vmatmul.mubr.bf16.gmra.mxu0 %v464
      %v760 = vpop.f32.mrf.mxu0
      %v761 = vadd.f32 0.0, %v760
      %v762 = vpop.f32.mrf.mxu0
      %v763 = vpop.f32.mrf.mxu0
      %v764 = vadd.f32 0.0, %v763
      %v765 = vpop.f32.mrf.mxu0
      %766 = vmatprep.mubr.bf16.mxu0 %v468
      %767 = vmatmul.mubr.bf16.gmra.mxu0 %v467
      %v768 = vpop.f32.mrf.mxu0
      %v769 = vadd.f32 0.0, %v768
      %v770 = vpop.f32.mrf.mxu0
      %v771 = vpop.f32.mrf.mxu0
      %v772 = vadd.f32 0.0, %v771
      %v773 = vpop.f32.mrf.mxu0
      %774 = vmatprep.mubr.bf16.mxu0 %v471
      %775 = vmatmul.mubr.bf16.gmra.mxu0 %v470
      %v776 = vpop.f32.mrf.mxu0
      %v777 = vadd.f32 0.0, %v776
      %v778 = vpop.f32.mrf.mxu0
      %v779 = vpop.f32.mrf.mxu0
      %v780 = vadd.f32 0.0, %v779
      %v781 = vpop.f32.mrf.mxu0
      %782 = vmatprep.mubr.bf16.mxu0 %v474
      %783 = vmatmul.mubr.bf16.gmra.mxu0 %v473
      %v784 = vpop.f32.mrf.mxu0
      %v785 = vadd.f32 0.0, %v784
      %v786 = vpop.f32.mrf.mxu0
      %v787 = vpop.f32.mrf.mxu0
      %v788 = vadd.f32 0.0, %v787
      %v789 = vpop.f32.mrf.mxu0
      %790 = vmatprep.mubr.bf16.mxu0 %v477
      %791 = vmatmul.mubr.bf16.gmra.mxu0 %v476
      %v792 = vpop.f32.mrf.mxu0
      %v793 = vadd.f32 0.0, %v792
      %v794 = vpop.f32.mrf.mxu0
      %v795 = vpop.f32.mrf.mxu0
      %v796 = vadd.f32 0.0, %v795
      %v797 = vpop.f32.mrf.mxu0
      %798 = vmatprep.mubr.bf16.mxu0 %v480
      %799 = vmatmul.mubr.bf16.gmra.mxu0 %v479
      %v800 = vpop.f32.mrf.mxu0
      %v801 = vadd.f32 0.0, %v800
      %v802 = vpop.f32.mrf.mxu0
      %v803 = vpop.f32.mrf.mxu0
      %v804 = vadd.f32 0.0, %v803
      %v805 = vpop.f32.mrf.mxu0
      %806 = vmatprep.mubr.bf16.mxu0 %v483
      %807 = vmatmul.mubr.bf16.gmra.mxu0 %v482
      %v808 = vpop.f32.mrf.mxu0
      %v809 = vadd.f32 0.0, %v808
      %v810 = vpop.f32.mrf.mxu0
      %v811 = vpop.f32.mrf.mxu0
      %v812 = vadd.f32 0.0, %v811
      %v813 = vpop.f32.mrf.mxu0
      %814 = vmatprep.mubr.bf16.mxu0 %v486
      %815 = vmatmul.mubr.bf16.gmra.mxu0 %v485
      %v816 = vpop.f32.mrf.mxu0
      %v817 = vadd.f32 0.0, %v816
      %v818 = vpop.f32.mrf.mxu0
      %v819 = vpop.f32.mrf.mxu0
      %v820 = vadd.f32 0.0, %v819
      %v821 = vpop.f32.mrf.mxu0
      %822 = vmatprep.mubr.bf16.mxu0 %v489
      %823 = vmatmul.mubr.bf16.gmra.mxu0 %v488
      %v824 = vpop.f32.mrf.mxu0
      %v825 = vadd.f32 0.0, %v824
      %v826 = vpop.f32.mrf.mxu0
      %v827 = vpop.f32.mrf.mxu0
      %v828 = vadd.f32 0.0, %v827
      %v829 = vpop.f32.mrf.mxu0
      %830 = vmatprep.mubr.bf16.mxu0 %v492
      %831 = vmatmul.mubr.bf16.gmra.mxu0 %v491
      %v832 = vpop.f32.mrf.mxu0
      %v833 = vadd.f32 0.0, %v832
      %v834 = vpop.f32.mrf.mxu0
      %v835 = vpop.f32.mrf.mxu0
      %v836 = vadd.f32 0.0, %v835
      %v837 = vpop.f32.mrf.mxu0
      %838 = vmatprep.mubr.bf16.mxu0 %v495
      %839 = vmatmul.mubr.bf16.gmra.mxu0 %v494
      %v840 = vpop.f32.mrf.mxu0
      %v841 = vadd.f32 0.0, %v840
      %v842 = vpop.f32.mrf.mxu0
      %v843 = vpop.f32.mrf.mxu0
      %v844 = vadd.f32 0.0, %v843
      %v845 = vpop.f32.mrf.mxu0
      %846 = vdwg.mxu0
      %847 = vmatprep.subr.bf16.mxu0 0
      %848 = vmatpush1.bf16.msra.mxu0 0
      %849 = vmatprep.subr.bf16.mxu0 0
      %850 = vmatpush1.bf16.msra.mxu0 0
      %851 = vmatprep.subr.bf16.mxu0 0
      %852 = vmatpush1.bf16.msra.mxu0 0
      %853 = vmatprep.subr.bf16.mxu0 0
      %854 = vmatpush1.bf16.msra.mxu0 0
      %855 = vmatprep.subr.bf16.mxu0 0
      %856 = vmatpush1.bf16.msra.mxu0 0
      %857 = vmatprep.subr.bf16.mxu0 0
      %858 = vmatpush1.bf16.msra.mxu0 0
      %859 = vmatprep.subr.bf16.mxu0 0
      %860 = vmatpush1.bf16.msra.mxu0 %v618
      %861 = vmatprep.subr.bf16.mxu0 0
      %862 = vmatpush1.bf16.msra.mxu0 %v617
      %863 = vmatprep.subr.bf16.mxu0 0
      %864 = vmatpush2.bf16.msra.mxu0 0
      %865 = vmatprep.subr.bf16.mxu0 0
      %866 = vmatpush2.bf16.msra.mxu0 0
      %867 = vmatprep.subr.bf16.mxu0 0
      %868 = vmatpush2.bf16.msra.mxu0 0
      %869 = vmatprep.subr.bf16.mxu0 0
      %870 = vmatpush2.bf16.msra.mxu0 0
      %871 = vmatprep.subr.bf16.mxu0 0
      %872 = vmatpush2.bf16.msra.mxu0 0
      %873 = vmatprep.subr.bf16.mxu0 0
      %874 = vmatpush2.bf16.msra.mxu0 0
      %875 = vmatprep.subr.bf16.mxu0 0
      %876 = vmatpush2.bf16.msra.mxu0 0
      %877 = vmatprep.subr.bf16.mxu0 0
      %878 = vmatpush2.bf16.msra.mxu0 0
      %879 = vmatprep.mubr.bf16.mxu0 0
      %880 = vmatmul.mubr.bf16.gmra.mxu0 %v639
      %v881 = vpop.f32.mrf.mxu0
      %v882 = vadd.f32 %v721, %v881
      %v883 = vpop.f32.mrf.mxu0
      %v884 = vpop.f32.mrf.mxu0
      %v885 = vadd.f32 %v724, %v884
      %v886 = vpop.f32.mrf.mxu0
      %887 = vmatprep.mubr.bf16.mxu0 0
      %888 = vmatmul.mubr.bf16.gmra.mxu0 %v642
      %v889 = vpop.f32.mrf.mxu0
      %v890 = vadd.f32 %v729, %v889
      %v891 = vpop.f32.mrf.mxu0
      %v892 = vpop.f32.mrf.mxu0
      %v893 = vadd.f32 %v732, %v892
      %v894 = vpop.f32.mrf.mxu0
      %895 = vmatprep.mubr.bf16.mxu0 0
      %896 = vmatmul.mubr.bf16.gmra.mxu0 %v645
      %v897 = vpop.f32.mrf.mxu0
      %v898 = vadd.f32 %v737, %v897
      %v899 = vpop.f32.mrf.mxu0
      %v900 = vpop.f32.mrf.mxu0
      %v901 = vadd.f32 %v740, %v900
      %v902 = vpop.f32.mrf.mxu0
      %903 = vmatprep.mubr.bf16.mxu0 0
      %904 = vmatmul.mubr.bf16.gmra.mxu0 %v648
      %v905 = vpop.f32.mrf.mxu0
      %v906 = vadd.f32 %v745, %v905
      %v907 = vpop.f32.mrf.mxu0
      %v908 = vpop.f32.mrf.mxu0
      %v909 = vadd.f32 %v748, %v908
      %v910 = vpop.f32.mrf.mxu0
      %911 = vmatprep.mubr.bf16.mxu0 0
      %912 = vmatmul.mubr.bf16.gmra.mxu0 %v651
      %v913 = vpop.f32.mrf.mxu0
      %v914 = vadd.f32 %v753, %v913
      %v915 = vpop.f32.mrf.mxu0
      %v916 = vpop.f32.mrf.mxu0
      %v917 = vadd.f32 %v756, %v916
      %v918 = vpop.f32.mrf.mxu0
      %919 = vmatprep.mubr.bf16.mxu0 0
      %920 = vmatmul.mubr.bf16.gmra.mxu0 %v654
      %v921 = vpop.f32.mrf.mxu0
      %v922 = vadd.f32 %v761, %v921
      %v923 = vpop.f32.mrf.mxu0
      %v924 = vpop.f32.mrf.mxu0
      %v925 = vadd.f32 %v764, %v924
      %v926 = vpop.f32.mrf.mxu0
      %927 = vmatprep.mubr.bf16.mxu0 0
      %928 = vmatmul.mubr.bf16.gmra.mxu0 %v657
      %v929 = vpop.f32.mrf.mxu0
      %v930 = vadd.f32 %v769, %v929
      %v931 = vpop.f32.mrf.mxu0
      %v932 = vpop.f32.mrf.mxu0
      %v933 = vadd.f32 %v772, %v932
      %v934 = vpop.f32.mrf.mxu0
      %935 = vmatprep.mubr.bf16.mxu0 0
      %936 = vmatmul.mubr.bf16.gmra.mxu0 %v660
      %v937 = vpop.f32.mrf.mxu0
      %v938 = vadd.f32 %v777, %v937
      %v939 = vpop.f32.mrf.mxu0
      %v940 = vpop.f32.mrf.mxu0
      %v941 = vadd.f32 %v780, %v940
      %v942 = vpop.f32.mrf.mxu0
      %943 = vmatprep.mubr.bf16.mxu0 0
      %944 = vmatmul.mubr.bf16.gmra.mxu0 %v663
      %v945 = vpop.f32.mrf.mxu0
      %v946 = vadd.f32 %v785, %v945
      %v947 = vpop.f32.mrf.mxu0
      %v948 = vpop.f32.mrf.mxu0
      %v949 = vadd.f32 %v788, %v948
      %v950 = vpop.f32.mrf.mxu0
      %951 = vmatprep.mubr.bf16.mxu0 0
      %952 = vmatmul.mubr.bf16.gmra.mxu0 %v666
      %v953 = vpop.f32.mrf.mxu0
      %v954 = vadd.f32 %v793, %v953
      %v955 = vpop.f32.mrf.mxu0
      %v956 = vpop.f32.mrf.mxu0
      %v957 = vadd.f32 %v796, %v956
      %v958 = vpop.f32.mrf.mxu0
      %959 = vmatprep.mubr.bf16.mxu0 0
      %960 = vmatmul.mubr.bf16.gmra.mxu0 %v669
      %v961 = vpop.f32.mrf.mxu0
      %v962 = vadd.f32 %v801, %v961
      %v963 = vpop.f32.mrf.mxu0
      %v964 = vpop.f32.mrf.mxu0
      %v965 = vadd.f32 %v804, %v964
      %v966 = vpop.f32.mrf.mxu0
      %967 = vmatprep.mubr.bf16.mxu0 0
      %968 = vmatmul.mubr.bf16.gmra.mxu0 %v672
      %v969 = vpop.f32.mrf.mxu0
      %v970 = vadd.f32 %v809, %v969
      %v971 = vpop.f32.mrf.mxu0
      %v972 = vpop.f32.mrf.mxu0
      %v973 = vadd.f32 %v812, %v972
      %v974 = vpop.f32.mrf.mxu0
      %975 = vmatprep.mubr.bf16.mxu0 0
      %976 = vmatmul.mubr.bf16.gmra.mxu0 %v675
      %v977 = vpop.f32.mrf.mxu0
      %v978 = vadd.f32 %v817, %v977
      %v979 = vpop.f32.mrf.mxu0
      %v980 = vpop.f32.mrf.mxu0
      %v981 = vadd.f32 %v820, %v980
      %v982 = vpop.f32.mrf.mxu0
      %983 = vmatprep.mubr.bf16.mxu0 0
      %984 = vmatmul.mubr.bf16.gmra.mxu0 %v678
      %v985 = vpop.f32.mrf.mxu0
      %v986 = vadd.f32 %v825, %v985
      %v987 = vpop.f32.mrf.mxu0
      %v988 = vpop.f32.mrf.mxu0
      %v989 = vadd.f32 %v828, %v988
      %v990 = vpop.f32.mrf.mxu0
      %991 = vmatprep.mubr.bf16.mxu0 0
      %992 = vmatmul.mubr.bf16.gmra.mxu0 %v681
      %v993 = vpop.f32.mrf.mxu0
      %v994 = vadd.f32 %v833, %v993
      %v995 = vpop.f32.mrf.mxu0
      %v996 = vpop.f32.mrf.mxu0
      %v997 = vadd.f32 %v836, %v996
      %v998 = vpop.f32.mrf.mxu0
      %999 = vmatprep.mubr.bf16.mxu0 0
      %1000 = vmatmul.mubr.bf16.gmra.mxu0 %v684
      %v1001 = vpop.f32.mrf.mxu0
      %v1002 = vadd.f32 %v841, %v1001
      %v1003 = vpop.f32.mrf.mxu0
      %v1004 = vpop.f32.mrf.mxu0
      %v1005 = vadd.f32 %v844, %v1004
      %v1006 = vpop.f32.mrf.mxu0
      %1007 = vdwg.mxu0
      %v1008 = vpack.c.bf16 %v885, %v882
      %v1009 = vpack.c.bf16 %v893, %v890
      %v1010 = vpack.c.bf16 %v901, %v898
      %v1011 = vpack.c.bf16 %v909, %v906
      %v1012 = vpack.c.bf16 %v917, %v914
      %v1013 = vpack.c.bf16 %v925, %v922
      %v1014 = vpack.c.bf16 %v933, %v930
      %v1015 = vpack.c.bf16 %v941, %v938
      %v1016 = vpack.c.bf16 %v949, %v946
      %v1017 = vpack.c.bf16 %v957, %v954
      %v1018 = vpack.c.bf16 %v965, %v962
      %v1019 = vpack.c.bf16 %v973, %v970
      %v1020 = vpack.c.bf16 %v981, %v978
      %v1021 = vpack.c.bf16 %v989, %v986
      %v1022 = vpack.c.bf16 %v997, %v994
      %v1023 = vpack.c.bf16 %v1005, %v1002
      %v1040 = vunpack.c.l.b16 %v1008
      %v1041 = vunpack.c.h.b16 %v1008
      %v1042 = vunpack.c.l.b16 %v1009
      %v1043 = vunpack.c.h.b16 %v1009
      %v1044 = vunpack.c.l.b16 %v1010
      %v1045 = vunpack.c.h.b16 %v1010
      %v1046 = vunpack.c.l.b16 %v1011
      %v1047 = vunpack.c.h.b16 %v1011
      %v1048 = vunpack.c.l.b16 %v1012
      %v1049 = vunpack.c.h.b16 %v1012
      %v1050 = vunpack.c.l.b16 %v1013
      %v1051 = vunpack.c.h.b16 %v1013
      %v1052 = vunpack.c.l.b16 %v1014
      %v1053 = vunpack.c.h.b16 %v1014
      %v1054 = vunpack.c.l.b16 %v1015
      %v1055 = vunpack.c.h.b16 %v1015
      %v1056 = vunpack.c.l.b16 %v1016
      %v1057 = vunpack.c.h.b16 %v1016
      %v1058 = vunpack.c.l.b16 %v1017
      %v1059 = vunpack.c.h.b16 %v1017
      %v1060 = vunpack.c.l.b16 %v1018
      %v1061 = vunpack.c.h.b16 %v1018
      %v1062 = vunpack.c.l.b16 %v1019
      %v1063 = vunpack.c.h.b16 %v1019
      %v1064 = vunpack.c.l.b16 %v1020
      %v1065 = vunpack.c.h.b16 %v1020
      %v1066 = vunpack.c.l.b16 %v1021
      %v1067 = vunpack.c.h.b16 %v1021
      %v1068 = vunpack.c.l.b16 %v1022
      %v1069 = vunpack.c.h.b16 %v1022
      %v1070 = vunpack.c.l.b16 %v1023
      %v1071 = vunpack.c.h.b16 %v1023
      %v1072 = vpack.c.b16 %v1040, %v1040
      %v1073 = vpack.c.b16 %v1041, %v1041
      %v1074 = vpack.c.b16 %v1042, %v1042
      %v1075 = vpack.c.b16 %v1043, %v1043
      %v1076 = vpack.c.b16 %v1044, %v1044
      %v1077 = vpack.c.b16 %v1045, %v1045
      %v1078 = vpack.c.b16 %v1046, %v1046
      %v1079 = vpack.c.b16 %v1047, %v1047
      %v1080 = vpack.c.b16 %v1048, %v1048
      %v1081 = vpack.c.b16 %v1049, %v1049
      %v1082 = vpack.c.b16 %v1050, %v1050
      %v1083 = vpack.c.b16 %v1051, %v1051
      %v1084 = vpack.c.b16 %v1052, %v1052
      %v1085 = vpack.c.b16 %v1053, %v1053
      %v1086 = vpack.c.b16 %v1054, %v1054
      %v1087 = vpack.c.b16 %v1055, %v1055
      %v1088 = vpack.c.b16 %v1056, %v1056
      %v1089 = vpack.c.b16 %v1057, %v1057
      %v1090 = vpack.c.b16 %v1058, %v1058
      %v1091 = vpack.c.b16 %v1059, %v1059
      %v1092 = vpack.c.b16 %v1060, %v1060
      %v1093 = vpack.c.b16 %v1061, %v1061
      %v1094 = vpack.c.b16 %v1062, %v1062
      %v1095 = vpack.c.b16 %v1063, %v1063
      %v1096 = vpack.c.b16 %v1064, %v1064
      %v1097 = vpack.c.b16 %v1065, %v1065
      %v1098 = vpack.c.b16 %v1066, %v1066
      %v1099 = vpack.c.b16 %v1067, %v1067
      %v1100 = vpack.c.b16 %v1068, %v1068
      %v1101 = vpack.c.b16 %v1069, %v1069
      %v1102 = vpack.c.b16 %v1070, %v1070
      %v1103 = vpack.c.b16 %v1071, %v1071
      %vm1136 = vcmask 519168
      %1137 = vst.msk [vmem:[%s182] sm:$0xf] %vm1136, %v1072
      %1138 = vst.msk [vmem:[%s182 + $0x4] sm:$0xf] %vm1136, %v1073
      %1139 = vst.msk [vmem:[%s182 + $0x8] sm:$0xf] %vm1136, %v1074
      %1140 = vst.msk [vmem:[%s182 + $0xc] sm:$0xf] %vm1136, %v1075
      %1141 = vst.msk [vmem:[%s182 + $0x10] sm:$0xf] %vm1136, %v1076
      %1142 = vst.msk [vmem:[%s182 + $0x14] sm:$0xf] %vm1136, %v1077
      %1143 = vst.msk [vmem:[%s182 + $0x18] sm:$0xf] %vm1136, %v1078
      %1144 = vst.msk [vmem:[%s182 + $0x1c] sm:$0xf] %vm1136, %v1079
      %1145 = vst.msk [vmem:[%s182 + $0x20] sm:$0xf] %vm1136, %v1080
      %1146 = vst.msk [vmem:[%s182 + $0x24] sm:$0xf] %vm1136, %v1081
      %1147 = vst.msk [vmem:[%s182 + $0x28] sm:$0xf] %vm1136, %v1082
      %1148 = vst.msk [vmem:[%s182 + $0x2c] sm:$0xf] %vm1136, %v1083
      %1149 = vst.msk [vmem:[%s182 + $0x30] sm:$0xf] %vm1136, %v1084
      %1150 = vst.msk [vmem:[%s182 + $0x34] sm:$0xf] %vm1136, %v1085
      %1151 = vst.msk [vmem:[%s182 + $0x38] sm:$0xf] %vm1136, %v1086
      %1152 = vst.msk [vmem:[%s182 + $0x3c] sm:$0xf] %vm1136, %v1087
      %1153 = vst.msk [vmem:[%s182 + $0x40] sm:$0xf] %vm1136, %v1088
      %1154 = vst.msk [vmem:[%s182 + $0x44] sm:$0xf] %vm1136, %v1089
      %1155 = vst.msk [vmem:[%s182 + $0x48] sm:$0xf] %vm1136, %v1090
      %1156 = vst.msk [vmem:[%s182 + $0x4c] sm:$0xf] %vm1136, %v1091
      %1157 = vst.msk [vmem:[%s182 + $0x50] sm:$0xf] %vm1136, %v1092
      %1158 = vst.msk [vmem:[%s182 + $0x54] sm:$0xf] %vm1136, %v1093
      %1159 = vst.msk [vmem:[%s182 + $0x58] sm:$0xf] %vm1136, %v1094
      %1160 = vst.msk [vmem:[%s182 + $0x5c] sm:$0xf] %vm1136, %v1095
      %1161 = vst.msk [vmem:[%s182 + $0x60] sm:$0xf] %vm1136, %v1096
      %1162 = vst.msk [vmem:[%s182 + $0x64] sm:$0xf] %vm1136, %v1097
      %1163 = vst.msk [vmem:[%s182 + $0x68] sm:$0xf] %vm1136, %v1098
      %1164 = vst.msk [vmem:[%s182 + $0x6c] sm:$0xf] %vm1136, %v1099
      %1165 = vst.msk [vmem:[%s182 + $0x70] sm:$0xf] %vm1136, %v1100
      %1166 = vst.msk [vmem:[%s182 + $0x74] sm:$0xf] %vm1136, %v1101
      %1167 = vst.msk [vmem:[%s182 + $0x78] sm:$0xf] %vm1136, %v1102
      %1168 = vst.msk [vmem:[%s182 + $0x7c] sm:$0xf] %vm1136, %v1103
      %vm1169 = vcmask 523264
      %v1170 = vsel %vm1169, %v882, 0.0
      %v1171 = vsel %vm1169, %v885, 0.0
      %v1172 = vadd.f32 %v1170, %v1171
      %v1173 = vsel %vm1169, %v890, 0.0
      %v1174 = vadd.f32 %v1172, %v1173
      %v1175 = vsel %vm1169, %v893, 0.0
      %v1176 = vadd.f32 %v1174, %v1175
      %v1177 = vsel %vm1169, %v898, 0.0
      %v1178 = vadd.f32 %v1176, %v1177
      %v1179 = vsel %vm1169, %v901, 0.0
      %v1180 = vadd.f32 %v1178, %v1179
      %v1181 = vsel %vm1169, %v906, 0.0
      %v1182 = vadd.f32 %v1180, %v1181
      %v1183 = vsel %vm1169, %v909, 0.0
      %v1184 = vadd.f32 %v1182, %v1183
      %v1185 = vsel %vm1169, %v914, 0.0
      %v1186 = vadd.f32 %v1184, %v1185
      %v1187 = vsel %vm1169, %v917, 0.0
      %v1188 = vadd.f32 %v1186, %v1187
      %v1189 = vsel %vm1169, %v922, 0.0
      %v1190 = vadd.f32 %v1188, %v1189
      %v1191 = vsel %vm1169, %v925, 0.0
      %v1192 = vadd.f32 %v1190, %v1191
      %v1193 = vsel %vm1169, %v930, 0.0
      %v1194 = vadd.f32 %v1192, %v1193
      %v1195 = vsel %vm1169, %v933, 0.0
      %v1196 = vadd.f32 %v1194, %v1195
      %v1197 = vsel %vm1169, %v938, 0.0
      %v1198 = vadd.f32 %v1196, %v1197
      %v1199 = vsel %vm1169, %v941, 0.0
      %v1200 = vadd.f32 %v1198, %v1199
      %v1201 = vsel %vm1169, %v946, 0.0
      %v1202 = vadd.f32 %v1200, %v1201
      %v1203 = vsel %vm1169, %v949, 0.0
      %v1204 = vadd.f32 %v1202, %v1203
      %v1205 = vsel %vm1169, %v954, 0.0
      %v1206 = vadd.f32 %v1204, %v1205
      %v1207 = vsel %vm1169, %v957, 0.0
      %v1208 = vadd.f32 %v1206, %v1207
      %v1209 = vsel %vm1169, %v962, 0.0
      %v1210 = vadd.f32 %v1208, %v1209
      %v1211 = vsel %vm1169, %v965, 0.0
      %v1212 = vadd.f32 %v1210, %v1211
      %v1213 = vsel %vm1169, %v970, 0.0
      %v1214 = vadd.f32 %v1212, %v1213
      %v1215 = vsel %vm1169, %v973, 0.0
      %v1216 = vadd.f32 %v1214, %v1215
      %v1217 = vsel %vm1169, %v978, 0.0
      %v1218 = vadd.f32 %v1216, %v1217
      %v1219 = vsel %vm1169, %v981, 0.0
      %v1220 = vadd.f32 %v1218, %v1219
      %v1221 = vsel %vm1169, %v986, 0.0
      %v1222 = vadd.f32 %v1220, %v1221
      %v1223 = vsel %vm1169, %v989, 0.0
      %v1224 = vadd.f32 %v1222, %v1223
      %v1225 = vsel %vm1169, %v994, 0.0
      %v1226 = vadd.f32 %v1224, %v1225
      %v1227 = vsel %vm1169, %v997, 0.0
      %v1228 = vadd.f32 %v1226, %v1227
      %v1229 = vsel %vm1169, %v1002, 0.0
      %v1230 = vadd.f32 %v1228, %v1229
      %v1231 = vsel %vm1169, %v1005, 0.0
      %v1232 = vadd.f32 %v1230, %v1231
      %v1233 = vrot.slane %v1232, 4
      %v1234 = vadd.f32 %v1232, %v1233
      %v1235 = vrot.slane %v1234, 2
      %v1236 = vadd.f32 %v1234, %v1235
      %v1237 = vrot.slane %v1236, 1
      %v1238 = vadd.f32 %v1236, %v1237
      %v1239 = vmul.f32 %v882, %v882
      %v1240 = vmul.f32 %v885, %v885
      %v1241 = vmul.f32 %v890, %v890
      %v1242 = vmul.f32 %v893, %v893
      %v1243 = vmul.f32 %v898, %v898
      %v1244 = vmul.f32 %v901, %v901
      %v1245 = vmul.f32 %v906, %v906
      %v1246 = vmul.f32 %v909, %v909
      %v1247 = vmul.f32 %v914, %v914
      %v1248 = vmul.f32 %v917, %v917
      %v1249 = vmul.f32 %v922, %v922
      %v1250 = vmul.f32 %v925, %v925
      %v1251 = vmul.f32 %v930, %v930
      %v1252 = vmul.f32 %v933, %v933
      %v1253 = vmul.f32 %v938, %v938
      %v1254 = vmul.f32 %v941, %v941
      %v1255 = vmul.f32 %v946, %v946
      %v1256 = vmul.f32 %v949, %v949
      %v1257 = vmul.f32 %v954, %v954
      %v1258 = vmul.f32 %v957, %v957
      %v1259 = vmul.f32 %v962, %v962
      %v1260 = vmul.f32 %v965, %v965
      %v1261 = vmul.f32 %v970, %v970
      %v1262 = vmul.f32 %v973, %v973
      %v1263 = vmul.f32 %v978, %v978
      %v1264 = vmul.f32 %v981, %v981
      %v1265 = vmul.f32 %v986, %v986
      %v1266 = vmul.f32 %v989, %v989
      %v1267 = vmul.f32 %v994, %v994
      %v1268 = vmul.f32 %v997, %v997
      %v1269 = vmul.f32 %v1002, %v1002
      %v1270 = vmul.f32 %v1005, %v1005
      %v1271 = vsel %vm1169, %v1239, 0.0
      %v1272 = vsel %vm1169, %v1240, 0.0
      %v1273 = vadd.f32 %v1271, %v1272
      %v1274 = vsel %vm1169, %v1241, 0.0
      %v1275 = vadd.f32 %v1273, %v1274
      %v1276 = vsel %vm1169, %v1242, 0.0
      %v1277 = vadd.f32 %v1275, %v1276
      %v1278 = vsel %vm1169, %v1243, 0.0
      %v1279 = vadd.f32 %v1277, %v1278
      %v1280 = vsel %vm1169, %v1244, 0.0
      %v1281 = vadd.f32 %v1279, %v1280
      %v1282 = vsel %vm1169, %v1245, 0.0
      %v1283 = vadd.f32 %v1281, %v1282
      %v1284 = vsel %vm1169, %v1246, 0.0
      %v1285 = vadd.f32 %v1283, %v1284
      %v1286 = vsel %vm1169, %v1247, 0.0
      %v1287 = vadd.f32 %v1285, %v1286
      %v1288 = vsel %vm1169, %v1248, 0.0
      %v1289 = vadd.f32 %v1287, %v1288
      %v1290 = vsel %vm1169, %v1249, 0.0
      %v1291 = vadd.f32 %v1289, %v1290
      %v1292 = vsel %vm1169, %v1250, 0.0
      %v1293 = vadd.f32 %v1291, %v1292
      %v1294 = vsel %vm1169, %v1251, 0.0
      %v1295 = vadd.f32 %v1293, %v1294
      %v1296 = vsel %vm1169, %v1252, 0.0
      %v1297 = vadd.f32 %v1295, %v1296
      %v1298 = vsel %vm1169, %v1253, 0.0
      %v1299 = vadd.f32 %v1297, %v1298
      %v1300 = vsel %vm1169, %v1254, 0.0
      %v1301 = vadd.f32 %v1299, %v1300
      %v1302 = vsel %vm1169, %v1255, 0.0
      %v1303 = vadd.f32 %v1301, %v1302
      %v1304 = vsel %vm1169, %v1256, 0.0
      %v1305 = vadd.f32 %v1303, %v1304
      %v1306 = vsel %vm1169, %v1257, 0.0
      %v1307 = vadd.f32 %v1305, %v1306
      %v1308 = vsel %vm1169, %v1258, 0.0
      %v1309 = vadd.f32 %v1307, %v1308
      %v1310 = vsel %vm1169, %v1259, 0.0
      %v1311 = vadd.f32 %v1309, %v1310
      %v1312 = vsel %vm1169, %v1260, 0.0
      %v1313 = vadd.f32 %v1311, %v1312
      %v1314 = vsel %vm1169, %v1261, 0.0
      %v1315 = vadd.f32 %v1313, %v1314
      %v1316 = vsel %vm1169, %v1262, 0.0
      %v1317 = vadd.f32 %v1315, %v1316
      %v1318 = vsel %vm1169, %v1263, 0.0
      %v1319 = vadd.f32 %v1317, %v1318
      %v1320 = vsel %vm1169, %v1264, 0.0
      %v1321 = vadd.f32 %v1319, %v1320
      %v1322 = vsel %vm1169, %v1265, 0.0
      %v1323 = vadd.f32 %v1321, %v1322
      %v1324 = vsel %vm1169, %v1266, 0.0
      %v1325 = vadd.f32 %v1323, %v1324
      %v1326 = vsel %vm1169, %v1267, 0.0
      %v1327 = vadd.f32 %v1325, %v1326
      %v1328 = vsel %vm1169, %v1268, 0.0
      %v1329 = vadd.f32 %v1327, %v1328
      %v1330 = vsel %vm1169, %v1269, 0.0
      %v1331 = vadd.f32 %v1329, %v1330
      %v1332 = vsel %vm1169, %v1270, 0.0
      %v1333 = vadd.f32 %v1331, %v1332
      %v1334 = vrot.slane %v1333, 4
      %v1335 = vadd.f32 %v1333, %v1334
      %v1336 = vrot.slane %v1335, 2
      %v1337 = vadd.f32 %v1335, %v1336
      %v1338 = vrot.slane %v1337, 1
      %v1339 = vadd.f32 %v1337, %v1338
      %vm1340 = vcmask 1040384
      %v1341 = vsel %vm1340, %v1238, %v1339
      %vm1342 = vcmask 517120
      %1343 = vst.msk [vmem:[%s187] sm:$0x3] %vm1342, %v1341
      %s1344 = smul.u32 32, %s15
      %p1345 = scmp.lt.s32.totalorder %s1344, 63
      %s1346 = scalar_select %p1345, %s1344, 63
      %s1347 = smul.addr %s1346, 4
      %s1348 = scalar_lea.vmem %s2, %s1347
      %p1349 = scmp.lt.s32.totalorder %s15, 1
      %s1350 = scalar_select %p1349, %s15, 1
      %s1351 = smul.addr %s1350, 2
      %s1352 = scalar_lea.vmem %s3, %s1351
      // Predicated region
      $region29: #{stem_forward.24} parent=27 // pred_check
        %p1353 = pneg %p80
      $region30: #{stem_forward.24} parent=27 // pred_check_branch
        %1355 = sbr.rel (%p1353) target = $region32
      $region31: #{stem_forward.24} parent=27 // pred_region
        %s1356 = smul.u32 32, %s15
      $region32: #{stem_forward.24} parent=27 // pred_fallthru
        _
      // Predicated region
      $region33: #{stem_forward.24} parent=27 // pred_check
        %p1357 = pneg %p106
      $region34: #{stem_forward.24} parent=27 // pred_check_branch
        %1359 = sbr.rel (%p1357) target = $region36
      $region35: #{stem_forward.24} parent=27 // pred_region
        _
      $region36: #{stem_forward.24} parent=27 // pred_fallthru
        _
    $region28: #{stem_forward.24} parent=5 // pred_fallthru
      _
    %p1360 = scmp.le.s32.totalorder 2, %s10
    // Predicated region
    $region37: #{stem_forward.24} parent=5 // pred_check
      %p1361 = pneg %p1360
    $region38: #{stem_forward.24} parent=5 // pred_check_branch
      %1363 = sbr.rel (%p1361) target = $region40
    $region39: #{stem_forward.24} parent=5 // pred_region
      %s1364 = ssub.s32 %s10, 2
      // Predicated region
      $region41: #{stem_forward.24} parent=39 // pred_check
        %p1365 = pneg %p86
      $region42: #{stem_forward.24} parent=39 // pred_check_branch
        %1367 = sbr.rel (%p1365) target = $region44
      $region43: #{stem_forward.24} parent=39 // pred_region
        %s1368 = smul.u32 32, %s16
        %p1369 = scmp.lt.s32.totalorder %s1368, 63
        %s1370 = scalar_select %p1369, %s1368, 63
        %s1371 = smul.addr %s1370, 4
        %s1372 = scalar_lea.vmem %s2, %s1371
      $region44: #{stem_forward.24} parent=39 // pred_fallthru
        _
      // Predicated region
      $region45: #{stem_forward.24} parent=39 // pred_check
        %p1373 = pneg %p112
      $region46: #{stem_forward.24} parent=39 // pred_check_branch
        %1375 = sbr.rel (%p1373) target = $region48
      $region47: #{stem_forward.24} parent=39 // pred_region
        %p1376 = scmp.lt.s32.totalorder %s16, 1
        %s1377 = scalar_select %p1376, %s16, 1
        %s1378 = smul.addr %s1377, 2
        %s1379 = scalar_lea.vmem %s3, %s1378
      $region48: #{stem_forward.24} parent=39 // pred_fallthru
        _
    $region40: #{stem_forward.24} parent=5 // pred_fallthru
      _
  $region6: #{stem_forward.24} parent=0 // loop_footer
    %s14 = sadd.s32 1, %s10
  $region7: #{stem_forward.24} parent=0 // loop_footer_branch
    %9 = sbr.rel target = $region3
  $region8: #{stem_forward.24} parent=0 // loop_exit
    _

// kernel: stem_forward.27
$region0: #{stem_forward.27}
  #allocation0 [shape = 'u32[]', space=smem, size = 0x4, offset = 0x4, fixed_abs, tag = 'smem constant byte address 0x4 - core index']
  #allocation1 [shape = 'u32[144,128]{1,0:T(1,128)}', space=vmem, size = 0x12000, scoped, tag = 'internal scratch']
  %s0 = inlined_call_operand.vmem [shape: bf16[72,96], index: 0, kind: input, shape index: {}]
  %s1 = inlined_call_operand.vmem [shape: f32[1,96], index: 1, kind: input, shape index: {}]
  %s2 = inlined_call_operand.vmem [shape: f32[1,96], index: 2, kind: input, shape index: {}]
  %s3 = inlined_call_operand.vmem [shape: bf16[72,96], index: 3, kind: output, shape index: {}]
  %s4 = sld [smem:[#allocation0]]
  $region22: #{stem_forward.27} parent=0
    _
  %s6 = ssub.s32 1, %s4
  %s7 = scalar_select 0, %s6, %s4
  // Predicated region
  $region2: #{stem_forward.27} parent=0 // pred_check
    _
  $region3: #{stem_forward.27} parent=0 // pred_check_branch
    %9 = sbr.rel (0) target = $region5
  $region4: #{stem_forward.27} parent=0 // pred_region
    _
  $region5: #{stem_forward.27} parent=0 // pred_fallthru
    _
  // Predicated region
  $region6: #{stem_forward.27} parent=0 // pred_check
    _
  $region7: #{stem_forward.27} parent=0 // pred_check_branch
    %11 = sbr.rel (0) target = $region9
  $region8: #{stem_forward.27} parent=0 // pred_region
    _
  $region9: #{stem_forward.27} parent=0 // pred_fallthru
    _
  // Predicated region
  $region10: #{stem_forward.27} parent=0 // pred_check
    _
  $region11: #{stem_forward.27} parent=0 // pred_check_branch
    %13 = sbr.rel (0) target = $region13
  $region12: #{stem_forward.27} parent=0 // pred_region
    _
  $region13: #{stem_forward.27} parent=0 // pred_fallthru
    _
  %v14 = vld [vmem:[%s0] sm:$0xf]
  %v15 = vld [vmem:[%s0 + $0x4] sm:$0xf]
  %v16 = vld [vmem:[%s0 + $0x8] sm:$0xf]
  %v17 = vld [vmem:[%s0 + $0xc] sm:$0xf]
  %v18 = vld [vmem:[%s0 + $0x10] sm:$0xf]
  %v19 = vld [vmem:[%s0 + $0x14] sm:$0xf]
  %v20 = vld [vmem:[%s0 + $0x18] sm:$0xf]
  %v21 = vld [vmem:[%s0 + $0x1c] sm:$0xf]
  %v22 = vld [vmem:[%s0 + $0x20] sm:$0xf]
  %v23 = vunpack.c.l.bf16 %v14
  %v24 = vunpack.c.l.bf16 %v15
  %v25 = vunpack.c.l.bf16 %v16
  %v26 = vunpack.c.l.bf16 %v17
  %v27 = vunpack.c.l.bf16 %v18
  %v28 = vunpack.c.l.bf16 %v19
  %v29 = vunpack.c.l.bf16 %v20
  %v30 = vunpack.c.l.bf16 %v21
  %v31 = vunpack.c.l.bf16 %v22
  %v32 = vld [vmem:[%s1] sm:$0x1]
  %v34 = vlaneseq
  %v35 = vshrl.u32 %v34, 7
  %v36 = vsub.s32 0, %v35
  %v37 = vrot.slane %v32, %v36
  %v39 = vmul.f32 %v23, %v37
  %v40 = vmul.f32 %v24, %v37
  %v41 = vmul.f32 %v25, %v37
  %v42 = vmul.f32 %v26, %v37
  %v43 = vmul.f32 %v27, %v37
  %v44 = vmul.f32 %v28, %v37
  %v45 = vmul.f32 %v29, %v37
  %v46 = vmul.f32 %v30, %v37
  %v47 = vmul.f32 %v31, %v37
  %v48 = vld [vmem:[%s2] sm:$0x1]
  %v50 = vlaneseq
  %v51 = vshrl.u32 %v50, 7
  %v52 = vsub.s32 0, %v51
  %v53 = vrot.slane %v48, %v52
  %v55 = vadd.f32 %v39, %v53
  %v56 = vadd.f32 %v40, %v53
  %v57 = vadd.f32 %v41, %v53
  %v58 = vadd.f32 %v42, %v53
  %v59 = vadd.f32 %v43, %v53
  %v60 = vadd.f32 %v44, %v53
  %v61 = vadd.f32 %v45, %v53
  %v62 = vadd.f32 %v46, %v53
  %v63 = vadd.f32 %v47, %v53
  %v64 = vmax.f32 %v55, 0.0
  %v65 = vmax.f32 %v56, 0.0
  %v66 = vmax.f32 %v57, 0.0
  %v67 = vmax.f32 %v58, 0.0
  %v68 = vmax.f32 %v59, 0.0
  %v69 = vmax.f32 %v60, 0.0
  %v70 = vmax.f32 %v61, 0.0
  %v71 = vmax.f32 %v62, 0.0
  %v72 = vmax.f32 %v63, 0.0
  %v73 = vpack.c.bf16 %v65, %v64
  %v74 = vpack.c.bf16 %v67, %v66
  %v75 = vpack.c.bf16 %v69, %v68
  %v76 = vpack.c.bf16 %v71, %v70
  %v77 = vpack.c.bf16 %v72, %v72
  %v83 = vunpack.c.l.b16 %v73
  %v84 = vunpack.c.h.b16 %v73
  %v85 = vunpack.c.l.b16 %v74
  %v86 = vunpack.c.h.b16 %v74
  %v87 = vunpack.c.l.b16 %v75
  %v88 = vunpack.c.h.b16 %v75
  %v89 = vunpack.c.l.b16 %v76
  %v90 = vunpack.c.h.b16 %v76
  %v91 = vunpack.c.l.b16 %v77
  %v92 = vpack.c.b16 %v83, %v83
  %v93 = vpack.c.b16 %v84, %v84
  %v94 = vpack.c.b16 %v85, %v85
  %v95 = vpack.c.b16 %v86, %v86
  %v96 = vpack.c.b16 %v87, %v87
  %v97 = vpack.c.b16 %v88, %v88
  %v98 = vpack.c.b16 %v89, %v89
  %v99 = vpack.c.b16 %v90, %v90
  %v100 = vpack.c.b16 %v91, %v91
  %vm110 = vcmask 781312
  %111 = vst.msk [vmem:[%s3] sm:$0xf] %vm110, %v92
  %112 = vst.msk [vmem:[%s3 + $0x4] sm:$0xf] %vm110, %v93
  %113 = vst.msk [vmem:[%s3 + $0x8] sm:$0xf] %vm110, %v94
  %114 = vst.msk [vmem:[%s3 + $0xc] sm:$0xf] %vm110, %v95
  %115 = vst.msk [vmem:[%s3 + $0x10] sm:$0xf] %vm110, %v96
  %116 = vst.msk [vmem:[%s3 + $0x14] sm:$0xf] %vm110, %v97
  %117 = vst.msk [vmem:[%s3 + $0x18] sm:$0xf] %vm110, %v98
  %118 = vst.msk [vmem:[%s3 + $0x1c] sm:$0xf] %vm110, %v99
  %119 = vst.msk [vmem:[%s3 + $0x20] sm:$0xf] %vm110, %v100
  // Predicated region
  $region14: #{stem_forward.27} parent=0 // pred_check
    _
  $region15: #{stem_forward.27} parent=0 // pred_check_branch
    %121 = sbr.rel (0) target = $region17
  $region16: #{stem_forward.27} parent=0 // pred_region
    _
  $region17: #{stem_forward.27} parent=0 // pred_fallthru
    _
  // Predicated region
  $region18: #{stem_forward.27} parent=0 // pred_check
    _
  $region19: #{stem_forward.27} parent=0 // pred_check_branch
    %123 = sbr.rel (0) target = $region21
  $region20: #{stem_forward.27} parent=0 // pred_region
    _
  $region21: #{stem_forward.27} parent=0 // pred_fallthru
    _

// kernel: stem_forward.26
$region0: #{stem_forward.26}
  #allocation0 [shape = 'u32[]', space=smem, size = 0x4, offset = 0x4, fixed_abs, tag = 'smem constant byte address 0x4 - core index']
  #allocation1 [shape = 'u32[144,128]{1,0:T(1,128)}', space=vmem, size = 0x12000, scoped, tag = 'internal scratch']
  %s0 = inlined_call_operand.vmem [shape: bf16[72,576], index: 0, kind: input, shape index: {}]
  %s1 = inlined_call_operand.vmem [shape: bf16[576,96], index: 1, kind: input, shape index: {}]
  %s2 = inlined_call_operand.vmem [shape: bf16[72,96], index: 2, kind: output, shape index: {0}]
  %s3 = inlined_call_operand.vmem [shape: f32[1,2,96], index: 3, kind: output, shape index: {1}]
  %4 = xla_tuple %s2, %s3
  %s5 = sld [smem:[#allocation0]]
  $region26: #{stem_forward.26} parent=0
    _
  %s7 = ssub.s32 1, %s5
  %s8 = scalar_select 0, %s7, %s5
  // Predicated region
  $region2: #{stem_forward.26} parent=0 // pred_check
    _
  $region3: #{stem_forward.26} parent=0 // pred_check_branch
    %10 = sbr.rel (0) target = $region5
  $region4: #{stem_forward.26} parent=0 // pred_region
    _
  $region5: #{stem_forward.26} parent=0 // pred_fallthru
    _
  // Predicated region
  $region6: #{stem_forward.26} parent=0 // pred_check
    _
  $region7: #{stem_forward.26} parent=0 // pred_check_branch
    %12 = sbr.rel (0) target = $region9
  $region8: #{stem_forward.26} parent=0 // pred_region
    _
  $region9: #{stem_forward.26} parent=0 // pred_fallthru
    _
  %v14 = vld [vmem:[%s0] sm:$0xff]
  %v15 = vld [vmem:[%s0 + $0x8] sm:$0xff]
  %v16 = vld [vmem:[%s0 + $0x10] sm:$0xf]
  %v17 = vld [vmem:[%s0 + $0x14] sm:$0xff]
  %v18 = vld [vmem:[%s0 + $0x1c] sm:$0xff]
  %v19 = vld [vmem:[%s0 + $0x24] sm:$0xf]
  %v20 = vld [vmem:[%s0 + $0x28] sm:$0xff]
  %v21 = vld [vmem:[%s0 + $0x30] sm:$0xff]
  %v22 = vld [vmem:[%s0 + $0x38] sm:$0xf]
  %v23 = vld [vmem:[%s0 + $0x3c] sm:$0xff]
  %v24 = vld [vmem:[%s0 + $0x44] sm:$0xff]
  %v25 = vld [vmem:[%s0 + $0x4c] sm:$0xf]
  %v26 = vld [vmem:[%s0 + $0x50] sm:$0xff]
  %v27 = vld [vmem:[%s0 + $0x58] sm:$0xff]
  %v28 = vld [vmem:[%s0 + $0x60] sm:$0xf]
  %v29 = vld [vmem:[%s0 + $0x64] sm:$0xff]
  %v30 = vld [vmem:[%s0 + $0x6c] sm:$0xff]
  %v31 = vld [vmem:[%s0 + $0x74] sm:$0xf]
  %v32 = vld [vmem:[%s0 + $0x78] sm:$0xff]
  %v33 = vld [vmem:[%s0 + $0x80] sm:$0xff]
  %v34 = vld [vmem:[%s0 + $0x88] sm:$0xf]
  %v35 = vld [vmem:[%s0 + $0x8c] sm:$0xff]
  %v36 = vld [vmem:[%s0 + $0x94] sm:$0xff]
  %v37 = vld [vmem:[%s0 + $0x9c] sm:$0xf]
  %v38 = vld [vmem:[%s0 + $0xa0] sm:$0xff]
  %v39 = vld [vmem:[%s0 + $0xa8] sm:$0xff]
  %v40 = vld [vmem:[%s0 + $0xb0] sm:$0xf]
  %v41 = vld [vmem:[%s1] sm:$0xf]
  %v42 = vld [vmem:[%s1 + $0x4] sm:$0xf]
  %v43 = vld [vmem:[%s1 + $0x8] sm:$0xf]
  %v44 = vld [vmem:[%s1 + $0xc] sm:$0xf]
  %v45 = vld [vmem:[%s1 + $0x10] sm:$0xf]
  %v46 = vld [vmem:[%s1 + $0x14] sm:$0xf]
  %v47 = vld [vmem:[%s1 + $0x18] sm:$0xf]
  %v48 = vld [vmem:[%s1 + $0x1c] sm:$0xf]
  %v49 = vld [vmem:[%s1 + $0x20] sm:$0xf]
  %v50 = vld [vmem:[%s1 + $0x24] sm:$0xf]
  %v51 = vld [vmem:[%s1 + $0x28] sm:$0xf]
  %v52 = vld [vmem:[%s1 + $0x2c] sm:$0xf]
  %v53 = vld [vmem:[%s1 + $0x30] sm:$0xf]
  %v54 = vld [vmem:[%s1 + $0x34] sm:$0xf]
  %v55 = vld [vmem:[%s1 + $0x38] sm:$0xf]
  %v56 = vld [vmem:[%s1 + $0x3c] sm:$0xf]
  %v57 = vld [vmem:[%s1 + $0x40] sm:$0xf]
  %v58 = vld [vmem:[%s1 + $0x44] sm:$0xf]
  %v59 = vld [vmem:[%s1 + $0x48] sm:$0xf]
  %v60 = vld [vmem:[%s1 + $0x4c] sm:$0xf]
  %v61 = vld [vmem:[%s1 + $0x50] sm:$0xf]
  %v62 = vld [vmem:[%s1 + $0x54] sm:$0xf]
  %v63 = vld [vmem:[%s1 + $0x58] sm:$0xf]
  %v64 = vld [vmem:[%s1 + $0x5c] sm:$0xf]
  %v65 = vld [vmem:[%s1 + $0x60] sm:$0xf]
  %v66 = vld [vmem:[%s1 + $0x64] sm:$0xf]
  %v67 = vld [vmem:[%s1 + $0x68] sm:$0xf]
  %v68 = vld [vmem:[%s1 + $0x6c] sm:$0xf]
  %v69 = vld [vmem:[%s1 + $0x70] sm:$0xf]
  %v70 = vld [vmem:[%s1 + $0x74] sm:$0xf]
  %v71 = vld [vmem:[%s1 + $0x78] sm:$0xf]
  %v72 = vld [vmem:[%s1 + $0x7c] sm:$0xf]
  %v73 = vld [vmem:[%s1 + $0x80] sm:$0xf]
  %v74 = vld [vmem:[%s1 + $0x84] sm:$0xf]
  %v75 = vld [vmem:[%s1 + $0x88] sm:$0xf]
  %v76 = vld [vmem:[%s1 + $0x8c] sm:$0xf]
  %v77 = vld [vmem:[%s1 + $0x90] sm:$0xf]
  %v78 = vld [vmem:[%s1 + $0x94] sm:$0xf]
  %v79 = vld [vmem:[%s1 + $0x98] sm:$0xf]
  %v80 = vld [vmem:[%s1 + $0x9c] sm:$0xf]
  %v81 = vld [vmem:[%s1 + $0xa0] sm:$0xf]
  %v82 = vld [vmem:[%s1 + $0xa4] sm:$0xf]
  %v83 = vld [vmem:[%s1 + $0xa8] sm:$0xf]
  %v84 = vld [vmem:[%s1 + $0xac] sm:$0xf]
  %v85 = vld [vmem:[%s1 + $0xb0] sm:$0xf]
  %v86 = vld [vmem:[%s1 + $0xb4] sm:$0xf]
  %v87 = vld [vmem:[%s1 + $0xb8] sm:$0xf]
  %v88 = vld [vmem:[%s1 + $0xbc] sm:$0xf]
  %v89 = vld [vmem:[%s1 + $0xc0] sm:$0xf]
  %v90 = vld [vmem:[%s1 + $0xc4] sm:$0xf]
  %v91 = vld [vmem:[%s1 + $0xc8] sm:$0xf]
  %v92 = vld [vmem:[%s1 + $0xcc] sm:$0xf]
  %v93 = vld [vmem:[%s1 + $0xd0] sm:$0xf]
  %v94 = vld [vmem:[%s1 + $0xd4] sm:$0xf]
  %v95 = vld [vmem:[%s1 + $0xd8] sm:$0xf]
  %v96 = vld [vmem:[%s1 + $0xdc] sm:$0xf]
  %v97 = vld [vmem:[%s1 + $0xe0] sm:$0xf]
  %v98 = vld [vmem:[%s1 + $0xe4] sm:$0xf]
  %v99 = vld [vmem:[%s1 + $0xe8] sm:$0xf]
  %v100 = vld [vmem:[%s1 + $0xec] sm:$0xf]
  %v101 = vld [vmem:[%s1 + $0xf0] sm:$0xf]
  %v102 = vld [vmem:[%s1 + $0xf4] sm:$0xf]
  %v103 = vld [vmem:[%s1 + $0xf8] sm:$0xf]
  %v104 = vld [vmem:[%s1 + $0xfc] sm:$0xf]
  %v105 = vld [vmem:[%s1 + $0x100] sm:$0xf]
  %v106 = vld [vmem:[%s1 + $0x104] sm:$0xf]
  %v107 = vld [vmem:[%s1 + $0x108] sm:$0xf]
  %v108 = vld [vmem:[%s1 + $0x10c] sm:$0xf]
  %v109 = vld [vmem:[%s1 + $0x110] sm:$0xf]
  %v110 = vld [vmem:[%s1 + $0x114] sm:$0xf]
  %v111 = vld [vmem:[%s1 + $0x118] sm:$0xf]
  %v112 = vld [vmem:[%s1 + $0x11c] sm:$0xf]
  %v140 = vunpack.c.l.b16 %v14
  %v141 = vunpack.c.h.b16 %v14
  %v142 = vunpack.c.l.b16 %v15
  %v143 = vunpack.c.h.b16 %v15
  %v144 = vunpack.c.l.b16 %v16
  %v145 = vunpack.c.l.b16 %v17
  %v146 = vunpack.c.h.b16 %v17
  %v147 = vunpack.c.l.b16 %v18
  %v148 = vunpack.c.h.b16 %v18
  %v149 = vunpack.c.l.b16 %v19
  %v150 = vunpack.c.l.b16 %v20
  %v151 = vunpack.c.h.b16 %v20
  %v152 = vunpack.c.l.b16 %v21
  %v153 = vunpack.c.h.b16 %v21
  %v154 = vunpack.c.l.b16 %v22
  %v155 = vunpack.c.l.b16 %v23
  %v156 = vunpack.c.h.b16 %v23
  %v157 = vunpack.c.l.b16 %v24
  %v158 = vunpack.c.h.b16 %v24
  %v159 = vunpack.c.l.b16 %v25
  %v160 = vunpack.c.l.b16 %v26
  %v161 = vunpack.c.h.b16 %v26
  %v162 = vunpack.c.l.b16 %v27
  %v163 = vunpack.c.h.b16 %v27
  %v164 = vunpack.c.l.b16 %v28
  %v165 = vunpack.c.l.b16 %v29
  %v166 = vunpack.c.h.b16 %v29
  %v167 = vunpack.c.l.b16 %v30
  %v168 = vunpack.c.h.b16 %v30
  %v169 = vunpack.c.l.b16 %v31
  %v170 = vunpack.c.l.b16 %v32
  %v171 = vunpack.c.h.b16 %v32
  %v172 = vunpack.c.l.b16 %v33
  %v173 = vunpack.c.h.b16 %v33
  %v174 = vunpack.c.l.b16 %v34
  %v175 = vunpack.c.l.b16 %v35
  %v176 = vunpack.c.h.b16 %v35
  %v177 = vunpack.c.l.b16 %v36
  %v178 = vunpack.c.h.b16 %v36
  %v179 = vunpack.c.l.b16 %v37
  %v180 = vunpack.c.l.b16 %v38
  %v181 = vunpack.c.h.b16 %v38
  %v182 = vunpack.c.l.b16 %v39
  %v183 = vunpack.c.h.b16 %v39
  %v184 = vunpack.c.l.b16 %v40
  %v185 = vpack.c.b16 %v145, %v140
  %v186 = vpack.c.b16 %v146, %v141
  %v187 = vpack.c.b16 %v147, %v142
  %v188 = vpack.c.b16 %v148, %v143
  %v189 = vpack.c.b16 %v149, %v144
  %v190 = vpack.c.b16 %v155, %v150
  %v191 = vpack.c.b16 %v156, %v151
  %v192 = vpack.c.b16 %v157, %v152
  %v193 = vpack.c.b16 %v158, %v153
  %v194 = vpack.c.b16 %v159, %v154
  %v195 = vpack.c.b16 %v165, %v160
  %v196 = vpack.c.b16 %v166, %v161
  %v197 = vpack.c.b16 %v167, %v162
  %v198 = vpack.c.b16 %v168, %v163
  %v199 = vpack.c.b16 %v169, %v164
  %v200 = vpack.c.b16 %v175, %v170
  %v201 = vpack.c.b16 %v176, %v171
  %v202 = vpack.c.b16 %v177, %v172
  %v203 = vpack.c.b16 %v178, %v173
  %v204 = vpack.c.b16 %v179, %v174
  %v205 = vpack.c.b16 %v180, %v180
  %v206 = vpack.c.b16 %v181, %v181
  %v207 = vpack.c.b16 %v182, %v182
  %v208 = vpack.c.b16 %v183, %v183
  %v209 = vpack.c.b16 %v184, %v184
  %v302 = vunpack.c.l.b16 %v41
  %v303 = vunpack.c.l.b16 %v42
  %v304 = vunpack.c.l.b16 %v43
  %v305 = vunpack.c.l.b16 %v44
  %v306 = vunpack.c.l.b16 %v45
  %v307 = vunpack.c.l.b16 %v46
  %v308 = vunpack.c.l.b16 %v47
  %v309 = vunpack.c.l.b16 %v48
  %v310 = vunpack.c.l.b16 %v49
  %v311 = vunpack.c.l.b16 %v50
  %v312 = vunpack.c.l.b16 %v51
  %v313 = vunpack.c.l.b16 %v52
  %v314 = vunpack.c.l.b16 %v53
  %v315 = vunpack.c.l.b16 %v54
  %v316 = vunpack.c.l.b16 %v55
  %v317 = vunpack.c.l.b16 %v56
  %v318 = vunpack.c.l.b16 %v57
  %v319 = vunpack.c.l.b16 %v58
  %v320 = vunpack.c.l.b16 %v59
  %v321 = vunpack.c.l.b16 %v60
  %v322 = vunpack.c.l.b16 %v61
  %v323 = vunpack.c.l.b16 %v62
  %v324 = vunpack.c.l.b16 %v63
  %v325 = vunpack.c.l.b16 %v64
  %v326 = vunpack.c.l.b16 %v65
  %v327 = vunpack.c.l.b16 %v66
  %v328 = vunpack.c.l.b16 %v67
  %v329 = vunpack.c.l.b16 %v68
  %v330 = vunpack.c.l.b16 %v69
  %v331 = vunpack.c.l.b16 %v70
  %v332 = vunpack.c.l.b16 %v71
  %v333 = vunpack.c.l.b16 %v72
  %v334 = vunpack.c.l.b16 %v73
  %v335 = vunpack.c.l.b16 %v74
  %v336 = vunpack.c.l.b16 %v75
  %v337 = vunpack.c.l.b16 %v76
  %v338 = vunpack.c.l.b16 %v77
  %v339 = vunpack.c.l.b16 %v78
  %v340 = vunpack.c.l.b16 %v79
  %v341 = vunpack.c.l.b16 %v80
  %v342 = vunpack.c.l.b16 %v81
  %v343 = vunpack.c.l.b16 %v82
  %v344 = vunpack.c.l.b16 %v83
  %v345 = vunpack.c.l.b16 %v84
  %v346 = vunpack.c.l.b16 %v85
  %v347 = vunpack.c.l.b16 %v86
  %v348 = vunpack.c.l.b16 %v87
  %v349 = vunpack.c.l.b16 %v88
  %v350 = vunpack.c.l.b16 %v89
  %v351 = vunpack.c.l.b16 %v90
  %v352 = vunpack.c.l.b16 %v91
  %v353 = vunpack.c.l.b16 %v92
  %v354 = vunpack.c.l.b16 %v93
  %v355 = vunpack.c.l.b16 %v94
  %v356 = vunpack.c.l.b16 %v95
  %v357 = vunpack.c.l.b16 %v96
  %v358 = vunpack.c.l.b16 %v97
  %v359 = vunpack.c.l.b16 %v98
  %v360 = vunpack.c.l.b16 %v99
  %v361 = vunpack.c.l.b16 %v100
  %v362 = vunpack.c.l.b16 %v101
  %v363 = vunpack.c.l.b16 %v102
  %v364 = vunpack.c.l.b16 %v103
  %v365 = vunpack.c.l.b16 %v104
  %v366 = vunpack.c.l.b16 %v105
  %v367 = vunpack.c.l.b16 %v106
  %v368 = vunpack.c.l.b16 %v107
  %v369 = vunpack.c.l.b16 %v108
  %v370 = vunpack.c.l.b16 %v109
  %v371 = vunpack.c.l.b16 %v110
  %v372 = vunpack.c.l.b16 %v111
  %v373 = vunpack.c.l.b16 %v112
  %v374 = vpack.c.b16 %v303, %v302
  %v375 = vpack.c.b16 %v305, %v304
  %v376 = vpack.c.b16 %v307, %v306
  %v377 = vpack.c.b16 %v309, %v308
  %v378 = vpack.c.b16 %v311, %v310
  %v379 = vpack.c.b16 %v313, %v312
  %v380 = vpack.c.b16 %v315, %v314
  %v381 = vpack.c.b16 %v317, %v316
  %v382 = vpack.c.b16 %v319, %v318
  %v383 = vpack.c.b16 %v321, %v320
  %v384 = vpack.c.b16 %v323, %v322
  %v385 = vpack.c.b16 %v325, %v324
  %v386 = vpack.c.b16 %v327, %v326
  %v387 = vpack.c.b16 %v329, %v328
  %v388 = vpack.c.b16 %v331, %v330
  %v389 = vpack.c.b16 %v333, %v332
  %v390 = vpack.c.b16 %v335, %v334
  %v391 = vpack.c.b16 %v337, %v336
  %v392 = vpack.c.b16 %v339, %v338
  %v393 = vpack.c.b16 %v341, %v340
  %v394 = vpack.c.b16 %v343, %v342
  %v395 = vpack.c.b16 %v345, %v344
  %v396 = vpack.c.b16 %v347, %v346
  %v397 = vpack.c.b16 %v349, %v348
  %v398 = vpack.c.b16 %v351, %v350
  %v399 = vpack.c.b16 %v353, %v352
  %v400 = vpack.c.b16 %v355, %v354
  %v401 = vpack.c.b16 %v357, %v356
  %v402 = vpack.c.b16 %v359, %v358
  %v403 = vpack.c.b16 %v361, %v360
  %v404 = vpack.c.b16 %v363, %v362
  %v405 = vpack.c.b16 %v365, %v364
  %v406 = vpack.c.b16 %v367, %v366
  %v407 = vpack.c.b16 %v369, %v368
  %v408 = vpack.c.b16 %v371, %v370
  %v409 = vpack.c.b16 %v373, %v372
  %vm446 = vcmask 523264
  %v448 = vsel %vm446, %v189, 0
  %v451 = vsel %vm446, %v194, 0
  %v454 = vsel %vm446, %v199, 0
  %v457 = vsel %vm446, %v204, 0
  %v460 = vsel %vm446, %v209, 0
  %462 = vmatprep.subr.bf16.mxu0 0
  %463 = vmatpush1.bf16.msra.mxu0 %v381
  %464 = vmatprep.subr.bf16.mxu0 0
  %465 = vmatpush1.bf16.msra.mxu0 %v380
  %466 = vmatprep.subr.bf16.mxu0 0
  %467 = vmatpush1.bf16.msra.mxu0 %v379
  %468 = vmatprep.subr.bf16.mxu0 0
  %469 = vmatpush1.bf16.msra.mxu0 %v378
  %470 = vmatprep.subr.bf16.mxu0 0
  %471 = vmatpush1.bf16.msra.mxu0 %v377
  %472 = vmatprep.subr.bf16.mxu0 0
  %473 = vmatpush1.bf16.msra.mxu0 %v376
  %474 = vmatprep.subr.bf16.mxu0 0
  %475 = vmatpush1.bf16.msra.mxu0 %v375
  %476 = vmatprep.subr.bf16.mxu0 0
  %477 = vmatpush1.bf16.msra.mxu0 %v374
  %478 = vmatprep.subr.bf16.mxu0 0
  %479 = vmatpush2.bf16.msra.mxu0 %v389
  %480 = vmatprep.subr.bf16.mxu0 0
  %481 = vmatpush2.bf16.msra.mxu0 %v388
  %482 = vmatprep.subr.bf16.mxu0 0
  %483 = vmatpush2.bf16.msra.mxu0 %v387
  %484 = vmatprep.subr.bf16.mxu0 0
  %485 = vmatpush2.bf16.msra.mxu0 %v386
  %486 = vmatprep.subr.bf16.mxu0 0
  %487 = vmatpush2.bf16.msra.mxu0 %v385
  %488 = vmatprep.subr.bf16.mxu0 0
  %489 = vmatpush2.bf16.msra.mxu0 %v384
  %490 = vmatprep.subr.bf16.mxu0 0
  %491 = vmatpush2.bf16.msra.mxu0 %v383
  %492 = vmatprep.subr.bf16.mxu0 0
  %493 = vmatpush2.bf16.msra.mxu0 %v382
  %494 = vmatprep.mubr.bf16.mxu0 %v186
  %495 = vmatmul.mubr.bf16.gmra.mxu0 %v185
  %v496 = vpop.f32.mrf.mxu0
  %v497 = vadd.f32 0.0, %v496
  %v498 = vpop.f32.mrf.mxu0
  %v499 = vpop.f32.mrf.mxu0
  %v500 = vadd.f32 0.0, %v499
  %v501 = vpop.f32.mrf.mxu0
  %502 = vmatprep.mubr.bf16.mxu0 %v191
  %503 = vmatmul.mubr.bf16.gmra.mxu0 %v190
  %v504 = vpop.f32.mrf.mxu0
  %v505 = vadd.f32 0.0, %v504
  %v506 = vpop.f32.mrf.mxu0
  %v507 = vpop.f32.mrf.mxu0
  %v508 = vadd.f32 0.0, %v507
  %v509 = vpop.f32.mrf.mxu0
  %510 = vmatprep.mubr.bf16.mxu0 %v196
  %511 = vmatmul.mubr.bf16.gmra.mxu0 %v195
  %v512 = vpop.f32.mrf.mxu0
  %v513 = vadd.f32 0.0, %v512
  %v514 = vpop.f32.mrf.mxu0
  %v515 = vpop.f32.mrf.mxu0
  %v516 = vadd.f32 0.0, %v515
  %v517 = vpop.f32.mrf.mxu0
  %518 = vmatprep.mubr.bf16.mxu0 %v201
  %519 = vmatmul.mubr.bf16.gmra.mxu0 %v200
  %v520 = vpop.f32.mrf.mxu0
  %v521 = vadd.f32 0.0, %v520
  %v522 = vpop.f32.mrf.mxu0
  %v523 = vpop.f32.mrf.mxu0
  %v524 = vadd.f32 0.0, %v523
  %v525 = vpop.f32.mrf.mxu0
  %526 = vmatprep.mubr.bf16.mxu0 %v206
  %527 = vmatmul.mubr.bf16.gmra.mxu0 %v205
  %v528 = vpop.f32.mrf.mxu0
  %v529 = vadd.f32 0.0, %v528
  %v530 = vpop.f32.mrf.mxu0
  %v531 = vpop.f32.mrf.mxu0
  %v532 = vpop.f32.mrf.mxu0
  %533 = vdwg.mxu0
  %534 = vmatprep.subr.bf16.mxu0 0
  %535 = vmatpush1.bf16.msra.mxu0 %v397
  %536 = vmatprep.subr.bf16.mxu0 0
  %537 = vmatpush1.bf16.msra.mxu0 %v396
  %538 = vmatprep.subr.bf16.mxu0 0
  %539 = vmatpush1.bf16.msra.mxu0 %v395
  %540 = vmatprep.subr.bf16.mxu0 0
  %541 = vmatpush1.bf16.msra.mxu0 %v394
  %542 = vmatprep.subr.bf16.mxu0 0
  %543 = vmatpush1.bf16.msra.mxu0 %v393
  %544 = vmatprep.subr.bf16.mxu0 0
  %545 = vmatpush1.bf16.msra.mxu0 %v392
  %546 = vmatprep.subr.bf16.mxu0 0
  %547 = vmatpush1.bf16.msra.mxu0 %v391
  %548 = vmatprep.subr.bf16.mxu0 0
  %549 = vmatpush1.bf16.msra.mxu0 %v390
  %550 = vmatprep.subr.bf16.mxu0 0
  %551 = vmatpush2.bf16.msra.mxu0 %v405
  %552 = vmatprep.subr.bf16.mxu0 0
  %553 = vmatpush2.bf16.msra.mxu0 %v404
  %554 = vmatprep.subr.bf16.mxu0 0
  %555 = vmatpush2.bf16.msra.mxu0 %v403
  %556 = vmatprep.subr.bf16.mxu0 0
  %557 = vmatpush2.bf16.msra.mxu0 %v402
  %558 = vmatprep.subr.bf16.mxu0 0
  %559 = vmatpush2.bf16.msra.mxu0 %v401
  %560 = vmatprep.subr.bf16.mxu0 0
  %561 = vmatpush2.bf16.msra.mxu0 %v400
  %562 = vmatprep.subr.bf16.mxu0 0
  %563 = vmatpush2.bf16.msra.mxu0 %v399
  %564 = vmatprep.subr.bf16.mxu0 0
  %565 = vmatpush2.bf16.msra.mxu0 %v398
  %566 = vmatprep.mubr.bf16.mxu0 %v188
  %567 = vmatmul.mubr.bf16.gmra.mxu0 %v187
  %v568 = vpop.f32.mrf.mxu0
  %v569 = vadd.f32 %v497, %v568
  %v570 = vpop.f32.mrf.mxu0
  %v571 = vpop.f32.mrf.mxu0
  %v572 = vadd.f32 %v500, %v571
  %v573 = vpop.f32.mrf.mxu0
  %574 = vmatprep.mubr.bf16.mxu0 %v193
  %575 = vmatmul.mubr.bf16.gmra.mxu0 %v192
  %v576 = vpop.f32.mrf.mxu0
  %v577 = vadd.f32 %v505, %v576
  %v578 = vpop.f32.mrf.mxu0
  %v579 = vpop.f32.mrf.mxu0
  %v580 = vadd.f32 %v508, %v579
  %v581 = vpop.f32.mrf.mxu0
  %582 = vmatprep.mubr.bf16.mxu0 %v198
  %583 = vmatmul.mubr.bf16.gmra.mxu0 %v197
  %v584 = vpop.f32.mrf.mxu0
  %v585 = vadd.f32 %v513, %v584
  %v586 = vpop.f32.mrf.mxu0
  %v587 = vpop.f32.mrf.mxu0
  %v588 = vadd.f32 %v516, %v587
  %v589 = vpop.f32.mrf.mxu0
  %590 = vmatprep.mubr.bf16.mxu0 %v203
  %591 = vmatmul.mubr.bf16.gmra.mxu0 %v202
  %v592 = vpop.f32.mrf.mxu0
  %v593 = vadd.f32 %v521, %v592
  %v594 = vpop.f32.mrf.mxu0
  %v595 = vpop.f32.mrf.mxu0
  %v596 = vadd.f32 %v524, %v595
  %v597 = vpop.f32.mrf.mxu0
  %598 = vmatprep.mubr.bf16.mxu0 %v208
  %599 = vmatmul.mubr.bf16.gmra.mxu0 %v207
  %v600 = vpop.f32.mrf.mxu0
  %v601 = vadd.f32 %v529, %v600
  %v602 = vpop.f32.mrf.mxu0
  %v603 = vpop.f32.mrf.mxu0
  %v604 = vpop.f32.mrf.mxu0
  %605 = vdwg.mxu0
  %606 = vmatprep.subr.bf16.mxu0 0
  %607 = vmatpush1.bf16.msra.mxu0 0
  %608 = vmatprep.subr.bf16.mxu0 0
  %609 = vmatpush1.bf16.msra.mxu0 0
  %610 = vmatprep.subr.bf16.mxu0 0
  %611 = vmatpush1.bf16.msra.mxu0 0
  %612 = vmatprep.subr.bf16.mxu0 0
  %613 = vmatpush1.bf16.msra.mxu0 0
  %614 = vmatprep.subr.bf16.mxu0 0
  %615 = vmatpush1.bf16.msra.mxu0 %v409
  %616 = vmatprep.subr.bf16.mxu0 0
  %617 = vmatpush1.bf16.msra.mxu0 %v408
  %618 = vmatprep.subr.bf16.mxu0 0
  %619 = vmatpush1.bf16.msra.mxu0 %v407
  %620 = vmatprep.subr.bf16.mxu0 0
  %621 = vmatpush1.bf16.msra.mxu0 %v406
  %622 = vmatprep.subr.bf16.mxu0 0
  %623 = vmatpush2.bf16.msra.mxu0 0
  %624 = vmatprep.subr.bf16.mxu0 0
  %625 = vmatpush2.bf16.msra.mxu0 0
  %626 = vmatprep.subr.bf16.mxu0 0
  %627 = vmatpush2.bf16.msra.mxu0 0
  %628 = vmatprep.subr.bf16.mxu0 0
  %629 = vmatpush2.bf16.msra.mxu0 0
  %630 = vmatprep.subr.bf16.mxu0 0
  %631 = vmatpush2.bf16.msra.mxu0 0
  %632 = vmatprep.subr.bf16.mxu0 0
  %633 = vmatpush2.bf16.msra.mxu0 0
  %634 = vmatprep.subr.bf16.mxu0 0
  %635 = vmatpush2.bf16.msra.mxu0 0
  %636 = vmatprep.subr.bf16.mxu0 0
  %637 = vmatpush2.bf16.msra.mxu0 0
  %638 = vmatprep.mubr.bf16.mxu0 0
  %639 = vmatmul.mubr.bf16.gmra.mxu0 %v448
  %v640 = vpop.f32.mrf.mxu0
  %v641 = vadd.f32 %v569, %v640
  %v642 = vpop.f32.mrf.mxu0
  %v643 = vpop.f32.mrf.mxu0
  %v644 = vadd.f32 %v572, %v643
  %v645 = vpop.f32.mrf.mxu0
  %646 = vmatprep.mubr.bf16.mxu0 0
  %647 = vmatmul.mubr.bf16.gmra.mxu0 %v451
  %v648 = vpop.f32.mrf.mxu0
  %v649 = vadd.f32 %v577, %v648
  %v650 = vpop.f32.mrf.mxu0
  %v651 = vpop.f32.mrf.mxu0
  %v652 = vadd.f32 %v580, %v651
  %v653 = vpop.f32.mrf.mxu0
  %654 = vmatprep.mubr.bf16.mxu0 0
  %655 = vmatmul.mubr.bf16.gmra.mxu0 %v454
  %v656 = vpop.f32.mrf.mxu0
  %v657 = vadd.f32 %v585, %v656
  %v658 = vpop.f32.mrf.mxu0
  %v659 = vpop.f32.mrf.mxu0
  %v660 = vadd.f32 %v588, %v659
  %v661 = vpop.f32.mrf.mxu0
  %662 = vmatprep.mubr.bf16.mxu0 0
  %663 = vmatmul.mubr.bf16.gmra.mxu0 %v457
  %v664 = vpop.f32.mrf.mxu0
  %v665 = vadd.f32 %v593, %v664
  %v666 = vpop.f32.mrf.mxu0
  %v667 = vpop.f32.mrf.mxu0
  %v668 = vadd.f32 %v596, %v667
  %v669 = vpop.f32.mrf.mxu0
  %670 = vmatprep.mubr.bf16.mxu0 0
  %671 = vmatmul.mubr.bf16.gmra.mxu0 %v460
  %v672 = vpop.f32.mrf.mxu0
  %v673 = vadd.f32 %v601, %v672
  %v674 = vpop.f32.mrf.mxu0
  %v675 = vpop.f32.mrf.mxu0
  %v676 = vpop.f32.mrf.mxu0
  %677 = vdwg.mxu0
  %v678 = vpack.c.bf16 %v644, %v641
  %v679 = vpack.c.bf16 %v652, %v649
  %v680 = vpack.c.bf16 %v660, %v657
  %v681 = vpack.c.bf16 %v668, %v665
  %v682 = vpack.c.bf16 %v673, %v673
  %v688 = vunpack.c.l.b16 %v678
  %v689 = vunpack.c.h.b16 %v678
  %v690 = vunpack.c.l.b16 %v679
  %v691 = vunpack.c.h.b16 %v679
  %v692 = vunpack.c.l.b16 %v680
  %v693 = vunpack.c.h.b16 %v680
  %v694 = vunpack.c.l.b16 %v681
  %v695 = vunpack.c.h.b16 %v681
  %v696 = vunpack.c.l.b16 %v682
  %v697 = vpack.c.b16 %v688, %v688
  %v698 = vpack.c.b16 %v689, %v689
  %v699 = vpack.c.b16 %v690, %v690
  %v700 = vpack.c.b16 %v691, %v691
  %v701 = vpack.c.b16 %v692, %v692
  %v702 = vpack.c.b16 %v693, %v693
  %v703 = vpack.c.b16 %v694, %v694
  %v704 = vpack.c.b16 %v695, %v695
  %v705 = vpack.c.b16 %v696, %v696
  %vm715 = vcmask 781312
  %716 = vst.msk [vmem:[%s2] sm:$0xf] %vm715, %v697
  %717 = vst.msk [vmem:[%s2 + $0x4] sm:$0xf] %vm715, %v698
  %718 = vst.msk [vmem:[%s2 + $0x8] sm:$0xf] %vm715, %v699
  %719 = vst.msk [vmem:[%s2 + $0xc] sm:$0xf] %vm715, %v700
  %720 = vst.msk [vmem:[%s2 + $0x10] sm:$0xf] %vm715, %v701
  %721 = vst.msk [vmem:[%s2 + $0x14] sm:$0xf] %vm715, %v702
  %722 = vst.msk [vmem:[%s2 + $0x18] sm:$0xf] %vm715, %v703
  %723 = vst.msk [vmem:[%s2 + $0x1c] sm:$0xf] %vm715, %v704
  %724 = vst.msk [vmem:[%s2 + $0x20] sm:$0xf] %vm715, %v705
  %vm725 = vcmask 785408
  %v726 = vsel %vm725, %v641, 0.0
  %v727 = vsel %vm725, %v644, 0.0
  %v728 = vadd.f32 %v726, %v727
  %v729 = vsel %vm725, %v649, 0.0
  %v730 = vadd.f32 %v728, %v729
  %v731 = vsel %vm725, %v652, 0.0
  %v732 = vadd.f32 %v730, %v731
  %v733 = vsel %vm725, %v657, 0.0
  %v734 = vadd.f32 %v732, %v733
  %v735 = vsel %vm725, %v660, 0.0
  %v736 = vadd.f32 %v734, %v735
  %v737 = vsel %vm725, %v665, 0.0
  %v738 = vadd.f32 %v736, %v737
  %v739 = vsel %vm725, %v668, 0.0
  %v740 = vadd.f32 %v738, %v739
  %v741 = vsel %vm725, %v673, 0.0
  %v742 = vadd.f32 %v740, %v741
  %v743 = vrot.slane %v742, 4
  %v744 = vadd.f32 %v742, %v743
  %v745 = vrot.slane %v744, 2
  %v746 = vadd.f32 %v744, %v745
  %v747 = vrot.slane %v746, 1
  %v748 = vadd.f32 %v746, %v747
  %v749 = vmul.f32 %v641, %v641
  %v750 = vmul.f32 %v644, %v644
  %v751 = vmul.f32 %v649, %v649
  %v752 = vmul.f32 %v652, %v652
  %v753 = vmul.f32 %v657, %v657
  %v754 = vmul.f32 %v660, %v660
  %v755 = vmul.f32 %v665, %v665
  %v756 = vmul.f32 %v668, %v668
  %v757 = vmul.f32 %v673, %v673
  %v758 = vsel %vm725, %v749, 0.0
  %v759 = vsel %vm725, %v750, 0.0
  %v760 = vadd.f32 %v758, %v759
  %v761 = vsel %vm725, %v751, 0.0
  %v762 = vadd.f32 %v760, %v761
  %v763 = vsel %vm725, %v752, 0.0
  %v764 = vadd.f32 %v762, %v763
  %v765 = vsel %vm725, %v753, 0.0
  %v766 = vadd.f32 %v764, %v765
  %v767 = vsel %vm725, %v754, 0.0
  %v768 = vadd.f32 %v766, %v767
  %v769 = vsel %vm725, %v755, 0.0
  %v770 = vadd.f32 %v768, %v769
  %v771 = vsel %vm725, %v756, 0.0
  %v772 = vadd.f32 %v770, %v771
  %v773 = vsel %vm725, %v757, 0.0
  %v774 = vadd.f32 %v772, %v773
  %v775 = vrot.slane %v774, 4
  %v776 = vadd.f32 %v774, %v775
  %v777 = vrot.slane %v776, 2
  %v778 = vadd.f32 %v776, %v777
  %v779 = vrot.slane %v778, 1
  %v780 = vadd.f32 %v778, %v779
  %vm781 = vcmask 1040384
  %v782 = vsel %vm781, %v748, %v780
  %vm783 = vcmask 779264
  %784 = vst.msk [vmem:[%s3] sm:$0x3] %vm783, %v782
  // Predicated region
  $region10: #{stem_forward.26} parent=0 // pred_check
    _
  $region11: #{stem_forward.26} parent=0 // pred_check_branch
    %786 = sbr.rel (0) target = $region13
  $region12: #{stem_forward.26} parent=0 // pred_region
    _
  $region13: #{stem_forward.26} parent=0 // pred_fallthru
    _
  // Predicated region
  $region14: #{stem_forward.26} parent=0 // pred_check
    _
  $region15: #{stem_forward.26} parent=0 // pred_check_branch
    %788 = sbr.rel (0) target = $region17
  $region16: #{stem_forward.26} parent=0 // pred_region
    _
  $region17: #{stem_forward.26} parent=0 // pred_fallthru
    _
  // Predicated region
  $region18: #{stem_forward.26} parent=0 // pred_check
    _
  $region19: #{stem_forward.26} parent=0 // pred_check_branch
    %790 = sbr.rel (0) target = $region21
  $region20: #{stem_forward.26} parent=0 // pred_region
    _
  $region21: #{stem_forward.26} parent=0 // pred_fallthru
    _
  // Predicated region
  $region22: #{stem_forward.26} parent=0 // pred_check
    _
  $region23: #{stem_forward.26} parent=0 // pred_check_branch
    %792 = sbr.rel (0) target = $region25
  $region24: #{stem_forward.26} parent=0 // pred_region
    _
  $region25: #{stem_forward.26} parent=0 // pred_fallthru
    _

// kernel: stem_forward.28
$region0: #{stem_forward.28}
  #allocation0 [shape = 'u32[]', space=smem, size = 0x4, offset = 0x4, fixed_abs, tag = 'smem constant byte address 0x4 - core index']
  #allocation1 [shape = 'u32[144,128]{1,0:T(1,128)}', space=vmem, size = 0x12000, scoped, tag = 'internal scratch']
  %s0 = inlined_call_operand.vmem [shape: bf16[72,160], index: 0, kind: input, shape index: {}]
  %s1 = inlined_call_operand.vmem [shape: bf16[160,128], index: 1, kind: input, shape index: {}]
  %s2 = inlined_call_operand.vmem [shape: bf16[72,128], index: 2, kind: output, shape index: {0}]
  %s3 = inlined_call_operand.vmem [shape: f32[1,2,128], index: 3, kind: output, shape index: {1}]
  %4 = xla_tuple %s2, %s3
  %s5 = sld [smem:[#allocation0]]
  $region26: #{stem_forward.28} parent=0
    _
  %s7 = ssub.s32 1, %s5
  %s8 = scalar_select 0, %s7, %s5
  // Predicated region
  $region2: #{stem_forward.28} parent=0 // pred_check
    _
  $region3: #{stem_forward.28} parent=0 // pred_check_branch
    %10 = sbr.rel (0) target = $region5
  $region4: #{stem_forward.28} parent=0 // pred_region
    _
  $region5: #{stem_forward.28} parent=0 // pred_fallthru
    _
  // Predicated region
  $region6: #{stem_forward.28} parent=0 // pred_check
    _
  $region7: #{stem_forward.28} parent=0 // pred_check_branch
    %12 = sbr.rel (0) target = $region9
  $region8: #{stem_forward.28} parent=0 // pred_region
    _
  $region9: #{stem_forward.28} parent=0 // pred_fallthru
    _
  %v14 = vld [vmem:[%s0] sm:$0xff]
  %v15 = vld [vmem:[%s0 + $0x8] sm:$0xff]
  %v16 = vld [vmem:[%s0 + $0x10] sm:$0xff]
  %v17 = vld [vmem:[%s0 + $0x18] sm:$0xff]
  %v18 = vld [vmem:[%s0 + $0x20] sm:$0xff]
  %v19 = vld [vmem:[%s0 + $0x28] sm:$0xff]
  %v20 = vld [vmem:[%s0 + $0x30] sm:$0xff]
  %v21 = vld [vmem:[%s0 + $0x38] sm:$0xff]
  %v22 = vld [vmem:[%s0 + $0x40] sm:$0xff]
  %v23 = vld [vmem:[%s1] sm:$0xf]
  %v24 = vld [vmem:[%s1 + $0x4] sm:$0xf]
  %v25 = vld [vmem:[%s1 + $0x8] sm:$0xf]
  %v26 = vld [vmem:[%s1 + $0xc] sm:$0xf]
  %v27 = vld [vmem:[%s1 + $0x10] sm:$0xf]
  %v28 = vld [vmem:[%s1 + $0x14] sm:$0xf]
  %v29 = vld [vmem:[%s1 + $0x18] sm:$0xf]
  %v30 = vld [vmem:[%s1 + $0x1c] sm:$0xf]
  %v31 = vld [vmem:[%s1 + $0x20] sm:$0xf]
  %v32 = vld [vmem:[%s1 + $0x24] sm:$0xf]
  %v33 = vld [vmem:[%s1 + $0x28] sm:$0xf]
  %v34 = vld [vmem:[%s1 + $0x2c] sm:$0xf]
  %v35 = vld [vmem:[%s1 + $0x30] sm:$0xf]
  %v36 = vld [vmem:[%s1 + $0x34] sm:$0xf]
  %v37 = vld [vmem:[%s1 + $0x38] sm:$0xf]
  %v38 = vld [vmem:[%s1 + $0x3c] sm:$0xf]
  %v39 = vld [vmem:[%s1 + $0x40] sm:$0xf]
  %v40 = vld [vmem:[%s1 + $0x44] sm:$0xf]
  %v41 = vld [vmem:[%s1 + $0x48] sm:$0xf]
  %v42 = vld [vmem:[%s1 + $0x4c] sm:$0xf]
  %v52 = vunpack.c.l.b16 %v14
  %v53 = vunpack.c.h.b16 %v14
  %v54 = vunpack.c.l.b16 %v15
  %v55 = vunpack.c.h.b16 %v15
  %v56 = vunpack.c.l.b16 %v16
  %v57 = vunpack.c.h.b16 %v16
  %v58 = vunpack.c.l.b16 %v17
  %v59 = vunpack.c.h.b16 %v17
  %v60 = vunpack.c.l.b16 %v18
  %v61 = vunpack.c.h.b16 %v18
  %v62 = vunpack.c.l.b16 %v19
  %v63 = vunpack.c.h.b16 %v19
  %v64 = vunpack.c.l.b16 %v20
  %v65 = vunpack.c.h.b16 %v20
  %v66 = vunpack.c.l.b16 %v21
  %v67 = vunpack.c.h.b16 %v21
  %v68 = vunpack.c.l.b16 %v22
  %v69 = vunpack.c.h.b16 %v22
  %v70 = vpack.c.b16 %v54, %v52
  %v71 = vpack.c.b16 %v55, %v53
  %v72 = vpack.c.b16 %v58, %v56
  %v73 = vpack.c.b16 %v59, %v57
  %v74 = vpack.c.b16 %v62, %v60
  %v75 = vpack.c.b16 %v63, %v61
  %v76 = vpack.c.b16 %v66, %v64
  %v77 = vpack.c.b16 %v67, %v65
  %v78 = vpack.c.b16 %v68, %v68
  %v79 = vpack.c.b16 %v69, %v69
  %v105 = vunpack.c.l.b16 %v23
  %v106 = vunpack.c.l.b16 %v24
  %v107 = vunpack.c.l.b16 %v25
  %v108 = vunpack.c.l.b16 %v26
  %v109 = vunpack.c.l.b16 %v27
  %v110 = vunpack.c.l.b16 %v28
  %v111 = vunpack.c.l.b16 %v29
  %v112 = vunpack.c.l.b16 %v30
  %v113 = vunpack.c.l.b16 %v31
  %v114 = vunpack.c.l.b16 %v32
  %v115 = vunpack.c.l.b16 %v33
  %v116 = vunpack.c.l.b16 %v34
  %v117 = vunpack.c.l.b16 %v35
  %v118 = vunpack.c.l.b16 %v36
  %v119 = vunpack.c.l.b16 %v37
  %v120 = vunpack.c.l.b16 %v38
  %v121 = vunpack.c.l.b16 %v39
  %v122 = vunpack.c.l.b16 %v40
  %v123 = vunpack.c.l.b16 %v41
  %v124 = vunpack.c.l.b16 %v42
  %v125 = vpack.c.b16 %v106, %v105
  %v126 = vpack.c.b16 %v108, %v107
  %v127 = vpack.c.b16 %v110, %v109
  %v128 = vpack.c.b16 %v112, %v111
  %v129 = vpack.c.b16 %v114, %v113
  %v130 = vpack.c.b16 %v116, %v115
  %v131 = vpack.c.b16 %v118, %v117
  %v132 = vpack.c.b16 %v120, %v119
  %v133 = vpack.c.b16 %v122, %v121
  %v134 = vpack.c.b16 %v124, %v123
  %vm145 = vcmask 261120
  %v147 = vsel %vm145, %v71, 0
  %v150 = vsel %vm145, %v73, 0
  %v153 = vsel %vm145, %v75, 0
  %v156 = vsel %vm145, %v77, 0
  %v159 = vsel %vm145, %v79, 0
  %161 = vmatprep.subr.bf16.mxu0 0
  %162 = vmatpush1.bf16.msra.mxu0 %v132
  %163 = vmatprep.subr.bf16.mxu0 0
  %164 = vmatpush1.bf16.msra.mxu0 %v131
  %165 = vmatprep.subr.bf16.mxu0 0
  %166 = vmatpush1.bf16.msra.mxu0 %v130
  %167 = vmatprep.subr.bf16.mxu0 0
  %168 = vmatpush1.bf16.msra.mxu0 %v129
  %169 = vmatprep.subr.bf16.mxu0 0
  %170 = vmatpush1.bf16.msra.mxu0 %v128
  %171 = vmatprep.subr.bf16.mxu0 0
  %172 = vmatpush1.bf16.msra.mxu0 %v127
  %173 = vmatprep.subr.bf16.mxu0 0
  %174 = vmatpush1.bf16.msra.mxu0 %v126
  %175 = vmatprep.subr.bf16.mxu0 0
  %176 = vmatpush1.bf16.msra.mxu0 %v125
  %177 = vmatprep.subr.bf16.mxu0 0
  %178 = vmatpush2.bf16.msra.mxu0 0
  %179 = vmatprep.subr.bf16.mxu0 0
  %180 = vmatpush2.bf16.msra.mxu0 0
  %181 = vmatprep.subr.bf16.mxu0 0
  %182 = vmatpush2.bf16.msra.mxu0 0
  %183 = vmatprep.subr.bf16.mxu0 0
  %184 = vmatpush2.bf16.msra.mxu0 0
  %185 = vmatprep.subr.bf16.mxu0 0
  %186 = vmatpush2.bf16.msra.mxu0 0
  %187 = vmatprep.subr.bf16.mxu0 0
  %188 = vmatpush2.bf16.msra.mxu0 0
  %189 = vmatprep.subr.bf16.mxu0 0
  %190 = vmatpush2.bf16.msra.mxu0 %v134
  %191 = vmatprep.subr.bf16.mxu0 0
  %192 = vmatpush2.bf16.msra.mxu0 %v133
  %193 = vmatprep.mubr.bf16.mxu0 %v147
  %194 = vmatmul.mubr.bf16.gmra.mxu0 %v70
  %v195 = vpop.f32.mrf.mxu0
  %v196 = vadd.f32 0.0, %v195
  %v197 = vpop.f32.mrf.mxu0
  %v198 = vpop.f32.mrf.mxu0
  %v199 = vadd.f32 0.0, %v198
  %v200 = vpop.f32.mrf.mxu0
  %201 = vmatprep.mubr.bf16.mxu0 %v150
  %202 = vmatmul.mubr.bf16.gmra.mxu0 %v72
  %v203 = vpop.f32.mrf.mxu0
  %v204 = vadd.f32 0.0, %v203
  %v205 = vpop.f32.mrf.mxu0
  %v206 = vpop.f32.mrf.mxu0
  %v207 = vadd.f32 0.0, %v206
  %v208 = vpop.f32.mrf.mxu0
  %209 = vmatprep.mubr.bf16.mxu0 %v153
  %210 = vmatmul.mubr.bf16.gmra.mxu0 %v74
  %v211 = vpop.f32.mrf.mxu0
  %v212 = vadd.f32 0.0, %v211
  %v213 = vpop.f32.mrf.mxu0
  %v214 = vpop.f32.mrf.mxu0
  %v215 = vadd.f32 0.0, %v214
  %v216 = vpop.f32.mrf.mxu0
  %217 = vmatprep.mubr.bf16.mxu0 %v156
  %218 = vmatmul.mubr.bf16.gmra.mxu0 %v76
  %v219 = vpop.f32.mrf.mxu0
  %v220 = vadd.f32 0.0, %v219
  %v221 = vpop.f32.mrf.mxu0
  %v222 = vpop.f32.mrf.mxu0
  %v223 = vadd.f32 0.0, %v222
  %v224 = vpop.f32.mrf.mxu0
  %225 = vmatprep.mubr.bf16.mxu0 %v159
  %226 = vmatmul.mubr.bf16.gmra.mxu0 %v78
  %v227 = vpop.f32.mrf.mxu0
  %v228 = vadd.f32 0.0, %v227
  %v229 = vpop.f32.mrf.mxu0
  %v230 = vpop.f32.mrf.mxu0
  %v231 = vpop.f32.mrf.mxu0
  %232 = vdwg.mxu0
  %v233 = vpack.c.bf16 %v199, %v196
  %v234 = vpack.c.bf16 %v207, %v204
  %v235 = vpack.c.bf16 %v215, %v212
  %v236 = vpack.c.bf16 %v223, %v220
  %v237 = vpack.c.bf16 %v228, %v228
  %v243 = vunpack.c.l.b16 %v233
  %v244 = vunpack.c.h.b16 %v233
  %v245 = vunpack.c.l.b16 %v234
  %v246 = vunpack.c.h.b16 %v234
  %v247 = vunpack.c.l.b16 %v235
  %v248 = vunpack.c.h.b16 %v235
  %v249 = vunpack.c.l.b16 %v236
  %v250 = vunpack.c.h.b16 %v236
  %v251 = vunpack.c.l.b16 %v237
  %v252 = vpack.c.b16 %v243, %v243
  %v253 = vpack.c.b16 %v244, %v244
  %v254 = vpack.c.b16 %v245, %v245
  %v255 = vpack.c.b16 %v246, %v246
  %v256 = vpack.c.b16 %v247, %v247
  %v257 = vpack.c.b16 %v248, %v248
  %v258 = vpack.c.b16 %v249, %v249
  %v259 = vpack.c.b16 %v250, %v250
  %v260 = vpack.c.b16 %v251, %v251
  %270 = vst [vmem:[%s2] sm:$0xf] %v252
  %271 = vst [vmem:[%s2 + $0x4] sm:$0xf] %v253
  %272 = vst [vmem:[%s2 + $0x8] sm:$0xf] %v254
  %273 = vst [vmem:[%s2 + $0xc] sm:$0xf] %v255
  %274 = vst [vmem:[%s2 + $0x10] sm:$0xf] %v256
  %275 = vst [vmem:[%s2 + $0x14] sm:$0xf] %v257
  %276 = vst [vmem:[%s2 + $0x18] sm:$0xf] %v258
  %277 = vst [vmem:[%s2 + $0x1c] sm:$0xf] %v259
  %278 = vst [vmem:[%s2 + $0x20] sm:$0xf] %v260
  %v279 = vadd.f32 %v196, %v199
  %v280 = vadd.f32 %v279, %v204
  %v281 = vadd.f32 %v280, %v207
  %v282 = vadd.f32 %v281, %v212
  %v283 = vadd.f32 %v282, %v215
  %v284 = vadd.f32 %v283, %v220
  %v285 = vadd.f32 %v284, %v223
  %v286 = vadd.f32 %v285, %v228
  %v287 = vrot.slane %v286, 4
  %v288 = vadd.f32 %v286, %v287
  %v289 = vrot.slane %v288, 2
  %v290 = vadd.f32 %v288, %v289
  %v291 = vrot.slane %v290, 1
  %v292 = vadd.f32 %v290, %v291
  %v293 = vmul.f32 %v196, %v196
  %v294 = vmul.f32 %v199, %v199
  %v295 = vmul.f32 %v204, %v204
  %v296 = vmul.f32 %v207, %v207
  %v297 = vmul.f32 %v212, %v212
  %v298 = vmul.f32 %v215, %v215
  %v299 = vmul.f32 %v220, %v220
  %v300 = vmul.f32 %v223, %v223
  %v301 = vmul.f32 %v228, %v228
  %v302 = vadd.f32 %v293, %v294
  %v303 = vadd.f32 %v302, %v295
  %v304 = vadd.f32 %v303, %v296
  %v305 = vadd.f32 %v304, %v297
  %v306 = vadd.f32 %v305, %v298
  %v307 = vadd.f32 %v306, %v299
  %v308 = vadd.f32 %v307, %v300
  %v309 = vadd.f32 %v308, %v301
  %v310 = vrot.slane %v309, 4
  %v311 = vadd.f32 %v309, %v310
  %v312 = vrot.slane %v311, 2
  %v313 = vadd.f32 %v311, %v312
  %v314 = vrot.slane %v313, 1
  %v315 = vadd.f32 %v313, %v314
  %vm316 = vcmask 1040384
  %v317 = vsel %vm316, %v292, %v315
  %318 = vst [vmem:[%s3] sm:$0x3] %v317
  // Predicated region
  $region10: #{stem_forward.28} parent=0 // pred_check
    _
  $region11: #{stem_forward.28} parent=0 // pred_check_branch
    %320 = sbr.rel (0) target = $region13
  $region12: #{stem_forward.28} parent=0 // pred_region
    _
  $region13: #{stem_forward.28} parent=0 // pred_fallthru
    _
  // Predicated region
  $region14: #{stem_forward.28} parent=0 // pred_check
    _
  $region15: #{stem_forward.28} parent=0 // pred_check_branch
    %322 = sbr.rel (0) target = $region17
  $region16: #{stem_forward.28} parent=0 // pred_region
    _
  $region17: #{stem_forward.28} parent=0 // pred_fallthru
    _
  // Predicated region
  $region18: #{stem_forward.28} parent=0 // pred_check
    _
  $region19: #{stem_forward.28} parent=0 // pred_check_branch
    %324 = sbr.rel (0) target = $region21
  $region20: #{stem_forward.28} parent=0 // pred_region
    _
  $region21: #{stem_forward.28} parent=0 // pred_fallthru
    _
  // Predicated region
  $region22: #{stem_forward.28} parent=0 // pred_check
    _
  $region23: #{stem_forward.28} parent=0 // pred_check_branch
    %326 = sbr.rel (0) target = $region25
  $region24: #{stem_forward.28} parent=0 // pred_region
    _
  $region25: #{stem_forward.28} parent=0 // pred_fallthru
    _

// kernel: stem_forward.29
$region0: #{stem_forward.29}
  #allocation0 [shape = 'u32[]', space=smem, size = 0x4, offset = 0x4, fixed_abs, tag = 'smem constant byte address 0x4 - core index']
  #allocation1 [shape = 'u32[144,128]{1,0:T(1,128)}', space=vmem, size = 0x12000, scoped, tag = 'internal scratch']
  %s0 = inlined_call_operand.vmem [shape: bf16[72,128], index: 0, kind: input, shape index: {}]
  %s1 = inlined_call_operand.vmem [shape: f32[1,128], index: 1, kind: input, shape index: {}]
  %s2 = inlined_call_operand.vmem [shape: f32[1,128], index: 2, kind: input, shape index: {}]
  %s3 = inlined_call_operand.vmem [shape: bf16[72,128], index: 3, kind: output, shape index: {}]
  %s4 = sld [smem:[#allocation0]]
  $region22: #{stem_forward.29} parent=0
    _
  %s6 = ssub.s32 1, %s4
  %s7 = scalar_select 0, %s6, %s4
  // Predicated region
  $region2: #{stem_forward.29} parent=0 // pred_check
    _
  $region3: #{stem_forward.29} parent=0 // pred_check_branch
    %9 = sbr.rel (0) target = $region5
  $region4: #{stem_forward.29} parent=0 // pred_region
    _
  $region5: #{stem_forward.29} parent=0 // pred_fallthru
    _
  // Predicated region
  $region6: #{stem_forward.29} parent=0 // pred_check
    _
  $region7: #{stem_forward.29} parent=0 // pred_check_branch
    %11 = sbr.rel (0) target = $region9
  $region8: #{stem_forward.29} parent=0 // pred_region
    _
  $region9: #{stem_forward.29} parent=0 // pred_fallthru
    _
  // Predicated region
  $region10: #{stem_forward.29} parent=0 // pred_check
    _
  $region11: #{stem_forward.29} parent=0 // pred_check_branch
    %13 = sbr.rel (0) target = $region13
  $region12: #{stem_forward.29} parent=0 // pred_region
    _
  $region13: #{stem_forward.29} parent=0 // pred_fallthru
    _
  %v14 = vld [vmem:[%s0] sm:$0xf]
  %v15 = vld [vmem:[%s0 + $0x4] sm:$0xf]
  %v16 = vld [vmem:[%s0 + $0x8] sm:$0xf]
  %v17 = vld [vmem:[%s0 + $0xc] sm:$0xf]
  %v18 = vld [vmem:[%s0 + $0x10] sm:$0xf]
  %v19 = vld [vmem:[%s0 + $0x14] sm:$0xf]
  %v20 = vld [vmem:[%s0 + $0x18] sm:$0xf]
  %v21 = vld [vmem:[%s0 + $0x1c] sm:$0xf]
  %v22 = vld [vmem:[%s0 + $0x20] sm:$0xf]
  %v23 = vunpack.c.l.bf16 %v14
  %v24 = vunpack.c.l.bf16 %v15
  %v25 = vunpack.c.l.bf16 %v16
  %v26 = vunpack.c.l.bf16 %v17
  %v27 = vunpack.c.l.bf16 %v18
  %v28 = vunpack.c.l.bf16 %v19
  %v29 = vunpack.c.l.bf16 %v20
  %v30 = vunpack.c.l.bf16 %v21
  %v31 = vunpack.c.l.bf16 %v22
  %v32 = vld [vmem:[%s1] sm:$0x1]
  %v34 = vlaneseq
  %v35 = vshrl.u32 %v34, 7
  %v36 = vsub.s32 0, %v35
  %v37 = vrot.slane %v32, %v36
  %v39 = vmul.f32 %v23, %v37
  %v40 = vmul.f32 %v24, %v37
  %v41 = vmul.f32 %v25, %v37
  %v42 = vmul.f32 %v26, %v37
  %v43 = vmul.f32 %v27, %v37
  %v44 = vmul.f32 %v28, %v37
  %v45 = vmul.f32 %v29, %v37
  %v46 = vmul.f32 %v30, %v37
  %v47 = vmul.f32 %v31, %v37
  %v48 = vld [vmem:[%s2] sm:$0x1]
  %v50 = vlaneseq
  %v51 = vshrl.u32 %v50, 7
  %v52 = vsub.s32 0, %v51
  %v53 = vrot.slane %v48, %v52
  %v55 = vadd.f32 %v39, %v53
  %v56 = vadd.f32 %v40, %v53
  %v57 = vadd.f32 %v41, %v53
  %v58 = vadd.f32 %v42, %v53
  %v59 = vadd.f32 %v43, %v53
  %v60 = vadd.f32 %v44, %v53
  %v61 = vadd.f32 %v45, %v53
  %v62 = vadd.f32 %v46, %v53
  %v63 = vadd.f32 %v47, %v53
  %v64 = vmax.f32 %v55, 0.0
  %v65 = vmax.f32 %v56, 0.0
  %v66 = vmax.f32 %v57, 0.0
  %v67 = vmax.f32 %v58, 0.0
  %v68 = vmax.f32 %v59, 0.0
  %v69 = vmax.f32 %v60, 0.0
  %v70 = vmax.f32 %v61, 0.0
  %v71 = vmax.f32 %v62, 0.0
  %v72 = vmax.f32 %v63, 0.0
  %v73 = vpack.c.bf16 %v65, %v64
  %v74 = vpack.c.bf16 %v67, %v66
  %v75 = vpack.c.bf16 %v69, %v68
  %v76 = vpack.c.bf16 %v71, %v70
  %v77 = vpack.c.bf16 %v72, %v72
  %v83 = vunpack.c.l.b16 %v73
  %v84 = vunpack.c.h.b16 %v73
  %v85 = vunpack.c.l.b16 %v74
  %v86 = vunpack.c.h.b16 %v74
  %v87 = vunpack.c.l.b16 %v75
  %v88 = vunpack.c.h.b16 %v75
  %v89 = vunpack.c.l.b16 %v76
  %v90 = vunpack.c.h.b16 %v76
  %v91 = vunpack.c.l.b16 %v77
  %v92 = vpack.c.b16 %v83, %v83
  %v93 = vpack.c.b16 %v84, %v84
  %v94 = vpack.c.b16 %v85, %v85
  %v95 = vpack.c.b16 %v86, %v86
  %v96 = vpack.c.b16 %v87, %v87
  %v97 = vpack.c.b16 %v88, %v88
  %v98 = vpack.c.b16 %v89, %v89
  %v99 = vpack.c.b16 %v90, %v90
  %v100 = vpack.c.b16 %v91, %v91
  %110 = vst [vmem:[%s3] sm:$0xf] %v92
  %111 = vst [vmem:[%s3 + $0x4] sm:$0xf] %v93
  %112 = vst [vmem:[%s3 + $0x8] sm:$0xf] %v94
  %113 = vst [vmem:[%s3 + $0xc] sm:$0xf] %v95
  %114 = vst [vmem:[%s3 + $0x10] sm:$0xf] %v96
  %115 = vst [vmem:[%s3 + $0x14] sm:$0xf] %v97
  %116 = vst [vmem:[%s3 + $0x18] sm:$0xf] %v98
  %117 = vst [vmem:[%s3 + $0x1c] sm:$0xf] %v99
  %118 = vst [vmem:[%s3 + $0x20] sm:$0xf] %v100
  // Predicated region
  $region14: #{stem_forward.29} parent=0 // pred_check
    _
  $region15: #{stem_forward.29} parent=0 // pred_check_branch
    %120 = sbr.rel (0) target = $region17
  $region16: #{stem_forward.29} parent=0 // pred_region
    _
  $region17: #{stem_forward.29} parent=0 // pred_fallthru
    _
  // Predicated region
  $region18: #{stem_forward.29} parent=0 // pred_check
    _
  $region19: #{stem_forward.29} parent=0 // pred_check_branch
    %122 = sbr.rel (0) target = $region21
  $region20: #{stem_forward.29} parent=0 // pred_region
    _
  $region21: #{stem_forward.29} parent=0 // pred_fallthru
    _

// kernel: stem_forward.31
$region0: #{stem_forward.31}
  #allocation0 [shape = 'u32[]', space=smem, size = 0x4, offset = 0x4, fixed_abs, tag = 'smem constant byte address 0x4 - core index']
  #allocation1 [shape = 'u32[144,128]{1,0:T(1,128)}', space=vmem, size = 0x12000, scoped, tag = 'internal scratch']
  %s0 = inlined_call_operand.vmem [shape: bf16[32,96], index: 0, kind: input, shape index: {}]
  %s1 = inlined_call_operand.vmem [shape: f32[1,96], index: 1, kind: input, shape index: {}]
  %s2 = inlined_call_operand.vmem [shape: f32[1,96], index: 2, kind: input, shape index: {}]
  %s3 = inlined_call_operand.vmem [shape: bf16[32,96], index: 3, kind: output, shape index: {}]
  %s4 = sld [smem:[#allocation0]]
  $region22: #{stem_forward.31} parent=0
    _
  %s6 = ssub.s32 1, %s4
  %s7 = scalar_select 0, %s6, %s4
  // Predicated region
  $region2: #{stem_forward.31} parent=0 // pred_check
    _
  $region3: #{stem_forward.31} parent=0 // pred_check_branch
    %9 = sbr.rel (0) target = $region5
  $region4: #{stem_forward.31} parent=0 // pred_region
    _
  $region5: #{stem_forward.31} parent=0 // pred_fallthru
    _
  // Predicated region
  $region6: #{stem_forward.31} parent=0 // pred_check
    _
  $region7: #{stem_forward.31} parent=0 // pred_check_branch
    %11 = sbr.rel (0) target = $region9
  $region8: #{stem_forward.31} parent=0 // pred_region
    _
  $region9: #{stem_forward.31} parent=0 // pred_fallthru
    _
  // Predicated region
  $region10: #{stem_forward.31} parent=0 // pred_check
    _
  $region11: #{stem_forward.31} parent=0 // pred_check_branch
    %13 = sbr.rel (0) target = $region13
  $region12: #{stem_forward.31} parent=0 // pred_region
    _
  $region13: #{stem_forward.31} parent=0 // pred_fallthru
    _
  %v14 = vld [vmem:[%s0] sm:$0xf]
  %v15 = vld [vmem:[%s0 + $0x4] sm:$0xf]
  %v16 = vld [vmem:[%s0 + $0x8] sm:$0xf]
  %v17 = vld [vmem:[%s0 + $0xc] sm:$0xf]
  %v18 = vunpack.c.l.bf16 %v14
  %v19 = vunpack.c.l.bf16 %v15
  %v20 = vunpack.c.l.bf16 %v16
  %v21 = vunpack.c.l.bf16 %v17
  %v22 = vld [vmem:[%s1] sm:$0x1]
  %v24 = vlaneseq
  %v25 = vshrl.u32 %v24, 7
  %v26 = vsub.s32 0, %v25
  %v27 = vrot.slane %v22, %v26
  %v29 = vmul.f32 %v18, %v27
  %v30 = vmul.f32 %v19, %v27
  %v31 = vmul.f32 %v20, %v27
  %v32 = vmul.f32 %v21, %v27
  %v33 = vld [vmem:[%s2] sm:$0x1]
  %v35 = vlaneseq
  %v36 = vshrl.u32 %v35, 7
  %v37 = vsub.s32 0, %v36
  %v38 = vrot.slane %v33, %v37
  %v40 = vadd.f32 %v29, %v38
  %v41 = vadd.f32 %v30, %v38
  %v42 = vadd.f32 %v31, %v38
  %v43 = vadd.f32 %v32, %v38
  %v44 = vmax.f32 %v40, 0.0
  %v45 = vmax.f32 %v41, 0.0
  %v46 = vmax.f32 %v42, 0.0
  %v47 = vmax.f32 %v43, 0.0
  %v48 = vpack.c.bf16 %v45, %v44
  %v49 = vpack.c.bf16 %v47, %v46
  %v52 = vunpack.c.l.b16 %v48
  %v53 = vunpack.c.h.b16 %v48
  %v54 = vunpack.c.l.b16 %v49
  %v55 = vunpack.c.h.b16 %v49
  %v56 = vpack.c.b16 %v52, %v52
  %v57 = vpack.c.b16 %v53, %v53
  %v58 = vpack.c.b16 %v54, %v54
  %v59 = vpack.c.b16 %v55, %v55
  %vm64 = vcmask 781312
  %65 = vst.msk [vmem:[%s3] sm:$0xf] %vm64, %v56
  %66 = vst.msk [vmem:[%s3 + $0x4] sm:$0xf] %vm64, %v57
  %67 = vst.msk [vmem:[%s3 + $0x8] sm:$0xf] %vm64, %v58
  %68 = vst.msk [vmem:[%s3 + $0xc] sm:$0xf] %vm64, %v59
  // Predicated region
  $region14: #{stem_forward.31} parent=0 // pred_check
    _
  $region15: #{stem_forward.31} parent=0 // pred_check_branch
    %70 = sbr.rel (0) target = $region17
  $region16: #{stem_forward.31} parent=0 // pred_region
    _
  $region17: #{stem_forward.31} parent=0 // pred_fallthru
    _
  // Predicated region
  $region18: #{stem_forward.31} parent=0 // pred_check
    _
  $region19: #{stem_forward.31} parent=0 // pred_check_branch
    %72 = sbr.rel (0) target = $region21
  $region20: #{stem_forward.31} parent=0 // pred_region
    _
  $region21: #{stem_forward.31} parent=0 // pred_fallthru
    _

// kernel: stem_forward.30
$region0: #{stem_forward.30}
  #allocation0 [shape = 'u32[]', space=smem, size = 0x4, offset = 0x4, fixed_abs, tag = 'smem constant byte address 0x4 - core index']
  #allocation1 [shape = 'u32[144,128]{1,0:T(1,128)}', space=vmem, size = 0x12000, scoped, tag = 'internal scratch']
  %s0 = inlined_call_operand.vmem [shape: bf16[32,576], index: 0, kind: input, shape index: {}]
  %s1 = inlined_call_operand.vmem [shape: bf16[576,96], index: 1, kind: input, shape index: {}]
  %s2 = inlined_call_operand.vmem [shape: bf16[32,96], index: 2, kind: output, shape index: {0}]
  %s3 = inlined_call_operand.vmem [shape: f32[1,2,96], index: 3, kind: output, shape index: {1}]
  %4 = xla_tuple %s2, %s3
  %s5 = sld [smem:[#allocation0]]
  $region26: #{stem_forward.30} parent=0
    _
  %s7 = ssub.s32 1, %s5
  %s8 = scalar_select 0, %s7, %s5
  // Predicated region
  $region2: #{stem_forward.30} parent=0 // pred_check
    _
  $region3: #{stem_forward.30} parent=0 // pred_check_branch
    %10 = sbr.rel (0) target = $region5
  $region4: #{stem_forward.30} parent=0 // pred_region
    _
  $region5: #{stem_forward.30} parent=0 // pred_fallthru
    _
  // Predicated region
  $region6: #{stem_forward.30} parent=0 // pred_check
    _
  $region7: #{stem_forward.30} parent=0 // pred_check_branch
    %12 = sbr.rel (0) target = $region9
  $region8: #{stem_forward.30} parent=0 // pred_region
    _
  $region9: #{stem_forward.30} parent=0 // pred_fallthru
    _
  %v14 = vld [vmem:[%s0] sm:$0xff]
  %v15 = vld [vmem:[%s0 + $0x8] sm:$0xff]
  %v16 = vld [vmem:[%s0 + $0x10] sm:$0xf]
  %v17 = vld [vmem:[%s0 + $0x14] sm:$0xff]
  %v18 = vld [vmem:[%s0 + $0x1c] sm:$0xff]
  %v19 = vld [vmem:[%s0 + $0x24] sm:$0xf]
  %v20 = vld [vmem:[%s0 + $0x28] sm:$0xff]
  %v21 = vld [vmem:[%s0 + $0x30] sm:$0xff]
  %v22 = vld [vmem:[%s0 + $0x38] sm:$0xf]
  %v23 = vld [vmem:[%s0 + $0x3c] sm:$0xff]
  %v24 = vld [vmem:[%s0 + $0x44] sm:$0xff]
  %v25 = vld [vmem:[%s0 + $0x4c] sm:$0xf]
  %v26 = vld [vmem:[%s1] sm:$0xf]
  %v27 = vld [vmem:[%s1 + $0x4] sm:$0xf]
  %v28 = vld [vmem:[%s1 + $0x8] sm:$0xf]
  %v29 = vld [vmem:[%s1 + $0xc] sm:$0xf]
  %v30 = vld [vmem:[%s1 + $0x10] sm:$0xf]
  %v31 = vld [vmem:[%s1 + $0x14] sm:$0xf]
  %v32 = vld [vmem:[%s1 + $0x18] sm:$0xf]
  %v33 = vld [vmem:[%s1 + $0x1c] sm:$0xf]
  %v34 = vld [vmem:[%s1 + $0x20] sm:$0xf]
  %v35 = vld [vmem:[%s1 + $0x24] sm:$0xf]
  %v36 = vld [vmem:[%s1 + $0x28] sm:$0xf]
  %v37 = vld [vmem:[%s1 + $0x2c] sm:$0xf]
  %v38 = vld [vmem:[%s1 + $0x30] sm:$0xf]
  %v39 = vld [vmem:[%s1 + $0x34] sm:$0xf]
  %v40 = vld [vmem:[%s1 + $0x38] sm:$0xf]
  %v41 = vld [vmem:[%s1 + $0x3c] sm:$0xf]
  %v42 = vld [vmem:[%s1 + $0x40] sm:$0xf]
  %v43 = vld [vmem:[%s1 + $0x44] sm:$0xf]
  %v44 = vld [vmem:[%s1 + $0x48] sm:$0xf]
  %v45 = vld [vmem:[%s1 + $0x4c] sm:$0xf]
  %v46 = vld [vmem:[%s1 + $0x50] sm:$0xf]
  %v47 = vld [vmem:[%s1 + $0x54] sm:$0xf]
  %v48 = vld [vmem:[%s1 + $0x58] sm:$0xf]
  %v49 = vld [vmem:[%s1 + $0x5c] sm:$0xf]
  %v50 = vld [vmem:[%s1 + $0x60] sm:$0xf]
  %v51 = vld [vmem:[%s1 + $0x64] sm:$0xf]
  %v52 = vld [vmem:[%s1 + $0x68] sm:$0xf]
  %v53 = vld [vmem:[%s1 + $0x6c] sm:$0xf]
  %v54 = vld [vmem:[%s1 + $0x70] sm:$0xf]
  %v55 = vld [vmem:[%s1 + $0x74] sm:$0xf]
  %v56 = vld [vmem:[%s1 + $0x78] sm:$0xf]
  %v57 = vld [vmem:[%s1 + $0x7c] sm:$0xf]
  %v58 = vld [vmem:[%s1 + $0x80] sm:$0xf]
  %v59 = vld [vmem:[%s1 + $0x84] sm:$0xf]
  %v60 = vld [vmem:[%s1 + $0x88] sm:$0xf]
  %v61 = vld [vmem:[%s1 + $0x8c] sm:$0xf]
  %v62 = vld [vmem:[%s1 + $0x90] sm:$0xf]
  %v63 = vld [vmem:[%s1 + $0x94] sm:$0xf]
  %v64 = vld [vmem:[%s1 + $0x98] sm:$0xf]
  %v65 = vld [vmem:[%s1 + $0x9c] sm:$0xf]
  %v66 = vld [vmem:[%s1 + $0xa0] sm:$0xf]
  %v67 = vld [vmem:[%s1 + $0xa4] sm:$0xf]
  %v68 = vld [vmem:[%s1 + $0xa8] sm:$0xf]
  %v69 = vld [vmem:[%s1 + $0xac] sm:$0xf]
  %v70 = vld [vmem:[%s1 + $0xb0] sm:$0xf]
  %v71 = vld [vmem:[%s1 + $0xb4] sm:$0xf]
  %v72 = vld [vmem:[%s1 + $0xb8] sm:$0xf]
  %v73 = vld [vmem:[%s1 + $0xbc] sm:$0xf]
  %v74 = vld [vmem:[%s1 + $0xc0] sm:$0xf]
  %v75 = vld [vmem:[%s1 + $0xc4] sm:$0xf]
  %v76 = vld [vmem:[%s1 + $0xc8] sm:$0xf]
  %v77 = vld [vmem:[%s1 + $0xcc] sm:$0xf]
  %v78 = vld [vmem:[%s1 + $0xd0] sm:$0xf]
  %v79 = vld [vmem:[%s1 + $0xd4] sm:$0xf]
  %v80 = vld [vmem:[%s1 + $0xd8] sm:$0xf]
  %v81 = vld [vmem:[%s1 + $0xdc] sm:$0xf]
  %v82 = vld [vmem:[%s1 + $0xe0] sm:$0xf]
  %v83 = vld [vmem:[%s1 + $0xe4] sm:$0xf]
  %v84 = vld [vmem:[%s1 + $0xe8] sm:$0xf]
  %v85 = vld [vmem:[%s1 + $0xec] sm:$0xf]
  %v86 = vld [vmem:[%s1 + $0xf0] sm:$0xf]
  %v87 = vld [vmem:[%s1 + $0xf4] sm:$0xf]
  %v88 = vld [vmem:[%s1 + $0xf8] sm:$0xf]
  %v89 = vld [vmem:[%s1 + $0xfc] sm:$0xf]
  %v90 = vld [vmem:[%s1 + $0x100] sm:$0xf]
  %v91 = vld [vmem:[%s1 + $0x104] sm:$0xf]
  %v92 = vld [vmem:[%s1 + $0x108] sm:$0xf]
  %v93 = vld [vmem:[%s1 + $0x10c] sm:$0xf]
  %v94 = vld [vmem:[%s1 + $0x110] sm:$0xf]
  %v95 = vld [vmem:[%s1 + $0x114] sm:$0xf]
  %v96 = vld [vmem:[%s1 + $0x118] sm:$0xf]
  %v97 = vld [vmem:[%s1 + $0x11c] sm:$0xf]
  %v110 = vunpack.c.l.b16 %v14
  %v111 = vunpack.c.h.b16 %v14
  %v112 = vunpack.c.l.b16 %v15
  %v113 = vunpack.c.h.b16 %v15
  %v114 = vunpack.c.l.b16 %v16
  %v115 = vunpack.c.l.b16 %v17
  %v116 = vunpack.c.h.b16 %v17
  %v117 = vunpack.c.l.b16 %v18
  %v118 = vunpack.c.h.b16 %v18
  %v119 = vunpack.c.l.b16 %v19
  %v120 = vunpack.c.l.b16 %v20
  %v121 = vunpack.c.h.b16 %v20
  %v122 = vunpack.c.l.b16 %v21
  %v123 = vunpack.c.h.b16 %v21
  %v124 = vunpack.c.l.b16 %v22
  %v125 = vunpack.c.l.b16 %v23
  %v126 = vunpack.c.h.b16 %v23
  %v127 = vunpack.c.l.b16 %v24
  %v128 = vunpack.c.h.b16 %v24
  %v129 = vunpack.c.l.b16 %v25
  %v130 = vpack.c.b16 %v115, %v110
  %v131 = vpack.c.b16 %v116, %v111
  %v132 = vpack.c.b16 %v117, %v112
  %v133 = vpack.c.b16 %v118, %v113
  %v134 = vpack.c.b16 %v119, %v114
  %v135 = vpack.c.b16 %v125, %v120
  %v136 = vpack.c.b16 %v126, %v121
  %v137 = vpack.c.b16 %v127, %v122
  %v138 = vpack.c.b16 %v128, %v123
  %v139 = vpack.c.b16 %v129, %v124
  %v220 = vunpack.c.l.b16 %v26
  %v221 = vunpack.c.l.b16 %v27
  %v222 = vunpack.c.l.b16 %v28
  %v223 = vunpack.c.l.b16 %v29
  %v224 = vunpack.c.l.b16 %v30
  %v225 = vunpack.c.l.b16 %v31
  %v226 = vunpack.c.l.b16 %v32
  %v227 = vunpack.c.l.b16 %v33
  %v228 = vunpack.c.l.b16 %v34
  %v229 = vunpack.c.l.b16 %v35
  %v230 = vunpack.c.l.b16 %v36
  %v231 = vunpack.c.l.b16 %v37
  %v232 = vunpack.c.l.b16 %v38
  %v233 = vunpack.c.l.b16 %v39
  %v234 = vunpack.c.l.b16 %v40
  %v235 = vunpack.c.l.b16 %v41
  %v236 = vunpack.c.l.b16 %v42
  %v237 = vunpack.c.l.b16 %v43
  %v238 = vunpack.c.l.b16 %v44
  %v239 = vunpack.c.l.b16 %v45
  %v240 = vunpack.c.l.b16 %v46
  %v241 = vunpack.c.l.b16 %v47
  %v242 = vunpack.c.l.b16 %v48
  %v243 = vunpack.c.l.b16 %v49
  %v244 = vunpack.c.l.b16 %v50
  %v245 = vunpack.c.l.b16 %v51
  %v246 = vunpack.c.l.b16 %v52
  %v247 = vunpack.c.l.b16 %v53
  %v248 = vunpack.c.l.b16 %v54
  %v249 = vunpack.c.l.b16 %v55
  %v250 = vunpack.c.l.b16 %v56
  %v251 = vunpack.c.l.b16 %v57
  %v252 = vunpack.c.l.b16 %v58
  %v253 = vunpack.c.l.b16 %v59
  %v254 = vunpack.c.l.b16 %v60
  %v255 = vunpack.c.l.b16 %v61
  %v256 = vunpack.c.l.b16 %v62
  %v257 = vunpack.c.l.b16 %v63
  %v258 = vunpack.c.l.b16 %v64
  %v259 = vunpack.c.l.b16 %v65
  %v260 = vunpack.c.l.b16 %v66
  %v261 = vunpack.c.l.b16 %v67
  %v262 = vunpack.c.l.b16 %v68
  %v263 = vunpack.c.l.b16 %v69
  %v264 = vunpack.c.l.b16 %v70
  %v265 = vunpack.c.l.b16 %v71
  %v266 = vunpack.c.l.b16 %v72
  %v267 = vunpack.c.l.b16 %v73
  %v268 = vunpack.c.l.b16 %v74
  %v269 = vunpack.c.l.b16 %v75
  %v270 = vunpack.c.l.b16 %v76
  %v271 = vunpack.c.l.b16 %v77
  %v272 = vunpack.c.l.b16 %v78
  %v273 = vunpack.c.l.b16 %v79
  %v274 = vunpack.c.l.b16 %v80
  %v275 = vunpack.c.l.b16 %v81
  %v276 = vunpack.c.l.b16 %v82
  %v277 = vunpack.c.l.b16 %v83
  %v278 = vunpack.c.l.b16 %v84
  %v279 = vunpack.c.l.b16 %v85
  %v280 = vunpack.c.l.b16 %v86
  %v281 = vunpack.c.l.b16 %v87
  %v282 = vunpack.c.l.b16 %v88
  %v283 = vunpack.c.l.b16 %v89
  %v284 = vunpack.c.l.b16 %v90
  %v285 = vunpack.c.l.b16 %v91
  %v286 = vunpack.c.l.b16 %v92
  %v287 = vunpack.c.l.b16 %v93
  %v288 = vunpack.c.l.b16 %v94
  %v289 = vunpack.c.l.b16 %v95
  %v290 = vunpack.c.l.b16 %v96
  %v291 = vunpack.c.l.b16 %v97
  %v292 = vpack.c.b16 %v221, %v220
  %v293 = vpack.c.b16 %v223, %v222
  %v294 = vpack.c.b16 %v225, %v224
  %v295 = vpack.c.b16 %v227, %v226
  %v296 = vpack.c.b16 %v229, %v228
  %v297 = vpack.c.b16 %v231, %v230
  %v298 = vpack.c.b16 %v233, %v232
  %v299 = vpack.c.b16 %v235, %v234
  %v300 = vpack.c.b16 %v237, %v236
  %v301 = vpack.c.b16 %v239, %v238
  %v302 = vpack.c.b16 %v241, %v240
  %v303 = vpack.c.b16 %v243, %v242
  %v304 = vpack.c.b16 %v245, %v244
  %v305 = vpack.c.b16 %v247, %v246
  %v306 = vpack.c.b16 %v249, %v248
  %v307 = vpack.c.b16 %v251, %v250
  %v308 = vpack.c.b16 %v253, %v252
  %v309 = vpack.c.b16 %v255, %v254
  %v310 = vpack.c.b16 %v257, %v256
  %v311 = vpack.c.b16 %v259, %v258
  %v312 = vpack.c.b16 %v261, %v260
  %v313 = vpack.c.b16 %v263, %v262
  %v314 = vpack.c.b16 %v265, %v264
  %v315 = vpack.c.b16 %v267, %v266
  %v316 = vpack.c.b16 %v269, %v268
  %v317 = vpack.c.b16 %v271, %v270
  %v318 = vpack.c.b16 %v273, %v272
  %v319 = vpack.c.b16 %v275, %v274
  %v320 = vpack.c.b16 %v277, %v276
  %v321 = vpack.c.b16 %v279, %v278
  %v322 = vpack.c.b16 %v281, %v280
  %v323 = vpack.c.b16 %v283, %v282
  %v324 = vpack.c.b16 %v285, %v284
  %v325 = vpack.c.b16 %v287, %v286
  %v326 = vpack.c.b16 %v289, %v288
  %v327 = vpack.c.b16 %v291, %v290
  %vm364 = vcmask 523264
  %v366 = vsel %vm364, %v134, 0
  %v369 = vsel %vm364, %v139, 0
  %371 = vmatprep.subr.bf16.mxu0 0
  %372 = vmatpush1.bf16.msra.mxu0 %v299
  %373 = vmatprep.subr.bf16.mxu0 0
  %374 = vmatpush1.bf16.msra.mxu0 %v298
  %375 = vmatprep.subr.bf16.mxu0 0
  %376 = vmatpush1.bf16.msra.mxu0 %v297
  %377 = vmatprep.subr.bf16.mxu0 0
  %378 = vmatpush1.bf16.msra.mxu0 %v296
  %379 = vmatprep.subr.bf16.mxu0 0
  %380 = vmatpush1.bf16.msra.mxu0 %v295
  %381 = vmatprep.subr.bf16.mxu0 0
  %382 = vmatpush1.bf16.msra.mxu0 %v294
  %383 = vmatprep.subr.bf16.mxu0 0
  %384 = vmatpush1.bf16.msra.mxu0 %v293
  %385 = vmatprep.subr.bf16.mxu0 0
  %386 = vmatpush1.bf16.msra.mxu0 %v292
  %387 = vmatprep.subr.bf16.mxu0 0
  %388 = vmatpush2.bf16.msra.mxu0 %v307
  %389 = vmatprep.subr.bf16.mxu0 0
  %390 = vmatpush2.bf16.msra.mxu0 %v306
  %391 = vmatprep.subr.bf16.mxu0 0
  %392 = vmatpush2.bf16.msra.mxu0 %v305
  %393 = vmatprep.subr.bf16.mxu0 0
  %394 = vmatpush2.bf16.msra.mxu0 %v304
  %395 = vmatprep.subr.bf16.mxu0 0
  %396 = vmatpush2.bf16.msra.mxu0 %v303
  %397 = vmatprep.subr.bf16.mxu0 0
  %398 = vmatpush2.bf16.msra.mxu0 %v302
  %399 = vmatprep.subr.bf16.mxu0 0
  %400 = vmatpush2.bf16.msra.mxu0 %v301
  %401 = vmatprep.subr.bf16.mxu0 0
  %402 = vmatpush2.bf16.msra.mxu0 %v300
  %403 = vmatprep.mubr.bf16.mxu0 %v131
  %404 = vmatmul.mubr.bf16.gmra.mxu0 %v130
  %v405 = vpop.f32.mrf.mxu0
  %v406 = vadd.f32 0.0, %v405
  %v407 = vpop.f32.mrf.mxu0
  %v408 = vpop.f32.mrf.mxu0
  %v409 = vadd.f32 0.0, %v408
  %v410 = vpop.f32.mrf.mxu0
  %411 = vmatprep.mubr.bf16.mxu0 %v136
  %412 = vmatmul.mubr.bf16.gmra.mxu0 %v135
  %v413 = vpop.f32.mrf.mxu0
  %v414 = vadd.f32 0.0, %v413
  %v415 = vpop.f32.mrf.mxu0
  %v416 = vpop.f32.mrf.mxu0
  %v417 = vadd.f32 0.0, %v416
  %v418 = vpop.f32.mrf.mxu0
  %419 = vdwg.mxu0
  %420 = vmatprep.subr.bf16.mxu0 0
  %421 = vmatpush1.bf16.msra.mxu0 %v315
  %422 = vmatprep.subr.bf16.mxu0 0
  %423 = vmatpush1.bf16.msra.mxu0 %v314
  %424 = vmatprep.subr.bf16.mxu0 0
  %425 = vmatpush1.bf16.msra.mxu0 %v313
  %426 = vmatprep.subr.bf16.mxu0 0
  %427 = vmatpush1.bf16.msra.mxu0 %v312
  %428 = vmatprep.subr.bf16.mxu0 0
  %429 = vmatpush1.bf16.msra.mxu0 %v311
  %430 = vmatprep.subr.bf16.mxu0 0
  %431 = vmatpush1.bf16.msra.mxu0 %v310
  %432 = vmatprep.subr.bf16.mxu0 0
  %433 = vmatpush1.bf16.msra.mxu0 %v309
  %434 = vmatprep.subr.bf16.mxu0 0
  %435 = vmatpush1.bf16.msra.mxu0 %v308
  %436 = vmatprep.subr.bf16.mxu0 0
  %437 = vmatpush2.bf16.msra.mxu0 %v323
  %438 = vmatprep.subr.bf16.mxu0 0
  %439 = vmatpush2.bf16.msra.mxu0 %v322
  %440 = vmatprep.subr.bf16.mxu0 0
  %441 = vmatpush2.bf16.msra.mxu0 %v321
  %442 = vmatprep.subr.bf16.mxu0 0
  %443 = vmatpush2.bf16.msra.mxu0 %v320
  %444 = vmatprep.subr.bf16.mxu0 0
  %445 = vmatpush2.bf16.msra.mxu0 %v319
  %446 = vmatprep.subr.bf16.mxu0 0
  %447 = vmatpush2.bf16.msra.mxu0 %v318
  %448 = vmatprep.subr.bf16.mxu0 0
  %449 = vmatpush2.bf16.msra.mxu0 %v317
  %450 = vmatprep.subr.bf16.mxu0 0
  %451 = vmatpush2.bf16.msra.mxu0 %v316
  %452 = vmatprep.mubr.bf16.mxu0 %v133
  %453 = vmatmul.mubr.bf16.gmra.mxu0 %v132
  %v454 = vpop.f32.mrf.mxu0
  %v455 = vadd.f32 %v406, %v454
  %v456 = vpop.f32.mrf.mxu0
  %v457 = vpop.f32.mrf.mxu0
  %v458 = vadd.f32 %v409, %v457
  %v459 = vpop.f32.mrf.mxu0
  %460 = vmatprep.mubr.bf16.mxu0 %v138
  %461 = vmatmul.mubr.bf16.gmra.mxu0 %v137
  %v462 = vpop.f32.mrf.mxu0
  %v463 = vadd.f32 %v414, %v462
  %v464 = vpop.f32.mrf.mxu0
  %v465 = vpop.f32.mrf.mxu0
  %v466 = vadd.f32 %v417, %v465
  %v467 = vpop.f32.mrf.mxu0
  %468 = vdwg.mxu0
  %469 = vmatprep.subr.bf16.mxu0 0
  %470 = vmatpush1.bf16.msra.mxu0 0
  %471 = vmatprep.subr.bf16.mxu0 0
  %472 = vmatpush1.bf16.msra.mxu0 0
  %473 = vmatprep.subr.bf16.mxu0 0
  %474 = vmatpush1.bf16.msra.mxu0 0
  %475 = vmatprep.subr.bf16.mxu0 0
  %476 = vmatpush1.bf16.msra.mxu0 0
  %477 = vmatprep.subr.bf16.mxu0 0
  %478 = vmatpush1.bf16.msra.mxu0 %v327
  %479 = vmatprep.subr.bf16.mxu0 0
  %480 = vmatpush1.bf16.msra.mxu0 %v326
  %481 = vmatprep.subr.bf16.mxu0 0
  %482 = vmatpush1.bf16.msra.mxu0 %v325
  %483 = vmatprep.subr.bf16.mxu0 0
  %484 = vmatpush1.bf16.msra.mxu0 %v324
  %485 = vmatprep.subr.bf16.mxu0 0
  %486 = vmatpush2.bf16.msra.mxu0 0
  %487 = vmatprep.subr.bf16.mxu0 0
  %488 = vmatpush2.bf16.msra.mxu0 0
  %489 = vmatprep.subr.bf16.mxu0 0
  %490 = vmatpush2.bf16.msra.mxu0 0
  %491 = vmatprep.subr.bf16.mxu0 0
  %492 = vmatpush2.bf16.msra.mxu0 0
  %493 = vmatprep.subr.bf16.mxu0 0
  %494 = vmatpush2.bf16.msra.mxu0 0
  %495 = vmatprep.subr.bf16.mxu0 0
  %496 = vmatpush2.bf16.msra.mxu0 0
  %497 = vmatprep.subr.bf16.mxu0 0
  %498 = vmatpush2.bf16.msra.mxu0 0
  %499 = vmatprep.subr.bf16.mxu0 0
  %500 = vmatpush2.bf16.msra.mxu0 0
  %501 = vmatprep.mubr.bf16.mxu0 0
  %502 = vmatmul.mubr.bf16.gmra.mxu0 %v366
  %v503 = vpop.f32.mrf.mxu0
  %v504 = vadd.f32 %v455, %v503
  %v505 = vpop.f32.mrf.mxu0
  %v506 = vpop.f32.mrf.mxu0
  %v507 = vadd.f32 %v458, %v506
  %v508 = vpop.f32.mrf.mxu0
  %509 = vmatprep.mubr.bf16.mxu0 0
  %510 = vmatmul.mubr.bf16.gmra.mxu0 %v369
  %v511 = vpop.f32.mrf.mxu0
  %v512 = vadd.f32 %v463, %v511
  %v513 = vpop.f32.mrf.mxu0
  %v514 = vpop.f32.mrf.mxu0
  %v515 = vadd.f32 %v466, %v514
  %v516 = vpop.f32.mrf.mxu0
  %517 = vdwg.mxu0
  %v518 = vpack.c.bf16 %v507, %v504
  %v519 = vpack.c.bf16 %v515, %v512
  %v522 = vunpack.c.l.b16 %v518
  %v523 = vunpack.c.h.b16 %v518
  %v524 = vunpack.c.l.b16 %v519
  %v525 = vunpack.c.h.b16 %v519
  %v526 = vpack.c.b16 %v522, %v522
  %v527 = vpack.c.b16 %v523, %v523
  %v528 = vpack.c.b16 %v524, %v524
  %v529 = vpack.c.b16 %v525, %v525
  %vm534 = vcmask 781312
  %535 = vst.msk [vmem:[%s2] sm:$0xf] %vm534, %v526
  %536 = vst.msk [vmem:[%s2 + $0x4] sm:$0xf] %vm534, %v527
  %537 = vst.msk [vmem:[%s2 + $0x8] sm:$0xf] %vm534, %v528
  %538 = vst.msk [vmem:[%s2 + $0xc] sm:$0xf] %vm534, %v529
  %vm539 = vcmask 785408
  %v540 = vsel %vm539, %v504, 0.0
  %v541 = vsel %vm539, %v507, 0.0
  %v542 = vadd.f32 %v540, %v541
  %v543 = vsel %vm539, %v512, 0.0
  %v544 = vadd.f32 %v542, %v543
  %v545 = vsel %vm539, %v515, 0.0
  %v546 = vadd.f32 %v544, %v545
  %v547 = vrot.slane %v546, 4
  %v548 = vadd.f32 %v546, %v547
  %v549 = vrot.slane %v548, 2
  %v550 = vadd.f32 %v548, %v549
  %v551 = vrot.slane %v550, 1
  %v552 = vadd.f32 %v550, %v551
  %v553 = vmul.f32 %v504, %v504
  %v554 = vmul.f32 %v507, %v507
  %v555 = vmul.f32 %v512, %v512
  %v556 = vmul.f32 %v515, %v515
  %v557 = vsel %vm539, %v553, 0.0
  %v558 = vsel %vm539, %v554, 0.0
  %v559 = vadd.f32 %v557, %v558
  %v560 = vsel %vm539, %v555, 0.0
  %v561 = vadd.f32 %v559, %v560
  %v562 = vsel %vm539, %v556, 0.0
  %v563 = vadd.f32 %v561, %v562
  %v564 = vrot.slane %v563, 4
  %v565 = vadd.f32 %v563, %v564
  %v566 = vrot.slane %v565, 2
  %v567 = vadd.f32 %v565, %v566
  %v568 = vrot.slane %v567, 1
  %v569 = vadd.f32 %v567, %v568
  %vm570 = vcmask 1040384
  %v571 = vsel %vm570, %v552, %v569
  %vm572 = vcmask 779264
  %573 = vst.msk [vmem:[%s3] sm:$0x3] %vm572, %v571
  // Predicated region
  $region10: #{stem_forward.30} parent=0 // pred_check
    _
  $region11: #{stem_forward.30} parent=0 // pred_check_branch
    %575 = sbr.rel (0) target = $region13
  $region12: #{stem_forward.30} parent=0 // pred_region
    _
  $region13: #{stem_forward.30} parent=0 // pred_fallthru
    _
  // Predicated region
  $region14: #{stem_forward.30} parent=0 // pred_check
    _
  $region15: #{stem_forward.30} parent=0 // pred_check_branch
    %577 = sbr.rel (0) target = $region17
  $region16: #{stem_forward.30} parent=0 // pred_region
    _
  $region17: #{stem_forward.30} parent=0 // pred_fallthru
    _
  // Predicated region
  $region18: #{stem_forward.30} parent=0 // pred_check
    _
  $region19: #{stem_forward.30} parent=0 // pred_check_branch
    %579 = sbr.rel (0) target = $region21
  $region20: #{stem_forward.30} parent=0 // pred_region
    _
  $region21: #{stem_forward.30} parent=0 // pred_fallthru
    _
  // Predicated region
  $region22: #{stem_forward.30} parent=0 // pred_check
    _
  $region23: #{stem_forward.30} parent=0 // pred_check_branch
    %581 = sbr.rel (0) target = $region25
  $region24: #{stem_forward.30} parent=0 // pred_region
    _
  $region25: #{stem_forward.30} parent=0 // pred_fallthru
    _

// kernel: stem_forward.32
$region0: #{stem_forward.32}
  #allocation0 [shape = 'u32[]', space=smem, size = 0x4, offset = 0x4, fixed_abs, tag = 'smem constant byte address 0x4 - core index']
  #allocation1 [shape = 'u32[144,128]{1,0:T(1,128)}', space=vmem, size = 0x12000, scoped, tag = 'internal scratch']
  %s0 = inlined_call_operand.vmem [shape: bf16[72,448], index: 0, kind: input, shape index: {}]
  %s1 = inlined_call_operand.vmem [shape: bf16[448,64], index: 1, kind: input, shape index: {}]
  %s2 = inlined_call_operand.vmem [shape: bf16[72,64], index: 2, kind: output, shape index: {0}]
  %s3 = inlined_call_operand.vmem [shape: f32[1,2,64], index: 3, kind: output, shape index: {1}]
  %4 = xla_tuple %s2, %s3
  %s5 = sld [smem:[#allocation0]]
  $region26: #{stem_forward.32} parent=0
    _
  %s7 = ssub.s32 1, %s5
  %s8 = scalar_select 0, %s7, %s5
  // Predicated region
  $region2: #{stem_forward.32} parent=0 // pred_check
    _
  $region3: #{stem_forward.32} parent=0 // pred_check_branch
    %10 = sbr.rel (0) target = $region5
  $region4: #{stem_forward.32} parent=0 // pred_region
    _
  $region5: #{stem_forward.32} parent=0 // pred_fallthru
    _
  // Predicated region
  $region6: #{stem_forward.32} parent=0 // pred_check
    _
  $region7: #{stem_forward.32} parent=0 // pred_check_branch
    %12 = sbr.rel (0) target = $region9
  $region8: #{stem_forward.32} parent=0 // pred_region
    _
  $region9: #{stem_forward.32} parent=0 // pred_fallthru
    _
  %v14 = vld [vmem:[%s0] sm:$0xff]
  %v15 = vld [vmem:[%s0 + $0x8] sm:$0xff]
  %v16 = vld [vmem:[%s0 + $0x10] sm:$0xff]
  %v17 = vld [vmem:[%s0 + $0x18] sm:$0xff]
  %v18 = vld [vmem:[%s0 + $0x20] sm:$0xff]
  %v19 = vld [vmem:[%s0 + $0x28] sm:$0xff]
  %v20 = vld [vmem:[%s0 + $0x30] sm:$0xff]
  %v21 = vld [vmem:[%s0 + $0x38] sm:$0xff]
  %v22 = vld [vmem:[%s0 + $0x40] sm:$0xff]
  %v23 = vld [vmem:[%s0 + $0x48] sm:$0xff]
  %v24 = vld [vmem:[%s0 + $0x50] sm:$0xff]
  %v25 = vld [vmem:[%s0 + $0x58] sm:$0xff]
  %v26 = vld [vmem:[%s0 + $0x60] sm:$0xff]
  %v27 = vld [vmem:[%s0 + $0x68] sm:$0xff]
  %v28 = vld [vmem:[%s0 + $0x70] sm:$0xff]
  %v29 = vld [vmem:[%s0 + $0x78] sm:$0xff]
  %v30 = vld [vmem:[%s0 + $0x80] sm:$0xff]
  %v31 = vld [vmem:[%s0 + $0x88] sm:$0xff]
  %v32 = vld [vmem:[%s1] sm:$0xf]
  %v33 = vld [vmem:[%s1 + $0x4] sm:$0xf]
  %v34 = vld [vmem:[%s1 + $0x8] sm:$0xf]
  %v35 = vld [vmem:[%s1 + $0xc] sm:$0xf]
  %v36 = vld [vmem:[%s1 + $0x10] sm:$0xf]
  %v37 = vld [vmem:[%s1 + $0x14] sm:$0xf]
  %v38 = vld [vmem:[%s1 + $0x18] sm:$0xf]
  %v39 = vld [vmem:[%s1 + $0x1c] sm:$0xf]
  %v40 = vld [vmem:[%s1 + $0x20] sm:$0xf]
  %v41 = vld [vmem:[%s1 + $0x24] sm:$0xf]
  %v42 = vld [vmem:[%s1 + $0x28] sm:$0xf]
  %v43 = vld [vmem:[%s1 + $0x2c] sm:$0xf]
  %v44 = vld [vmem:[%s1 + $0x30] sm:$0xf]
  %v45 = vld [vmem:[%s1 + $0x34] sm:$0xf]
  %v46 = vld [vmem:[%s1 + $0x38] sm:$0xf]
  %v47 = vld [vmem:[%s1 + $0x3c] sm:$0xf]
  %v48 = vld [vmem:[%s1 + $0x40] sm:$0xf]
  %v49 = vld [vmem:[%s1 + $0x44] sm:$0xf]
  %v50 = vld [vmem:[%s1 + $0x48] sm:$0xf]
  %v51 = vld [vmem:[%s1 + $0x4c] sm:$0xf]
  %v52 = vld [vmem:[%s1 + $0x50] sm:$0xf]
  %v53 = vld [vmem:[%s1 + $0x54] sm:$0xf]
  %v54 = vld [vmem:[%s1 + $0x58] sm:$0xf]
  %v55 = vld [vmem:[%s1 + $0x5c] sm:$0xf]
  %v56 = vld [vmem:[%s1 + $0x60] sm:$0xf]
  %v57 = vld [vmem:[%s1 + $0x64] sm:$0xf]
  %v58 = vld [vmem:[%s1 + $0x68] sm:$0xf]
  %v59 = vld [vmem:[%s1 + $0x6c] sm:$0xf]
  %v60 = vld [vmem:[%s1 + $0x70] sm:$0xf]
  %v61 = vld [vmem:[%s1 + $0x74] sm:$0xf]
  %v62 = vld [vmem:[%s1 + $0x78] sm:$0xf]
  %v63 = vld [vmem:[%s1 + $0x7c] sm:$0xf]
  %v64 = vld [vmem:[%s1 + $0x80] sm:$0xf]
  %v65 = vld [vmem:[%s1 + $0x84] sm:$0xf]
  %v66 = vld [vmem:[%s1 + $0x88] sm:$0xf]
  %v67 = vld [vmem:[%s1 + $0x8c] sm:$0xf]
  %v68 = vld [vmem:[%s1 + $0x90] sm:$0xf]
  %v69 = vld [vmem:[%s1 + $0x94] sm:$0xf]
  %v70 = vld [vmem:[%s1 + $0x98] sm:$0xf]
  %v71 = vld [vmem:[%s1 + $0x9c] sm:$0xf]
  %v72 = vld [vmem:[%s1 + $0xa0] sm:$0xf]
  %v73 = vld [vmem:[%s1 + $0xa4] sm:$0xf]
  %v74 = vld [vmem:[%s1 + $0xa8] sm:$0xf]
  %v75 = vld [vmem:[%s1 + $0xac] sm:$0xf]
  %v76 = vld [vmem:[%s1 + $0xb0] sm:$0xf]
  %v77 = vld [vmem:[%s1 + $0xb4] sm:$0xf]
  %v78 = vld [vmem:[%s1 + $0xb8] sm:$0xf]
  %v79 = vld [vmem:[%s1 + $0xbc] sm:$0xf]
  %v80 = vld [vmem:[%s1 + $0xc0] sm:$0xf]
  %v81 = vld [vmem:[%s1 + $0xc4] sm:$0xf]
  %v82 = vld [vmem:[%s1 + $0xc8] sm:$0xf]
  %v83 = vld [vmem:[%s1 + $0xcc] sm:$0xf]
  %v84 = vld [vmem:[%s1 + $0xd0] sm:$0xf]
  %v85 = vld [vmem:[%s1 + $0xd4] sm:$0xf]
  %v86 = vld [vmem:[%s1 + $0xd8] sm:$0xf]
  %v87 = vld [vmem:[%s1 + $0xdc] sm:$0xf]
  %v106 = vunpack.c.l.b16 %v14
  %v107 = vunpack.c.h.b16 %v14
  %v108 = vunpack.c.l.b16 %v15
  %v109 = vunpack.c.h.b16 %v15
  %v110 = vunpack.c.l.b16 %v16
  %v111 = vunpack.c.h.b16 %v16
  %v112 = vunpack.c.l.b16 %v17
  %v113 = vunpack.c.h.b16 %v17
  %v114 = vunpack.c.l.b16 %v18
  %v115 = vunpack.c.h.b16 %v18
  %v116 = vunpack.c.l.b16 %v19
  %v117 = vunpack.c.h.b16 %v19
  %v118 = vunpack.c.l.b16 %v20
  %v119 = vunpack.c.h.b16 %v20
  %v120 = vunpack.c.l.b16 %v21
  %v121 = vunpack.c.h.b16 %v21
  %v122 = vunpack.c.l.b16 %v22
  %v123 = vunpack.c.h.b16 %v22
  %v124 = vunpack.c.l.b16 %v23
  %v125 = vunpack.c.h.b16 %v23
  %v126 = vunpack.c.l.b16 %v24
  %v127 = vunpack.c.h.b16 %v24
  %v128 = vunpack.c.l.b16 %v25
  %v129 = vunpack.c.h.b16 %v25
  %v130 = vunpack.c.l.b16 %v26
  %v131 = vunpack.c.h.b16 %v26
  %v132 = vunpack.c.l.b16 %v27
  %v133 = vunpack.c.h.b16 %v27
  %v134 = vunpack.c.l.b16 %v28
  %v135 = vunpack.c.h.b16 %v28
  %v136 = vunpack.c.l.b16 %v29
  %v137 = vunpack.c.h.b16 %v29
  %v138 = vunpack.c.l.b16 %v30
  %v139 = vunpack.c.h.b16 %v30
  %v140 = vunpack.c.l.b16 %v31
  %v141 = vunpack.c.h.b16 %v31
  %v142 = vpack.c.b16 %v110, %v106
  %v143 = vpack.c.b16 %v111, %v107
  %v144 = vpack.c.b16 %v112, %v108
  %v145 = vpack.c.b16 %v113, %v109
  %v146 = vpack.c.b16 %v118, %v114
  %v147 = vpack.c.b16 %v119, %v115
  %v148 = vpack.c.b16 %v120, %v116
  %v149 = vpack.c.b16 %v121, %v117
  %v150 = vpack.c.b16 %v126, %v122
  %v151 = vpack.c.b16 %v127, %v123
  %v152 = vpack.c.b16 %v128, %v124
  %v153 = vpack.c.b16 %v129, %v125
  %v154 = vpack.c.b16 %v134, %v130
  %v155 = vpack.c.b16 %v135, %v131
  %v156 = vpack.c.b16 %v136, %v132
  %v157 = vpack.c.b16 %v137, %v133
  %v158 = vpack.c.b16 %v138, %v138
  %v159 = vpack.c.b16 %v139, %v139
  %v160 = vpack.c.b16 %v140, %v140
  %v161 = vpack.c.b16 %v141, %v141
  %v233 = vunpack.c.l.b16 %v32
  %v234 = vunpack.c.l.b16 %v33
  %v235 = vunpack.c.l.b16 %v34
  %v236 = vunpack.c.l.b16 %v35
  %v237 = vunpack.c.l.b16 %v36
  %v238 = vunpack.c.l.b16 %v37
  %v239 = vunpack.c.l.b16 %v38
  %v240 = vunpack.c.l.b16 %v39
  %v241 = vunpack.c.l.b16 %v40
  %v242 = vunpack.c.l.b16 %v41
  %v243 = vunpack.c.l.b16 %v42
  %v244 = vunpack.c.l.b16 %v43
  %v245 = vunpack.c.l.b16 %v44
  %v246 = vunpack.c.l.b16 %v45
  %v247 = vunpack.c.l.b16 %v46
  %v248 = vunpack.c.l.b16 %v47
  %v249 = vunpack.c.l.b16 %v48
  %v250 = vunpack.c.l.b16 %v49
  %v251 = vunpack.c.l.b16 %v50
  %v252 = vunpack.c.l.b16 %v51
  %v253 = vunpack.c.l.b16 %v52
  %v254 = vunpack.c.l.b16 %v53
  %v255 = vunpack.c.l.b16 %v54
  %v256 = vunpack.c.l.b16 %v55
  %v257 = vunpack.c.l.b16 %v56
  %v258 = vunpack.c.l.b16 %v57
  %v259 = vunpack.c.l.b16 %v58
  %v260 = vunpack.c.l.b16 %v59
  %v261 = vunpack.c.l.b16 %v60
  %v262 = vunpack.c.l.b16 %v61
  %v263 = vunpack.c.l.b16 %v62
  %v264 = vunpack.c.l.b16 %v63
  %v265 = vunpack.c.l.b16 %v64
  %v266 = vunpack.c.l.b16 %v65
  %v267 = vunpack.c.l.b16 %v66
  %v268 = vunpack.c.l.b16 %v67
  %v269 = vunpack.c.l.b16 %v68
  %v270 = vunpack.c.l.b16 %v69
  %v271 = vunpack.c.l.b16 %v70
  %v272 = vunpack.c.l.b16 %v71
  %v273 = vunpack.c.l.b16 %v72
  %v274 = vunpack.c.l.b16 %v73
  %v275 = vunpack.c.l.b16 %v74
  %v276 = vunpack.c.l.b16 %v75
  %v277 = vunpack.c.l.b16 %v76
  %v278 = vunpack.c.l.b16 %v77
  %v279 = vunpack.c.l.b16 %v78
  %v280 = vunpack.c.l.b16 %v79
  %v281 = vunpack.c.l.b16 %v80
  %v282 = vunpack.c.l.b16 %v81
  %v283 = vunpack.c.l.b16 %v82
  %v284 = vunpack.c.l.b16 %v83
  %v285 = vunpack.c.l.b16 %v84
  %v286 = vunpack.c.l.b16 %v85
  %v287 = vunpack.c.l.b16 %v86
  %v288 = vunpack.c.l.b16 %v87
  %v289 = vpack.c.b16 %v234, %v233
  %v290 = vpack.c.b16 %v236, %v235
  %v291 = vpack.c.b16 %v238, %v237
  %v292 = vpack.c.b16 %v240, %v239
  %v293 = vpack.c.b16 %v242, %v241
  %v294 = vpack.c.b16 %v244, %v243
  %v295 = vpack.c.b16 %v246, %v245
  %v296 = vpack.c.b16 %v248, %v247
  %v297 = vpack.c.b16 %v250, %v249
  %v298 = vpack.c.b16 %v252, %v251
  %v299 = vpack.c.b16 %v254, %v253
  %v300 = vpack.c.b16 %v256, %v255
  %v301 = vpack.c.b16 %v258, %v257
  %v302 = vpack.c.b16 %v260, %v259
  %v303 = vpack.c.b16 %v262, %v261
  %v304 = vpack.c.b16 %v264, %v263
  %v305 = vpack.c.b16 %v266, %v265
  %v306 = vpack.c.b16 %v268, %v267
  %v307 = vpack.c.b16 %v270, %v269
  %v308 = vpack.c.b16 %v272, %v271
  %v309 = vpack.c.b16 %v274, %v273
  %v310 = vpack.c.b16 %v276, %v275
  %v311 = vpack.c.b16 %v278, %v277
  %v312 = vpack.c.b16 %v280, %v279
  %v313 = vpack.c.b16 %v282, %v281
  %v314 = vpack.c.b16 %v284, %v283
  %v315 = vpack.c.b16 %v286, %v285
  %v316 = vpack.c.b16 %v288, %v287
  %vm345 = vcmask 523264
  %v347 = vsel %vm345, %v145, 0
  %v350 = vsel %vm345, %v149, 0
  %v353 = vsel %vm345, %v153, 0
  %v356 = vsel %vm345, %v157, 0
  %v359 = vsel %vm345, %v161, 0
  %361 = vmatprep.subr.bf16.mxu0 0
  %362 = vmatpush1.bf16.msra.mxu0 %v296
  %363 = vmatprep.subr.bf16.mxu0 0
  %364 = vmatpush1.bf16.msra.mxu0 %v295
  %365 = vmatprep.subr.bf16.mxu0 0
  %366 = vmatpush1.bf16.msra.mxu0 %v294
  %367 = vmatprep.subr.bf16.mxu0 0
  %368 = vmatpush1.bf16.msra.mxu0 %v293
  %369 = vmatprep.subr.bf16.mxu0 0
  %370 = vmatpush1.bf16.msra.mxu0 %v292
  %371 = vmatprep.subr.bf16.mxu0 0
  %372 = vmatpush1.bf16.msra.mxu0 %v291
  %373 = vmatprep.subr.bf16.mxu0 0
  %374 = vmatpush1.bf16.msra.mxu0 %v290
  %375 = vmatprep.subr.bf16.mxu0 0
  %376 = vmatpush1.bf16.msra.mxu0 %v289
  %377 = vmatprep.subr.bf16.mxu0 0
  %378 = vmatpush2.bf16.msra.mxu0 %v304
  %379 = vmatprep.subr.bf16.mxu0 0
  %380 = vmatpush2.bf16.msra.mxu0 %v303
  %381 = vmatprep.subr.bf16.mxu0 0
  %382 = vmatpush2.bf16.msra.mxu0 %v302
  %383 = vmatprep.subr.bf16.mxu0 0
  %384 = vmatpush2.bf16.msra.mxu0 %v301
  %385 = vmatprep.subr.bf16.mxu0 0
  %386 = vmatpush2.bf16.msra.mxu0 %v300
  %387 = vmatprep.subr.bf16.mxu0 0
  %388 = vmatpush2.bf16.msra.mxu0 %v299
  %389 = vmatprep.subr.bf16.mxu0 0
  %390 = vmatpush2.bf16.msra.mxu0 %v298
  %391 = vmatprep.subr.bf16.mxu0 0
  %392 = vmatpush2.bf16.msra.mxu0 %v297
  %393 = vmatprep.mubr.bf16.mxu0 %v143
  %394 = vmatmul.mubr.bf16.gmra.mxu0 %v142
  %v395 = vpop.f32.mrf.mxu0
  %v396 = vadd.f32 0.0, %v395
  %v397 = vpop.f32.mrf.mxu0
  %v398 = vpop.f32.mrf.mxu0
  %v399 = vadd.f32 0.0, %v398
  %v400 = vpop.f32.mrf.mxu0
  %401 = vmatprep.mubr.bf16.mxu0 %v147
  %402 = vmatmul.mubr.bf16.gmra.mxu0 %v146
  %v403 = vpop.f32.mrf.mxu0
  %v404 = vadd.f32 0.0, %v403
  %v405 = vpop.f32.mrf.mxu0
  %v406 = vpop.f32.mrf.mxu0
  %v407 = vadd.f32 0.0, %v406
  %v408 = vpop.f32.mrf.mxu0
  %409 = vmatprep.mubr.bf16.mxu0 %v151
  %410 = vmatmul.mubr.bf16.gmra.mxu0 %v150
  %v411 = vpop.f32.mrf.mxu0
  %v412 = vadd.f32 0.0, %v411
  %v413 = vpop.f32.mrf.mxu0
  %v414 = vpop.f32.mrf.mxu0
  %v415 = vadd.f32 0.0, %v414
  %v416 = vpop.f32.mrf.mxu0
  %417 = vmatprep.mubr.bf16.mxu0 %v155
  %418 = vmatmul.mubr.bf16.gmra.mxu0 %v154
  %v419 = vpop.f32.mrf.mxu0
  %v420 = vadd.f32 0.0, %v419
  %v421 = vpop.f32.mrf.mxu0
  %v422 = vpop.f32.mrf.mxu0
  %v423 = vadd.f32 0.0, %v422
  %v424 = vpop.f32.mrf.mxu0
  %425 = vmatprep.mubr.bf16.mxu0 %v159
  %426 = vmatmul.mubr.bf16.gmra.mxu0 %v158
  %v427 = vpop.f32.mrf.mxu0
  %v428 = vadd.f32 0.0, %v427
  %v429 = vpop.f32.mrf.mxu0
  %v430 = vpop.f32.mrf.mxu0
  %v431 = vpop.f32.mrf.mxu0
  %432 = vdwg.mxu0
  %433 = vmatprep.subr.bf16.mxu0 0
  %434 = vmatpush1.bf16.msra.mxu0 %v312
  %435 = vmatprep.subr.bf16.mxu0 0
  %436 = vmatpush1.bf16.msra.mxu0 %v311
  %437 = vmatprep.subr.bf16.mxu0 0
  %438 = vmatpush1.bf16.msra.mxu0 %v310
  %439 = vmatprep.subr.bf16.mxu0 0
  %440 = vmatpush1.bf16.msra.mxu0 %v309
  %441 = vmatprep.subr.bf16.mxu0 0
  %442 = vmatpush1.bf16.msra.mxu0 %v308
  %443 = vmatprep.subr.bf16.mxu0 0
  %444 = vmatpush1.bf16.msra.mxu0 %v307
  %445 = vmatprep.subr.bf16.mxu0 0
  %446 = vmatpush1.bf16.msra.mxu0 %v306
  %447 = vmatprep.subr.bf16.mxu0 0
  %448 = vmatpush1.bf16.msra.mxu0 %v305
  %449 = vmatprep.subr.bf16.mxu0 0
  %450 = vmatpush2.bf16.msra.mxu0 0
  %451 = vmatprep.subr.bf16.mxu0 0
  %452 = vmatpush2.bf16.msra.mxu0 0
  %453 = vmatprep.subr.bf16.mxu0 0
  %454 = vmatpush2.bf16.msra.mxu0 0
  %455 = vmatprep.subr.bf16.mxu0 0
  %456 = vmatpush2.bf16.msra.mxu0 0
  %457 = vmatprep.subr.bf16.mxu0 0
  %458 = vmatpush2.bf16.msra.mxu0 %v316
  %459 = vmatprep.subr.bf16.mxu0 0
  %460 = vmatpush2.bf16.msra.mxu0 %v315
  %461 = vmatprep.subr.bf16.mxu0 0
  %462 = vmatpush2.bf16.msra.mxu0 %v314
  %463 = vmatprep.subr.bf16.mxu0 0
  %464 = vmatpush2.bf16.msra.mxu0 %v313
  %465 = vmatprep.mubr.bf16.mxu0 %v347
  %466 = vmatmul.mubr.bf16.gmra.mxu0 %v144
  %v467 = vpop.f32.mrf.mxu0
  %v468 = vadd.f32 %v396, %v467
  %v469 = vpop.f32.mrf.mxu0
  %v470 = vpop.f32.mrf.mxu0
  %v471 = vadd.f32 %v399, %v470
  %v472 = vpop.f32.mrf.mxu0
  %473 = vmatprep.mubr.bf16.mxu0 %v350
  %474 = vmatmul.mubr.bf16.gmra.mxu0 %v148
  %v475 = vpop.f32.mrf.mxu0
  %v476 = vadd.f32 %v404, %v475
  %v477 = vpop.f32.mrf.mxu0
  %v478 = vpop.f32.mrf.mxu0
  %v479 = vadd.f32 %v407, %v478
  %v480 = vpop.f32.mrf.mxu0
  %481 = vmatprep.mubr.bf16.mxu0 %v353
  %482 = vmatmul.mubr.bf16.gmra.mxu0 %v152
  %v483 = vpop.f32.mrf.mxu0
  %v484 = vadd.f32 %v412, %v483
  %v485 = vpop.f32.mrf.mxu0
  %v486 = vpop.f32.mrf.mxu0
  %v487 = vadd.f32 %v415, %v486
  %v488 = vpop.f32.mrf.mxu0
  %489 = vmatprep.mubr.bf16.mxu0 %v356
  %490 = vmatmul.mubr.bf16.gmra.mxu0 %v156
  %v491 = vpop.f32.mrf.mxu0
  %v492 = vadd.f32 %v420, %v491
  %v493 = vpop.f32.mrf.mxu0
  %v494 = vpop.f32.mrf.mxu0
  %v495 = vadd.f32 %v423, %v494
  %v496 = vpop.f32.mrf.mxu0
  %497 = vmatprep.mubr.bf16.mxu0 %v359
  %498 = vmatmul.mubr.bf16.gmra.mxu0 %v160
  %v499 = vpop.f32.mrf.mxu0
  %v500 = vadd.f32 %v428, %v499
  %v501 = vpop.f32.mrf.mxu0
  %v502 = vpop.f32.mrf.mxu0
  %v503 = vpop.f32.mrf.mxu0
  %504 = vdwg.mxu0
  %v505 = vpack.c.bf16 %v471, %v468
  %v506 = vpack.c.bf16 %v479, %v476
  %v507 = vpack.c.bf16 %v487, %v484
  %v508 = vpack.c.bf16 %v495, %v492
  %v509 = vpack.c.bf16 %v500, %v500
  %v515 = vunpack.c.l.b16 %v505
  %v516 = vunpack.c.h.b16 %v505
  %v517 = vunpack.c.l.b16 %v506
  %v518 = vunpack.c.h.b16 %v506
  %v519 = vunpack.c.l.b16 %v507
  %v520 = vunpack.c.h.b16 %v507
  %v521 = vunpack.c.l.b16 %v508
  %v522 = vunpack.c.h.b16 %v508
  %v523 = vunpack.c.l.b16 %v509
  %v524 = vpack.c.b16 %v515, %v515
  %v525 = vpack.c.b16 %v516, %v516
  %v526 = vpack.c.b16 %v517, %v517
  %v527 = vpack.c.b16 %v518, %v518
  %v528 = vpack.c.b16 %v519, %v519
  %v529 = vpack.c.b16 %v520, %v520
  %v530 = vpack.c.b16 %v521, %v521
  %v531 = vpack.c.b16 %v522, %v522
  %v532 = vpack.c.b16 %v523, %v523
  %vm542 = vcmask 519168
  %543 = vst.msk [vmem:[%s2] sm:$0xf] %vm542, %v524
  %544 = vst.msk [vmem:[%s2 + $0x4] sm:$0xf] %vm542, %v525
  %545 = vst.msk [vmem:[%s2 + $0x8] sm:$0xf] %vm542, %v526
  %546 = vst.msk [vmem:[%s2 + $0xc] sm:$0xf] %vm542, %v527
  %547 = vst.msk [vmem:[%s2 + $0x10] sm:$0xf] %vm542, %v528
  %548 = vst.msk [vmem:[%s2 + $0x14] sm:$0xf] %vm542, %v529
  %549 = vst.msk [vmem:[%s2 + $0x18] sm:$0xf] %vm542, %v530
  %550 = vst.msk [vmem:[%s2 + $0x1c] sm:$0xf] %vm542, %v531
  %551 = vst.msk [vmem:[%s2 + $0x20] sm:$0xf] %vm542, %v532
  %v552 = vsel %vm345, %v468, 0.0
  %v553 = vsel %vm345, %v471, 0.0
  %v554 = vadd.f32 %v552, %v553
  %v555 = vsel %vm345, %v476, 0.0
  %v556 = vadd.f32 %v554, %v555
  %v557 = vsel %vm345, %v479, 0.0
  %v558 = vadd.f32 %v556, %v557
  %v559 = vsel %vm345, %v484, 0.0
  %v560 = vadd.f32 %v558, %v559
  %v561 = vsel %vm345, %v487, 0.0
  %v562 = vadd.f32 %v560, %v561
  %v563 = vsel %vm345, %v492, 0.0
  %v564 = vadd.f32 %v562, %v563
  %v565 = vsel %vm345, %v495, 0.0
  %v566 = vadd.f32 %v564, %v565
  %v567 = vsel %vm345, %v500, 0.0
  %v568 = vadd.f32 %v566, %v567
  %v569 = vrot.slane %v568, 4
  %v570 = vadd.f32 %v568, %v569
  %v571 = vrot.slane %v570, 2
  %v572 = vadd.f32 %v570, %v571
  %v573 = vrot.slane %v572, 1
  %v574 = vadd.f32 %v572, %v573
  %v575 = vmul.f32 %v468, %v468
  %v576 = vmul.f32 %v471, %v471
  %v577 = vmul.f32 %v476, %v476
  %v578 = vmul.f32 %v479, %v479
  %v579 = vmul.f32 %v484, %v484
  %v580 = vmul.f32 %v487, %v487
  %v581 = vmul.f32 %v492, %v492
  %v582 = vmul.f32 %v495, %v495
  %v583 = vmul.f32 %v500, %v500
  %v584 = vsel %vm345, %v575, 0.0
  %v585 = vsel %vm345, %v576, 0.0
  %v586 = vadd.f32 %v584, %v585
  %v587 = vsel %vm345, %v577, 0.0
  %v588 = vadd.f32 %v586, %v587
  %v589 = vsel %vm345, %v578, 0.0
  %v590 = vadd.f32 %v588, %v589
  %v591 = vsel %vm345, %v579, 0.0
  %v592 = vadd.f32 %v590, %v591
  %v593 = vsel %vm345, %v580, 0.0
  %v594 = vadd.f32 %v592, %v593
  %v595 = vsel %vm345, %v581, 0.0
  %v596 = vadd.f32 %v594, %v595
  %v597 = vsel %vm345, %v582, 0.0
  %v598 = vadd.f32 %v596, %v597
  %v599 = vsel %vm345, %v583, 0.0
  %v600 = vadd.f32 %v598, %v599
  %v601 = vrot.slane %v600, 4
  %v602 = vadd.f32 %v600, %v601
  %v603 = vrot.slane %v602, 2
  %v604 = vadd.f32 %v602, %v603
  %v605 = vrot.slane %v604, 1
  %v606 = vadd.f32 %v604, %v605
  %vm607 = vcmask 1040384
  %v608 = vsel %vm607, %v574, %v606
  %vm609 = vcmask 517120
  %610 = vst.msk [vmem:[%s3] sm:$0x3] %vm609, %v608
  // Predicated region
  $region10: #{stem_forward.32} parent=0 // pred_check
    _
  $region11: #{stem_forward.32} parent=0 // pred_check_branch
    %612 = sbr.rel (0) target = $region13
  $region12: #{stem_forward.32} parent=0 // pred_region
    _
  $region13: #{stem_forward.32} parent=0 // pred_fallthru
    _
  // Predicated region
  $region14: #{stem_forward.32} parent=0 // pred_check
    _
  $region15: #{stem_forward.32} parent=0 // pred_check_branch
    %614 = sbr.rel (0) target = $region17
  $region16: #{stem_forward.32} parent=0 // pred_region
    _
  $region17: #{stem_forward.32} parent=0 // pred_fallthru
    _
  // Predicated region
  $region18: #{stem_forward.32} parent=0 // pred_check
    _
  $region19: #{stem_forward.32} parent=0 // pred_check_branch
    %616 = sbr.rel (0) target = $region21
  $region20: #{stem_forward.32} parent=0 // pred_region
    _
  $region21: #{stem_forward.32} parent=0 // pred_fallthru
    _
  // Predicated region
  $region22: #{stem_forward.32} parent=0 // pred_check
    _
  $region23: #{stem_forward.32} parent=0 // pred_check_branch
    %618 = sbr.rel (0) target = $region25
  $region24: #{stem_forward.32} parent=0 // pred_region
    _
  $region25: #{stem_forward.32} parent=0 // pred_fallthru
    _

// kernel: stem_forward.33
$region0: #{stem_forward.33}
  #allocation0 [shape = 'u32[]', space=smem, size = 0x4, offset = 0x4, fixed_abs, tag = 'smem constant byte address 0x4 - core index']
  #allocation1 [shape = 'u32[144,128]{1,0:T(1,128)}', space=vmem, size = 0x12000, scoped, tag = 'internal scratch']
  %s0 = inlined_call_operand.vmem [shape: bf16[72,64], index: 0, kind: input, shape index: {}]
  %s1 = inlined_call_operand.vmem [shape: f32[1,64], index: 1, kind: input, shape index: {}]
  %s2 = inlined_call_operand.vmem [shape: f32[1,64], index: 2, kind: input, shape index: {}]
  %s3 = inlined_call_operand.vmem [shape: bf16[72,64], index: 3, kind: output, shape index: {}]
  %s4 = sld [smem:[#allocation0]]
  $region22: #{stem_forward.33} parent=0
    _
  %s6 = ssub.s32 1, %s4
  %s7 = scalar_select 0, %s6, %s4
  // Predicated region
  $region2: #{stem_forward.33} parent=0 // pred_check
    _
  $region3: #{stem_forward.33} parent=0 // pred_check_branch
    %9 = sbr.rel (0) target = $region5
  $region4: #{stem_forward.33} parent=0 // pred_region
    _
  $region5: #{stem_forward.33} parent=0 // pred_fallthru
    _
  // Predicated region
  $region6: #{stem_forward.33} parent=0 // pred_check
    _
  $region7: #{stem_forward.33} parent=0 // pred_check_branch
    %11 = sbr.rel (0) target = $region9
  $region8: #{stem_forward.33} parent=0 // pred_region
    _
  $region9: #{stem_forward.33} parent=0 // pred_fallthru
    _
  // Predicated region
  $region10: #{stem_forward.33} parent=0 // pred_check
    _
  $region11: #{stem_forward.33} parent=0 // pred_check_branch
    %13 = sbr.rel (0) target = $region13
  $region12: #{stem_forward.33} parent=0 // pred_region
    _
  $region13: #{stem_forward.33} parent=0 // pred_fallthru
    _
  %v14 = vld [vmem:[%s0] sm:$0xf]
  %v15 = vld [vmem:[%s0 + $0x4] sm:$0xf]
  %v16 = vld [vmem:[%s0 + $0x8] sm:$0xf]
  %v17 = vld [vmem:[%s0 + $0xc] sm:$0xf]
  %v18 = vld [vmem:[%s0 + $0x10] sm:$0xf]
  %v19 = vld [vmem:[%s0 + $0x14] sm:$0xf]
  %v20 = vld [vmem:[%s0 + $0x18] sm:$0xf]
  %v21 = vld [vmem:[%s0 + $0x1c] sm:$0xf]
  %v22 = vld [vmem:[%s0 + $0x20] sm:$0xf]
  %v23 = vunpack.c.l.bf16 %v14
  %v24 = vunpack.c.l.bf16 %v15
  %v25 = vunpack.c.l.bf16 %v16
  %v26 = vunpack.c.l.bf16 %v17
  %v27 = vunpack.c.l.bf16 %v18
  %v28 = vunpack.c.l.bf16 %v19
  %v29 = vunpack.c.l.bf16 %v20
  %v30 = vunpack.c.l.bf16 %v21
  %v31 = vunpack.c.l.bf16 %v22
  %v32 = vld [vmem:[%s1] sm:$0x1]
  %v34 = vlaneseq
  %v35 = vshrl.u32 %v34, 7
  %v36 = vsub.s32 0, %v35
  %v37 = vrot.slane %v32, %v36
  %v39 = vmul.f32 %v23, %v37
  %v40 = vmul.f32 %v24, %v37
  %v41 = vmul.f32 %v25, %v37
  %v42 = vmul.f32 %v26, %v37
  %v43 = vmul.f32 %v27, %v37
  %v44 = vmul.f32 %v28, %v37
  %v45 = vmul.f32 %v29, %v37
  %v46 = vmul.f32 %v30, %v37
  %v47 = vmul.f32 %v31, %v37
  %v48 = vld [vmem:[%s2] sm:$0x1]
  %v50 = vlaneseq
  %v51 = vshrl.u32 %v50, 7
  %v52 = vsub.s32 0, %v51
  %v53 = vrot.slane %v48, %v52
  %v55 = vadd.f32 %v39, %v53
  %v56 = vadd.f32 %v40, %v53
  %v57 = vadd.f32 %v41, %v53
  %v58 = vadd.f32 %v42, %v53
  %v59 = vadd.f32 %v43, %v53
  %v60 = vadd.f32 %v44, %v53
  %v61 = vadd.f32 %v45, %v53
  %v62 = vadd.f32 %v46, %v53
  %v63 = vadd.f32 %v47, %v53
  %v64 = vmax.f32 %v55, 0.0
  %v65 = vmax.f32 %v56, 0.0
  %v66 = vmax.f32 %v57, 0.0
  %v67 = vmax.f32 %v58, 0.0
  %v68 = vmax.f32 %v59, 0.0
  %v69 = vmax.f32 %v60, 0.0
  %v70 = vmax.f32 %v61, 0.0
  %v71 = vmax.f32 %v62, 0.0
  %v72 = vmax.f32 %v63, 0.0
  %v73 = vpack.c.bf16 %v65, %v64
  %v74 = vpack.c.bf16 %v67, %v66
  %v75 = vpack.c.bf16 %v69, %v68
  %v76 = vpack.c.bf16 %v71, %v70
  %v77 = vpack.c.bf16 %v72, %v72
  %v83 = vunpack.c.l.b16 %v73
  %v84 = vunpack.c.h.b16 %v73
  %v85 = vunpack.c.l.b16 %v74
  %v86 = vunpack.c.h.b16 %v74
  %v87 = vunpack.c.l.b16 %v75
  %v88 = vunpack.c.h.b16 %v75
  %v89 = vunpack.c.l.b16 %v76
  %v90 = vunpack.c.h.b16 %v76
  %v91 = vunpack.c.l.b16 %v77
  %v92 = vpack.c.b16 %v83, %v83
  %v93 = vpack.c.b16 %v84, %v84
  %v94 = vpack.c.b16 %v85, %v85
  %v95 = vpack.c.b16 %v86, %v86
  %v96 = vpack.c.b16 %v87, %v87
  %v97 = vpack.c.b16 %v88, %v88
  %v98 = vpack.c.b16 %v89, %v89
  %v99 = vpack.c.b16 %v90, %v90
  %v100 = vpack.c.b16 %v91, %v91
  %vm110 = vcmask 519168
  %111 = vst.msk [vmem:[%s3] sm:$0xf] %vm110, %v92
  %112 = vst.msk [vmem:[%s3 + $0x4] sm:$0xf] %vm110, %v93
  %113 = vst.msk [vmem:[%s3 + $0x8] sm:$0xf] %vm110, %v94
  %114 = vst.msk [vmem:[%s3 + $0xc] sm:$0xf] %vm110, %v95
  %115 = vst.msk [vmem:[%s3 + $0x10] sm:$0xf] %vm110, %v96
  %116 = vst.msk [vmem:[%s3 + $0x14] sm:$0xf] %vm110, %v97
  %117 = vst.msk [vmem:[%s3 + $0x18] sm:$0xf] %vm110, %v98
  %118 = vst.msk [vmem:[%s3 + $0x1c] sm:$0xf] %vm110, %v99
  %119 = vst.msk [vmem:[%s3 + $0x20] sm:$0xf] %vm110, %v100
  // Predicated region
  $region14: #{stem_forward.33} parent=0 // pred_check
    _
  $region15: #{stem_forward.33} parent=0 // pred_check_branch
    %121 = sbr.rel (0) target = $region17
  $region16: #{stem_forward.33} parent=0 // pred_region
    _
  $region17: #{stem_forward.33} parent=0 // pred_fallthru
    _
  // Predicated region
  $region18: #{stem_forward.33} parent=0 // pred_check
    _
  $region19: #{stem_forward.33} parent=0 // pred_check_branch
    %123 = sbr.rel (0) target = $region21
  $region20: #{stem_forward.33} parent=0 // pred_region
    _
  $region21: #{stem_forward.33} parent=0 // pred_fallthru
    _

// kernel: stem_forward.39
$region0: #{stem_forward.39}
  #allocation0 [shape = 'u32[]', space=smem, size = 0x4, offset = 0x4, fixed_abs, tag = 'smem constant byte address 0x4 - core index']
  #allocation1 [shape = 'u32[144,128]{1,0:T(1,128)}', space=vmem, size = 0x12000, scoped, tag = 'internal scratch']
  %s0 = inlined_call_operand.vmem [shape: bf16[8,192], index: 0, kind: input, shape index: {}]
  %s1 = inlined_call_operand.vmem [shape: f32[1,192], index: 1, kind: input, shape index: {}]
  %s2 = inlined_call_operand.vmem [shape: f32[1,192], index: 2, kind: input, shape index: {}]
  %s3 = inlined_call_operand.vmem [shape: bf16[8,192], index: 3, kind: output, shape index: {}]
  %s4 = sld [smem:[#allocation0]]
  $region22: #{stem_forward.39} parent=0
    _
  %s6 = ssub.s32 1, %s4
  %s7 = scalar_select 0, %s6, %s4
  // Predicated region
  $region2: #{stem_forward.39} parent=0 // pred_check
    _
  $region3: #{stem_forward.39} parent=0 // pred_check_branch
    %9 = sbr.rel (0) target = $region5
  $region4: #{stem_forward.39} parent=0 // pred_region
    _
  $region5: #{stem_forward.39} parent=0 // pred_fallthru
    _
  // Predicated region
  $region6: #{stem_forward.39} parent=0 // pred_check
    _
  $region7: #{stem_forward.39} parent=0 // pred_check_branch
    %11 = sbr.rel (0) target = $region9
  $region8: #{stem_forward.39} parent=0 // pred_region
    _
  $region9: #{stem_forward.39} parent=0 // pred_fallthru
    _
  // Predicated region
  $region10: #{stem_forward.39} parent=0 // pred_check
    _
  $region11: #{stem_forward.39} parent=0 // pred_check_branch
    %13 = sbr.rel (0) target = $region13
  $region12: #{stem_forward.39} parent=0 // pred_region
    _
  $region13: #{stem_forward.39} parent=0 // pred_fallthru
    _
  %v14 = vld [vmem:[%s0] sm:$0xff]
  %v15 = vunpack.c.l.bf16 %v14
  %v16 = vunpack.c.h.bf16 %v14
  %v17 = vld [vmem:[%s1] sm:$0x3]
  %v19 = vlaneseq
  %v20 = vshrl.u32 %v19, 7
  %v21 = vsub.s32 0, %v20
  %v22 = vrot.slane %v17, %v21
  %v23 = vlaneseq
  %v24 = vshrl.u32 %v23, 7
  %v25 = vsub.s32 1, %v24
  %v26 = vrot.slane %v17, %v25
  %v29 = vmul.f32 %v15, %v22
  %v30 = vmul.f32 %v16, %v26
  %v31 = vld [vmem:[%s2] sm:$0x3]
  %v33 = vlaneseq
  %v34 = vshrl.u32 %v33, 7
  %v35 = vsub.s32 0, %v34
  %v36 = vrot.slane %v31, %v35
  %v37 = vlaneseq
  %v38 = vshrl.u32 %v37, 7
  %v39 = vsub.s32 1, %v38
  %v40 = vrot.slane %v31, %v39
  %v43 = vadd.f32 %v29, %v36
  %v44 = vadd.f32 %v30, %v40
  %v45 = vmax.f32 %v43, 0.0
  %v46 = vmax.f32 %v44, 0.0
  %v47 = vpack.c.bf16 %v45, %v45
  %v48 = vpack.c.bf16 %v46, %v46
  %v51 = vunpack.c.l.b16 %v47
  %v52 = vunpack.c.l.b16 %v48
  %v53 = vpack.c.b16 %v52, %v51
  %vm55 = vcmask 1043456
  %vm56 = vcmask 523268
  %vm57 = vmor %vm56, %vm55
  %58 = vst.msk [vmem:[%s3] sm:$0xff] %vm57, %v53
  // Predicated region
  $region14: #{stem_forward.39} parent=0 // pred_check
    _
  $region15: #{stem_forward.39} parent=0 // pred_check_branch
    %60 = sbr.rel (0) target = $region17
  $region16: #{stem_forward.39} parent=0 // pred_region
    _
  $region17: #{stem_forward.39} parent=0 // pred_fallthru
    _
  // Predicated region
  $region18: #{stem_forward.39} parent=0 // pred_check
    _
  $region19: #{stem_forward.39} parent=0 // pred_check_branch
    %62 = sbr.rel (0) target = $region21
  $region20: #{stem_forward.39} parent=0 // pred_region
    _
  $region21: #{stem_forward.39} parent=0 // pred_fallthru
    _

// kernel: stem_forward.38
$region0: #{stem_forward.38}
  #allocation0 [shape = 'u32[]', space=smem, size = 0x4, offset = 0x4, fixed_abs, tag = 'smem constant byte address 0x4 - core index']
  #allocation1 [shape = 'u32[144,128]{1,0:T(1,128)}', space=vmem, size = 0x12000, scoped, tag = 'internal scratch']
  %s0 = inlined_call_operand.vmem [shape: bf16[8,1728], index: 0, kind: input, shape index: {}]
  %s1 = inlined_call_operand.vmem [shape: bf16[1728,192], index: 1, kind: input, shape index: {}]
  %s2 = inlined_call_operand.vmem [shape: bf16[8,192], index: 2, kind: output, shape index: {0}]
  %s3 = inlined_call_operand.vmem [shape: f32[1,2,192], index: 3, kind: output, shape index: {1}]
  %4 = xla_tuple %s2, %s3
  %s5 = sld [smem:[#allocation0]]
  $region26: #{stem_forward.38} parent=0
    _
  %s7 = ssub.s32 1, %s5
  %s8 = scalar_select 0, %s7, %s5
  // Predicated region
  $region2: #{stem_forward.38} parent=0 // pred_check
    _
  $region3: #{stem_forward.38} parent=0 // pred_check_branch
    %10 = sbr.rel (0) target = $region5
  $region4: #{stem_forward.38} parent=0 // pred_region
    _
  $region5: #{stem_forward.38} parent=0 // pred_fallthru
    _
  // Predicated region
  $region6: #{stem_forward.38} parent=0 // pred_check
    _
  $region7: #{stem_forward.38} parent=0 // pred_check_branch
    %12 = sbr.rel (0) target = $region9
  $region8: #{stem_forward.38} parent=0 // pred_region
    _
  $region9: #{stem_forward.38} parent=0 // pred_fallthru
    _
  %v14 = vld [vmem:[%s0] sm:$0xff]
  %v15 = vld [vmem:[%s0 + $0x8] sm:$0xff]
  %v16 = vld [vmem:[%s0 + $0x10] sm:$0xff]
  %v17 = vld [vmem:[%s0 + $0x18] sm:$0xff]
  %v18 = vld [vmem:[%s0 + $0x20] sm:$0xff]
  %v19 = vld [vmem:[%s0 + $0x28] sm:$0xff]
  %v20 = vld [vmem:[%s0 + $0x30] sm:$0xff]
  %v21 = vld [vmem:[%s1] sm:$0xff]
  %v22 = vld [vmem:[%s1 + $0x8] sm:$0xff]
  %v23 = vld [vmem:[%s1 + $0x10] sm:$0xff]
  %v24 = vld [vmem:[%s1 + $0x18] sm:$0xff]
  %v25 = vld [vmem:[%s1 + $0x20] sm:$0xff]
  %v26 = vld [vmem:[%s1 + $0x28] sm:$0xff]
  %v27 = vld [vmem:[%s1 + $0x30] sm:$0xff]
  %v28 = vld [vmem:[%s1 + $0x38] sm:$0xff]
  %v29 = vld [vmem:[%s1 + $0x40] sm:$0xff]
  %v30 = vld [vmem:[%s1 + $0x48] sm:$0xff]
  %v31 = vld [vmem:[%s1 + $0x50] sm:$0xff]
  %v32 = vld [vmem:[%s1 + $0x58] sm:$0xff]
  %v33 = vld [vmem:[%s1 + $0x60] sm:$0xff]
  %v34 = vld [vmem:[%s1 + $0x68] sm:$0xff]
  %v35 = vld [vmem:[%s1 + $0x70] sm:$0xff]
  %v36 = vld [vmem:[%s1 + $0x78] sm:$0xff]
  %v37 = vld [vmem:[%s1 + $0x80] sm:$0xff]
  %v38 = vld [vmem:[%s1 + $0x88] sm:$0xff]
  %v39 = vld [vmem:[%s1 + $0x90] sm:$0xff]
  %v40 = vld [vmem:[%s1 + $0x98] sm:$0xff]
  %v41 = vld [vmem:[%s1 + $0xa0] sm:$0xff]
  %v42 = vld [vmem:[%s1 + $0xa8] sm:$0xff]
  %v43 = vld [vmem:[%s1 + $0xb0] sm:$0xff]
  %v44 = vld [vmem:[%s1 + $0xb8] sm:$0xff]
  %v45 = vld [vmem:[%s1 + $0xc0] sm:$0xff]
  %v46 = vld [vmem:[%s1 + $0xc8] sm:$0xff]
  %v47 = vld [vmem:[%s1 + $0xd0] sm:$0xff]
  %v48 = vld [vmem:[%s1 + $0xd8] sm:$0xff]
  %v49 = vld [vmem:[%s1 + $0xe0] sm:$0xff]
  %v50 = vld [vmem:[%s1 + $0xe8] sm:$0xff]
  %v51 = vld [vmem:[%s1 + $0xf0] sm:$0xff]
  %v52 = vld [vmem:[%s1 + $0xf8] sm:$0xff]
  %v53 = vld [vmem:[%s1 + $0x100] sm:$0xff]
  %v54 = vld [vmem:[%s1 + $0x108] sm:$0xff]
  %v55 = vld [vmem:[%s1 + $0x110] sm:$0xff]
  %v56 = vld [vmem:[%s1 + $0x118] sm:$0xff]
  %v57 = vld [vmem:[%s1 + $0x120] sm:$0xff]
  %v58 = vld [vmem:[%s1 + $0x128] sm:$0xff]
  %v59 = vld [vmem:[%s1 + $0x130] sm:$0xff]
  %v60 = vld [vmem:[%s1 + $0x138] sm:$0xff]
  %v61 = vld [vmem:[%s1 + $0x140] sm:$0xff]
  %v62 = vld [vmem:[%s1 + $0x148] sm:$0xff]
  %v63 = vld [vmem:[%s1 + $0x150] sm:$0xff]
  %v64 = vld [vmem:[%s1 + $0x158] sm:$0xff]
  %v65 = vld [vmem:[%s1 + $0x160] sm:$0xff]
  %v66 = vld [vmem:[%s1 + $0x168] sm:$0xff]
  %v67 = vld [vmem:[%s1 + $0x170] sm:$0xff]
  %v68 = vld [vmem:[%s1 + $0x178] sm:$0xff]
  %v69 = vld [vmem:[%s1 + $0x180] sm:$0xff]
  %v70 = vld [vmem:[%s1 + $0x188] sm:$0xff]
  %v71 = vld [vmem:[%s1 + $0x190] sm:$0xff]
  %v72 = vld [vmem:[%s1 + $0x198] sm:$0xff]
  %v73 = vld [vmem:[%s1 + $0x1a0] sm:$0xff]
  %v74 = vld [vmem:[%s1 + $0x1a8] sm:$0xff]
  %v75 = vld [vmem:[%s1 + $0x1b0] sm:$0xff]
  %v76 = vld [vmem:[%s1 + $0x1b8] sm:$0xff]
  %v77 = vld [vmem:[%s1 + $0x1c0] sm:$0xff]
  %v78 = vld [vmem:[%s1 + $0x1c8] sm:$0xff]
  %v79 = vld [vmem:[%s1 + $0x1d0] sm:$0xff]
  %v80 = vld [vmem:[%s1 + $0x1d8] sm:$0xff]
  %v81 = vld [vmem:[%s1 + $0x1e0] sm:$0xff]
  %v82 = vld [vmem:[%s1 + $0x1e8] sm:$0xff]
  %v83 = vld [vmem:[%s1 + $0x1f0] sm:$0xff]
  %v84 = vld [vmem:[%s1 + $0x1f8] sm:$0xff]
  %v85 = vld [vmem:[%s1 + $0x200] sm:$0xff]
  %v86 = vld [vmem:[%s1 + $0x208] sm:$0xff]
  %v87 = vld [vmem:[%s1 + $0x210] sm:$0xff]
  %v88 = vld [vmem:[%s1 + $0x218] sm:$0xff]
  %v89 = vld [vmem:[%s1 + $0x220] sm:$0xff]
  %v90 = vld [vmem:[%s1 + $0x228] sm:$0xff]
  %v91 = vld [vmem:[%s1 + $0x230] sm:$0xff]
  %v92 = vld [vmem:[%s1 + $0x238] sm:$0xff]
  %v93 = vld [vmem:[%s1 + $0x240] sm:$0xff]
  %v94 = vld [vmem:[%s1 + $0x248] sm:$0xff]
  %v95 = vld [vmem:[%s1 + $0x250] sm:$0xff]
  %v96 = vld [vmem:[%s1 + $0x258] sm:$0xff]
  %v97 = vld [vmem:[%s1 + $0x260] sm:$0xff]
  %v98 = vld [vmem:[%s1 + $0x268] sm:$0xff]
  %v99 = vld [vmem:[%s1 + $0x270] sm:$0xff]
  %v100 = vld [vmem:[%s1 + $0x278] sm:$0xff]
  %v101 = vld [vmem:[%s1 + $0x280] sm:$0xff]
  %v102 = vld [vmem:[%s1 + $0x288] sm:$0xff]
  %v103 = vld [vmem:[%s1 + $0x290] sm:$0xff]
  %v104 = vld [vmem:[%s1 + $0x298] sm:$0xff]
  %v105 = vld [vmem:[%s1 + $0x2a0] sm:$0xff]
  %v106 = vld [vmem:[%s1 + $0x2a8] sm:$0xff]
  %v107 = vld [vmem:[%s1 + $0x2b0] sm:$0xff]
  %v108 = vld [vmem:[%s1 + $0x2b8] sm:$0xff]
  %v109 = vld [vmem:[%s1 + $0x2c0] sm:$0xff]
  %v110 = vld [vmem:[%s1 + $0x2c8] sm:$0xff]
  %v111 = vld [vmem:[%s1 + $0x2d0] sm:$0xff]
  %v112 = vld [vmem:[%s1 + $0x2d8] sm:$0xff]
  %v113 = vld [vmem:[%s1 + $0x2e0] sm:$0xff]
  %v114 = vld [vmem:[%s1 + $0x2e8] sm:$0xff]
  %v115 = vld [vmem:[%s1 + $0x2f0] sm:$0xff]
  %v116 = vld [vmem:[%s1 + $0x2f8] sm:$0xff]
  %v117 = vld [vmem:[%s1 + $0x300] sm:$0xff]
  %v118 = vld [vmem:[%s1 + $0x308] sm:$0xff]
  %v119 = vld [vmem:[%s1 + $0x310] sm:$0xff]
  %v120 = vld [vmem:[%s1 + $0x318] sm:$0xff]
  %v121 = vld [vmem:[%s1 + $0x320] sm:$0xff]
  %v122 = vld [vmem:[%s1 + $0x328] sm:$0xff]
  %v123 = vld [vmem:[%s1 + $0x330] sm:$0xff]
  %v124 = vld [vmem:[%s1 + $0x338] sm:$0xff]
  %v125 = vld [vmem:[%s1 + $0x340] sm:$0xff]
  %v126 = vld [vmem:[%s1 + $0x348] sm:$0xff]
  %v127 = vld [vmem:[%s1 + $0x350] sm:$0xff]
  %v128 = vld [vmem:[%s1 + $0x358] sm:$0xff]
  %v129 = vld [vmem:[%s1 + $0x360] sm:$0xff]
  %v130 = vld [vmem:[%s1 + $0x368] sm:$0xff]
  %v131 = vld [vmem:[%s1 + $0x370] sm:$0xff]
  %v132 = vld [vmem:[%s1 + $0x378] sm:$0xff]
  %v133 = vld [vmem:[%s1 + $0x380] sm:$0xff]
  %v134 = vld [vmem:[%s1 + $0x388] sm:$0xff]
  %v135 = vld [vmem:[%s1 + $0x390] sm:$0xff]
  %v136 = vld [vmem:[%s1 + $0x398] sm:$0xff]
  %v137 = vld [vmem:[%s1 + $0x3a0] sm:$0xff]
  %v138 = vld [vmem:[%s1 + $0x3a8] sm:$0xff]
  %v139 = vld [vmem:[%s1 + $0x3b0] sm:$0xff]
  %v140 = vld [vmem:[%s1 + $0x3b8] sm:$0xff]
  %v141 = vld [vmem:[%s1 + $0x3c0] sm:$0xff]
  %v142 = vld [vmem:[%s1 + $0x3c8] sm:$0xff]
  %v143 = vld [vmem:[%s1 + $0x3d0] sm:$0xff]
  %v144 = vld [vmem:[%s1 + $0x3d8] sm:$0xff]
  %v145 = vld [vmem:[%s1 + $0x3e0] sm:$0xff]
  %v146 = vld [vmem:[%s1 + $0x3e8] sm:$0xff]
  %v147 = vld [vmem:[%s1 + $0x3f0] sm:$0xff]
  %v148 = vld [vmem:[%s1 + $0x3f8] sm:$0xff]
  %v149 = vld [vmem:[%s1 + $0x400] sm:$0xff]
  %v150 = vld [vmem:[%s1 + $0x408] sm:$0xff]
  %v151 = vld [vmem:[%s1 + $0x410] sm:$0xff]
  %v152 = vld [vmem:[%s1 + $0x418] sm:$0xff]
  %v153 = vld [vmem:[%s1 + $0x420] sm:$0xff]
  %v154 = vld [vmem:[%s1 + $0x428] sm:$0xff]
  %v155 = vld [vmem:[%s1 + $0x430] sm:$0xff]
  %v156 = vld [vmem:[%s1 + $0x438] sm:$0xff]
  %v157 = vld [vmem:[%s1 + $0x440] sm:$0xff]
  %v158 = vld [vmem:[%s1 + $0x448] sm:$0xff]
  %v159 = vld [vmem:[%s1 + $0x450] sm:$0xff]
  %v160 = vld [vmem:[%s1 + $0x458] sm:$0xff]
  %v161 = vld [vmem:[%s1 + $0x460] sm:$0xff]
  %v162 = vld [vmem:[%s1 + $0x468] sm:$0xff]
  %v163 = vld [vmem:[%s1 + $0x470] sm:$0xff]
  %v164 = vld [vmem:[%s1 + $0x478] sm:$0xff]
  %v165 = vld [vmem:[%s1 + $0x480] sm:$0xff]
  %v166 = vld [vmem:[%s1 + $0x488] sm:$0xff]
  %v167 = vld [vmem:[%s1 + $0x490] sm:$0xff]
  %v168 = vld [vmem:[%s1 + $0x498] sm:$0xff]
  %v169 = vld [vmem:[%s1 + $0x4a0] sm:$0xff]
  %v170 = vld [vmem:[%s1 + $0x4a8] sm:$0xff]
  %v171 = vld [vmem:[%s1 + $0x4b0] sm:$0xff]
  %v172 = vld [vmem:[%s1 + $0x4b8] sm:$0xff]
  %v173 = vld [vmem:[%s1 + $0x4c0] sm:$0xff]
  %v174 = vld [vmem:[%s1 + $0x4c8] sm:$0xff]
  %v175 = vld [vmem:[%s1 + $0x4d0] sm:$0xff]
  %v176 = vld [vmem:[%s1 + $0x4d8] sm:$0xff]
  %v177 = vld [vmem:[%s1 + $0x4e0] sm:$0xff]
  %v178 = vld [vmem:[%s1 + $0x4e8] sm:$0xff]
  %v179 = vld [vmem:[%s1 + $0x4f0] sm:$0xff]
  %v180 = vld [vmem:[%s1 + $0x4f8] sm:$0xff]
  %v181 = vld [vmem:[%s1 + $0x500] sm:$0xff]
  %v182 = vld [vmem:[%s1 + $0x508] sm:$0xff]
  %v183 = vld [vmem:[%s1 + $0x510] sm:$0xff]
  %v184 = vld [vmem:[%s1 + $0x518] sm:$0xff]
  %v185 = vld [vmem:[%s1 + $0x520] sm:$0xff]
  %v186 = vld [vmem:[%s1 + $0x528] sm:$0xff]
  %v187 = vld [vmem:[%s1 + $0x530] sm:$0xff]
  %v188 = vld [vmem:[%s1 + $0x538] sm:$0xff]
  %v189 = vld [vmem:[%s1 + $0x540] sm:$0xff]
  %v190 = vld [vmem:[%s1 + $0x548] sm:$0xff]
  %v191 = vld [vmem:[%s1 + $0x550] sm:$0xff]
  %v192 = vld [vmem:[%s1 + $0x558] sm:$0xff]
  %v193 = vld [vmem:[%s1 + $0x560] sm:$0xff]
  %v194 = vld [vmem:[%s1 + $0x568] sm:$0xff]
  %v195 = vld [vmem:[%s1 + $0x570] sm:$0xff]
  %v196 = vld [vmem:[%s1 + $0x578] sm:$0xff]
  %v197 = vld [vmem:[%s1 + $0x580] sm:$0xff]
  %v198 = vld [vmem:[%s1 + $0x588] sm:$0xff]
  %v199 = vld [vmem:[%s1 + $0x590] sm:$0xff]
  %v200 = vld [vmem:[%s1 + $0x598] sm:$0xff]
  %v201 = vld [vmem:[%s1 + $0x5a0] sm:$0xff]
  %v202 = vld [vmem:[%s1 + $0x5a8] sm:$0xff]
  %v203 = vld [vmem:[%s1 + $0x5b0] sm:$0xff]
  %v204 = vld [vmem:[%s1 + $0x5b8] sm:$0xff]
  %v205 = vld [vmem:[%s1 + $0x5c0] sm:$0xff]
  %v206 = vld [vmem:[%s1 + $0x5c8] sm:$0xff]
  %v207 = vld [vmem:[%s1 + $0x5d0] sm:$0xff]
  %v208 = vld [vmem:[%s1 + $0x5d8] sm:$0xff]
  %v209 = vld [vmem:[%s1 + $0x5e0] sm:$0xff]
  %v210 = vld [vmem:[%s1 + $0x5e8] sm:$0xff]
  %v211 = vld [vmem:[%s1 + $0x5f0] sm:$0xff]
  %v212 = vld [vmem:[%s1 + $0x5f8] sm:$0xff]
  %v213 = vld [vmem:[%s1 + $0x600] sm:$0xff]
  %v214 = vld [vmem:[%s1 + $0x608] sm:$0xff]
  %v215 = vld [vmem:[%s1 + $0x610] sm:$0xff]
  %v216 = vld [vmem:[%s1 + $0x618] sm:$0xff]
  %v217 = vld [vmem:[%s1 + $0x620] sm:$0xff]
  %v218 = vld [vmem:[%s1 + $0x628] sm:$0xff]
  %v219 = vld [vmem:[%s1 + $0x630] sm:$0xff]
  %v220 = vld [vmem:[%s1 + $0x638] sm:$0xff]
  %v221 = vld [vmem:[%s1 + $0x640] sm:$0xff]
  %v222 = vld [vmem:[%s1 + $0x648] sm:$0xff]
  %v223 = vld [vmem:[%s1 + $0x650] sm:$0xff]
  %v224 = vld [vmem:[%s1 + $0x658] sm:$0xff]
  %v225 = vld [vmem:[%s1 + $0x660] sm:$0xff]
  %v226 = vld [vmem:[%s1 + $0x668] sm:$0xff]
  %v227 = vld [vmem:[%s1 + $0x670] sm:$0xff]
  %v228 = vld [vmem:[%s1 + $0x678] sm:$0xff]
  %v229 = vld [vmem:[%s1 + $0x680] sm:$0xff]
  %v230 = vld [vmem:[%s1 + $0x688] sm:$0xff]
  %v231 = vld [vmem:[%s1 + $0x690] sm:$0xff]
  %v232 = vld [vmem:[%s1 + $0x698] sm:$0xff]
  %v233 = vld [vmem:[%s1 + $0x6a0] sm:$0xff]
  %v234 = vld [vmem:[%s1 + $0x6a8] sm:$0xff]
  %v235 = vld [vmem:[%s1 + $0x6b0] sm:$0xff]
  %v236 = vld [vmem:[%s1 + $0x6b8] sm:$0xff]
  %v244 = vunpack.c.l.b16 %v14
  %v245 = vunpack.c.h.b16 %v14
  %v246 = vunpack.c.l.b16 %v15
  %v247 = vunpack.c.h.b16 %v15
  %v248 = vunpack.c.l.b16 %v16
  %v249 = vunpack.c.h.b16 %v16
  %v250 = vunpack.c.l.b16 %v17
  %v251 = vunpack.c.h.b16 %v17
  %v252 = vunpack.c.l.b16 %v18
  %v253 = vunpack.c.h.b16 %v18
  %v254 = vunpack.c.l.b16 %v19
  %v255 = vunpack.c.h.b16 %v19
  %v256 = vunpack.c.l.b16 %v20
  %v257 = vunpack.c.h.b16 %v20
  %v258 = vpack.c.b16 %v244, %v244
  %v259 = vpack.c.b16 %v245, %v245
  %v260 = vpack.c.b16 %v246, %v246
  %v261 = vpack.c.b16 %v247, %v247
  %v262 = vpack.c.b16 %v248, %v248
  %v263 = vpack.c.b16 %v249, %v249
  %v264 = vpack.c.b16 %v250, %v250
  %v265 = vpack.c.b16 %v251, %v251
  %v266 = vpack.c.b16 %v252, %v252
  %v267 = vpack.c.b16 %v253, %v253
  %v268 = vpack.c.b16 %v254, %v254
  %v269 = vpack.c.b16 %v255, %v255
  %v270 = vpack.c.b16 %v256, %v256
  %v271 = vpack.c.b16 %v257, %v257
  %v501 = vunpack.c.l.b16 %v21
  %v502 = vunpack.c.h.b16 %v21
  %v503 = vunpack.c.l.b16 %v22
  %v504 = vunpack.c.h.b16 %v22
  %v505 = vunpack.c.l.b16 %v23
  %v506 = vunpack.c.h.b16 %v23
  %v507 = vunpack.c.l.b16 %v24
  %v508 = vunpack.c.h.b16 %v24
  %v509 = vunpack.c.l.b16 %v25
  %v510 = vunpack.c.h.b16 %v25
  %v511 = vunpack.c.l.b16 %v26
  %v512 = vunpack.c.h.b16 %v26
  %v513 = vunpack.c.l.b16 %v27
  %v514 = vunpack.c.h.b16 %v27
  %v515 = vunpack.c.l.b16 %v28
  %v516 = vunpack.c.h.b16 %v28
  %v517 = vunpack.c.l.b16 %v29
  %v518 = vunpack.c.h.b16 %v29
  %v519 = vunpack.c.l.b16 %v30
  %v520 = vunpack.c.h.b16 %v30
  %v521 = vunpack.c.l.b16 %v31
  %v522 = vunpack.c.h.b16 %v31
  %v523 = vunpack.c.l.b16 %v32
  %v524 = vunpack.c.h.b16 %v32
  %v525 = vunpack.c.l.b16 %v33
  %v526 = vunpack.c.h.b16 %v33
  %v527 = vunpack.c.l.b16 %v34
  %v528 = vunpack.c.h.b16 %v34
  %v529 = vunpack.c.l.b16 %v35
  %v530 = vunpack.c.h.b16 %v35
  %v531 = vunpack.c.l.b16 %v36
  %v532 = vunpack.c.h.b16 %v36
  %v533 = vunpack.c.l.b16 %v37
  %v534 = vunpack.c.h.b16 %v37
  %v535 = vunpack.c.l.b16 %v38
  %v536 = vunpack.c.h.b16 %v38
  %v537 = vunpack.c.l.b16 %v39
  %v538 = vunpack.c.h.b16 %v39
  %v539 = vunpack.c.l.b16 %v40
  %v540 = vunpack.c.h.b16 %v40
  %v541 = vunpack.c.l.b16 %v41
  %v542 = vunpack.c.h.b16 %v41
  %v543 = vunpack.c.l.b16 %v42
  %v544 = vunpack.c.h.b16 %v42
  %v545 = vunpack.c.l.b16 %v43
  %v546 = vunpack.c.h.b16 %v43
  %v547 = vunpack.c.l.b16 %v44
  %v548 = vunpack.c.h.b16 %v44
  %v549 = vunpack.c.l.b16 %v45
  %v550 = vunpack.c.h.b16 %v45
  %v551 = vunpack.c.l.b16 %v46
  %v552 = vunpack.c.h.b16 %v46
  %v553 = vunpack.c.l.b16 %v47
  %v554 = vunpack.c.h.b16 %v47
  %v555 = vunpack.c.l.b16 %v48
  %v556 = vunpack.c.h.b16 %v48
  %v557 = vunpack.c.l.b16 %v49
  %v558 = vunpack.c.h.b16 %v49
  %v559 = vunpack.c.l.b16 %v50
  %v560 = vunpack.c.h.b16 %v50
  %v561 = vunpack.c.l.b16 %v51
  %v562 = vunpack.c.h.b16 %v51
  %v563 = vunpack.c.l.b16 %v52
  %v564 = vunpack.c.h.b16 %v52
  %v565 = vunpack.c.l.b16 %v53
  %v566 = vunpack.c.h.b16 %v53
  %v567 = vunpack.c.l.b16 %v54
  %v568 = vunpack.c.h.b16 %v54
  %v569 = vunpack.c.l.b16 %v55
  %v570 = vunpack.c.h.b16 %v55
  %v571 = vunpack.c.l.b16 %v56
  %v572 = vunpack.c.h.b16 %v56
  %v573 = vunpack.c.l.b16 %v57
  %v574 = vunpack.c.h.b16 %v57
  %v575 = vunpack.c.l.b16 %v58
  %v576 = vunpack.c.h.b16 %v58
  %v577 = vunpack.c.l.b16 %v59
  %v578 = vunpack.c.h.b16 %v59
  %v579 = vunpack.c.l.b16 %v60
  %v580 = vunpack.c.h.b16 %v60
  %v581 = vunpack.c.l.b16 %v61
  %v582 = vunpack.c.h.b16 %v61
  %v583 = vunpack.c.l.b16 %v62
  %v584 = vunpack.c.h.b16 %v62
  %v585 = vunpack.c.l.b16 %v63
  %v586 = vunpack.c.h.b16 %v63
  %v587 = vunpack.c.l.b16 %v64
  %v588 = vunpack.c.h.b16 %v64
  %v589 = vunpack.c.l.b16 %v65
  %v590 = vunpack.c.h.b16 %v65
  %v591 = vunpack.c.l.b16 %v66
  %v592 = vunpack.c.h.b16 %v66
  %v593 = vunpack.c.l.b16 %v67
  %v594 = vunpack.c.h.b16 %v67
  %v595 = vunpack.c.l.b16 %v68
  %v596 = vunpack.c.h.b16 %v68
  %v597 = vunpack.c.l.b16 %v69
  %v598 = vunpack.c.h.b16 %v69
  %v599 = vunpack.c.l.b16 %v70
  %v600 = vunpack.c.h.b16 %v70
  %v601 = vunpack.c.l.b16 %v71
  %v602 = vunpack.c.h.b16 %v71
  %v603 = vunpack.c.l.b16 %v72
  %v604 = vunpack.c.h.b16 %v72
  %v605 = vunpack.c.l.b16 %v73
  %v606 = vunpack.c.h.b16 %v73
  %v607 = vunpack.c.l.b16 %v74
  %v608 = vunpack.c.h.b16 %v74
  %v609 = vunpack.c.l.b16 %v75
  %v610 = vunpack.c.h.b16 %v75
  %v611 = vunpack.c.l.b16 %v76
  %v612 = vunpack.c.h.b16 %v76
  %v613 = vunpack.c.l.b16 %v77
  %v614 = vunpack.c.h.b16 %v77
  %v615 = vunpack.c.l.b16 %v78
  %v616 = vunpack.c.h.b16 %v78
  %v617 = vunpack.c.l.b16 %v79
  %v618 = vunpack.c.h.b16 %v79
  %v619 = vunpack.c.l.b16 %v80
  %v620 = vunpack.c.h.b16 %v80
  %v621 = vunpack.c.l.b16 %v81
  %v622 = vunpack.c.h.b16 %v81
  %v623 = vunpack.c.l.b16 %v82
  %v624 = vunpack.c.h.b16 %v82
  %v625 = vunpack.c.l.b16 %v83
  %v626 = vunpack.c.h.b16 %v83
  %v627 = vunpack.c.l.b16 %v84
  %v628 = vunpack.c.h.b16 %v84
  %v629 = vunpack.c.l.b16 %v85
  %v630 = vunpack.c.h.b16 %v85
  %v631 = vunpack.c.l.b16 %v86
  %v632 = vunpack.c.h.b16 %v86
  %v633 = vunpack.c.l.b16 %v87
  %v634 = vunpack.c.h.b16 %v87
  %v635 = vunpack.c.l.b16 %v88
  %v636 = vunpack.c.h.b16 %v88
  %v637 = vunpack.c.l.b16 %v89
  %v638 = vunpack.c.h.b16 %v89
  %v639 = vunpack.c.l.b16 %v90
  %v640 = vunpack.c.h.b16 %v90
  %v641 = vunpack.c.l.b16 %v91
  %v642 = vunpack.c.h.b16 %v91
  %v643 = vunpack.c.l.b16 %v92
  %v644 = vunpack.c.h.b16 %v92
  %v645 = vunpack.c.l.b16 %v93
  %v646 = vunpack.c.h.b16 %v93
  %v647 = vunpack.c.l.b16 %v94
  %v648 = vunpack.c.h.b16 %v94
  %v649 = vunpack.c.l.b16 %v95
  %v650 = vunpack.c.h.b16 %v95
  %v651 = vunpack.c.l.b16 %v96
  %v652 = vunpack.c.h.b16 %v96
  %v653 = vunpack.c.l.b16 %v97
  %v654 = vunpack.c.h.b16 %v97
  %v655 = vunpack.c.l.b16 %v98
  %v656 = vunpack.c.h.b16 %v98
  %v657 = vunpack.c.l.b16 %v99
  %v658 = vunpack.c.h.b16 %v99
  %v659 = vunpack.c.l.b16 %v100
  %v660 = vunpack.c.h.b16 %v100
  %v661 = vunpack.c.l.b16 %v101
  %v662 = vunpack.c.h.b16 %v101
  %v663 = vunpack.c.l.b16 %v102
  %v664 = vunpack.c.h.b16 %v102
  %v665 = vunpack.c.l.b16 %v103
  %v666 = vunpack.c.h.b16 %v103
  %v667 = vunpack.c.l.b16 %v104
  %v668 = vunpack.c.h.b16 %v104
  %v669 = vunpack.c.l.b16 %v105
  %v670 = vunpack.c.h.b16 %v105
  %v671 = vunpack.c.l.b16 %v106
  %v672 = vunpack.c.h.b16 %v106
  %v673 = vunpack.c.l.b16 %v107
  %v674 = vunpack.c.h.b16 %v107
  %v675 = vunpack.c.l.b16 %v108
  %v676 = vunpack.c.h.b16 %v108
  %v677 = vunpack.c.l.b16 %v109
  %v678 = vunpack.c.h.b16 %v109
  %v679 = vunpack.c.l.b16 %v110
  %v680 = vunpack.c.h.b16 %v110
  %v681 = vunpack.c.l.b16 %v111
  %v682 = vunpack.c.h.b16 %v111
  %v683 = vunpack.c.l.b16 %v112
  %v684 = vunpack.c.h.b16 %v112
  %v685 = vunpack.c.l.b16 %v113
  %v686 = vunpack.c.h.b16 %v113
  %v687 = vunpack.c.l.b16 %v114
  %v688 = vunpack.c.h.b16 %v114
  %v689 = vunpack.c.l.b16 %v115
  %v690 = vunpack.c.h.b16 %v115
  %v691 = vunpack.c.l.b16 %v116
  %v692 = vunpack.c.h.b16 %v116
  %v693 = vunpack.c.l.b16 %v117
  %v694 = vunpack.c.h.b16 %v117
  %v695 = vunpack.c.l.b16 %v118
  %v696 = vunpack.c.h.b16 %v118
  %v697 = vunpack.c.l.b16 %v119
  %v698 = vunpack.c.h.b16 %v119
  %v699 = vunpack.c.l.b16 %v120
  %v700 = vunpack.c.h.b16 %v120
  %v701 = vunpack.c.l.b16 %v121
  %v702 = vunpack.c.h.b16 %v121
  %v703 = vunpack.c.l.b16 %v122
  %v704 = vunpack.c.h.b16 %v122
  %v705 = vunpack.c.l.b16 %v123
  %v706 = vunpack.c.h.b16 %v123
  %v707 = vunpack.c.l.b16 %v124
  %v708 = vunpack.c.h.b16 %v124
  %v709 = vunpack.c.l.b16 %v125
  %v710 = vunpack.c.h.b16 %v125
  %v711 = vunpack.c.l.b16 %v126
  %v712 = vunpack.c.h.b16 %v126
  %v713 = vunpack.c.l.b16 %v127
  %v714 = vunpack.c.h.b16 %v127
  %v715 = vunpack.c.l.b16 %v128
  %v716 = vunpack.c.h.b16 %v128
  %v717 = vunpack.c.l.b16 %v129
  %v718 = vunpack.c.h.b16 %v129
  %v719 = vunpack.c.l.b16 %v130
  %v720 = vunpack.c.h.b16 %v130
  %v721 = vunpack.c.l.b16 %v131
  %v722 = vunpack.c.h.b16 %v131
  %v723 = vunpack.c.l.b16 %v132
  %v724 = vunpack.c.h.b16 %v132
  %v725 = vunpack.c.l.b16 %v133
  %v726 = vunpack.c.h.b16 %v133
  %v727 = vunpack.c.l.b16 %v134
  %v728 = vunpack.c.h.b16 %v134
  %v729 = vunpack.c.l.b16 %v135
  %v730 = vunpack.c.h.b16 %v135
  %v731 = vunpack.c.l.b16 %v136
  %v732 = vunpack.c.h.b16 %v136
  %v733 = vunpack.c.l.b16 %v137
  %v734 = vunpack.c.h.b16 %v137
  %v735 = vunpack.c.l.b16 %v138
  %v736 = vunpack.c.h.b16 %v138
  %v737 = vunpack.c.l.b16 %v139
  %v738 = vunpack.c.h.b16 %v139
  %v739 = vunpack.c.l.b16 %v140
  %v740 = vunpack.c.h.b16 %v140
  %v741 = vunpack.c.l.b16 %v141
  %v742 = vunpack.c.h.b16 %v141
  %v743 = vunpack.c.l.b16 %v142
  %v744 = vunpack.c.h.b16 %v142
  %v745 = vunpack.c.l.b16 %v143
  %v746 = vunpack.c.h.b16 %v143
  %v747 = vunpack.c.l.b16 %v144
  %v748 = vunpack.c.h.b16 %v144
  %v749 = vunpack.c.l.b16 %v145
  %v750 = vunpack.c.h.b16 %v145
  %v751 = vunpack.c.l.b16 %v146
  %v752 = vunpack.c.h.b16 %v146
  %v753 = vunpack.c.l.b16 %v147
  %v754 = vunpack.c.h.b16 %v147
  %v755 = vunpack.c.l.b16 %v148
  %v756 = vunpack.c.h.b16 %v148
  %v757 = vunpack.c.l.b16 %v149
  %v758 = vunpack.c.h.b16 %v149
  %v759 = vunpack.c.l.b16 %v150
  %v760 = vunpack.c.h.b16 %v150
  %v761 = vunpack.c.l.b16 %v151
  %v762 = vunpack.c.h.b16 %v151
  %v763 = vunpack.c.l.b16 %v152
  %v764 = vunpack.c.h.b16 %v152
  %v765 = vunpack.c.l.b16 %v153
  %v766 = vunpack.c.h.b16 %v153
  %v767 = vunpack.c.l.b16 %v154
  %v768 = vunpack.c.h.b16 %v154
  %v769 = vunpack.c.l.b16 %v155
  %v770 = vunpack.c.h.b16 %v155
  %v771 = vunpack.c.l.b16 %v156
  %v772 = vunpack.c.h.b16 %v156
  %v773 = vunpack.c.l.b16 %v157
  %v774 = vunpack.c.h.b16 %v157
  %v775 = vunpack.c.l.b16 %v158
  %v776 = vunpack.c.h.b16 %v158
  %v777 = vunpack.c.l.b16 %v159
  %v778 = vunpack.c.h.b16 %v159
  %v779 = vunpack.c.l.b16 %v160
  %v780 = vunpack.c.h.b16 %v160
  %v781 = vunpack.c.l.b16 %v161
  %v782 = vunpack.c.h.b16 %v161
  %v783 = vunpack.c.l.b16 %v162
  %v784 = vunpack.c.h.b16 %v162
  %v785 = vunpack.c.l.b16 %v163
  %v786 = vunpack.c.h.b16 %v163
  %v787 = vunpack.c.l.b16 %v164
  %v788 = vunpack.c.h.b16 %v164
  %v789 = vunpack.c.l.b16 %v165
  %v790 = vunpack.c.h.b16 %v165
  %v791 = vunpack.c.l.b16 %v166
  %v792 = vunpack.c.h.b16 %v166
  %v793 = vunpack.c.l.b16 %v167
  %v794 = vunpack.c.h.b16 %v167
  %v795 = vunpack.c.l.b16 %v168
  %v796 = vunpack.c.h.b16 %v168
  %v797 = vunpack.c.l.b16 %v169
  %v798 = vunpack.c.h.b16 %v169
  %v799 = vunpack.c.l.b16 %v170
  %v800 = vunpack.c.h.b16 %v170
  %v801 = vunpack.c.l.b16 %v171
  %v802 = vunpack.c.h.b16 %v171
  %v803 = vunpack.c.l.b16 %v172
  %v804 = vunpack.c.h.b16 %v172
  %v805 = vunpack.c.l.b16 %v173
  %v806 = vunpack.c.h.b16 %v173
  %v807 = vunpack.c.l.b16 %v174
  %v808 = vunpack.c.h.b16 %v174
  %v809 = vunpack.c.l.b16 %v175
  %v810 = vunpack.c.h.b16 %v175
  %v811 = vunpack.c.l.b16 %v176
  %v812 = vunpack.c.h.b16 %v176
  %v813 = vunpack.c.l.b16 %v177
  %v814 = vunpack.c.h.b16 %v177
  %v815 = vunpack.c.l.b16 %v178
  %v816 = vunpack.c.h.b16 %v178
  %v817 = vunpack.c.l.b16 %v179
  %v818 = vunpack.c.h.b16 %v179
  %v819 = vunpack.c.l.b16 %v180
  %v820 = vunpack.c.h.b16 %v180
  %v821 = vunpack.c.l.b16 %v181
  %v822 = vunpack.c.h.b16 %v181
  %v823 = vunpack.c.l.b16 %v182
  %v824 = vunpack.c.h.b16 %v182
  %v825 = vunpack.c.l.b16 %v183
  %v826 = vunpack.c.h.b16 %v183
  %v827 = vunpack.c.l.b16 %v184
  %v828 = vunpack.c.h.b16 %v184
  %v829 = vunpack.c.l.b16 %v185
  %v830 = vunpack.c.h.b16 %v185
  %v831 = vunpack.c.l.b16 %v186
  %v832 = vunpack.c.h.b16 %v186
  %v833 = vunpack.c.l.b16 %v187
  %v834 = vunpack.c.h.b16 %v187
  %v835 = vunpack.c.l.b16 %v188
  %v836 = vunpack.c.h.b16 %v188
  %v837 = vunpack.c.l.b16 %v189
  %v838 = vunpack.c.h.b16 %v189
  %v839 = vunpack.c.l.b16 %v190
  %v840 = vunpack.c.h.b16 %v190
  %v841 = vunpack.c.l.b16 %v191
  %v842 = vunpack.c.h.b16 %v191
  %v843 = vunpack.c.l.b16 %v192
  %v844 = vunpack.c.h.b16 %v192
  %v845 = vunpack.c.l.b16 %v193
  %v846 = vunpack.c.h.b16 %v193
  %v847 = vunpack.c.l.b16 %v194
  %v848 = vunpack.c.h.b16 %v194
  %v849 = vunpack.c.l.b16 %v195
  %v850 = vunpack.c.h.b16 %v195
  %v851 = vunpack.c.l.b16 %v196
  %v852 = vunpack.c.h.b16 %v196
  %v853 = vunpack.c.l.b16 %v197
  %v854 = vunpack.c.h.b16 %v197
  %v855 = vunpack.c.l.b16 %v198
  %v856 = vunpack.c.h.b16 %v198
  %v857 = vunpack.c.l.b16 %v199
  %v858 = vunpack.c.h.b16 %v199
  %v859 = vunpack.c.l.b16 %v200
  %v860 = vunpack.c.h.b16 %v200
  %v861 = vunpack.c.l.b16 %v201
  %v862 = vunpack.c.h.b16 %v201
  %v863 = vunpack.c.l.b16 %v202
  %v864 = vunpack.c.h.b16 %v202
  %v865 = vunpack.c.l.b16 %v203
  %v866 = vunpack.c.h.b16 %v203
  %v867 = vunpack.c.l.b16 %v204
  %v868 = vunpack.c.h.b16 %v204
  %v869 = vunpack.c.l.b16 %v205
  %v870 = vunpack.c.h.b16 %v205
  %v871 = vunpack.c.l.b16 %v206
  %v872 = vunpack.c.h.b16 %v206
  %v873 = vunpack.c.l.b16 %v207
  %v874 = vunpack.c.h.b16 %v207
  %v875 = vunpack.c.l.b16 %v208
  %v876 = vunpack.c.h.b16 %v208
  %v877 = vunpack.c.l.b16 %v209
  %v878 = vunpack.c.h.b16 %v209
  %v879 = vunpack.c.l.b16 %v210
  %v880 = vunpack.c.h.b16 %v210
  %v881 = vunpack.c.l.b16 %v211
  %v882 = vunpack.c.h.b16 %v211
  %v883 = vunpack.c.l.b16 %v212
  %v884 = vunpack.c.h.b16 %v212
  %v885 = vunpack.c.l.b16 %v213
  %v886 = vunpack.c.h.b16 %v213
  %v887 = vunpack.c.l.b16 %v214
  %v888 = vunpack.c.h.b16 %v214
  %v889 = vunpack.c.l.b16 %v215
  %v890 = vunpack.c.h.b16 %v215
  %v891 = vunpack.c.l.b16 %v216
  %v892 = vunpack.c.h.b16 %v216
  %v893 = vunpack.c.l.b16 %v217
  %v894 = vunpack.c.h.b16 %v217
  %v895 = vunpack.c.l.b16 %v218
  %v896 = vunpack.c.h.b16 %v218
  %v897 = vunpack.c.l.b16 %v219
  %v898 = vunpack.c.h.b16 %v219
  %v899 = vunpack.c.l.b16 %v220
  %v900 = vunpack.c.h.b16 %v220
  %v901 = vunpack.c.l.b16 %v221
  %v902 = vunpack.c.h.b16 %v221
  %v903 = vunpack.c.l.b16 %v222
  %v904 = vunpack.c.h.b16 %v222
  %v905 = vunpack.c.l.b16 %v223
  %v906 = vunpack.c.h.b16 %v223
  %v907 = vunpack.c.l.b16 %v224
  %v908 = vunpack.c.h.b16 %v224
  %v909 = vunpack.c.l.b16 %v225
  %v910 = vunpack.c.h.b16 %v225
  %v911 = vunpack.c.l.b16 %v226
  %v912 = vunpack.c.h.b16 %v226
  %v913 = vunpack.c.l.b16 %v227
  %v914 = vunpack.c.h.b16 %v227
  %v915 = vunpack.c.l.b16 %v228
  %v916 = vunpack.c.h.b16 %v228
  %v917 = vunpack.c.l.b16 %v229
  %v918 = vunpack.c.h.b16 %v229
  %v919 = vunpack.c.l.b16 %v230
  %v920 = vunpack.c.h.b16 %v230
  %v921 = vunpack.c.l.b16 %v231
  %v922 = vunpack.c.h.b16 %v231
  %v923 = vunpack.c.l.b16 %v232
  %v924 = vunpack.c.h.b16 %v232
  %v925 = vunpack.c.l.b16 %v233
  %v926 = vunpack.c.h.b16 %v233
  %v927 = vunpack.c.l.b16 %v234
  %v928 = vunpack.c.h.b16 %v234
  %v929 = vunpack.c.l.b16 %v235
  %v930 = vunpack.c.h.b16 %v235
  %v931 = vunpack.c.l.b16 %v236
  %v932 = vunpack.c.h.b16 %v236
  %v933 = vpack.c.b16 %v503, %v501
  %v934 = vpack.c.b16 %v504, %v502
  %v935 = vpack.c.b16 %v507, %v505
  %v936 = vpack.c.b16 %v508, %v506
  %v937 = vpack.c.b16 %v511, %v509
  %v938 = vpack.c.b16 %v512, %v510
  %v939 = vpack.c.b16 %v515, %v513
  %v940 = vpack.c.b16 %v516, %v514
  %v941 = vpack.c.b16 %v519, %v517
  %v942 = vpack.c.b16 %v520, %v518
  %v943 = vpack.c.b16 %v523, %v521
  %v944 = vpack.c.b16 %v524, %v522
  %v945 = vpack.c.b16 %v527, %v525
  %v946 = vpack.c.b16 %v528, %v526
  %v947 = vpack.c.b16 %v531, %v529
  %v948 = vpack.c.b16 %v532, %v530
  %v949 = vpack.c.b16 %v535, %v533
  %v950 = vpack.c.b16 %v536, %v534
  %v951 = vpack.c.b16 %v539, %v537
  %v952 = vpack.c.b16 %v540, %v538
  %v953 = vpack.c.b16 %v543, %v541
  %v954 = vpack.c.b16 %v544, %v542
  %v955 = vpack.c.b16 %v547, %v545
  %v956 = vpack.c.b16 %v548, %v546
  %v957 = vpack.c.b16 %v551, %v549
  %v958 = vpack.c.b16 %v552, %v550
  %v959 = vpack.c.b16 %v555, %v553
  %v960 = vpack.c.b16 %v556, %v554
  %v961 = vpack.c.b16 %v559, %v557
  %v962 = vpack.c.b16 %v560, %v558
  %v963 = vpack.c.b16 %v563, %v561
  %v964 = vpack.c.b16 %v564, %v562
  %v965 = vpack.c.b16 %v567, %v565
  %v966 = vpack.c.b16 %v568, %v566
  %v967 = vpack.c.b16 %v571, %v569
  %v968 = vpack.c.b16 %v572, %v570
  %v969 = vpack.c.b16 %v575, %v573
  %v970 = vpack.c.b16 %v576, %v574
  %v971 = vpack.c.b16 %v579, %v577
  %v972 = vpack.c.b16 %v580, %v578
  %v973 = vpack.c.b16 %v583, %v581
  %v974 = vpack.c.b16 %v584, %v582
  %v975 = vpack.c.b16 %v587, %v585
  %v976 = vpack.c.b16 %v588, %v586
  %v977 = vpack.c.b16 %v591, %v589
  %v978 = vpack.c.b16 %v592, %v590
  %v979 = vpack.c.b16 %v595, %v593
  %v980 = vpack.c.b16 %v596, %v594
  %v981 = vpack.c.b16 %v599, %v597
  %v982 = vpack.c.b16 %v600, %v598
  %v983 = vpack.c.b16 %v603, %v601
  %v984 = vpack.c.b16 %v604, %v602
  %v985 = vpack.c.b16 %v607, %v605
  %v986 = vpack.c.b16 %v608, %v606
  %v987 = vpack.c.b16 %v611, %v609
  %v988 = vpack.c.b16 %v612, %v610
  %v989 = vpack.c.b16 %v615, %v613
  %v990 = vpack.c.b16 %v616, %v614
  %v991 = vpack.c.b16 %v619, %v617
  %v992 = vpack.c.b16 %v620, %v618
  %v993 = vpack.c.b16 %v623, %v621
  %v994 = vpack.c.b16 %v624, %v622
  %v995 = vpack.c.b16 %v627, %v625
  %v996 = vpack.c.b16 %v628, %v626
  %v997 = vpack.c.b16 %v631, %v629
  %v998 = vpack.c.b16 %v632, %v630
  %v999 = vpack.c.b16 %v635, %v633
  %v1000 = vpack.c.b16 %v636, %v634
  %v1001 = vpack.c.b16 %v639, %v637
  %v1002 = vpack.c.b16 %v640, %v638
  %v1003 = vpack.c.b16 %v643, %v641
  %v1004 = vpack.c.b16 %v644, %v642
  %v1005 = vpack.c.b16 %v647, %v645
  %v1006 = vpack.c.b16 %v648, %v646
  %v1007 = vpack.c.b16 %v651, %v649
  %v1008 = vpack.c.b16 %v652, %v650
  %v1009 = vpack.c.b16 %v655, %v653
  %v1010 = vpack.c.b16 %v656, %v654
  %v1011 = vpack.c.b16 %v659, %v657
  %v1012 = vpack.c.b16 %v660, %v658
  %v1013 = vpack.c.b16 %v663, %v661
  %v1014 = vpack.c.b16 %v664, %v662
  %v1015 = vpack.c.b16 %v667, %v665
  %v1016 = vpack.c.b16 %v668, %v666
  %v1017 = vpack.c.b16 %v671, %v669
  %v1018 = vpack.c.b16 %v672, %v670
  %v1019 = vpack.c.b16 %v675, %v673
  %v1020 = vpack.c.b16 %v676, %v674
  %v1021 = vpack.c.b16 %v679, %v677
  %v1022 = vpack.c.b16 %v680, %v678
  %v1023 = vpack.c.b16 %v683, %v681
  %v1024 = vpack.c.b16 %v684, %v682
  %v1025 = vpack.c.b16 %v687, %v685
  %v1026 = vpack.c.b16 %v688, %v686
  %v1027 = vpack.c.b16 %v691, %v689
  %v1028 = vpack.c.b16 %v692, %v690
  %v1029 = vpack.c.b16 %v695, %v693
  %v1030 = vpack.c.b16 %v696, %v694
  %v1031 = vpack.c.b16 %v699, %v697
  %v1032 = vpack.c.b16 %v700, %v698
  %v1033 = vpack.c.b16 %v703, %v701
  %v1034 = vpack.c.b16 %v704, %v702
  %v1035 = vpack.c.b16 %v707, %v705
  %v1036 = vpack.c.b16 %v708, %v706
  %v1037 = vpack.c.b16 %v711, %v709
  %v1038 = vpack.c.b16 %v712, %v710
  %v1039 = vpack.c.b16 %v715, %v713
  %v1040 = vpack.c.b16 %v716, %v714
  %v1041 = vpack.c.b16 %v719, %v717
  %v1042 = vpack.c.b16 %v720, %v718
  %v1043 = vpack.c.b16 %v723, %v721
  %v1044 = vpack.c.b16 %v724, %v722
  %v1045 = vpack.c.b16 %v727, %v725
  %v1046 = vpack.c.b16 %v728, %v726
  %v1047 = vpack.c.b16 %v731, %v729
  %v1048 = vpack.c.b16 %v732, %v730
  %v1049 = vpack.c.b16 %v735, %v733
  %v1050 = vpack.c.b16 %v736, %v734
  %v1051 = vpack.c.b16 %v739, %v737
  %v1052 = vpack.c.b16 %v740, %v738
  %v1053 = vpack.c.b16 %v743, %v741
  %v1054 = vpack.c.b16 %v744, %v742
  %v1055 = vpack.c.b16 %v747, %v745
  %v1056 = vpack.c.b16 %v748, %v746
  %v1057 = vpack.c.b16 %v751, %v749
  %v1058 = vpack.c.b16 %v752, %v750
  %v1059 = vpack.c.b16 %v755, %v753
  %v1060 = vpack.c.b16 %v756, %v754
  %v1061 = vpack.c.b16 %v759, %v757
  %v1062 = vpack.c.b16 %v760, %v758
  %v1063 = vpack.c.b16 %v763, %v761
  %v1064 = vpack.c.b16 %v764, %v762
  %v1065 = vpack.c.b16 %v767, %v765
  %v1066 = vpack.c.b16 %v768, %v766
  %v1067 = vpack.c.b16 %v771, %v769
  %v1068 = vpack.c.b16 %v772, %v770
  %v1069 = vpack.c.b16 %v775, %v773
  %v1070 = vpack.c.b16 %v776, %v774
  %v1071 = vpack.c.b16 %v779, %v777
  %v1072 = vpack.c.b16 %v780, %v778
  %v1073 = vpack.c.b16 %v783, %v781
  %v1074 = vpack.c.b16 %v784, %v782
  %v1075 = vpack.c.b16 %v787, %v785
  %v1076 = vpack.c.b16 %v788, %v786
  %v1077 = vpack.c.b16 %v791, %v789
  %v1078 = vpack.c.b16 %v792, %v790
  %v1079 = vpack.c.b16 %v795, %v793
  %v1080 = vpack.c.b16 %v796, %v794
  %v1081 = vpack.c.b16 %v799, %v797
  %v1082 = vpack.c.b16 %v800, %v798
  %v1083 = vpack.c.b16 %v803, %v801
  %v1084 = vpack.c.b16 %v804, %v802
  %v1085 = vpack.c.b16 %v807, %v805
  %v1086 = vpack.c.b16 %v808, %v806
  %v1087 = vpack.c.b16 %v811, %v809
  %v1088 = vpack.c.b16 %v812, %v810
  %v1089 = vpack.c.b16 %v815, %v813
  %v1090 = vpack.c.b16 %v816, %v814
  %v1091 = vpack.c.b16 %v819, %v817
  %v1092 = vpack.c.b16 %v820, %v818
  %v1093 = vpack.c.b16 %v823, %v821
  %v1094 = vpack.c.b16 %v824, %v822
  %v1095 = vpack.c.b16 %v827, %v825
  %v1096 = vpack.c.b16 %v828, %v826
  %v1097 = vpack.c.b16 %v831, %v829
  %v1098 = vpack.c.b16 %v832, %v830
  %v1099 = vpack.c.b16 %v835, %v833
  %v1100 = vpack.c.b16 %v836, %v834
  %v1101 = vpack.c.b16 %v839, %v837
  %v1102 = vpack.c.b16 %v840, %v838
  %v1103 = vpack.c.b16 %v843, %v841
  %v1104 = vpack.c.b16 %v844, %v842
  %v1105 = vpack.c.b16 %v847, %v845
  %v1106 = vpack.c.b16 %v848, %v846
  %v1107 = vpack.c.b16 %v851, %v849
  %v1108 = vpack.c.b16 %v852, %v850
  %v1109 = vpack.c.b16 %v855, %v853
  %v1110 = vpack.c.b16 %v856, %v854
  %v1111 = vpack.c.b16 %v859, %v857
  %v1112 = vpack.c.b16 %v860, %v858
  %v1113 = vpack.c.b16 %v863, %v861
  %v1114 = vpack.c.b16 %v864, %v862
  %v1115 = vpack.c.b16 %v867, %v865
  %v1116 = vpack.c.b16 %v868, %v866
  %v1117 = vpack.c.b16 %v871, %v869
  %v1118 = vpack.c.b16 %v872, %v870
  %v1119 = vpack.c.b16 %v875, %v873
  %v1120 = vpack.c.b16 %v876, %v874
  %v1121 = vpack.c.b16 %v879, %v877
  %v1122 = vpack.c.b16 %v880, %v878
  %v1123 = vpack.c.b16 %v883, %v881
  %v1124 = vpack.c.b16 %v884, %v882
  %v1125 = vpack.c.b16 %v887, %v885
  %v1126 = vpack.c.b16 %v888, %v886
  %v1127 = vpack.c.b16 %v891, %v889
  %v1128 = vpack.c.b16 %v892, %v890
  %v1129 = vpack.c.b16 %v895, %v893
  %v1130 = vpack.c.b16 %v896, %v894
  %v1131 = vpack.c.b16 %v899, %v897
  %v1132 = vpack.c.b16 %v900, %v898
  %v1133 = vpack.c.b16 %v903, %v901
  %v1134 = vpack.c.b16 %v904, %v902
  %v1135 = vpack.c.b16 %v907, %v905
  %v1136 = vpack.c.b16 %v908, %v906
  %v1137 = vpack.c.b16 %v911, %v909
  %v1138 = vpack.c.b16 %v912, %v910
  %v1139 = vpack.c.b16 %v915, %v913
  %v1140 = vpack.c.b16 %v916, %v914
  %v1141 = vpack.c.b16 %v919, %v917
  %v1142 = vpack.c.b16 %v920, %v918
  %v1143 = vpack.c.b16 %v923, %v921
  %v1144 = vpack.c.b16 %v924, %v922
  %v1145 = vpack.c.b16 %v927, %v925
  %v1146 = vpack.c.b16 %v928, %v926
  %v1147 = vpack.c.b16 %v931, %v929
  %v1148 = vpack.c.b16 %v932, %v930
  %vm1365 = vcmask 523264
  %v1367 = vsel %vm1365, %v271, 0
  %1369 = vmatprep.subr.bf16.mxu0 %v948
  %1370 = vmatpush1.bf16.msra.mxu0 %v947
  %1371 = vmatprep.subr.bf16.mxu0 %v946
  %1372 = vmatpush1.bf16.msra.mxu0 %v945
  %1373 = vmatprep.subr.bf16.mxu0 %v944
  %1374 = vmatpush1.bf16.msra.mxu0 %v943
  %1375 = vmatprep.subr.bf16.mxu0 %v942
  %1376 = vmatpush1.bf16.msra.mxu0 %v941
  %1377 = vmatprep.subr.bf16.mxu0 %v940
  %1378 = vmatpush1.bf16.msra.mxu0 %v939
  %1379 = vmatprep.subr.bf16.mxu0 %v938
  %1380 = vmatpush1.bf16.msra.mxu0 %v937
  %1381 = vmatprep.subr.bf16.mxu0 %v936
  %1382 = vmatpush1.bf16.msra.mxu0 %v935
  %1383 = vmatprep.subr.bf16.mxu0 %v934
  %1384 = vmatpush1.bf16.msra.mxu0 %v933
  %1385 = vmatprep.subr.bf16.mxu0 %v964
  %1386 = vmatpush2.bf16.msra.mxu0 %v963
  %1387 = vmatprep.subr.bf16.mxu0 %v962
  %1388 = vmatpush2.bf16.msra.mxu0 %v961
  %1389 = vmatprep.subr.bf16.mxu0 %v960
  %1390 = vmatpush2.bf16.msra.mxu0 %v959
  %1391 = vmatprep.subr.bf16.mxu0 %v958
  %1392 = vmatpush2.bf16.msra.mxu0 %v957
  %1393 = vmatprep.subr.bf16.mxu0 %v956
  %1394 = vmatpush2.bf16.msra.mxu0 %v955
  %1395 = vmatprep.subr.bf16.mxu0 %v954
  %1396 = vmatpush2.bf16.msra.mxu0 %v953
  %1397 = vmatprep.subr.bf16.mxu0 %v952
  %1398 = vmatpush2.bf16.msra.mxu0 %v951
  %1399 = vmatprep.subr.bf16.mxu0 %v950
  %1400 = vmatpush2.bf16.msra.mxu0 %v949
  %1401 = vmatprep.mubr.bf16.mxu0 %v259
  %1402 = vmatmul.mubr.bf16.gmra.mxu0 %v258
  %v1403 = vpop.f32.mrf.mxu0
  %v1404 = vadd.f32 0.0, %v1403
  %v1405 = vpop.f32.mrf.mxu0
  %v1406 = vadd.f32 0.0, %v1405
  %v1407 = vpop.f32.mrf.mxu0
  %v1408 = vpop.f32.mrf.mxu0
  %1409 = vdwg.mxu0
  %1410 = vmatprep.subr.bf16.mxu0 %v980
  %1411 = vmatpush1.bf16.msra.mxu0 %v979
  %1412 = vmatprep.subr.bf16.mxu0 %v978
  %1413 = vmatpush1.bf16.msra.mxu0 %v977
  %1414 = vmatprep.subr.bf16.mxu0 %v976
  %1415 = vmatpush1.bf16.msra.mxu0 %v975
  %1416 = vmatprep.subr.bf16.mxu0 %v974
  %1417 = vmatpush1.bf16.msra.mxu0 %v973
  %1418 = vmatprep.subr.bf16.mxu0 %v972
  %1419 = vmatpush1.bf16.msra.mxu0 %v971
  %1420 = vmatprep.subr.bf16.mxu0 %v970
  %1421 = vmatpush1.bf16.msra.mxu0 %v969
  %1422 = vmatprep.subr.bf16.mxu0 %v968
  %1423 = vmatpush1.bf16.msra.mxu0 %v967
  %1424 = vmatprep.subr.bf16.mxu0 %v966
  %1425 = vmatpush1.bf16.msra.mxu0 %v965
  %1426 = vmatprep.subr.bf16.mxu0 %v996
  %1427 = vmatpush2.bf16.msra.mxu0 %v995
  %1428 = vmatprep.subr.bf16.mxu0 %v994
  %1429 = vmatpush2.bf16.msra.mxu0 %v993
  %1430 = vmatprep.subr.bf16.mxu0 %v992
  %1431 = vmatpush2.bf16.msra.mxu0 %v991
  %1432 = vmatprep.subr.bf16.mxu0 %v990
  %1433 = vmatpush2.bf16.msra.mxu0 %v989
  %1434 = vmatprep.subr.bf16.mxu0 %v988
  %1435 = vmatpush2.bf16.msra.mxu0 %v987
  %1436 = vmatprep.subr.bf16.mxu0 %v986
  %1437 = vmatpush2.bf16.msra.mxu0 %v985
  %1438 = vmatprep.subr.bf16.mxu0 %v984
  %1439 = vmatpush2.bf16.msra.mxu0 %v983
  %1440 = vmatprep.subr.bf16.mxu0 %v982
  %1441 = vmatpush2.bf16.msra.mxu0 %v981
  %1442 = vmatprep.mubr.bf16.mxu0 %v261
  %1443 = vmatmul.mubr.bf16.gmra.mxu0 %v260
  %v1444 = vpop.f32.mrf.mxu0
  %v1445 = vadd.f32 %v1404, %v1444
  %v1446 = vpop.f32.mrf.mxu0
  %v1447 = vadd.f32 %v1406, %v1446
  %v1448 = vpop.f32.mrf.mxu0
  %v1449 = vpop.f32.mrf.mxu0
  %1450 = vdwg.mxu0
  %1451 = vmatprep.subr.bf16.mxu0 %v1012
  %1452 = vmatpush1.bf16.msra.mxu0 %v1011
  %1453 = vmatprep.subr.bf16.mxu0 %v1010
  %1454 = vmatpush1.bf16.msra.mxu0 %v1009
  %1455 = vmatprep.subr.bf16.mxu0 %v1008
  %1456 = vmatpush1.bf16.msra.mxu0 %v1007
  %1457 = vmatprep.subr.bf16.mxu0 %v1006
  %1458 = vmatpush1.bf16.msra.mxu0 %v1005
  %1459 = vmatprep.subr.bf16.mxu0 %v1004
  %1460 = vmatpush1.bf16.msra.mxu0 %v1003
  %1461 = vmatprep.subr.bf16.mxu0 %v1002
  %1462 = vmatpush1.bf16.msra.mxu0 %v1001
  %1463 = vmatprep.subr.bf16.mxu0 %v1000
  %1464 = vmatpush1.bf16.msra.mxu0 %v999
  %1465 = vmatprep.subr.bf16.mxu0 %v998
  %1466 = vmatpush1.bf16.msra.mxu0 %v997
  %1467 = vmatprep.subr.bf16.mxu0 %v1028
  %1468 = vmatpush2.bf16.msra.mxu0 %v1027
  %1469 = vmatprep.subr.bf16.mxu0 %v1026
  %1470 = vmatpush2.bf16.msra.mxu0 %v1025
  %1471 = vmatprep.subr.bf16.mxu0 %v1024
  %1472 = vmatpush2.bf16.msra.mxu0 %v1023
  %1473 = vmatprep.subr.bf16.mxu0 %v1022
  %1474 = vmatpush2.bf16.msra.mxu0 %v1021
  %1475 = vmatprep.subr.bf16.mxu0 %v1020
  %1476 = vmatpush2.bf16.msra.mxu0 %v1019
  %1477 = vmatprep.subr.bf16.mxu0 %v1018
  %1478 = vmatpush2.bf16.msra.mxu0 %v1017
  %1479 = vmatprep.subr.bf16.mxu0 %v1016
  %1480 = vmatpush2.bf16.msra.mxu0 %v1015
  %1481 = vmatprep.subr.bf16.mxu0 %v1014
  %1482 = vmatpush2.bf16.msra.mxu0 %v1013
  %1483 = vmatprep.mubr.bf16.mxu0 %v263
  %1484 = vmatmul.mubr.bf16.gmra.mxu0 %v262
  %v1485 = vpop.f32.mrf.mxu0
  %v1486 = vadd.f32 %v1445, %v1485
  %v1487 = vpop.f32.mrf.mxu0
  %v1488 = vadd.f32 %v1447, %v1487
  %v1489 = vpop.f32.mrf.mxu0
  %v1490 = vpop.f32.mrf.mxu0
  %1491 = vdwg.mxu0
  %1492 = vmatprep.subr.bf16.mxu0 %v1044
  %1493 = vmatpush1.bf16.msra.mxu0 %v1043
  %1494 = vmatprep.subr.bf16.mxu0 %v1042
  %1495 = vmatpush1.bf16.msra.mxu0 %v1041
  %1496 = vmatprep.subr.bf16.mxu0 %v1040
  %1497 = vmatpush1.bf16.msra.mxu0 %v1039
  %1498 = vmatprep.subr.bf16.mxu0 %v1038
  %1499 = vmatpush1.bf16.msra.mxu0 %v1037
  %1500 = vmatprep.subr.bf16.mxu0 %v1036
  %1501 = vmatpush1.bf16.msra.mxu0 %v1035
  %1502 = vmatprep.subr.bf16.mxu0 %v1034
  %1503 = vmatpush1.bf16.msra.mxu0 %v1033
  %1504 = vmatprep.subr.bf16.mxu0 %v1032
  %1505 = vmatpush1.bf16.msra.mxu0 %v1031
  %1506 = vmatprep.subr.bf16.mxu0 %v1030
  %1507 = vmatpush1.bf16.msra.mxu0 %v1029
  %1508 = vmatprep.subr.bf16.mxu0 %v1060
  %1509 = vmatpush2.bf16.msra.mxu0 %v1059
  %1510 = vmatprep.subr.bf16.mxu0 %v1058
  %1511 = vmatpush2.bf16.msra.mxu0 %v1057
  %1512 = vmatprep.subr.bf16.mxu0 %v1056
  %1513 = vmatpush2.bf16.msra.mxu0 %v1055
  %1514 = vmatprep.subr.bf16.mxu0 %v1054
  %1515 = vmatpush2.bf16.msra.mxu0 %v1053
  %1516 = vmatprep.subr.bf16.mxu0 %v1052
  %1517 = vmatpush2.bf16.msra.mxu0 %v1051
  %1518 = vmatprep.subr.bf16.mxu0 %v1050
  %1519 = vmatpush2.bf16.msra.mxu0 %v1049
  %1520 = vmatprep.subr.bf16.mxu0 %v1048
  %1521 = vmatpush2.bf16.msra.mxu0 %v1047
  %1522 = vmatprep.subr.bf16.mxu0 %v1046
  %1523 = vmatpush2.bf16.msra.mxu0 %v1045
  %1524 = vmatprep.mubr.bf16.mxu0 %v265
  %1525 = vmatmul.mubr.bf16.gmra.mxu0 %v264
  %v1526 = vpop.f32.mrf.mxu0
  %v1527 = vadd.f32 %v1486, %v1526
  %v1528 = vpop.f32.mrf.mxu0
  %v1529 = vadd.f32 %v1488, %v1528
  %v1530 = vpop.f32.mrf.mxu0
  %v1531 = vpop.f32.mrf.mxu0
  %1532 = vdwg.mxu0
  %1533 = vmatprep.subr.bf16.mxu0 %v1076
  %1534 = vmatpush1.bf16.msra.mxu0 %v1075
  %1535 = vmatprep.subr.bf16.mxu0 %v1074
  %1536 = vmatpush1.bf16.msra.mxu0 %v1073
  %1537 = vmatprep.subr.bf16.mxu0 %v1072
  %1538 = vmatpush1.bf16.msra.mxu0 %v1071
  %1539 = vmatprep.subr.bf16.mxu0 %v1070
  %1540 = vmatpush1.bf16.msra.mxu0 %v1069
  %1541 = vmatprep.subr.bf16.mxu0 %v1068
  %1542 = vmatpush1.bf16.msra.mxu0 %v1067
  %1543 = vmatprep.subr.bf16.mxu0 %v1066
  %1544 = vmatpush1.bf16.msra.mxu0 %v1065
  %1545 = vmatprep.subr.bf16.mxu0 %v1064
  %1546 = vmatpush1.bf16.msra.mxu0 %v1063
  %1547 = vmatprep.subr.bf16.mxu0 %v1062
  %1548 = vmatpush1.bf16.msra.mxu0 %v1061
  %1549 = vmatprep.subr.bf16.mxu0 %v1092
  %1550 = vmatpush2.bf16.msra.mxu0 %v1091
  %1551 = vmatprep.subr.bf16.mxu0 %v1090
  %1552 = vmatpush2.bf16.msra.mxu0 %v1089
  %1553 = vmatprep.subr.bf16.mxu0 %v1088
  %1554 = vmatpush2.bf16.msra.mxu0 %v1087
  %1555 = vmatprep.subr.bf16.mxu0 %v1086
  %1556 = vmatpush2.bf16.msra.mxu0 %v1085
  %1557 = vmatprep.subr.bf16.mxu0 %v1084
  %1558 = vmatpush2.bf16.msra.mxu0 %v1083
  %1559 = vmatprep.subr.bf16.mxu0 %v1082
  %1560 = vmatpush2.bf16.msra.mxu0 %v1081
  %1561 = vmatprep.subr.bf16.mxu0 %v1080
  %1562 = vmatpush2.bf16.msra.mxu0 %v1079
  %1563 = vmatprep.subr.bf16.mxu0 %v1078
  %1564 = vmatpush2.bf16.msra.mxu0 %v1077
  %1565 = vmatprep.mubr.bf16.mxu0 %v267
  %1566 = vmatmul.mubr.bf16.gmra.mxu0 %v266
  %v1567 = vpop.f32.mrf.mxu0
  %v1568 = vadd.f32 %v1527, %v1567
  %v1569 = vpop.f32.mrf.mxu0
  %v1570 = vadd.f32 %v1529, %v1569
  %v1571 = vpop.f32.mrf.mxu0
  %v1572 = vpop.f32.mrf.mxu0
  %1573 = vdwg.mxu0
  %1574 = vmatprep.subr.bf16.mxu0 %v1108
  %1575 = vmatpush1.bf16.msra.mxu0 %v1107
  %1576 = vmatprep.subr.bf16.mxu0 %v1106
  %1577 = vmatpush1.bf16.msra.mxu0 %v1105
  %1578 = vmatprep.subr.bf16.mxu0 %v1104
  %1579 = vmatpush1.bf16.msra.mxu0 %v1103
  %1580 = vmatprep.subr.bf16.mxu0 %v1102
  %1581 = vmatpush1.bf16.msra.mxu0 %v1101
  %1582 = vmatprep.subr.bf16.mxu0 %v1100
  %1583 = vmatpush1.bf16.msra.mxu0 %v1099
  %1584 = vmatprep.subr.bf16.mxu0 %v1098
  %1585 = vmatpush1.bf16.msra.mxu0 %v1097
  %1586 = vmatprep.subr.bf16.mxu0 %v1096
  %1587 = vmatpush1.bf16.msra.mxu0 %v1095
  %1588 = vmatprep.subr.bf16.mxu0 %v1094
  %1589 = vmatpush1.bf16.msra.mxu0 %v1093
  %1590 = vmatprep.subr.bf16.mxu0 %v1124
  %1591 = vmatpush2.bf16.msra.mxu0 %v1123
  %1592 = vmatprep.subr.bf16.mxu0 %v1122
  %1593 = vmatpush2.bf16.msra.mxu0 %v1121
  %1594 = vmatprep.subr.bf16.mxu0 %v1120
  %1595 = vmatpush2.bf16.msra.mxu0 %v1119
  %1596 = vmatprep.subr.bf16.mxu0 %v1118
  %1597 = vmatpush2.bf16.msra.mxu0 %v1117
  %1598 = vmatprep.subr.bf16.mxu0 %v1116
  %1599 = vmatpush2.bf16.msra.mxu0 %v1115
  %1600 = vmatprep.subr.bf16.mxu0 %v1114
  %1601 = vmatpush2.bf16.msra.mxu0 %v1113
  %1602 = vmatprep.subr.bf16.mxu0 %v1112
  %1603 = vmatpush2.bf16.msra.mxu0 %v1111
  %1604 = vmatprep.subr.bf16.mxu0 %v1110
  %1605 = vmatpush2.bf16.msra.mxu0 %v1109
  %1606 = vmatprep.mubr.bf16.mxu0 %v269
  %1607 = vmatmul.mubr.bf16.gmra.mxu0 %v268
  %v1608 = vpop.f32.mrf.mxu0
  %v1609 = vadd.f32 %v1568, %v1608
  %v1610 = vpop.f32.mrf.mxu0
  %v1611 = vadd.f32 %v1570, %v1610
  %v1612 = vpop.f32.mrf.mxu0
  %v1613 = vpop.f32.mrf.mxu0
  %1614 = vdwg.mxu0
  %1615 = vmatprep.subr.bf16.mxu0 %v1140
  %1616 = vmatpush1.bf16.msra.mxu0 %v1139
  %1617 = vmatprep.subr.bf16.mxu0 %v1138
  %1618 = vmatpush1.bf16.msra.mxu0 %v1137
  %1619 = vmatprep.subr.bf16.mxu0 %v1136
  %1620 = vmatpush1.bf16.msra.mxu0 %v1135
  %1621 = vmatprep.subr.bf16.mxu0 %v1134
  %1622 = vmatpush1.bf16.msra.mxu0 %v1133
  %1623 = vmatprep.subr.bf16.mxu0 %v1132
  %1624 = vmatpush1.bf16.msra.mxu0 %v1131
  %1625 = vmatprep.subr.bf16.mxu0 %v1130
  %1626 = vmatpush1.bf16.msra.mxu0 %v1129
  %1627 = vmatprep.subr.bf16.mxu0 %v1128
  %1628 = vmatpush1.bf16.msra.mxu0 %v1127
  %1629 = vmatprep.subr.bf16.mxu0 %v1126
  %1630 = vmatpush1.bf16.msra.mxu0 %v1125
  %1631 = vmatprep.subr.bf16.mxu0 0
  %1632 = vmatpush2.bf16.msra.mxu0 0
  %1633 = vmatprep.subr.bf16.mxu0 0
  %1634 = vmatpush2.bf16.msra.mxu0 0
  %1635 = vmatprep.subr.bf16.mxu0 0
  %1636 = vmatpush2.bf16.msra.mxu0 0
  %1637 = vmatprep.subr.bf16.mxu0 0
  %1638 = vmatpush2.bf16.msra.mxu0 0
  %1639 = vmatprep.subr.bf16.mxu0 %v1148
  %1640 = vmatpush2.bf16.msra.mxu0 %v1147
  %1641 = vmatprep.subr.bf16.mxu0 %v1146
  %1642 = vmatpush2.bf16.msra.mxu0 %v1145
  %1643 = vmatprep.subr.bf16.mxu0 %v1144
  %1644 = vmatpush2.bf16.msra.mxu0 %v1143
  %1645 = vmatprep.subr.bf16.mxu0 %v1142
  %1646 = vmatpush2.bf16.msra.mxu0 %v1141
  %1647 = vmatprep.mubr.bf16.mxu0 %v1367
  %1648 = vmatmul.mubr.bf16.gmra.mxu0 %v270
  %v1649 = vpop.f32.mrf.mxu0
  %v1650 = vadd.f32 %v1609, %v1649
  %v1651 = vpop.f32.mrf.mxu0
  %v1652 = vadd.f32 %v1611, %v1651
  %v1653 = vpop.f32.mrf.mxu0
  %v1654 = vpop.f32.mrf.mxu0
  %1655 = vdwg.mxu0
  %v1656 = vpack.c.bf16 %v1650, %v1650
  %v1657 = vpack.c.bf16 %v1652, %v1652
  %v1660 = vunpack.c.l.b16 %v1656
  %v1661 = vunpack.c.l.b16 %v1657
  %v1662 = vpack.c.b16 %v1661, %v1660
  %vm1664 = vcmask 1043456
  %vm1665 = vcmask 523268
  %vm1666 = vmor %vm1665, %vm1664
  %1667 = vst.msk [vmem:[%s2] sm:$0xff] %vm1666, %v1662
  %v1668 = vrot.slane %v1650, 4
  %v1669 = vadd.f32 %v1650, %v1668
  %v1670 = vrot.slane %v1669, 2
  %v1671 = vadd.f32 %v1669, %v1670
  %v1672 = vrot.slane %v1671, 1
  %v1673 = vadd.f32 %v1671, %v1672
  %v1674 = vsel %vm1365, %v1652, 0.0
  %v1675 = vrot.slane %v1674, 4
  %v1676 = vadd.f32 %v1674, %v1675
  %v1677 = vrot.slane %v1676, 2
  %v1678 = vadd.f32 %v1676, %v1677
  %v1679 = vrot.slane %v1678, 1
  %v1680 = vadd.f32 %v1678, %v1679
  %v1681 = vmul.f32 %v1650, %v1650
  %v1682 = vmul.f32 %v1652, %v1652
  %v1683 = vrot.slane %v1681, 4
  %v1684 = vadd.f32 %v1681, %v1683
  %v1685 = vrot.slane %v1684, 2
  %v1686 = vadd.f32 %v1684, %v1685
  %v1687 = vrot.slane %v1686, 1
  %v1688 = vadd.f32 %v1686, %v1687
  %v1689 = vsel %vm1365, %v1682, 0.0
  %v1690 = vrot.slane %v1689, 4
  %v1691 = vadd.f32 %v1689, %v1690
  %v1692 = vrot.slane %v1691, 2
  %v1693 = vadd.f32 %v1691, %v1692
  %v1694 = vrot.slane %v1693, 1
  %v1695 = vadd.f32 %v1693, %v1694
  %vm1696 = vcmask 1040384
  %v1697 = vsel %vm1696, %v1673, %v1688
  %v1698 = vsel %vm1696, %v1680, %v1695
  %v1701 = vcombine.low %v1697, %v1698
  %v1703 = vunpack.c.l.s4 1983009808
  %v1704 = vunpack.c.0.s8 %v1703
  %v1705 = vlaneseq
  %v1706 = vshrl.u32 %v1705, 7
  %v1707 = vsub.s32 %v1704, %v1706
  %v1708 = vrot.slane %v1701, %v1707
  %vm1710 = vcmask 1041408
  %vm1711 = vcmask 519170
  %vm1712 = vmor %vm1711, %vm1710
  %1713 = vst.msk [vmem:[%s3] sm:$0xf] %vm1712, %v1708
  // Predicated region
  $region10: #{stem_forward.38} parent=0 // pred_check
    _
  $region11: #{stem_forward.38} parent=0 // pred_check_branch
    %1715 = sbr.rel (0) target = $region13
  $region12: #{stem_forward.38} parent=0 // pred_region
    _
  $region13: #{stem_forward.38} parent=0 // pred_fallthru
    _
  // Predicated region
  $region14: #{stem_forward.38} parent=0 // pred_check
    _
  $region15: #{stem_forward.38} parent=0 // pred_check_branch
    %1717 = sbr.rel (0) target = $region17
  $region16: #{stem_forward.38} parent=0 // pred_region
    _
  $region17: #{stem_forward.38} parent=0 // pred_fallthru
    _
  // Predicated region
  $region18: #{stem_forward.38} parent=0 // pred_check
    _
  $region19: #{stem_forward.38} parent=0 // pred_check_branch
    %1719 = sbr.rel (0) target = $region21
  $region20: #{stem_forward.38} parent=0 // pred_region
    _
  $region21: #{stem_forward.38} parent=0 // pred_fallthru
    _
  // Predicated region
  $region22: #{stem_forward.38} parent=0 // pred_check
    _
  $region23: #{stem_forward.38} parent=0 // pred_check_branch
    %1721 = sbr.rel (0) target = $region25
  $region24: #{stem_forward.38} parent=0 // pred_region
    _
  $region25: #{stem_forward.38} parent=0 // pred_fallthru
    _

</llo_original>
